<compile_context>
chip_gen: v5e
topology: v5e:2x2
jax: 0.10.0
libtpu: 0.0.40
codegen_flags: <defaults>
</compile_context>

<pallas_src>
import functools
import numpy as np
import jax
import jax.numpy as jnp
from jax.experimental import pallas as pl
from jax.experimental.pallas import tpu as pltpu

NEG_SLOPE = 0.2      # LeakyReLU(0.2)
RES_RATIO = 0.1      # ResNetBlock res_ratio
CPAD = 16            # channel padding -> bf16 (16,128) sublane alignment


def _round_up(v, m):
    return (v + m - 1) // m * m


# ----------------------------- in-kernel helpers -----------------------------

def _leaky(v):
    return jnp.where(v >= 0.0, v, NEG_SLOPE * v)


def _conv3x3(x, w9, b, wp, np_pad, tap_ref):
    """3x3 'same' conv in (channel-in-sublane, padded-flat-spatial-in-lane) layout.

    x       : (Cin_pad, np_pad) f32, zero at every padding/tail lane
    w9      : (Cout_pad, 9*Cin_pad) bf16, tap-major / channel-minor column order
    b       : (Cout_pad, 1) f32
    tap_ref : bf16 VMEM scratch, rows >= 9*Cin_pad, lanes >= np_pad
    Returns (Cout_pad, np_pad) f32 (NOT yet masked / activated).
    """
    cin_pad = x.shape[0]
    for ky in range(3):
        for kx in range(3):
            t = ky * 3 + kx
            off = (ky - 1) * wp + (kx - 1)          # want shifted[j] = x[j + off]
            tap = x if off == 0 else pltpu.roll(x, (-off) % np_pad, axis=1)
            # stream each tap into the reusable bf16 scratch; only one f32 tap live
            tap_ref[pl.ds(t * cin_pad, cin_pad), pl.ds(0, np_pad)] = \
                tap.astype(jnp.bfloat16)
    x9 = tap_ref[pl.ds(0, 9 * cin_pad), pl.ds(0, np_pad)]
    return jnp.dot(w9, x9, preferred_element_type=jnp.float32) + b


def make_kernel(meta, treedef, n_params):
    stages = meta['stages']
    blocks = meta['blocks']

    def kernel(*refs):
        xy_ref = refs[0]
        param_refs = list(refs[1:1 + n_params])
        out_ref = refs[1 + n_params]
        tap_ref = refs[2 + n_params]                # bf16 VMEM scratch
        p = jax.tree_util.tree_unflatten(treedef, param_refs)

        st = 0
        wp = stages[st]['wp']
        np_pad = stages[st]['np_pad']
        mask = p['masks'][st][...]                  # (1, np_pad)

        # fused conv_img + conv_label (block-diagonal weights) + LeakyReLU
        act = _leaky(_conv3x3(xy_ref[...], p['conv_in']['w'][...],
                              p['conv_in']['b'][...], wp, np_pad, tap_ref)) * mask

        for bi, blk in enumerate(blocks):
            bp = p['blocks'][bi]
            if blk['pool']:
                # AvgPool2d(3, 2, 1): one bf16 matmul with a constant
                # (box-average + stride-2 downsample + re-pad) matrix.
                act = jnp.dot(act.astype(jnp.bfloat16), p['pools'][st][...],
                              preferred_element_type=jnp.float32)
                st += 1
                wp = stages[st]['wp']
                np_pad = stages[st]['np_pad']
                mask = p['masks'][st][...]
            # shortcut consumes the UN-modified block input (matches PyTorch ref)
            if blk['learned_shortcut']:
                xs = jnp.dot(bp['ws'][...], act.astype(jnp.bfloat16),
                             preferred_element_type=jnp.float32)
            else:
                xs = act
            h = _leaky(_conv3x3(act, bp['w0'][...], bp['b0'][...],
                                wp, np_pad, tap_ref)) * mask
            d = _conv3x3(h, bp['w1'][...], bp['b1'][...], wp, np_pad, tap_ref)
            act = _leaky(xs + RES_RATIO * d) * mask

        # fc (PyTorch NCHW .view flatten order baked into w_map), fused epilogue:
        # (act * w_map) @ sel -> (C_pad, B), then tiny sublane sum + bias + sigmoid.
        prod = (act * p['fc']['w_map'][...]).astype(jnp.bfloat16)   # (C_pad, np_pad)
        zc = jnp.dot(prod, p['fc']['sel'][...],
                     preferred_element_type=jnp.float32)            # (C_pad, B)
        z = jnp.sum(zc, axis=0, keepdims=True) + p['fc']['b'][...]  # (1, B)
        e = jnp.exp(-jnp.abs(z))                                    # stable sigmoid
        out_ref[...] = jnp.where(z >= 0.0, 1.0 / (1.0 + e), e / (1.0 + e))

    return kernel


# ----------------------------- constant builders (host-side numpy) -----------------------------

def build_mask(batch, h, w, np_pad):
    hp, wp = h + 2, w + 2
    m = np.zeros((1, np_pad), np.float32)
    for b in range(batch):
        for i in range(h):
            for j in range(w):
                m[0, b * hp * wp + (i + 1) * wp + (j + 1)] = 1.0
    return jnp.asarray(m)


def build_pool_matrix(batch, h, w, np_in_pad, np_out_pad):
    """AvgPool2d(3, stride=2, padding=1), count_include_pad=True (PyTorch default),
    as a linear map between padded-flattened spatial layouts (incl. output re-pad)."""
    hp, wp = h + 2, w + 2
    ho = (h + 2 - 3) // 2 + 1
    wo = (w + 2 - 3) // 2 + 1
    hop, wop = ho + 2, wo + 2
    P = np.zeros((np_in_pad, np_out_pad), np.float32)
    for b in range(batch):
        for oy in range(ho):
            for ox in range(wo):
                j = b * hop * wop + (oy + 1) * wop + (ox + 1)
                for dy in range(3):
                    for dx in range(3):
                        iy = 2 * oy - 1 + dy
                        ix = 2 * ox - 1 + dx
                        if 0 <= iy < h and 0 <= ix < w:
                            i = b * hp * wp + (iy + 1) * wp + (ix + 1)
                            P[i, j] += 1.0 / 9.0
    return jnp.asarray(P, dtype=jnp.bfloat16)      # bf16 pool constant (perf review)


# ----------------------------- parameter / model construction -----------------------------

def build_model(key, input_nc, nf, nf_max, img_size, num_classes, batch):
    s0 = 4
    nlayers = int(np.log2(img_size / s0))
    nf0_final = min(nf_max, nf * 2 ** nlayers)

    # static geometry per resolution stage
    stages = []
    r = img_size
    for _ in range(nlayers + 1):
        hp, wp = r + 2, r + 2
        n = batch * hp * wp
        stages.append(dict(h=r, w=r, hp=hp, wp=wp, n=n, np_pad=_round_up(n, 128)))
        r //= 2

    nf0 = min(nf, nf_max)
    nf1 = min(nf * 2, nf_max)
    block_defs = [(nf0, nf0, False), (nf0, nf1, False)]
    for i in range(1, nlayers + 1):
        block_defs.append((min(nf * 2 ** i, nf_max), min(nf * 2 ** (i + 1), nf_max), True))

    keys = iter(jax.random.split(key, 4 * len(block_defs) + 8))
    cpad = lambda c: _round_up(c, CPAD)

    def conv_init(cout, cin, k):
        kw, kb = jax.random.split(next(keys))
        bound = 1.0 / np.sqrt(cin * k * k)
        wgt = np.asarray(jax.random.uniform(kw, (cout, cin, k, k), jnp.float32, -bound, bound))
        bias = np.asarray(jax.random.uniform(kb, (cout,), jnp.float32, -bound, bound))
        return wgt, bias

    def to_w9(wgt, cout_pad, cin_pad):
        cout, cin = wgt.shape[:2]
        wfull = np.zeros((cout_pad, cin_pad, 3, 3), np.float32)
        wfull[:cout, :cin] = wgt
        w9 = np.transpose(wfull, (0, 2, 3, 1)).reshape(cout_pad, 9 * cin_pad)
        return jnp.asarray(w9, jnp.bfloat16)

    def to_bias(bias, cout_pad):
        bfull = np.zeros((cout_pad, 1), np.float32)
        bfull[:bias.shape[0], 0] = bias
        return jnp.asarray(bfull)

    params = {}

    # merged conv_img / conv_label: block-diagonal over input channels
    nfh = nf // 2
    wi, b_img = conv_init(nfh, input_nc, 3)
    wl, b_lbl = conv_init(nfh, num_classes, 3)
    cin_tot = input_nc + num_classes
    w_in = np.zeros((2 * nfh, cin_tot, 3, 3), np.float32)
    w_in[:nfh, :input_nc] = wi
    w_in[nfh:, input_nc:] = wl
    params['conv_in'] = dict(w=to_w9(w_in, cpad(2 * nfh), cpad(cin_tot)),
                             b=to_bias(np.concatenate([b_img, b_lbl], 0), cpad(2 * nfh)))

    # ResNet blocks
    blocks_meta, blocks_params = [], []
    max_cin_pad = cpad(cin_tot)
    for (cin, cout, pooled) in block_defs:
        hidden = min(cin, cout)
        max_cin_pad = max(max_cin_pad, cpad(cin), cpad(hidden))
        bp = {}
        w0, b0 = conv_init(hidden, cin, 3)
        w1, b1 = conv_init(cout, hidden, 3)
        bp['w0'] = to_w9(w0, cpad(hidden), cpad(cin))
        bp['b0'] = to_bias(b0, cpad(hidden))
        bp['w1'] = to_w9(w1, cpad(cout), cpad(hidden))
        bp['b1'] = to_bias(b1, cpad(cout))
        learned = cin != cout
        if learned:  # 1x1 conv, no bias (bn=False)
            ws, _ = conv_init(cout, cin, 1)
            ws_m = np.zeros((cpad(cout), cpad(cin)), np.float32)
            ws_m[:cout, :cin] = ws[:, :, 0, 0]
            bp['ws'] = jnp.asarray(ws_m, jnp.bfloat16)
        blocks_params.append(bp)
        blocks_meta.append(dict(pool=pooled, learned_shortcut=learned))
    params['blocks'] = blocks_params

    # padding masks and pool matrices (constants, VMEM-resident with the weights)
    params['masks'] = [build_mask(batch, s['h'], s['w'], s['np_pad']) for s in stages]
    params['pools'] = [build_pool_matrix(batch, stages[i]['h'], stages[i]['w'],
                                         stages[i]['np_pad'], stages[i + 1]['np_pad'])
                       for i in range(len(stages) - 1)]

    # fc + sigmoid; PyTorch flatten order (B, C*s0*s0) baked into a weight map
    fc_in = nf0_final * s0 * s0
    kw, kb = jax.random.split(next(keys))
    bound = 1.0 / np.sqrt(fc_in)
    fc_w = np.asarray(jax.random.uniform(kw, (1, fc_in), jnp.float32, -bound, bound))
    fc_b = float(jax.random.uniform(kb, (), jnp.float32, -bound, bound))
    s_last = stages[-1]
    hp3, wp3 = s_last['hp'], s_last['wp']
    w_map = np.zeros((cpad(nf0_final), s_last['np_pad']), np.float32)
    sel = np.zeros((s_last['np_pad'], batch), np.float32)
    for b in range(batch):
        sel[b * hp3 * wp3:(b + 1) * hp3 * wp3, b] = 1.0
        for c in range(nf0_final):
            for i in range(s0):
                for j in range(s0):
                    w_map[c, b * hp3 * wp3 + (i + 1) * wp3 + (j + 1)] = \
                        fc_w[0, c * s0 * s0 + i * s0 + j]
    params['fc'] = dict(w_map=jnp.asarray(w_map),
                        sel=jnp.asarray(sel, dtype=jnp.bfloat16),
                        b=jnp.full((1, batch), fc_b, jnp.float32))

    flat, treedef = jax.tree_util.tree_flatten(params)
    meta = dict(stages=stages, blocks=blocks_meta, cin_pad=cpad(cin_tot), batch=batch,
                tap_shape=(9 * max_cin_pad, stages[0]['np_pad']))
    return dict(flat=flat, treedef=treedef, meta=meta)


# ----------------------------- forward -----------------------------

def discriminator_forward(model, x_nchw, y_nchw):
    meta = model['meta']
    batch = x_nchw.shape[0]
    np_pad0 = meta['stages'][0]['np_pad']

    # one-time input packing into (channel-in-sublane, padded-flat-spatial-in-lane)
    xy = jnp.concatenate([x_nchw, y_nchw], axis=1)            # (B, Cx+Cy, H, W)
    xy = jnp.transpose(xy, (1, 0, 2, 3))                       # (C, B, H, W)
    xy = jnp.pad(xy, ((0, meta['cin_pad'] - xy.shape[0]), (0, 0), (1, 1), (1, 1)))
    xy = xy.reshape(meta['cin_pad'], -1)
    xy = jnp.pad(xy, ((0, 0), (0, np_pad0 - xy.shape[1])))

    n_params = len(model['flat'])
    kernel = make_kernel(meta, model['treedef'], n_params)
    out = pl.pallas_call(
        kernel,
        out_shape=jax.ShapeDtypeStruct((1, batch), jnp.float32),
        scratch_shapes=[pltpu.VMEM(meta['tap_shape'], jnp.bfloat16)],
        compiler_params=pltpu.CompilerParams(vmem_limit_bytes=32 * 1024 * 1024),
    )(xy, *model['flat'])
    return out.reshape(batch, 1)


# ----------------------------- main -----------------------------

if __name__ == "__main__":
    INPUT_NC, NF, NF_MAX, IMG, NUM_CLASSES = 3, 8, 32, 16, 4
    BATCH = 2

    key = jax.random.PRNGKey(0)
    kp, kx, ky = jax.random.split(key, 3)
    model = build_model(kp, INPUT_NC, NF, NF_MAX, IMG, NUM_CLASSES, BATCH)

    x = jax.random.normal(kx, (BATCH, INPUT_NC, IMG, IMG), jnp.float32)
    labels = jax.random.randint(ky, (BATCH,), 0, NUM_CLASSES)
    y = jax.nn.one_hot(labels, NUM_CLASSES, dtype=jnp.float32)
    y = jnp.broadcast_to(y[:, :, None, None], (BATCH, NUM_CLASSES, IMG, IMG))

    fwd = jax.jit(functools.partial(discriminator_forward, model))
    out = jax.block_until_ready(fwd(x, y))

    assert out.shape == (BATCH, 1), out.shape
    assert bool(jnp.all(jnp.isfinite(out)))
    assert bool(jnp.all((out >= 0.0) & (out <= 1.0)))
    print("KERNEL_OK")
</pallas_src>

<mosaic_0001>
module attributes {stable_mosaic.version = 11 : i64} {
  func.func @kernel(%arg0: memref<16x768xf32, #tpu.memory_space<vmem>>, %arg1: memref<16x1xf32, #tpu.memory_space<vmem>>, %arg2: memref<16x1xf32, #tpu.memory_space<vmem>>, %arg3: memref<16x144xbf16, #tpu.memory_space<vmem>>, %arg4: memref<16x144xbf16, #tpu.memory_space<vmem>>, %arg5: memref<16x1xf32, #tpu.memory_space<vmem>>, %arg6: memref<16x1xf32, #tpu.memory_space<vmem>>, %arg7: memref<16x144xbf16, #tpu.memory_space<vmem>>, %arg8: memref<16x144xbf16, #tpu.memory_space<vmem>>, %arg9: memref<16x16xbf16, #tpu.memory_space<vmem>>, %arg10: memref<16x1xf32, #tpu.memory_space<vmem>>, %arg11: memref<32x1xf32, #tpu.memory_space<vmem>>, %arg12: memref<16x144xbf16, #tpu.memory_space<vmem>>, %arg13: memref<32x144xbf16, #tpu.memory_space<vmem>>, %arg14: memref<32x16xbf16, #tpu.memory_space<vmem>>, %arg15: memref<32x1xf32, #tpu.memory_space<vmem>>, %arg16: memref<32x1xf32, #tpu.memory_space<vmem>>, %arg17: memref<32x288xbf16, #tpu.memory_space<vmem>>, %arg18: memref<32x288xbf16, #tpu.memory_space<vmem>>, %arg19: memref<16x1xf32, #tpu.memory_space<vmem>>, %arg20: memref<16x144xbf16, #tpu.memory_space<vmem>>, %arg21: memref<1x2xf32, #tpu.memory_space<vmem>>, %arg22: memref<128x2xbf16, #tpu.memory_space<vmem>>, %arg23: memref<32x128xf32, #tpu.memory_space<vmem>>, %arg24: memref<1x768xf32, #tpu.memory_space<vmem>>, %arg25: memref<1x256xf32, #tpu.memory_space<vmem>>, %arg26: memref<1x128xf32, #tpu.memory_space<vmem>>, %arg27: memref<768x256xbf16, #tpu.memory_space<vmem>>, %arg28: memref<256x128xbf16, #tpu.memory_space<vmem>>, %arg29: memref<1x2xf32, #tpu.memory_space<vmem>>, %arg30: memref<288x768xbf16, #tpu.memory_space<vmem>>) attributes {dimension_semantics = [], scalar_prefetch = 0 : i64, scratch_operands = 1 : i64, tpu.core_type = #tpu.core_type<tc>} {
    %c0 = arith.constant 0 : index
    %c0_0 = arith.constant 0 : index
    %0 = vector.load %arg24[%c0, %c0_0] : memref<1x768xf32, #tpu.memory_space<vmem>>, vector<1x768xf32>
    %c0_1 = arith.constant 0 : index
    %c0_2 = arith.constant 0 : index
    %1 = vector.load %arg0[%c0_1, %c0_2] : memref<16x768xf32, #tpu.memory_space<vmem>>, vector<16x768xf32>
    %c0_3 = arith.constant 0 : index
    %c0_4 = arith.constant 0 : index
    %2 = vector.load %arg20[%c0_3, %c0_4] : memref<16x144xbf16, #tpu.memory_space<vmem>>, vector<16x144xbf16>
    %c0_5 = arith.constant 0 : index
    %c0_6 = arith.constant 0 : index
    %3 = vector.load %arg19[%c0_5, %c0_6] : memref<16x1xf32, #tpu.memory_space<vmem>>, vector<16x1xf32>
    %c19_i32 = arith.constant 19 : i32
    %4 = tpu.dynamic_rotate %1 by %c19_i32 dim 1 : vector<16x768xf32>, i32 -> vector<16x768xf32>
    %5 = arith.truncf %4 : vector<16x768xf32> to vector<16x768xbf16>
    %c0_7 = arith.constant 0 : index
    %c0_8 = arith.constant 0 : index
    %6 = vector.load %arg30[%c0_7, %c0_8] : memref<288x768xbf16, #tpu.memory_space<vmem>>, vector<16x768xbf16>
    tpu.vector_store %arg30[%c0_7, %c0_8], %5 {strides = array<i32>} : memref<288x768xbf16, #tpu.memory_space<vmem>>, vector<16x768xbf16>,
    %c18_i32 = arith.constant 18 : i32
    %7 = tpu.dynamic_rotate %1 by %c18_i32 dim 1 : vector<16x768xf32>, i32 -> vector<16x768xf32>
    %8 = arith.truncf %7 : vector<16x768xf32> to vector<16x768xbf16>
    %c16 = arith.constant 16 : index
    %c0_9 = arith.constant 0 : index
    %9 = vector.load %arg30[%c16, %c0_9] : memref<288x768xbf16, #tpu.memory_space<vmem>>, vector<16x768xbf16>
    tpu.vector_store %arg30[%c16, %c0_9], %8 {strides = array<i32>} : memref<288x768xbf16, #tpu.memory_space<vmem>>, vector<16x768xbf16>,
    %c17_i32 = arith.constant 17 : i32
    %10 = tpu.dynamic_rotate %1 by %c17_i32 dim 1 : vector<16x768xf32>, i32 -> vector<16x768xf32>
    %11 = arith.truncf %10 : vector<16x768xf32> to vector<16x768xbf16>
    %c32 = arith.constant 32 : index
    %c0_10 = arith.constant 0 : index
    %12 = vector.load %arg30[%c32, %c0_10] : memref<288x768xbf16, #tpu.memory_space<vmem>>, vector<16x768xbf16>
    tpu.vector_store %arg30[%c32, %c0_10], %11 {strides = array<i32>} : memref<288x768xbf16, #tpu.memory_space<vmem>>, vector<16x768xbf16>,
    %c1_i32 = arith.constant 1 : i32
    %13 = tpu.dynamic_rotate %1 by %c1_i32 dim 1 : vector<16x768xf32>, i32 -> vector<16x768xf32>
    %14 = arith.truncf %13 : vector<16x768xf32> to vector<16x768xbf16>
    %c48 = arith.constant 48 : index
    %c0_11 = arith.constant 0 : index
    %15 = vector.load %arg30[%c48, %c0_11] : memref<288x768xbf16, #tpu.memory_space<vmem>>, vector<16x768xbf16>
    tpu.vector_store %arg30[%c48, %c0_11], %14 {strides = array<i32>} : memref<288x768xbf16, #tpu.memory_space<vmem>>, vector<16x768xbf16>,
    %16 = arith.truncf %1 : vector<16x768xf32> to vector<16x768xbf16>
    %c64 = arith.constant 64 : index
    %c0_12 = arith.constant 0 : index
    %17 = vector.load %arg30[%c64, %c0_12] : memref<288x768xbf16, #tpu.memory_space<vmem>>, vector<16x768xbf16>
    tpu.vector_store %arg30[%c64, %c0_12], %16 {strides = array<i32>} : memref<288x768xbf16, #tpu.memory_space<vmem>>, vector<16x768xbf16>,
    %c767_i32 = arith.constant 767 : i32
    %18 = tpu.dynamic_rotate %1 by %c767_i32 dim 1 : vector<16x768xf32>, i32 -> vector<16x768xf32>
    %19 = arith.truncf %18 : vector<16x768xf32> to vector<16x768xbf16>
    %c80 = arith.constant 80 : index
    %c0_13 = arith.constant 0 : index
    %20 = vector.load %arg30[%c80, %c0_13] : memref<288x768xbf16, #tpu.memory_space<vmem>>, vector<16x768xbf16>
    tpu.vector_store %arg30[%c80, %c0_13], %19 {strides = array<i32>} : memref<288x768xbf16, #tpu.memory_space<vmem>>, vector<16x768xbf16>,
    %c751_i32 = arith.constant 751 : i32
    %21 = tpu.dynamic_rotate %1 by %c751_i32 dim 1 : vector<16x768xf32>, i32 -> vector<16x768xf32>
    %22 = arith.truncf %21 : vector<16x768xf32> to vector<16x768xbf16>
    %c96 = arith.constant 96 : index
    %c0_14 = arith.constant 0 : index
    %23 = vector.load %arg30[%c96, %c0_14] : memref<288x768xbf16, #tpu.memory_space<vmem>>, vector<16x768xbf16>
    tpu.vector_store %arg30[%c96, %c0_14], %22 {strides = array<i32>} : memref<288x768xbf16, #tpu.memory_space<vmem>>, vector<16x768xbf16>,
    %c750_i32 = arith.constant 750 : i32
    %24 = tpu.dynamic_rotate %1 by %c750_i32 dim 1 : vector<16x768xf32>, i32 -> vector<16x768xf32>
    %25 = arith.truncf %24 : vector<16x768xf32> to vector<16x768xbf16>
    %c112 = arith.constant 112 : index
    %c0_15 = arith.constant 0 : index
    %26 = vector.load %arg30[%c112, %c0_15] : memref<288x768xbf16, #tpu.memory_space<vmem>>, vector<16x768xbf16>
    tpu.vector_store %arg30[%c112, %c0_15], %25 {strides = array<i32>} : memref<288x768xbf16, #tpu.memory_space<vmem>>, vector<16x768xbf16>,
    %c749_i32 = arith.constant 749 : i32
    %27 = tpu.dynamic_rotate %1 by %c749_i32 dim 1 : vector<16x768xf32>, i32 -> vector<16x768xf32>
    %28 = arith.truncf %27 : vector<16x768xf32> to vector<16x768xbf16>
    %c128 = arith.constant 128 : index
    %c0_16 = arith.constant 0 : index
    %29 = vector.load %arg30[%c128, %c0_16] : memref<288x768xbf16, #tpu.memory_space<vmem>>, vector<16x768xbf16>
    tpu.vector_store %arg30[%c128, %c0_16], %28 {strides = array<i32>} : memref<288x768xbf16, #tpu.memory_space<vmem>>, vector<16x768xbf16>,
    %c0_17 = arith.constant 0 : index
    %c0_18 = arith.constant 0 : index
    %30 = vector.load %arg30[%c0_17, %c0_18] : memref<288x768xbf16, #tpu.memory_space<vmem>>, vector<144x768xbf16>
    %cst = arith.constant dense<0.000000e+00> : vector<16x768xf32>
    %31 = tpu.matmul %2, %30, %cst {dimension_numbers = #tpu.dot_dimension_numbers<[1], [0], [0], [1], [0, 0, 1, 1], [], []>} : vector<16x144xbf16>, vector<144x768xbf16>, vector<16x768xf32> -> vector<16x768xf32>
    %32 = vector.broadcast %3 : vector<16x1xf32> to vector<16x768xf32>
    %33 = arith.addf %31, %32 : vector<16x768xf32>
    %cst_19 = arith.constant 0.000000e+00 : f32
    %34 = vector.broadcast %cst_19 : f32 to vector<16x768xf32>
    %35 = arith.cmpf oge, %33, %34 : vector<16x768xf32>
    %cst_20 = arith.constant 2.000000e-01 : f32
    %36 = vector.broadcast %cst_20 : f32 to vector<16x768xf32>
    %37 = arith.mulf %36, %33 : vector<16x768xf32>
    %38 = arith.select %35, %33, %37 : vector<16x768xi1>, vector<16x768xf32>
    %39 = vector.broadcast %0 : vector<1x768xf32> to vector<16x768xf32>
    %40 = arith.mulf %38, %39 : vector<16x768xf32>
    %c0_21 = arith.constant 0 : index
    %c0_22 = arith.constant 0 : index
    %41 = vector.load %arg3[%c0_21, %c0_22] : memref<16x144xbf16, #tpu.memory_space<vmem>>, vector<16x144xbf16>
    %c0_23 = arith.constant 0 : index
    %c0_24 = arith.constant 0 : index
    %42 = vector.load %arg1[%c0_23, %c0_24] : memref<16x1xf32, #tpu.memory_space<vmem>>, vector<16x1xf32>
    %c19_i32_25 = arith.constant 19 : i32
    %43 = tpu.dynamic_rotate %40 by %c19_i32_25 dim 1 : vector<16x768xf32>, i32 -> vector<16x768xf32>
    %44 = arith.truncf %43 : vector<16x768xf32> to vector<16x768xbf16>
    %c0_26 = arith.constant 0 : index
    %c0_27 = arith.constant 0 : index
    %45 = vector.load %arg30[%c0_26, %c0_27] : memref<288x768xbf16, #tpu.memory_space<vmem>>, vector<16x768xbf16>
    tpu.vector_store %arg30[%c0_26, %c0_27], %44 {strides = array<i32>} : memref<288x768xbf16, #tpu.memory_space<vmem>>, vector<16x768xbf16>,
    %c18_i32_28 = arith.constant 18 : i32
    %46 = tpu.dynamic_rotate %40 by %c18_i32_28 dim 1 : vector<16x768xf32>, i32 -> vector<16x768xf32>
    %47 = arith.truncf %46 : vector<16x768xf32> to vector<16x768xbf16>
    %c16_29 = arith.constant 16 : index
    %c0_30 = arith.constant 0 : index
    %48 = vector.load %arg30[%c16_29, %c0_30] : memref<288x768xbf16, #tpu.memory_space<vmem>>, vector<16x768xbf16>
    tpu.vector_store %arg30[%c16_29, %c0_30], %47 {strides = array<i32>} : memref<288x768xbf16, #tpu.memory_space<vmem>>, vector<16x768xbf16>,
    %c17_i32_31 = arith.constant 17 : i32
    %49 = tpu.dynamic_rotate %40 by %c17_i32_31 dim 1 : vector<16x768xf32>, i32 -> vector<16x768xf32>
    %50 = arith.truncf %49 : vector<16x768xf32> to vector<16x768xbf16>
    %c32_32 = arith.constant 32 : index
    %c0_33 = arith.constant 0 : index
    %51 = vector.load %arg30[%c32_32, %c0_33] : memref<288x768xbf16, #tpu.memory_space<vmem>>, vector<16x768xbf16>
    tpu.vector_store %arg30[%c32_32, %c0_33], %50 {strides = array<i32>} : memref<288x768xbf16, #tpu.memory_space<vmem>>, vector<16x768xbf16>,
    %c1_i32_34 = arith.constant 1 : i32
    %52 = tpu.dynamic_rotate %40 by %c1_i32_34 dim 1 : vector<16x768xf32>, i32 -> vector<16x768xf32>
    %53 = arith.truncf %52 : vector<16x768xf32> to vector<16x768xbf16>
    %c48_35 = arith.constant 48 : index
    %c0_36 = arith.constant 0 : index
    %54 = vector.load %arg30[%c48_35, %c0_36] : memref<288x768xbf16, #tpu.memory_space<vmem>>, vector<16x768xbf16>
    tpu.vector_store %arg30[%c48_35, %c0_36], %53 {strides = array<i32>} : memref<288x768xbf16, #tpu.memory_space<vmem>>, vector<16x768xbf16>,
    %55 = arith.truncf %40 : vector<16x768xf32> to vector<16x768xbf16>
    %c64_37 = arith.constant 64 : index
    %c0_38 = arith.constant 0 : index
    %56 = vector.load %arg30[%c64_37, %c0_38] : memref<288x768xbf16, #tpu.memory_space<vmem>>, vector<16x768xbf16>
    tpu.vector_store %arg30[%c64_37, %c0_38], %55 {strides = array<i32>} : memref<288x768xbf16, #tpu.memory_space<vmem>>, vector<16x768xbf16>,
    %c767_i32_39 = arith.constant 767 : i32
    %57 = tpu.dynamic_rotate %40 by %c767_i32_39 dim 1 : vector<16x768xf32>, i32 -> vector<16x768xf32>
    %58 = arith.truncf %57 : vector<16x768xf32> to vector<16x768xbf16>
    %c80_40 = arith.constant 80 : index
    %c0_41 = arith.constant 0 : index
    %59 = vector.load %arg30[%c80_40, %c0_41] : memref<288x768xbf16, #tpu.memory_space<vmem>>, vector<16x768xbf16>
    tpu.vector_store %arg30[%c80_40, %c0_41], %58 {strides = array<i32>} : memref<288x768xbf16, #tpu.memory_space<vmem>>, vector<16x768xbf16>,
    %c751_i32_42 = arith.constant 751 : i32
    %60 = tpu.dynamic_rotate %40 by %c751_i32_42 dim 1 : vector<16x768xf32>, i32 -> vector<16x768xf32>
    %61 = arith.truncf %60 : vector<16x768xf32> to vector<16x768xbf16>
    %c96_43 = arith.constant 96 : index
    %c0_44 = arith.constant 0 : index
    %62 = vector.load %arg30[%c96_43, %c0_44] : memref<288x768xbf16, #tpu.memory_space<vmem>>, vector<16x768xbf16>
    tpu.vector_store %arg30[%c96_43, %c0_44], %61 {strides = array<i32>} : memref<288x768xbf16, #tpu.memory_space<vmem>>, vector<16x768xbf16>,
    %c750_i32_45 = arith.constant 750 : i32
    %63 = tpu.dynamic_rotate %40 by %c750_i32_45 dim 1 : vector<16x768xf32>, i32 -> vector<16x768xf32>
    %64 = arith.truncf %63 : vector<16x768xf32> to vector<16x768xbf16>
    %c112_46 = arith.constant 112 : index
    %c0_47 = arith.constant 0 : index
    %65 = vector.load %arg30[%c112_46, %c0_47] : memref<288x768xbf16, #tpu.memory_space<vmem>>, vector<16x768xbf16>
    tpu.vector_store %arg30[%c112_46, %c0_47], %64 {strides = array<i32>} : memref<288x768xbf16, #tpu.memory_space<vmem>>, vector<16x768xbf16>,
    %c749_i32_48 = arith.constant 749 : i32
    %66 = tpu.dynamic_rotate %40 by %c749_i32_48 dim 1 : vector<16x768xf32>, i32 -> vector<16x768xf32>
    %67 = arith.truncf %66 : vector<16x768xf32> to vector<16x768xbf16>
    %c128_49 = arith.constant 128 : index
    %c0_50 = arith.constant 0 : index
    %68 = vector.load %arg30[%c128_49, %c0_50] : memref<288x768xbf16, #tpu.memory_space<vmem>>, vector<16x768xbf16>
    tpu.vector_store %arg30[%c128_49, %c0_50], %67 {strides = array<i32>} : memref<288x768xbf16, #tpu.memory_space<vmem>>, vector<16x768xbf16>,
    %c0_51 = arith.constant 0 : index
    %c0_52 = arith.constant 0 : index
    %69 = vector.load %arg30[%c0_51, %c0_52] : memref<288x768xbf16, #tpu.memory_space<vmem>>, vector<144x768xbf16>
    %cst_53 = arith.constant dense<0.000000e+00> : vector<16x768xf32>
    %70 = tpu.matmul %41, %69, %cst_53 {dimension_numbers = #tpu.dot_dimension_numbers<[1], [0], [0], [1], [0, 0, 1, 1], [], []>} : vector<16x144xbf16>, vector<144x768xbf16>, vector<16x768xf32> -> vector<16x768xf32>
    %71 = vector.broadcast %42 : vector<16x1xf32> to vector<16x768xf32>
    %72 = arith.addf %70, %71 : vector<16x768xf32>
    %cst_54 = arith.constant 0.000000e+00 : f32
    %73 = vector.broadcast %cst_54 : f32 to vector<16x768xf32>
    %74 = arith.cmpf oge, %72, %73 : vector<16x768xf32>
    %cst_55 = arith.constant 2.000000e-01 : f32
    %75 = vector.broadcast %cst_55 : f32 to vector<16x768xf32>
    %76 = arith.mulf %75, %72 : vector<16x768xf32>
    %77 = arith.select %74, %72, %76 : vector<16x768xi1>, vector<16x768xf32>
    %78 = vector.broadcast %0 : vector<1x768xf32> to vector<16x768xf32>
    %79 = arith.mulf %77, %78 : vector<16x768xf32>
    %c0_56 = arith.constant 0 : index
    %c0_57 = arith.constant 0 : index
    %80 = vector.load %arg4[%c0_56, %c0_57] : memref<16x144xbf16, #tpu.memory_space<vmem>>, vector<16x144xbf16>
    %c0_58 = arith.constant 0 : index
    %c0_59 = arith.constant 0 : index
    %81 = vector.load %arg2[%c0_58, %c0_59] : memref<16x1xf32, #tpu.memory_space<vmem>>, vector<16x1xf32>
    %c19_i32_60 = arith.constant 19 : i32
    %82 = tpu.dynamic_rotate %79 by %c19_i32_60 dim 1 : vector<16x768xf32>, i32 -> vector<16x768xf32>
    %83 = arith.truncf %82 : vector<16x768xf32> to vector<16x768xbf16>
    %c0_61 = arith.constant 0 : index
    %c0_62 = arith.constant 0 : index
    %84 = vector.load %arg30[%c0_61, %c0_62] : memref<288x768xbf16, #tpu.memory_space<vmem>>, vector<16x768xbf16>
    tpu.vector_store %arg30[%c0_61, %c0_62], %83 {strides = array<i32>} : memref<288x768xbf16, #tpu.memory_space<vmem>>, vector<16x768xbf16>,
    %c18_i32_63 = arith.constant 18 : i32
    %85 = tpu.dynamic_rotate %79 by %c18_i32_63 dim 1 : vector<16x768xf32>, i32 -> vector<16x768xf32>
    %86 = arith.truncf %85 : vector<16x768xf32> to vector<16x768xbf16>
    %c16_64 = arith.constant 16 : index
    %c0_65 = arith.constant 0 : index
    %87 = vector.load %arg30[%c16_64, %c0_65] : memref<288x768xbf16, #tpu.memory_space<vmem>>, vector<16x768xbf16>
    tpu.vector_store %arg30[%c16_64, %c0_65], %86 {strides = array<i32>} : memref<288x768xbf16, #tpu.memory_space<vmem>>, vector<16x768xbf16>,
    %c17_i32_66 = arith.constant 17 : i32
    %88 = tpu.dynamic_rotate %79 by %c17_i32_66 dim 1 : vector<16x768xf32>, i32 -> vector<16x768xf32>
    %89 = arith.truncf %88 : vector<16x768xf32> to vector<16x768xbf16>
    %c32_67 = arith.constant 32 : index
    %c0_68 = arith.constant 0 : index
    %90 = vector.load %arg30[%c32_67, %c0_68] : memref<288x768xbf16, #tpu.memory_space<vmem>>, vector<16x768xbf16>
    tpu.vector_store %arg30[%c32_67, %c0_68], %89 {strides = array<i32>} : memref<288x768xbf16, #tpu.memory_space<vmem>>, vector<16x768xbf16>,
    %c1_i32_69 = arith.constant 1 : i32
    %91 = tpu.dynamic_rotate %79 by %c1_i32_69 dim 1 : vector<16x768xf32>, i32 -> vector<16x768xf32>
    %92 = arith.truncf %91 : vector<16x768xf32> to vector<16x768xbf16>
    %c48_70 = arith.constant 48 : index
    %c0_71 = arith.constant 0 : index
    %93 = vector.load %arg30[%c48_70, %c0_71] : memref<288x768xbf16, #tpu.memory_space<vmem>>, vector<16x768xbf16>
    tpu.vector_store %arg30[%c48_70, %c0_71], %92 {strides = array<i32>} : memref<288x768xbf16, #tpu.memory_space<vmem>>, vector<16x768xbf16>,
    %94 = arith.truncf %79 : vector<16x768xf32> to vector<16x768xbf16>
    %c64_72 = arith.constant 64 : index
    %c0_73 = arith.constant 0 : index
    %95 = vector.load %arg30[%c64_72, %c0_73] : memref<288x768xbf16, #tpu.memory_space<vmem>>, vector<16x768xbf16>
    tpu.vector_store %arg30[%c64_72, %c0_73], %94 {strides = array<i32>} : memref<288x768xbf16, #tpu.memory_space<vmem>>, vector<16x768xbf16>,
    %c767_i32_74 = arith.constant 767 : i32
    %96 = tpu.dynamic_rotate %79 by %c767_i32_74 dim 1 : vector<16x768xf32>, i32 -> vector<16x768xf32>
    %97 = arith.truncf %96 : vector<16x768xf32> to vector<16x768xbf16>
    %c80_75 = arith.constant 80 : index
    %c0_76 = arith.constant 0 : index
    %98 = vector.load %arg30[%c80_75, %c0_76] : memref<288x768xbf16, #tpu.memory_space<vmem>>, vector<16x768xbf16>
    tpu.vector_store %arg30[%c80_75, %c0_76], %97 {strides = array<i32>} : memref<288x768xbf16, #tpu.memory_space<vmem>>, vector<16x768xbf16>,
    %c751_i32_77 = arith.constant 751 : i32
    %99 = tpu.dynamic_rotate %79 by %c751_i32_77 dim 1 : vector<16x768xf32>, i32 -> vector<16x768xf32>
    %100 = arith.truncf %99 : vector<16x768xf32> to vector<16x768xbf16>
    %c96_78 = arith.constant 96 : index
    %c0_79 = arith.constant 0 : index
    %101 = vector.load %arg30[%c96_78, %c0_79] : memref<288x768xbf16, #tpu.memory_space<vmem>>, vector<16x768xbf16>
    tpu.vector_store %arg30[%c96_78, %c0_79], %100 {strides = array<i32>} : memref<288x768xbf16, #tpu.memory_space<vmem>>, vector<16x768xbf16>,
    %c750_i32_80 = arith.constant 750 : i32
    %102 = tpu.dynamic_rotate %79 by %c750_i32_80 dim 1 : vector<16x768xf32>, i32 -> vector<16x768xf32>
    %103 = arith.truncf %102 : vector<16x768xf32> to vector<16x768xbf16>
    %c112_81 = arith.constant 112 : index
    %c0_82 = arith.constant 0 : index
    %104 = vector.load %arg30[%c112_81, %c0_82] : memref<288x768xbf16, #tpu.memory_space<vmem>>, vector<16x768xbf16>
    tpu.vector_store %arg30[%c112_81, %c0_82], %103 {strides = array<i32>} : memref<288x768xbf16, #tpu.memory_space<vmem>>, vector<16x768xbf16>,
    %c749_i32_83 = arith.constant 749 : i32
    %105 = tpu.dynamic_rotate %79 by %c749_i32_83 dim 1 : vector<16x768xf32>, i32 -> vector<16x768xf32>
    %106 = arith.truncf %105 : vector<16x768xf32> to vector<16x768xbf16>
    %c128_84 = arith.constant 128 : index
    %c0_85 = arith.constant 0 : index
    %107 = vector.load %arg30[%c128_84, %c0_85] : memref<288x768xbf16, #tpu.memory_space<vmem>>, vector<16x768xbf16>
    tpu.vector_store %arg30[%c128_84, %c0_85], %106 {strides = array<i32>} : memref<288x768xbf16, #tpu.memory_space<vmem>>, vector<16x768xbf16>,
    %c0_86 = arith.constant 0 : index
    %c0_87 = arith.constant 0 : index
    %108 = vector.load %arg30[%c0_86, %c0_87] : memref<288x768xbf16, #tpu.memory_space<vmem>>, vector<144x768xbf16>
    %cst_88 = arith.constant dense<0.000000e+00> : vector<16x768xf32>
    %109 = tpu.matmul %80, %108, %cst_88 {dimension_numbers = #tpu.dot_dimension_numbers<[1], [0], [0], [1], [0, 0, 1, 1], [], []>} : vector<16x144xbf16>, vector<144x768xbf16>, vector<16x768xf32> -> vector<16x768xf32>
    %110 = vector.broadcast %81 : vector<16x1xf32> to vector<16x768xf32>
    %111 = arith.addf %109, %110 : vector<16x768xf32>
    %cst_89 = arith.constant 1.000000e-01 : f32
    %112 = vector.broadcast %cst_89 : f32 to vector<16x768xf32>
    %113 = arith.mulf %112, %111 : vector<16x768xf32>
    %114 = arith.addf %40, %113 : vector<16x768xf32>
    %cst_90 = arith.constant 0.000000e+00 : f32
    %115 = vector.broadcast %cst_90 : f32 to vector<16x768xf32>
    %116 = arith.cmpf oge, %114, %115 : vector<16x768xf32>
    %cst_91 = arith.constant 2.000000e-01 : f32
    %117 = vector.broadcast %cst_91 : f32 to vector<16x768xf32>
    %118 = arith.mulf %117, %114 : vector<16x768xf32>
    %119 = arith.select %116, %114, %118 : vector<16x768xi1>, vector<16x768xf32>
    %120 = vector.broadcast %0 : vector<1x768xf32> to vector<16x768xf32>
    %121 = arith.mulf %119, %120 : vector<16x768xf32>
    %c0_92 = arith.constant 0 : index
    %c0_93 = arith.constant 0 : index
    %122 = vector.load %arg9[%c0_92, %c0_93] : memref<16x16xbf16, #tpu.memory_space<vmem>>, vector<16x16xbf16>
    %123 = arith.truncf %121 : vector<16x768xf32> to vector<16x768xbf16>
    %cst_94 = arith.constant dense<0.000000e+00> : vector<16x768xf32>
    %124 = tpu.matmul %122, %123, %cst_94 {dimension_numbers = #tpu.dot_dimension_numbers<[1], [0], [0], [1], [0, 0, 1, 1], [], []>} : vector<16x16xbf16>, vector<16x768xbf16>, vector<16x768xf32> -> vector<16x768xf32>
    %c0_95 = arith.constant 0 : index
    %c0_96 = arith.constant 0 : index
    %125 = vector.load %arg7[%c0_95, %c0_96] : memref<16x144xbf16, #tpu.memory_space<vmem>>, vector<16x144xbf16>
    %c0_97 = arith.constant 0 : index
    %c0_98 = arith.constant 0 : index
    %126 = vector.load %arg5[%c0_97, %c0_98] : memref<16x1xf32, #tpu.memory_space<vmem>>, vector<16x1xf32>
    %c19_i32_99 = arith.constant 19 : i32
    %127 = tpu.dynamic_rotate %121 by %c19_i32_99 dim 1 : vector<16x768xf32>, i32 -> vector<16x768xf32>
    %128 = arith.truncf %127 : vector<16x768xf32> to vector<16x768xbf16>
    %c0_100 = arith.constant 0 : index
    %c0_101 = arith.constant 0 : index
    %129 = vector.load %arg30[%c0_100, %c0_101] : memref<288x768xbf16, #tpu.memory_space<vmem>>, vector<16x768xbf16>
    tpu.vector_store %arg30[%c0_100, %c0_101], %128 {strides = array<i32>} : memref<288x768xbf16, #tpu.memory_space<vmem>>, vector<16x768xbf16>,
    %c18_i32_102 = arith.constant 18 : i32
    %130 = tpu.dynamic_rotate %121 by %c18_i32_102 dim 1 : vector<16x768xf32>, i32 -> vector<16x768xf32>
    %131 = arith.truncf %130 : vector<16x768xf32> to vector<16x768xbf16>
    %c16_103 = arith.constant 16 : index
    %c0_104 = arith.constant 0 : index
    %132 = vector.load %arg30[%c16_103, %c0_104] : memref<288x768xbf16, #tpu.memory_space<vmem>>, vector<16x768xbf16>
    tpu.vector_store %arg30[%c16_103, %c0_104], %131 {strides = array<i32>} : memref<288x768xbf16, #tpu.memory_space<vmem>>, vector<16x768xbf16>,
    %c17_i32_105 = arith.constant 17 : i32
    %133 = tpu.dynamic_rotate %121 by %c17_i32_105 dim 1 : vector<16x768xf32>, i32 -> vector<16x768xf32>
    %134 = arith.truncf %133 : vector<16x768xf32> to vector<16x768xbf16>
    %c32_106 = arith.constant 32 : index
    %c0_107 = arith.constant 0 : index
    %135 = vector.load %arg30[%c32_106, %c0_107] : memref<288x768xbf16, #tpu.memory_space<vmem>>, vector<16x768xbf16>
    tpu.vector_store %arg30[%c32_106, %c0_107], %134 {strides = array<i32>} : memref<288x768xbf16, #tpu.memory_space<vmem>>, vector<16x768xbf16>,
    %c1_i32_108 = arith.constant 1 : i32
    %136 = tpu.dynamic_rotate %121 by %c1_i32_108 dim 1 : vector<16x768xf32>, i32 -> vector<16x768xf32>
    %137 = arith.truncf %136 : vector<16x768xf32> to vector<16x768xbf16>
    %c48_109 = arith.constant 48 : index
    %c0_110 = arith.constant 0 : index
    %138 = vector.load %arg30[%c48_109, %c0_110] : memref<288x768xbf16, #tpu.memory_space<vmem>>, vector<16x768xbf16>
    tpu.vector_store %arg30[%c48_109, %c0_110], %137 {strides = array<i32>} : memref<288x768xbf16, #tpu.memory_space<vmem>>, vector<16x768xbf16>,
    %139 = arith.truncf %121 : vector<16x768xf32> to vector<16x768xbf16>
    %c64_111 = arith.constant 64 : index
    %c0_112 = arith.constant 0 : index
    %140 = vector.load %arg30[%c64_111, %c0_112] : memref<288x768xbf16, #tpu.memory_space<vmem>>, vector<16x768xbf16>
    tpu.vector_store %arg30[%c64_111, %c0_112], %139 {strides = array<i32>} : memref<288x768xbf16, #tpu.memory_space<vmem>>, vector<16x768xbf16>,
    %c767_i32_113 = arith.constant 767 : i32
    %141 = tpu.dynamic_rotate %121 by %c767_i32_113 dim 1 : vector<16x768xf32>, i32 -> vector<16x768xf32>
    %142 = arith.truncf %141 : vector<16x768xf32> to vector<16x768xbf16>
    %c80_114 = arith.constant 80 : index
    %c0_115 = arith.constant 0 : index
    %143 = vector.load %arg30[%c80_114, %c0_115] : memref<288x768xbf16, #tpu.memory_space<vmem>>, vector<16x768xbf16>
    tpu.vector_store %arg30[%c80_114, %c0_115], %142 {strides = array<i32>} : memref<288x768xbf16, #tpu.memory_space<vmem>>, vector<16x768xbf16>,
    %c751_i32_116 = arith.constant 751 : i32
    %144 = tpu.dynamic_rotate %121 by %c751_i32_116 dim 1 : vector<16x768xf32>, i32 -> vector<16x768xf32>
    %145 = arith.truncf %144 : vector<16x768xf32> to vector<16x768xbf16>
    %c96_117 = arith.constant 96 : index
    %c0_118 = arith.constant 0 : index
    %146 = vector.load %arg30[%c96_117, %c0_118] : memref<288x768xbf16, #tpu.memory_space<vmem>>, vector<16x768xbf16>
    tpu.vector_store %arg30[%c96_117, %c0_118], %145 {strides = array<i32>} : memref<288x768xbf16, #tpu.memory_space<vmem>>, vector<16x768xbf16>,
    %c750_i32_119 = arith.constant 750 : i32
    %147 = tpu.dynamic_rotate %121 by %c750_i32_119 dim 1 : vector<16x768xf32>, i32 -> vector<16x768xf32>
    %148 = arith.truncf %147 : vector<16x768xf32> to vector<16x768xbf16>
    %c112_120 = arith.constant 112 : index
    %c0_121 = arith.constant 0 : index
    %149 = vector.load %arg30[%c112_120, %c0_121] : memref<288x768xbf16, #tpu.memory_space<vmem>>, vector<16x768xbf16>
    tpu.vector_store %arg30[%c112_120, %c0_121], %148 {strides = array<i32>} : memref<288x768xbf16, #tpu.memory_space<vmem>>, vector<16x768xbf16>,
    %c749_i32_122 = arith.constant 749 : i32
    %150 = tpu.dynamic_rotate %121 by %c749_i32_122 dim 1 : vector<16x768xf32>, i32 -> vector<16x768xf32>
    %151 = arith.truncf %150 : vector<16x768xf32> to vector<16x768xbf16>
    %c128_123 = arith.constant 128 : index
    %c0_124 = arith.constant 0 : index
    %152 = vector.load %arg30[%c128_123, %c0_124] : memref<288x768xbf16, #tpu.memory_space<vmem>>, vector<16x768xbf16>
    tpu.vector_store %arg30[%c128_123, %c0_124], %151 {strides = array<i32>} : memref<288x768xbf16, #tpu.memory_space<vmem>>, vector<16x768xbf16>,
    %c0_125 = arith.constant 0 : index
    %c0_126 = arith.constant 0 : index
    %153 = vector.load %arg30[%c0_125, %c0_126] : memref<288x768xbf16, #tpu.memory_space<vmem>>, vector<144x768xbf16>
    %cst_127 = arith.constant dense<0.000000e+00> : vector<16x768xf32>
    %154 = tpu.matmul %125, %153, %cst_127 {dimension_numbers = #tpu.dot_dimension_numbers<[1], [0], [0], [1], [0, 0, 1, 1], [], []>} : vector<16x144xbf16>, vector<144x768xbf16>, vector<16x768xf32> -> vector<16x768xf32>
    %155 = vector.broadcast %126 : vector<16x1xf32> to vector<16x768xf32>
    %156 = arith.addf %154, %155 : vector<16x768xf32>
    %cst_128 = arith.constant 0.000000e+00 : f32
    %157 = vector.broadcast %cst_128 : f32 to vector<16x768xf32>
    %158 = arith.cmpf oge, %156, %157 : vector<16x768xf32>
    %cst_129 = arith.constant 2.000000e-01 : f32
    %159 = vector.broadcast %cst_129 : f32 to vector<16x768xf32>
    %160 = arith.mulf %159, %156 : vector<16x768xf32>
    %161 = arith.select %158, %156, %160 : vector<16x768xi1>, vector<16x768xf32>
    %162 = vector.broadcast %0 : vector<1x768xf32> to vector<16x768xf32>
    %163 = arith.mulf %161, %162 : vector<16x768xf32>
    %c0_130 = arith.constant 0 : index
    %c0_131 = arith.constant 0 : index
    %164 = vector.load %arg8[%c0_130, %c0_131] : memref<16x144xbf16, #tpu.memory_space<vmem>>, vector<16x144xbf16>
    %c0_132 = arith.constant 0 : index
    %c0_133 = arith.constant 0 : index
    %165 = vector.load %arg6[%c0_132, %c0_133] : memref<16x1xf32, #tpu.memory_space<vmem>>, vector<16x1xf32>
    %c19_i32_134 = arith.constant 19 : i32
    %166 = tpu.dynamic_rotate %163 by %c19_i32_134 dim 1 : vector<16x768xf32>, i32 -> vector<16x768xf32>
    %167 = arith.truncf %166 : vector<16x768xf32> to vector<16x768xbf16>
    %c0_135 = arith.constant 0 : index
    %c0_136 = arith.constant 0 : index
    %168 = vector.load %arg30[%c0_135, %c0_136] : memref<288x768xbf16, #tpu.memory_space<vmem>>, vector<16x768xbf16>
    tpu.vector_store %arg30[%c0_135, %c0_136], %167 {strides = array<i32>} : memref<288x768xbf16, #tpu.memory_space<vmem>>, vector<16x768xbf16>,
    %c18_i32_137 = arith.constant 18 : i32
    %169 = tpu.dynamic_rotate %163 by %c18_i32_137 dim 1 : vector<16x768xf32>, i32 -> vector<16x768xf32>
    %170 = arith.truncf %169 : vector<16x768xf32> to vector<16x768xbf16>
    %c16_138 = arith.constant 16 : index
    %c0_139 = arith.constant 0 : index
    %171 = vector.load %arg30[%c16_138, %c0_139] : memref<288x768xbf16, #tpu.memory_space<vmem>>, vector<16x768xbf16>
    tpu.vector_store %arg30[%c16_138, %c0_139], %170 {strides = array<i32>} : memref<288x768xbf16, #tpu.memory_space<vmem>>, vector<16x768xbf16>,
    %c17_i32_140 = arith.constant 17 : i32
    %172 = tpu.dynamic_rotate %163 by %c17_i32_140 dim 1 : vector<16x768xf32>, i32 -> vector<16x768xf32>
    %173 = arith.truncf %172 : vector<16x768xf32> to vector<16x768xbf16>
    %c32_141 = arith.constant 32 : index
    %c0_142 = arith.constant 0 : index
    %174 = vector.load %arg30[%c32_141, %c0_142] : memref<288x768xbf16, #tpu.memory_space<vmem>>, vector<16x768xbf16>
    tpu.vector_store %arg30[%c32_141, %c0_142], %173 {strides = array<i32>} : memref<288x768xbf16, #tpu.memory_space<vmem>>, vector<16x768xbf16>,
    %c1_i32_143 = arith.constant 1 : i32
    %175 = tpu.dynamic_rotate %163 by %c1_i32_143 dim 1 : vector<16x768xf32>, i32 -> vector<16x768xf32>
    %176 = arith.truncf %175 : vector<16x768xf32> to vector<16x768xbf16>
    %c48_144 = arith.constant 48 : index
    %c0_145 = arith.constant 0 : index
    %177 = vector.load %arg30[%c48_144, %c0_145] : memref<288x768xbf16, #tpu.memory_space<vmem>>, vector<16x768xbf16>
    tpu.vector_store %arg30[%c48_144, %c0_145], %176 {strides = array<i32>} : memref<288x768xbf16, #tpu.memory_space<vmem>>, vector<16x768xbf16>,
    %178 = arith.truncf %163 : vector<16x768xf32> to vector<16x768xbf16>
    %c64_146 = arith.constant 64 : index
    %c0_147 = arith.constant 0 : index
    %179 = vector.load %arg30[%c64_146, %c0_147] : memref<288x768xbf16, #tpu.memory_space<vmem>>, vector<16x768xbf16>
    tpu.vector_store %arg30[%c64_146, %c0_147], %178 {strides = array<i32>} : memref<288x768xbf16, #tpu.memory_space<vmem>>, vector<16x768xbf16>,
    %c767_i32_148 = arith.constant 767 : i32
    %180 = tpu.dynamic_rotate %163 by %c767_i32_148 dim 1 : vector<16x768xf32>, i32 -> vector<16x768xf32>
    %181 = arith.truncf %180 : vector<16x768xf32> to vector<16x768xbf16>
    %c80_149 = arith.constant 80 : index
    %c0_150 = arith.constant 0 : index
    %182 = vector.load %arg30[%c80_149, %c0_150] : memref<288x768xbf16, #tpu.memory_space<vmem>>, vector<16x768xbf16>
    tpu.vector_store %arg30[%c80_149, %c0_150], %181 {strides = array<i32>} : memref<288x768xbf16, #tpu.memory_space<vmem>>, vector<16x768xbf16>,
    %c751_i32_151 = arith.constant 751 : i32
    %183 = tpu.dynamic_rotate %163 by %c751_i32_151 dim 1 : vector<16x768xf32>, i32 -> vector<16x768xf32>
    %184 = arith.truncf %183 : vector<16x768xf32> to vector<16x768xbf16>
    %c96_152 = arith.constant 96 : index
    %c0_153 = arith.constant 0 : index
    %185 = vector.load %arg30[%c96_152, %c0_153] : memref<288x768xbf16, #tpu.memory_space<vmem>>, vector<16x768xbf16>
    tpu.vector_store %arg30[%c96_152, %c0_153], %184 {strides = array<i32>} : memref<288x768xbf16, #tpu.memory_space<vmem>>, vector<16x768xbf16>,
    %c750_i32_154 = arith.constant 750 : i32
    %186 = tpu.dynamic_rotate %163 by %c750_i32_154 dim 1 : vector<16x768xf32>, i32 -> vector<16x768xf32>
    %187 = arith.truncf %186 : vector<16x768xf32> to vector<16x768xbf16>
    %c112_155 = arith.constant 112 : index
    %c0_156 = arith.constant 0 : index
    %188 = vector.load %arg30[%c112_155, %c0_156] : memref<288x768xbf16, #tpu.memory_space<vmem>>, vector<16x768xbf16>
    tpu.vector_store %arg30[%c112_155, %c0_156], %187 {strides = array<i32>} : memref<288x768xbf16, #tpu.memory_space<vmem>>, vector<16x768xbf16>,
    %c749_i32_157 = arith.constant 749 : i32
    %189 = tpu.dynamic_rotate %163 by %c749_i32_157 dim 1 : vector<16x768xf32>, i32 -> vector<16x768xf32>
    %190 = arith.truncf %189 : vector<16x768xf32> to vector<16x768xbf16>
    %c128_158 = arith.constant 128 : index
    %c0_159 = arith.constant 0 : index
    %191 = vector.load %arg30[%c128_158, %c0_159] : memref<288x768xbf16, #tpu.memory_space<vmem>>, vector<16x768xbf16>
    tpu.vector_store %arg30[%c128_158, %c0_159], %190 {strides = array<i32>} : memref<288x768xbf16, #tpu.memory_space<vmem>>, vector<16x768xbf16>,
    %c0_160 = arith.constant 0 : index
    %c0_161 = arith.constant 0 : index
    %192 = vector.load %arg30[%c0_160, %c0_161] : memref<288x768xbf16, #tpu.memory_space<vmem>>, vector<144x768xbf16>
    %cst_162 = arith.constant dense<0.000000e+00> : vector<16x768xf32>
    %193 = tpu.matmul %164, %192, %cst_162 {dimension_numbers = #tpu.dot_dimension_numbers<[1], [0], [0], [1], [0, 0, 1, 1], [], []>} : vector<16x144xbf16>, vector<144x768xbf16>, vector<16x768xf32> -> vector<16x768xf32>
    %194 = vector.broadcast %165 : vector<16x1xf32> to vector<16x768xf32>
    %195 = arith.addf %193, %194 : vector<16x768xf32>
    %cst_163 = arith.constant 1.000000e-01 : f32
    %196 = vector.broadcast %cst_163 : f32 to vector<16x768xf32>
    %197 = arith.mulf %196, %195 : vector<16x768xf32>
    %198 = arith.addf %124, %197 : vector<16x768xf32>
    %cst_164 = arith.constant 0.000000e+00 : f32
    %199 = vector.broadcast %cst_164 : f32 to vector<16x768xf32>
    %200 = arith.cmpf oge, %198, %199 : vector<16x768xf32>
    %cst_165 = arith.constant 2.000000e-01 : f32
    %201 = vector.broadcast %cst_165 : f32 to vector<16x768xf32>
    %202 = arith.mulf %201, %198 : vector<16x768xf32>
    %203 = arith.select %200, %198, %202 : vector<16x768xi1>, vector<16x768xf32>
    %204 = vector.broadcast %0 : vector<1x768xf32> to vector<16x768xf32>
    %205 = arith.mulf %203, %204 : vector<16x768xf32>
    %206 = arith.truncf %205 : vector<16x768xf32> to vector<16x768xbf16>
    %c0_166 = arith.constant 0 : index
    %c0_167 = arith.constant 0 : index
    %207 = vector.load %arg27[%c0_166, %c0_167] : memref<768x256xbf16, #tpu.memory_space<vmem>>, vector<768x256xbf16>
    %cst_168 = arith.constant dense<0.000000e+00> : vector<16x256xf32>
    %208 = tpu.matmul %206, %207, %cst_168 {dimension_numbers = #tpu.dot_dimension_numbers<[1], [0], [0], [1], [0, 0, 1, 1], [], []>} : vector<16x768xbf16>, vector<768x256xbf16>, vector<16x256xf32> -> vector<16x256xf32>
    %c0_169 = arith.constant 0 : index
    %c0_170 = arith.constant 0 : index
    %209 = vector.load %arg25[%c0_169, %c0_170] : memref<1x256xf32, #tpu.memory_space<vmem>>, vector<1x256xf32>
    %c0_171 = arith.constant 0 : index
    %c0_172 = arith.constant 0 : index
    %210 = vector.load %arg14[%c0_171, %c0_172] : memref<32x16xbf16, #tpu.memory_space<vmem>>, vector<32x16xbf16>
    %211 = arith.truncf %208 : vector<16x256xf32> to vector<16x256xbf16>
    %cst_173 = arith.constant dense<0.000000e+00> : vector<32x256xf32>
    %212 = tpu.matmul %210, %211, %cst_173 {dimension_numbers = #tpu.dot_dimension_numbers<[1], [0], [0], [1], [0, 0, 1, 1], [], []>} : vector<32x16xbf16>, vector<16x256xbf16>, vector<32x256xf32> -> vector<32x256xf32>
    %c0_174 = arith.constant 0 : index
    %c0_175 = arith.constant 0 : index
    %213 = vector.load %arg12[%c0_174, %c0_175] : memref<16x144xbf16, #tpu.memory_space<vmem>>, vector<16x144xbf16>
    %c0_176 = arith.constant 0 : index
    %c0_177 = arith.constant 0 : index
    %214 = vector.load %arg10[%c0_176, %c0_177] : memref<16x1xf32, #tpu.memory_space<vmem>>, vector<16x1xf32>
    %c11_i32 = arith.constant 11 : i32
    %215 = tpu.dynamic_rotate %208 by %c11_i32 dim 1 : vector<16x256xf32>, i32 -> vector<16x256xf32>
    %216 = arith.truncf %215 : vector<16x256xf32> to vector<16x256xbf16>
    %c0_178 = arith.constant 0 : index
    %c0_179 = arith.constant 0 : index
    %217 = vector.load %arg30[%c0_178, %c0_179] : memref<288x768xbf16, #tpu.memory_space<vmem>>, vector<16x256xbf16>
    tpu.vector_store %arg30[%c0_178, %c0_179], %216 {strides = array<i32>} : memref<288x768xbf16, #tpu.memory_space<vmem>>, vector<16x256xbf16>,
    %c10_i32 = arith.constant 10 : i32
    %218 = tpu.dynamic_rotate %208 by %c10_i32 dim 1 : vector<16x256xf32>, i32 -> vector<16x256xf32>
    %219 = arith.truncf %218 : vector<16x256xf32> to vector<16x256xbf16>
    %c16_180 = arith.constant 16 : index
    %c0_181 = arith.constant 0 : index
    %220 = vector.load %arg30[%c16_180, %c0_181] : memref<288x768xbf16, #tpu.memory_space<vmem>>, vector<16x256xbf16>
    tpu.vector_store %arg30[%c16_180, %c0_181], %219 {strides = array<i32>} : memref<288x768xbf16, #tpu.memory_space<vmem>>, vector<16x256xbf16>,
    %c9_i32 = arith.constant 9 : i32
    %221 = tpu.dynamic_rotate %208 by %c9_i32 dim 1 : vector<16x256xf32>, i32 -> vector<16x256xf32>
    %222 = arith.truncf %221 : vector<16x256xf32> to vector<16x256xbf16>
    %c32_182 = arith.constant 32 : index
    %c0_183 = arith.constant 0 : index
    %223 = vector.load %arg30[%c32_182, %c0_183] : memref<288x768xbf16, #tpu.memory_space<vmem>>, vector<16x256xbf16>
    tpu.vector_store %arg30[%c32_182, %c0_183], %222 {strides = array<i32>} : memref<288x768xbf16, #tpu.memory_space<vmem>>, vector<16x256xbf16>,
    %c1_i32_184 = arith.constant 1 : i32
    %224 = tpu.dynamic_rotate %208 by %c1_i32_184 dim 1 : vector<16x256xf32>, i32 -> vector<16x256xf32>
    %225 = arith.truncf %224 : vector<16x256xf32> to vector<16x256xbf16>
    %c48_185 = arith.constant 48 : index
    %c0_186 = arith.constant 0 : index
    %226 = vector.load %arg30[%c48_185, %c0_186] : memref<288x768xbf16, #tpu.memory_space<vmem>>, vector<16x256xbf16>
    tpu.vector_store %arg30[%c48_185, %c0_186], %225 {strides = array<i32>} : memref<288x768xbf16, #tpu.memory_space<vmem>>, vector<16x256xbf16>,
    %227 = arith.truncf %208 : vector<16x256xf32> to vector<16x256xbf16>
    %c64_187 = arith.constant 64 : index
    %c0_188 = arith.constant 0 : index
    %228 = vector.load %arg30[%c64_187, %c0_188] : memref<288x768xbf16, #tpu.memory_space<vmem>>, vector<16x256xbf16>
    tpu.vector_store %arg30[%c64_187, %c0_188], %227 {strides = array<i32>} : memref<288x768xbf16, #tpu.memory_space<vmem>>, vector<16x256xbf16>,
    %c255_i32 = arith.constant 255 : i32
    %229 = tpu.dynamic_rotate %208 by %c255_i32 dim 1 : vector<16x256xf32>, i32 -> vector<16x256xf32>
    %230 = arith.truncf %229 : vector<16x256xf32> to vector<16x256xbf16>
    %c80_189 = arith.constant 80 : index
    %c0_190 = arith.constant 0 : index
    %231 = vector.load %arg30[%c80_189, %c0_190] : memref<288x768xbf16, #tpu.memory_space<vmem>>, vector<16x256xbf16>
    tpu.vector_store %arg30[%c80_189, %c0_190], %230 {strides = array<i32>} : memref<288x768xbf16, #tpu.memory_space<vmem>>, vector<16x256xbf16>,
    %c247_i32 = arith.constant 247 : i32
    %232 = tpu.dynamic_rotate %208 by %c247_i32 dim 1 : vector<16x256xf32>, i32 -> vector<16x256xf32>
    %233 = arith.truncf %232 : vector<16x256xf32> to vector<16x256xbf16>
    %c96_191 = arith.constant 96 : index
    %c0_192 = arith.constant 0 : index
    %234 = vector.load %arg30[%c96_191, %c0_192] : memref<288x768xbf16, #tpu.memory_space<vmem>>, vector<16x256xbf16>
    tpu.vector_store %arg30[%c96_191, %c0_192], %233 {strides = array<i32>} : memref<288x768xbf16, #tpu.memory_space<vmem>>, vector<16x256xbf16>,
    %c246_i32 = arith.constant 246 : i32
    %235 = tpu.dynamic_rotate %208 by %c246_i32 dim 1 : vector<16x256xf32>, i32 -> vector<16x256xf32>
    %236 = arith.truncf %235 : vector<16x256xf32> to vector<16x256xbf16>
    %c112_193 = arith.constant 112 : index
    %c0_194 = arith.constant 0 : index
    %237 = vector.load %arg30[%c112_193, %c0_194] : memref<288x768xbf16, #tpu.memory_space<vmem>>, vector<16x256xbf16>
    tpu.vector_store %arg30[%c112_193, %c0_194], %236 {strides = array<i32>} : memref<288x768xbf16, #tpu.memory_space<vmem>>, vector<16x256xbf16>,
    %c245_i32 = arith.constant 245 : i32
    %238 = tpu.dynamic_rotate %208 by %c245_i32 dim 1 : vector<16x256xf32>, i32 -> vector<16x256xf32>
    %239 = arith.truncf %238 : vector<16x256xf32> to vector<16x256xbf16>
    %c128_195 = arith.constant 128 : index
    %c0_196 = arith.constant 0 : index
    %240 = vector.load %arg30[%c128_195, %c0_196] : memref<288x768xbf16, #tpu.memory_space<vmem>>, vector<16x256xbf16>
    tpu.vector_store %arg30[%c128_195, %c0_196], %239 {strides = array<i32>} : memref<288x768xbf16, #tpu.memory_space<vmem>>, vector<16x256xbf16>,
    %c0_197 = arith.constant 0 : index
    %c0_198 = arith.constant 0 : index
    %241 = vector.load %arg30[%c0_197, %c0_198] : memref<288x768xbf16, #tpu.memory_space<vmem>>, vector<144x256xbf16>
    %cst_199 = arith.constant dense<0.000000e+00> : vector<16x256xf32>
    %242 = tpu.matmul %213, %241, %cst_199 {dimension_numbers = #tpu.dot_dimension_numbers<[1], [0], [0], [1], [0, 0, 1, 1], [], []>} : vector<16x144xbf16>, vector<144x256xbf16>, vector<16x256xf32> -> vector<16x256xf32>
    %243 = vector.broadcast %214 : vector<16x1xf32> to vector<16x256xf32>
    %244 = arith.addf %242, %243 : vector<16x256xf32>
    %cst_200 = arith.constant 0.000000e+00 : f32
    %245 = vector.broadcast %cst_200 : f32 to vector<16x256xf32>
    %246 = arith.cmpf oge, %244, %245 : vector<16x256xf32>
    %cst_201 = arith.constant 2.000000e-01 : f32
    %247 = vector.broadcast %cst_201 : f32 to vector<16x256xf32>
    %248 = arith.mulf %247, %244 : vector<16x256xf32>
    %249 = arith.select %246, %244, %248 : vector<16x256xi1>, vector<16x256xf32>
    %250 = vector.broadcast %209 : vector<1x256xf32> to vector<16x256xf32>
    %251 = arith.mulf %249, %250 : vector<16x256xf32>
    %c0_202 = arith.constant 0 : index
    %c0_203 = arith.constant 0 : index
    %252 = vector.load %arg13[%c0_202, %c0_203] : memref<32x144xbf16, #tpu.memory_space<vmem>>, vector<32x144xbf16>
    %c0_204 = arith.constant 0 : index
    %c0_205 = arith.constant 0 : index
    %253 = vector.load %arg11[%c0_204, %c0_205] : memref<32x1xf32, #tpu.memory_space<vmem>>, vector<32x1xf32>
    %c11_i32_206 = arith.constant 11 : i32
    %254 = tpu.dynamic_rotate %251 by %c11_i32_206 dim 1 : vector<16x256xf32>, i32 -> vector<16x256xf32>
    %255 = arith.truncf %254 : vector<16x256xf32> to vector<16x256xbf16>
    %c0_207 = arith.constant 0 : index
    %c0_208 = arith.constant 0 : index
    %256 = vector.load %arg30[%c0_207, %c0_208] : memref<288x768xbf16, #tpu.memory_space<vmem>>, vector<16x256xbf16>
    tpu.vector_store %arg30[%c0_207, %c0_208], %255 {strides = array<i32>} : memref<288x768xbf16, #tpu.memory_space<vmem>>, vector<16x256xbf16>,
    %c10_i32_209 = arith.constant 10 : i32
    %257 = tpu.dynamic_rotate %251 by %c10_i32_209 dim 1 : vector<16x256xf32>, i32 -> vector<16x256xf32>
    %258 = arith.truncf %257 : vector<16x256xf32> to vector<16x256xbf16>
    %c16_210 = arith.constant 16 : index
    %c0_211 = arith.constant 0 : index
    %259 = vector.load %arg30[%c16_210, %c0_211] : memref<288x768xbf16, #tpu.memory_space<vmem>>, vector<16x256xbf16>
    tpu.vector_store %arg30[%c16_210, %c0_211], %258 {strides = array<i32>} : memref<288x768xbf16, #tpu.memory_space<vmem>>, vector<16x256xbf16>,
    %c9_i32_212 = arith.constant 9 : i32
    %260 = tpu.dynamic_rotate %251 by %c9_i32_212 dim 1 : vector<16x256xf32>, i32 -> vector<16x256xf32>
    %261 = arith.truncf %260 : vector<16x256xf32> to vector<16x256xbf16>
    %c32_213 = arith.constant 32 : index
    %c0_214 = arith.constant 0 : index
    %262 = vector.load %arg30[%c32_213, %c0_214] : memref<288x768xbf16, #tpu.memory_space<vmem>>, vector<16x256xbf16>
    tpu.vector_store %arg30[%c32_213, %c0_214], %261 {strides = array<i32>} : memref<288x768xbf16, #tpu.memory_space<vmem>>, vector<16x256xbf16>,
    %c1_i32_215 = arith.constant 1 : i32
    %263 = tpu.dynamic_rotate %251 by %c1_i32_215 dim 1 : vector<16x256xf32>, i32 -> vector<16x256xf32>
    %264 = arith.truncf %263 : vector<16x256xf32> to vector<16x256xbf16>
    %c48_216 = arith.constant 48 : index
    %c0_217 = arith.constant 0 : index
    %265 = vector.load %arg30[%c48_216, %c0_217] : memref<288x768xbf16, #tpu.memory_space<vmem>>, vector<16x256xbf16>
    tpu.vector_store %arg30[%c48_216, %c0_217], %264 {strides = array<i32>} : memref<288x768xbf16, #tpu.memory_space<vmem>>, vector<16x256xbf16>,
    %266 = arith.truncf %251 : vector<16x256xf32> to vector<16x256xbf16>
    %c64_218 = arith.constant 64 : index
    %c0_219 = arith.constant 0 : index
    %267 = vector.load %arg30[%c64_218, %c0_219] : memref<288x768xbf16, #tpu.memory_space<vmem>>, vector<16x256xbf16>
    tpu.vector_store %arg30[%c64_218, %c0_219], %266 {strides = array<i32>} : memref<288x768xbf16, #tpu.memory_space<vmem>>, vector<16x256xbf16>,
    %c255_i32_220 = arith.constant 255 : i32
    %268 = tpu.dynamic_rotate %251 by %c255_i32_220 dim 1 : vector<16x256xf32>, i32 -> vector<16x256xf32>
    %269 = arith.truncf %268 : vector<16x256xf32> to vector<16x256xbf16>
    %c80_221 = arith.constant 80 : index
    %c0_222 = arith.constant 0 : index
    %270 = vector.load %arg30[%c80_221, %c0_222] : memref<288x768xbf16, #tpu.memory_space<vmem>>, vector<16x256xbf16>
    tpu.vector_store %arg30[%c80_221, %c0_222], %269 {strides = array<i32>} : memref<288x768xbf16, #tpu.memory_space<vmem>>, vector<16x256xbf16>,
    %c247_i32_223 = arith.constant 247 : i32
    %271 = tpu.dynamic_rotate %251 by %c247_i32_223 dim 1 : vector<16x256xf32>, i32 -> vector<16x256xf32>
    %272 = arith.truncf %271 : vector<16x256xf32> to vector<16x256xbf16>
    %c96_224 = arith.constant 96 : index
    %c0_225 = arith.constant 0 : index
    %273 = vector.load %arg30[%c96_224, %c0_225] : memref<288x768xbf16, #tpu.memory_space<vmem>>, vector<16x256xbf16>
    tpu.vector_store %arg30[%c96_224, %c0_225], %272 {strides = array<i32>} : memref<288x768xbf16, #tpu.memory_space<vmem>>, vector<16x256xbf16>,
    %c246_i32_226 = arith.constant 246 : i32
    %274 = tpu.dynamic_rotate %251 by %c246_i32_226 dim 1 : vector<16x256xf32>, i32 -> vector<16x256xf32>
    %275 = arith.truncf %274 : vector<16x256xf32> to vector<16x256xbf16>
    %c112_227 = arith.constant 112 : index
    %c0_228 = arith.constant 0 : index
    %276 = vector.load %arg30[%c112_227, %c0_228] : memref<288x768xbf16, #tpu.memory_space<vmem>>, vector<16x256xbf16>
    tpu.vector_store %arg30[%c112_227, %c0_228], %275 {strides = array<i32>} : memref<288x768xbf16, #tpu.memory_space<vmem>>, vector<16x256xbf16>,
    %c245_i32_229 = arith.constant 245 : i32
    %277 = tpu.dynamic_rotate %251 by %c245_i32_229 dim 1 : vector<16x256xf32>, i32 -> vector<16x256xf32>
    %278 = arith.truncf %277 : vector<16x256xf32> to vector<16x256xbf16>
    %c128_230 = arith.constant 128 : index
    %c0_231 = arith.constant 0 : index
    %279 = vector.load %arg30[%c128_230, %c0_231] : memref<288x768xbf16, #tpu.memory_space<vmem>>, vector<16x256xbf16>
    tpu.vector_store %arg30[%c128_230, %c0_231], %278 {strides = array<i32>} : memref<288x768xbf16, #tpu.memory_space<vmem>>, vector<16x256xbf16>,
    %c0_232 = arith.constant 0 : index
    %c0_233 = arith.constant 0 : index
    %280 = vector.load %arg30[%c0_232, %c0_233] : memref<288x768xbf16, #tpu.memory_space<vmem>>, vector<144x256xbf16>
    %cst_234 = arith.constant dense<0.000000e+00> : vector<32x256xf32>
    %281 = tpu.matmul %252, %280, %cst_234 {dimension_numbers = #tpu.dot_dimension_numbers<[1], [0], [0], [1], [0, 0, 1, 1], [], []>} : vector<32x144xbf16>, vector<144x256xbf16>, vector<32x256xf32> -> vector<32x256xf32>
    %282 = vector.broadcast %253 : vector<32x1xf32> to vector<32x256xf32>
    %283 = arith.addf %281, %282 : vector<32x256xf32>
    %cst_235 = arith.constant 1.000000e-01 : f32
    %284 = vector.broadcast %cst_235 : f32 to vector<32x256xf32>
    %285 = arith.mulf %284, %283 : vector<32x256xf32>
    %286 = arith.addf %212, %285 : vector<32x256xf32>
    %cst_236 = arith.constant 0.000000e+00 : f32
    %287 = vector.broadcast %cst_236 : f32 to vector<32x256xf32>
    %288 = arith.cmpf oge, %286, %287 : vector<32x256xf32>
    %cst_237 = arith.constant 2.000000e-01 : f32
    %289 = vector.broadcast %cst_237 : f32 to vector<32x256xf32>
    %290 = arith.mulf %289, %286 : vector<32x256xf32>
    %291 = arith.select %288, %286, %290 : vector<32x256xi1>, vector<32x256xf32>
    %292 = vector.broadcast %209 : vector<1x256xf32> to vector<32x256xf32>
    %293 = arith.mulf %291, %292 : vector<32x256xf32>
    %294 = arith.truncf %293 : vector<32x256xf32> to vector<32x256xbf16>
    %c0_238 = arith.constant 0 : index
    %c0_239 = arith.constant 0 : index
    %295 = vector.load %arg28[%c0_238, %c0_239] : memref<256x128xbf16, #tpu.memory_space<vmem>>, vector<256x128xbf16>
    %cst_240 = arith.constant dense<0.000000e+00> : vector<32x128xf32>
    %296 = tpu.matmul %294, %295, %cst_240 {dimension_numbers = #tpu.dot_dimension_numbers<[1], [0], [0], [1], [0, 0, 1, 1], [], []>} : vector<32x256xbf16>, vector<256x128xbf16>, vector<32x128xf32> -> vector<32x128xf32>
    %c0_241 = arith.constant 0 : index
    %c0_242 = arith.constant 0 : index
    %297 = vector.load %arg26[%c0_241, %c0_242] : memref<1x128xf32, #tpu.memory_space<vmem>>, vector<1x128xf32>
    %c0_243 = arith.constant 0 : index
    %c0_244 = arith.constant 0 : index
    %298 = vector.load %arg17[%c0_243, %c0_244] : memref<32x288xbf16, #tpu.memory_space<vmem>>, vector<32x288xbf16>
    %c0_245 = arith.constant 0 : index
    %c0_246 = arith.constant 0 : index
    %299 = vector.load %arg15[%c0_245, %c0_246] : memref<32x1xf32, #tpu.memory_space<vmem>>, vector<32x1xf32>
    %c7_i32 = arith.constant 7 : i32
    %300 = tpu.dynamic_rotate %296 by %c7_i32 dim 1 : vector<32x128xf32>, i32 -> vector<32x128xf32>
    %301 = arith.truncf %300 : vector<32x128xf32> to vector<32x128xbf16>
    %c0_247 = arith.constant 0 : index
    %c0_248 = arith.constant 0 : index
    %302 = vector.load %arg30[%c0_247, %c0_248] : memref<288x768xbf16, #tpu.memory_space<vmem>>, vector<32x128xbf16>
    tpu.vector_store %arg30[%c0_247, %c0_248], %301 {strides = array<i32>} : memref<288x768xbf16, #tpu.memory_space<vmem>>, vector<32x128xbf16>,
    %c6_i32 = arith.constant 6 : i32
    %303 = tpu.dynamic_rotate %296 by %c6_i32 dim 1 : vector<32x128xf32>, i32 -> vector<32x128xf32>
    %304 = arith.truncf %303 : vector<32x128xf32> to vector<32x128xbf16>
    %c32_249 = arith.constant 32 : index
    %c0_250 = arith.constant 0 : index
    %305 = vector.load %arg30[%c32_249, %c0_250] : memref<288x768xbf16, #tpu.memory_space<vmem>>, vector<32x128xbf16>
    tpu.vector_store %arg30[%c32_249, %c0_250], %304 {strides = array<i32>} : memref<288x768xbf16, #tpu.memory_space<vmem>>, vector<32x128xbf16>,
    %c5_i32 = arith.constant 5 : i32
    %306 = tpu.dynamic_rotate %296 by %c5_i32 dim 1 : vector<32x128xf32>, i32 -> vector<32x128xf32>
    %307 = arith.truncf %306 : vector<32x128xf32> to vector<32x128xbf16>
    %c64_251 = arith.constant 64 : index
    %c0_252 = arith.constant 0 : index
    %308 = vector.load %arg30[%c64_251, %c0_252] : memref<288x768xbf16, #tpu.memory_space<vmem>>, vector<32x128xbf16>
    tpu.vector_store %arg30[%c64_251, %c0_252], %307 {strides = array<i32>} : memref<288x768xbf16, #tpu.memory_space<vmem>>, vector<32x128xbf16>,
    %c1_i32_253 = arith.constant 1 : i32
    %309 = tpu.dynamic_rotate %296 by %c1_i32_253 dim 1 : vector<32x128xf32>, i32 -> vector<32x128xf32>
    %310 = arith.truncf %309 : vector<32x128xf32> to vector<32x128xbf16>
    %c96_254 = arith.constant 96 : index
    %c0_255 = arith.constant 0 : index
    %311 = vector.load %arg30[%c96_254, %c0_255] : memref<288x768xbf16, #tpu.memory_space<vmem>>, vector<32x128xbf16>
    tpu.vector_store %arg30[%c96_254, %c0_255], %310 {strides = array<i32>} : memref<288x768xbf16, #tpu.memory_space<vmem>>, vector<32x128xbf16>,
    %312 = arith.truncf %296 : vector<32x128xf32> to vector<32x128xbf16>
    %c128_256 = arith.constant 128 : index
    %c0_257 = arith.constant 0 : index
    %313 = vector.load %arg30[%c128_256, %c0_257] : memref<288x768xbf16, #tpu.memory_space<vmem>>, vector<32x128xbf16>
    tpu.vector_store %arg30[%c128_256, %c0_257], %312 {strides = array<i32>} : memref<288x768xbf16, #tpu.memory_space<vmem>>, vector<32x128xbf16>,
    %c127_i32 = arith.constant 127 : i32
    %314 = tpu.dynamic_rotate %296 by %c127_i32 dim 1 : vector<32x128xf32>, i32 -> vector<32x128xf32>
    %315 = arith.truncf %314 : vector<32x128xf32> to vector<32x128xbf16>
    %c160 = arith.constant 160 : index
    %c0_258 = arith.constant 0 : index
    %316 = vector.load %arg30[%c160, %c0_258] : memref<288x768xbf16, #tpu.memory_space<vmem>>, vector<32x128xbf16>
    tpu.vector_store %arg30[%c160, %c0_258], %315 {strides = array<i32>} : memref<288x768xbf16, #tpu.memory_space<vmem>>, vector<32x128xbf16>,
    %c123_i32 = arith.constant 123 : i32
    %317 = tpu.dynamic_rotate %296 by %c123_i32 dim 1 : vector<32x128xf32>, i32 -> vector<32x128xf32>
    %318 = arith.truncf %317 : vector<32x128xf32> to vector<32x128xbf16>
    %c192 = arith.constant 192 : index
    %c0_259 = arith.constant 0 : index
    %319 = vector.load %arg30[%c192, %c0_259] : memref<288x768xbf16, #tpu.memory_space<vmem>>, vector<32x128xbf16>
    tpu.vector_store %arg30[%c192, %c0_259], %318 {strides = array<i32>} : memref<288x768xbf16, #tpu.memory_space<vmem>>, vector<32x128xbf16>,
    %c122_i32 = arith.constant 122 : i32
    %320 = tpu.dynamic_rotate %296 by %c122_i32 dim 1 : vector<32x128xf32>, i32 -> vector<32x128xf32>
    %321 = arith.truncf %320 : vector<32x128xf32> to vector<32x128xbf16>
    %c224 = arith.constant 224 : index
    %c0_260 = arith.constant 0 : index
    %322 = vector.load %arg30[%c224, %c0_260] : memref<288x768xbf16, #tpu.memory_space<vmem>>, vector<32x128xbf16>
    tpu.vector_store %arg30[%c224, %c0_260], %321 {strides = array<i32>} : memref<288x768xbf16, #tpu.memory_space<vmem>>, vector<32x128xbf16>,
    %c121_i32 = arith.constant 121 : i32
    %323 = tpu.dynamic_rotate %296 by %c121_i32 dim 1 : vector<32x128xf32>, i32 -> vector<32x128xf32>
    %324 = arith.truncf %323 : vector<32x128xf32> to vector<32x128xbf16>
    %c256 = arith.constant 256 : index
    %c0_261 = arith.constant 0 : index
    %325 = vector.load %arg30[%c256, %c0_261] : memref<288x768xbf16, #tpu.memory_space<vmem>>, vector<32x128xbf16>
    tpu.vector_store %arg30[%c256, %c0_261], %324 {strides = array<i32>} : memref<288x768xbf16, #tpu.memory_space<vmem>>, vector<32x128xbf16>,
    %c0_262 = arith.constant 0 : index
    %c0_263 = arith.constant 0 : index
    %326 = vector.load %arg30[%c0_262, %c0_263] : memref<288x768xbf16, #tpu.memory_space<vmem>>, vector<288x128xbf16>
    %cst_264 = arith.constant dense<0.000000e+00> : vector<32x128xf32>
    %327 = tpu.matmul %298, %326, %cst_264 {dimension_numbers = #tpu.dot_dimension_numbers<[1], [0], [0], [1], [0, 0, 1, 1], [], []>} : vector<32x288xbf16>, vector<288x128xbf16>, vector<32x128xf32> -> vector<32x128xf32>
    %328 = vector.broadcast %299 : vector<32x1xf32> to vector<32x128xf32>
    %329 = arith.addf %327, %328 : vector<32x128xf32>
    %cst_265 = arith.constant 0.000000e+00 : f32
    %330 = vector.broadcast %cst_265 : f32 to vector<32x128xf32>
    %331 = arith.cmpf oge, %329, %330 : vector<32x128xf32>
    %cst_266 = arith.constant 2.000000e-01 : f32
    %332 = vector.broadcast %cst_266 : f32 to vector<32x128xf32>
    %333 = arith.mulf %332, %329 : vector<32x128xf32>
    %334 = arith.select %331, %329, %333 : vector<32x128xi1>, vector<32x128xf32>
    %335 = vector.broadcast %297 : vector<1x128xf32> to vector<32x128xf32>
    %336 = arith.mulf %334, %335 : vector<32x128xf32>
    %c0_267 = arith.constant 0 : index
    %c0_268 = arith.constant 0 : index
    %337 = vector.load %arg18[%c0_267, %c0_268] : memref<32x288xbf16, #tpu.memory_space<vmem>>, vector<32x288xbf16>
    %c0_269 = arith.constant 0 : index
    %c0_270 = arith.constant 0 : index
    %338 = vector.load %arg16[%c0_269, %c0_270] : memref<32x1xf32, #tpu.memory_space<vmem>>, vector<32x1xf32>
    %c7_i32_271 = arith.constant 7 : i32
    %339 = tpu.dynamic_rotate %336 by %c7_i32_271 dim 1 : vector<32x128xf32>, i32 -> vector<32x128xf32>
    %340 = arith.truncf %339 : vector<32x128xf32> to vector<32x128xbf16>
    %c0_272 = arith.constant 0 : index
    %c0_273 = arith.constant 0 : index
    %341 = vector.load %arg30[%c0_272, %c0_273] : memref<288x768xbf16, #tpu.memory_space<vmem>>, vector<32x128xbf16>
    tpu.vector_store %arg30[%c0_272, %c0_273], %340 {strides = array<i32>} : memref<288x768xbf16, #tpu.memory_space<vmem>>, vector<32x128xbf16>,
    %c6_i32_274 = arith.constant 6 : i32
    %342 = tpu.dynamic_rotate %336 by %c6_i32_274 dim 1 : vector<32x128xf32>, i32 -> vector<32x128xf32>
    %343 = arith.truncf %342 : vector<32x128xf32> to vector<32x128xbf16>
    %c32_275 = arith.constant 32 : index
    %c0_276 = arith.constant 0 : index
    %344 = vector.load %arg30[%c32_275, %c0_276] : memref<288x768xbf16, #tpu.memory_space<vmem>>, vector<32x128xbf16>
    tpu.vector_store %arg30[%c32_275, %c0_276], %343 {strides = array<i32>} : memref<288x768xbf16, #tpu.memory_space<vmem>>, vector<32x128xbf16>,
    %c5_i32_277 = arith.constant 5 : i32
    %345 = tpu.dynamic_rotate %336 by %c5_i32_277 dim 1 : vector<32x128xf32>, i32 -> vector<32x128xf32>
    %346 = arith.truncf %345 : vector<32x128xf32> to vector<32x128xbf16>
    %c64_278 = arith.constant 64 : index
    %c0_279 = arith.constant 0 : index
    %347 = vector.load %arg30[%c64_278, %c0_279] : memref<288x768xbf16, #tpu.memory_space<vmem>>, vector<32x128xbf16>
    tpu.vector_store %arg30[%c64_278, %c0_279], %346 {strides = array<i32>} : memref<288x768xbf16, #tpu.memory_space<vmem>>, vector<32x128xbf16>,
    %c1_i32_280 = arith.constant 1 : i32
    %348 = tpu.dynamic_rotate %336 by %c1_i32_280 dim 1 : vector<32x128xf32>, i32 -> vector<32x128xf32>
    %349 = arith.truncf %348 : vector<32x128xf32> to vector<32x128xbf16>
    %c96_281 = arith.constant 96 : index
    %c0_282 = arith.constant 0 : index
    %350 = vector.load %arg30[%c96_281, %c0_282] : memref<288x768xbf16, #tpu.memory_space<vmem>>, vector<32x128xbf16>
    tpu.vector_store %arg30[%c96_281, %c0_282], %349 {strides = array<i32>} : memref<288x768xbf16, #tpu.memory_space<vmem>>, vector<32x128xbf16>,
    %351 = arith.truncf %336 : vector<32x128xf32> to vector<32x128xbf16>
    %c128_283 = arith.constant 128 : index
    %c0_284 = arith.constant 0 : index
    %352 = vector.load %arg30[%c128_283, %c0_284] : memref<288x768xbf16, #tpu.memory_space<vmem>>, vector<32x128xbf16>
    tpu.vector_store %arg30[%c128_283, %c0_284], %351 {strides = array<i32>} : memref<288x768xbf16, #tpu.memory_space<vmem>>, vector<32x128xbf16>,
    %c127_i32_285 = arith.constant 127 : i32
    %353 = tpu.dynamic_rotate %336 by %c127_i32_285 dim 1 : vector<32x128xf32>, i32 -> vector<32x128xf32>
    %354 = arith.truncf %353 : vector<32x128xf32> to vector<32x128xbf16>
    %c160_286 = arith.constant 160 : index
    %c0_287 = arith.constant 0 : index
    %355 = vector.load %arg30[%c160_286, %c0_287] : memref<288x768xbf16, #tpu.memory_space<vmem>>, vector<32x128xbf16>
    tpu.vector_store %arg30[%c160_286, %c0_287], %354 {strides = array<i32>} : memref<288x768xbf16, #tpu.memory_space<vmem>>, vector<32x128xbf16>,
    %c123_i32_288 = arith.constant 123 : i32
    %356 = tpu.dynamic_rotate %336 by %c123_i32_288 dim 1 : vector<32x128xf32>, i32 -> vector<32x128xf32>
    %357 = arith.truncf %356 : vector<32x128xf32> to vector<32x128xbf16>
    %c192_289 = arith.constant 192 : index
    %c0_290 = arith.constant 0 : index
    %358 = vector.load %arg30[%c192_289, %c0_290] : memref<288x768xbf16, #tpu.memory_space<vmem>>, vector<32x128xbf16>
    tpu.vector_store %arg30[%c192_289, %c0_290], %357 {strides = array<i32>} : memref<288x768xbf16, #tpu.memory_space<vmem>>, vector<32x128xbf16>,
    %c122_i32_291 = arith.constant 122 : i32
    %359 = tpu.dynamic_rotate %336 by %c122_i32_291 dim 1 : vector<32x128xf32>, i32 -> vector<32x128xf32>
    %360 = arith.truncf %359 : vector<32x128xf32> to vector<32x128xbf16>
    %c224_292 = arith.constant 224 : index
    %c0_293 = arith.constant 0 : index
    %361 = vector.load %arg30[%c224_292, %c0_293] : memref<288x768xbf16, #tpu.memory_space<vmem>>, vector<32x128xbf16>
    tpu.vector_store %arg30[%c224_292, %c0_293], %360 {strides = array<i32>} : memref<288x768xbf16, #tpu.memory_space<vmem>>, vector<32x128xbf16>,
    %c121_i32_294 = arith.constant 121 : i32
    %362 = tpu.dynamic_rotate %336 by %c121_i32_294 dim 1 : vector<32x128xf32>, i32 -> vector<32x128xf32>
    %363 = arith.truncf %362 : vector<32x128xf32> to vector<32x128xbf16>
    %c256_295 = arith.constant 256 : index
    %c0_296 = arith.constant 0 : index
    %364 = vector.load %arg30[%c256_295, %c0_296] : memref<288x768xbf16, #tpu.memory_space<vmem>>, vector<32x128xbf16>
    tpu.vector_store %arg30[%c256_295, %c0_296], %363 {strides = array<i32>} : memref<288x768xbf16, #tpu.memory_space<vmem>>, vector<32x128xbf16>,
    %c0_297 = arith.constant 0 : index
    %c0_298 = arith.constant 0 : index
    %365 = vector.load %arg30[%c0_297, %c0_298] : memref<288x768xbf16, #tpu.memory_space<vmem>>, vector<288x128xbf16>
    %cst_299 = arith.constant dense<0.000000e+00> : vector<32x128xf32>
    %366 = tpu.matmul %337, %365, %cst_299 {dimension_numbers = #tpu.dot_dimension_numbers<[1], [0], [0], [1], [0, 0, 1, 1], [], []>} : vector<32x288xbf16>, vector<288x128xbf16>, vector<32x128xf32> -> vector<32x128xf32>
    %367 = vector.broadcast %338 : vector<32x1xf32> to vector<32x128xf32>
    %368 = arith.addf %366, %367 : vector<32x128xf32>
    %cst_300 = arith.constant 1.000000e-01 : f32
    %369 = vector.broadcast %cst_300 : f32 to vector<32x128xf32>
    %370 = arith.mulf %369, %368 : vector<32x128xf32>
    %371 = arith.addf %296, %370 : vector<32x128xf32>
    %cst_301 = arith.constant 0.000000e+00 : f32
    %372 = vector.broadcast %cst_301 : f32 to vector<32x128xf32>
    %373 = arith.cmpf oge, %371, %372 : vector<32x128xf32>
    %cst_302 = arith.constant 2.000000e-01 : f32
    %374 = vector.broadcast %cst_302 : f32 to vector<32x128xf32>
    %375 = arith.mulf %374, %371 : vector<32x128xf32>
    %376 = arith.select %373, %371, %375 : vector<32x128xi1>, vector<32x128xf32>
    %377 = vector.broadcast %297 : vector<1x128xf32> to vector<32x128xf32>
    %378 = arith.mulf %376, %377 : vector<32x128xf32>
    %c0_303 = arith.constant 0 : index
    %c0_304 = arith.constant 0 : index
    %379 = vector.load %arg23[%c0_303, %c0_304] : memref<32x128xf32, #tpu.memory_space<vmem>>, vector<32x128xf32>
    %380 = arith.mulf %378, %379 : vector<32x128xf32>
    %381 = arith.truncf %380 : vector<32x128xf32> to vector<32x128xbf16>
    %c0_305 = arith.constant 0 : index
    %c0_306 = arith.constant 0 : index
    %382 = vector.load %arg22[%c0_305, %c0_306] : memref<128x2xbf16, #tpu.memory_space<vmem>>, vector<128x2xbf16>
    %cst_307 = arith.constant dense<0.000000e+00> : vector<32x2xf32>
    %383 = tpu.matmul %381, %382, %cst_307 {dimension_numbers = #tpu.dot_dimension_numbers<[1], [0], [0], [1], [0, 0, 1, 1], [], []>} : vector<32x128xbf16>, vector<128x2xbf16>, vector<32x2xf32> -> vector<32x2xf32>
    %cst_308 = arith.constant dense<0.000000e+00> : vector<2xf32>
    %384 = vector.multi_reduction <add>, %383, %cst_308 [0] : vector<32x2xf32> to vector<2xf32>
    %385 = vector.shape_cast %384 : vector<2xf32> to vector<1x2xf32>
    %c0_309 = arith.constant 0 : index
    %c0_310 = arith.constant 0 : index
    %386 = vector.load %arg21[%c0_309, %c0_310] : memref<1x2xf32, #tpu.memory_space<vmem>>, vector<1x2xf32>
    %387 = arith.addf %385, %386 : vector<1x2xf32>
    %388 = math.absf %387 : vector<1x2xf32>
    %cst_311 = arith.constant 0.000000e+00 : f32
    %389 = vector.broadcast %cst_311 : f32 to vector<1x2xf32>
    %390 = arith.subf %389, %388 : vector<1x2xf32>
    %391 = math.exp %390 : vector<1x2xf32>
    %cst_312 = arith.constant 0.000000e+00 : f32
    %392 = vector.broadcast %cst_312 : f32 to vector<1x2xf32>
    %393 = arith.cmpf oge, %387, %392 : vector<1x2xf32>
    %cst_313 = arith.constant 1.000000e+00 : f32
    %394 = vector.broadcast %cst_313 : f32 to vector<1x2xf32>
    %395 = arith.addf %394, %391 : vector<1x2xf32>
    %cst_314 = arith.constant 1.000000e+00 : f32
    %396 = vector.broadcast %cst_314 : f32 to vector<1x2xf32>
    %397 = arith.divf %396, %395 : vector<1x2xf32>
    %cst_315 = arith.constant 1.000000e+00 : f32
    %398 = vector.broadcast %cst_315 : f32 to vector<1x2xf32>
    %399 = arith.addf %398, %391 : vector<1x2xf32>
    %400 = arith.divf %391, %399 : vector<1x2xf32>
    %401 = arith.select %393, %397, %400 : vector<1x2xi1>, vector<1x2xf32>
    %c0_316 = arith.constant 0 : index
    %c0_317 = arith.constant 0 : index
    %402 = vector.load %arg29[%c0_316, %c0_317] : memref<1x2xf32, #tpu.memory_space<vmem>>, vector<1x2xf32>
    tpu.vector_store %arg29[%c0_316, %c0_317], %401 {strides = array<i32>} : memref<1x2xf32, #tpu.memory_space<vmem>>, vector<1x2xf32>,
    return
  }
}

</mosaic_0001>

<llo_original>
// kernel: discriminator_forward.1
$region0: #{discriminator_forward.1}
  #allocation0 [shape = 'u32[]', space=smem, size = 0x4, offset = 0x4, fixed_abs, tag = 'smem constant byte address 0x4 - core index']
  #allocation1 [shape = 'u32[72,128]{1,0:T(1,128)}', space=vmem, size = 0x9000, scoped, tag = 'internal scratch']
  #allocation2 [shape = 'bf16[288,768]{1,0:T(8,128)(2,1)}', space=vmem, size = 0x6c000, scoped, tag = 'scratch operand']
  %s0 = inlined_call_operand.smem [shape: u32[30], index: -1, kind: input, shape index: {}]
  %s1 = sld [smem:[%s0]]
  %s2 = scalar_lea.smem %s0, 1
  %s3 = sld [smem:[%s2]]
  %s4 = scalar_lea.smem %s0, 2
  %s5 = sld [smem:[%s4]]
  %s6 = scalar_lea.smem %s0, 3
  %s7 = sld [smem:[%s6]]
  %s8 = scalar_lea.smem %s0, 4
  %s9 = sld [smem:[%s8]]
  %s10 = scalar_lea.smem %s0, 5
  %s11 = sld [smem:[%s10]]
  %s12 = scalar_lea.smem %s0, 6
  %s13 = sld [smem:[%s12]]
  %s14 = scalar_lea.smem %s0, 7
  %s15 = sld [smem:[%s14]]
  %s16 = scalar_lea.smem %s0, 8
  %s17 = sld [smem:[%s16]]
  %s18 = scalar_lea.smem %s0, 9
  %s19 = sld [smem:[%s18]]
  %s20 = scalar_lea.smem %s0, 10
  %s21 = sld [smem:[%s20]]
  %s22 = scalar_lea.smem %s0, 11
  %s23 = sld [smem:[%s22]]
  %s24 = scalar_lea.smem %s0, 12
  %s25 = sld [smem:[%s24]]
  %s26 = scalar_lea.smem %s0, 13
  %s27 = sld [smem:[%s26]]
  %s28 = scalar_lea.smem %s0, 14
  %s29 = sld [smem:[%s28]]
  %s30 = scalar_lea.smem %s0, 15
  %s31 = sld [smem:[%s30]]
  %s32 = scalar_lea.smem %s0, 16
  %s33 = sld [smem:[%s32]]
  %s34 = scalar_lea.smem %s0, 17
  %s35 = sld [smem:[%s34]]
  %s36 = scalar_lea.smem %s0, 18
  %s37 = sld [smem:[%s36]]
  %s38 = scalar_lea.smem %s0, 19
  %s39 = sld [smem:[%s38]]
  %s40 = scalar_lea.smem %s0, 20
  %s41 = sld [smem:[%s40]]
  %s42 = scalar_lea.smem %s0, 21
  %s43 = sld [smem:[%s42]]
  %s44 = scalar_lea.smem %s0, 22
  %s45 = sld [smem:[%s44]]
  %s46 = scalar_lea.smem %s0, 23
  %s47 = sld [smem:[%s46]]
  %s48 = scalar_lea.smem %s0, 24
  %s49 = sld [smem:[%s48]]
  %s50 = scalar_lea.smem %s0, 25
  %s51 = sld [smem:[%s50]]
  %s52 = scalar_lea.smem %s0, 26
  %s53 = sld [smem:[%s52]]
  %s54 = scalar_lea.smem %s0, 27
  %s55 = sld [smem:[%s54]]
  %s56 = scalar_lea.smem %s0, 28
  %s57 = sld [smem:[%s56]]
  %s58 = scalar_lea.smem %s0, 29
  %s59 = sld [smem:[%s58]]
  %s60 = sld [smem:[#allocation0]]
  $region126: #{discriminator_forward.1} parent=0
    _
  %s62 = ssub.s32 1, %s60
  %s63 = scalar_select 0, %s62, %s60
  $region1: #{discriminator_forward.1} parent=0
    #allocation3 [shape = 'u8[512]{0}', space=vmem, size = 0x400, scoped, tag = 'output window, operand 0, single buffered']
    #allocation4 [shape = 's32[1]{0}', space=sflag, size = 0x4, scoped, tag = 'scoped memory for discriminator_forward.1']
    %64 = vsyncpa [#allocation4], 0
    // Predicated region
    $region2: #{discriminator_forward.1} parent=1 // pred_check
      _
    $region3: #{discriminator_forward.1} parent=1 // pred_check_branch
      %66 = sbr.rel (0) target = $region5
    $region4: #{discriminator_forward.1} parent=1 // pred_region
      _
    $region5: #{discriminator_forward.1} parent=1 // pred_fallthru
      _
    // Predicated region
    $region6: #{discriminator_forward.1} parent=1 // pred_check
      _
    $region7: #{discriminator_forward.1} parent=1 // pred_check_branch
      %68 = sbr.rel (0) target = $region9
    $region8: #{discriminator_forward.1} parent=1 // pred_region
      _
    $region9: #{discriminator_forward.1} parent=1 // pred_fallthru
      _
    // Predicated region
    $region10: #{discriminator_forward.1} parent=1 // pred_check
      _
    $region11: #{discriminator_forward.1} parent=1 // pred_check_branch
      %70 = sbr.rel (0) target = $region13
    $region12: #{discriminator_forward.1} parent=1 // pred_region
      _
    $region13: #{discriminator_forward.1} parent=1 // pred_fallthru
      _
    // Predicated region
    $region14: #{discriminator_forward.1} parent=1 // pred_check
      _
    $region15: #{discriminator_forward.1} parent=1 // pred_check_branch
      %72 = sbr.rel (0) target = $region17
    $region16: #{discriminator_forward.1} parent=1 // pred_region
      _
    $region17: #{discriminator_forward.1} parent=1 // pred_fallthru
      _
    // Predicated region
    $region18: #{discriminator_forward.1} parent=1 // pred_check
      _
    $region19: #{discriminator_forward.1} parent=1 // pred_check_branch
      %74 = sbr.rel (0) target = $region21
    $region20: #{discriminator_forward.1} parent=1 // pred_region
      _
    $region21: #{discriminator_forward.1} parent=1 // pred_fallthru
      _
    // Predicated region
    $region22: #{discriminator_forward.1} parent=1 // pred_check
      _
    $region23: #{discriminator_forward.1} parent=1 // pred_check_branch
      %76 = sbr.rel (0) target = $region25
    $region24: #{discriminator_forward.1} parent=1 // pred_region
      _
    $region25: #{discriminator_forward.1} parent=1 // pred_fallthru
      _
    // Predicated region
    $region26: #{discriminator_forward.1} parent=1 // pred_check
      _
    $region27: #{discriminator_forward.1} parent=1 // pred_check_branch
      %78 = sbr.rel (0) target = $region29
    $region28: #{discriminator_forward.1} parent=1 // pred_region
      _
    $region29: #{discriminator_forward.1} parent=1 // pred_fallthru
      _
    // Predicated region
    $region30: #{discriminator_forward.1} parent=1 // pred_check
      _
    $region31: #{discriminator_forward.1} parent=1 // pred_check_branch
      %80 = sbr.rel (0) target = $region33
    $region32: #{discriminator_forward.1} parent=1 // pred_region
      _
    $region33: #{discriminator_forward.1} parent=1 // pred_fallthru
      _
    // Predicated region
    $region34: #{discriminator_forward.1} parent=1 // pred_check
      _
    $region35: #{discriminator_forward.1} parent=1 // pred_check_branch
      %82 = sbr.rel (0) target = $region37
    $region36: #{discriminator_forward.1} parent=1 // pred_region
      _
    $region37: #{discriminator_forward.1} parent=1 // pred_fallthru
      _
    // Predicated region
    $region38: #{discriminator_forward.1} parent=1 // pred_check
      _
    $region39: #{discriminator_forward.1} parent=1 // pred_check_branch
      %84 = sbr.rel (0) target = $region41
    $region40: #{discriminator_forward.1} parent=1 // pred_region
      _
    $region41: #{discriminator_forward.1} parent=1 // pred_fallthru
      _
    // Predicated region
    $region42: #{discriminator_forward.1} parent=1 // pred_check
      _
    $region43: #{discriminator_forward.1} parent=1 // pred_check_branch
      %86 = sbr.rel (0) target = $region45
    $region44: #{discriminator_forward.1} parent=1 // pred_region
      _
    $region45: #{discriminator_forward.1} parent=1 // pred_fallthru
      _
    // Predicated region
    $region46: #{discriminator_forward.1} parent=1 // pred_check
      _
    $region47: #{discriminator_forward.1} parent=1 // pred_check_branch
      %88 = sbr.rel (0) target = $region49
    $region48: #{discriminator_forward.1} parent=1 // pred_region
      _
    $region49: #{discriminator_forward.1} parent=1 // pred_fallthru
      _
    // Predicated region
    $region50: #{discriminator_forward.1} parent=1 // pred_check
      _
    $region51: #{discriminator_forward.1} parent=1 // pred_check_branch
      %90 = sbr.rel (0) target = $region53
    $region52: #{discriminator_forward.1} parent=1 // pred_region
      _
    $region53: #{discriminator_forward.1} parent=1 // pred_fallthru
      _
    // Predicated region
    $region54: #{discriminator_forward.1} parent=1 // pred_check
      _
    $region55: #{discriminator_forward.1} parent=1 // pred_check_branch
      %92 = sbr.rel (0) target = $region57
    $region56: #{discriminator_forward.1} parent=1 // pred_region
      _
    $region57: #{discriminator_forward.1} parent=1 // pred_fallthru
      _
    // Predicated region
    $region58: #{discriminator_forward.1} parent=1 // pred_check
      _
    $region59: #{discriminator_forward.1} parent=1 // pred_check_branch
      %94 = sbr.rel (0) target = $region61
    $region60: #{discriminator_forward.1} parent=1 // pred_region
      _
    $region61: #{discriminator_forward.1} parent=1 // pred_fallthru
      _
    // Predicated region
    $region62: #{discriminator_forward.1} parent=1 // pred_check
      _
    $region63: #{discriminator_forward.1} parent=1 // pred_check_branch
      %96 = sbr.rel (0) target = $region65
    $region64: #{discriminator_forward.1} parent=1 // pred_region
      _
    $region65: #{discriminator_forward.1} parent=1 // pred_fallthru
      _
    // Predicated region
    $region66: #{discriminator_forward.1} parent=1 // pred_check
      _
    $region67: #{discriminator_forward.1} parent=1 // pred_check_branch
      %98 = sbr.rel (0) target = $region69
    $region68: #{discriminator_forward.1} parent=1 // pred_region
      _
    $region69: #{discriminator_forward.1} parent=1 // pred_fallthru
      _
    // Predicated region
    $region70: #{discriminator_forward.1} parent=1 // pred_check
      _
    $region71: #{discriminator_forward.1} parent=1 // pred_check_branch
      %100 = sbr.rel (0) target = $region73
    $region72: #{discriminator_forward.1} parent=1 // pred_region
      _
    $region73: #{discriminator_forward.1} parent=1 // pred_fallthru
      _
    // Predicated region
    $region74: #{discriminator_forward.1} parent=1 // pred_check
      _
    $region75: #{discriminator_forward.1} parent=1 // pred_check_branch
      %102 = sbr.rel (0) target = $region77
    $region76: #{discriminator_forward.1} parent=1 // pred_region
      _
    $region77: #{discriminator_forward.1} parent=1 // pred_fallthru
      _
    // Predicated region
    $region78: #{discriminator_forward.1} parent=1 // pred_check
      _
    $region79: #{discriminator_forward.1} parent=1 // pred_check_branch
      %104 = sbr.rel (0) target = $region81
    $region80: #{discriminator_forward.1} parent=1 // pred_region
      _
    $region81: #{discriminator_forward.1} parent=1 // pred_fallthru
      _
    // Predicated region
    $region82: #{discriminator_forward.1} parent=1 // pred_check
      _
    $region83: #{discriminator_forward.1} parent=1 // pred_check_branch
      %106 = sbr.rel (0) target = $region85
    $region84: #{discriminator_forward.1} parent=1 // pred_region
      _
    $region85: #{discriminator_forward.1} parent=1 // pred_fallthru
      _
    // Predicated region
    $region86: #{discriminator_forward.1} parent=1 // pred_check
      _
    $region87: #{discriminator_forward.1} parent=1 // pred_check_branch
      %108 = sbr.rel (0) target = $region89
    $region88: #{discriminator_forward.1} parent=1 // pred_region
      _
    $region89: #{discriminator_forward.1} parent=1 // pred_fallthru
      _
    // Predicated region
    $region90: #{discriminator_forward.1} parent=1 // pred_check
      _
    $region91: #{discriminator_forward.1} parent=1 // pred_check_branch
      %110 = sbr.rel (0) target = $region93
    $region92: #{discriminator_forward.1} parent=1 // pred_region
      _
    $region93: #{discriminator_forward.1} parent=1 // pred_fallthru
      _
    // Predicated region
    $region94: #{discriminator_forward.1} parent=1 // pred_check
      _
    $region95: #{discriminator_forward.1} parent=1 // pred_check_branch
      %112 = sbr.rel (0) target = $region97
    $region96: #{discriminator_forward.1} parent=1 // pred_region
      _
    $region97: #{discriminator_forward.1} parent=1 // pred_fallthru
      _
    // Predicated region
    $region98: #{discriminator_forward.1} parent=1 // pred_check
      _
    $region99: #{discriminator_forward.1} parent=1 // pred_check_branch
      %114 = sbr.rel (0) target = $region101
    $region100: #{discriminator_forward.1} parent=1 // pred_region
      _
    $region101: #{discriminator_forward.1} parent=1 // pred_fallthru
      _
    // Predicated region
    $region102: #{discriminator_forward.1} parent=1 // pred_check
      _
    $region103: #{discriminator_forward.1} parent=1 // pred_check_branch
      %116 = sbr.rel (0) target = $region105
    $region104: #{discriminator_forward.1} parent=1 // pred_region
      _
    $region105: #{discriminator_forward.1} parent=1 // pred_fallthru
      _
    // Predicated region
    $region106: #{discriminator_forward.1} parent=1 // pred_check
      _
    $region107: #{discriminator_forward.1} parent=1 // pred_check_branch
      %118 = sbr.rel (0) target = $region109
    $region108: #{discriminator_forward.1} parent=1 // pred_region
      _
    $region109: #{discriminator_forward.1} parent=1 // pred_fallthru
      _
    // Predicated region
    $region110: #{discriminator_forward.1} parent=1 // pred_check
      _
    $region111: #{discriminator_forward.1} parent=1 // pred_check_branch
      %120 = sbr.rel (0) target = $region113
    $region112: #{discriminator_forward.1} parent=1 // pred_region
      _
    $region113: #{discriminator_forward.1} parent=1 // pred_fallthru
      _
    // Predicated region
    $region114: #{discriminator_forward.1} parent=1 // pred_check
      _
    $region115: #{discriminator_forward.1} parent=1 // pred_check_branch
      %122 = sbr.rel (0) target = $region117
    $region116: #{discriminator_forward.1} parent=1 // pred_region
      _
    $region117: #{discriminator_forward.1} parent=1 // pred_fallthru
      _
    %v124 = vld [vmem:[%s49] sm:$0x3f]
    %v125 = vld [vmem:[%s1] sm:$0xff]
    %v126 = vld [vmem:[%s1 + $0x8] sm:$0xff]
    %v127 = vld [vmem:[%s1 + $0x10] sm:$0xff]
    %v128 = vld [vmem:[%s1 + $0x18] sm:$0xff]
    %v129 = vld [vmem:[%s1 + $0x20] sm:$0xff]
    %v130 = vld [vmem:[%s1 + $0x28] sm:$0xff]
    %v131 = vld [vmem:[%s1 + $0x30] sm:$0xff]
    %v132 = vld [vmem:[%s1 + $0x38] sm:$0xff]
    %v133 = vld [vmem:[%s1 + $0x40] sm:$0xff]
    %v134 = vld [vmem:[%s1 + $0x48] sm:$0xff]
    %v135 = vld [vmem:[%s1 + $0x50] sm:$0xff]
    %v136 = vld [vmem:[%s1 + $0x58] sm:$0xff]
    %v137 = vld [vmem:[%s41] sm:$0xff]
    %v138 = vld [vmem:[%s41 + $0x8] sm:$0xff]
    %v139 = vld [vmem:[%s39] sm:$0xff]
    %v140 = vld [vmem:[%s39 + $0x8] sm:$0xff]
    %141 = vrot.lane.b32.xlu0 %v125, 19
    %v142 = vpop.permute.xlu0 %141
    %143 = vrot.lane.b32.xlu0 %v131, 19
    %v144 = vpop.permute.xlu0 %143
    %145 = vrot.lane.b32.xlu0 %v126, 19
    %v146 = vpop.permute.xlu0 %145
    %147 = vrot.lane.b32.xlu0 %v132, 19
    %v148 = vpop.permute.xlu0 %147
    %149 = vrot.lane.b32.xlu0 %v127, 19
    %v150 = vpop.permute.xlu0 %149
    %151 = vrot.lane.b32.xlu0 %v133, 19
    %v152 = vpop.permute.xlu0 %151
    %153 = vrot.lane.b32.xlu0 %v128, 19
    %v154 = vpop.permute.xlu0 %153
    %155 = vrot.lane.b32.xlu0 %v134, 19
    %v156 = vpop.permute.xlu0 %155
    %157 = vrot.lane.b32.xlu0 %v129, 19
    %v158 = vpop.permute.xlu0 %157
    %159 = vrot.lane.b32.xlu0 %v135, 19
    %v160 = vpop.permute.xlu0 %159
    %161 = vrot.lane.b32.xlu0 %v130, 19
    %v162 = vpop.permute.xlu0 %161
    %163 = vrot.lane.b32.xlu0 %v136, 19
    %v164 = vpop.permute.xlu0 %163
    %v165 = vlaneseq
    %v166 = vand.u32 %v165, 127
    %vm167 = vcmp.lt.s32.totalorder %v166, 19
    %v168 = vsel %vm167, %v158, %v162
    %v169 = vsel %vm167, %v160, %v164
    %v170 = vsel %vm167, %v154, %v158
    %v171 = vsel %vm167, %v156, %v160
    %v172 = vsel %vm167, %v150, %v154
    %v173 = vsel %vm167, %v152, %v156
    %v174 = vsel %vm167, %v146, %v150
    %v175 = vsel %vm167, %v148, %v152
    %v176 = vsel %vm167, %v142, %v146
    %v177 = vsel %vm167, %v144, %v148
    %v178 = vsel %vm167, %v162, %v142
    %v179 = vsel %vm167, %v164, %v144
    %v180 = vpack.c.bf16 %v176, %v178
    %v181 = vpack.c.bf16 %v172, %v174
    %v182 = vpack.c.bf16 %v168, %v170
    %v183 = vpack.c.bf16 %v177, %v179
    %v184 = vpack.c.bf16 %v173, %v175
    %v185 = vpack.c.bf16 %v169, %v171
    %186 = vst [vmem:[#allocation2] sm:$0xff] %v180
    %187 = vst [vmem:[#allocation2 + $0x8] sm:$0xff] %v181
    %188 = vst [vmem:[#allocation2 + $0x10] sm:$0xff] %v182
    %189 = vst [vmem:[#allocation2 + $0x18] sm:$0xff] %v183
    %190 = vst [vmem:[#allocation2 + $0x20] sm:$0xff] %v184
    %191 = vst [vmem:[#allocation2 + $0x28] sm:$0xff] %v185
    %192 = vrot.lane.b32.xlu0 %v125, 18
    %v193 = vpop.permute.xlu0 %192
    %194 = vrot.lane.b32.xlu0 %v131, 18
    %v195 = vpop.permute.xlu0 %194
    %196 = vrot.lane.b32.xlu0 %v126, 18
    %v197 = vpop.permute.xlu0 %196
    %198 = vrot.lane.b32.xlu0 %v132, 18
    %v199 = vpop.permute.xlu0 %198
    %200 = vrot.lane.b32.xlu0 %v127, 18
    %v201 = vpop.permute.xlu0 %200
    %202 = vrot.lane.b32.xlu0 %v133, 18
    %v203 = vpop.permute.xlu0 %202
    %204 = vrot.lane.b32.xlu0 %v128, 18
    %v205 = vpop.permute.xlu0 %204
    %206 = vrot.lane.b32.xlu0 %v134, 18
    %v207 = vpop.permute.xlu0 %206
    %208 = vrot.lane.b32.xlu0 %v129, 18
    %v209 = vpop.permute.xlu0 %208
    %210 = vrot.lane.b32.xlu0 %v135, 18
    %v211 = vpop.permute.xlu0 %210
    %212 = vrot.lane.b32.xlu0 %v130, 18
    %v213 = vpop.permute.xlu0 %212
    %214 = vrot.lane.b32.xlu0 %v136, 18
    %v215 = vpop.permute.xlu0 %214
    %vm216 = vcmp.lt.s32.totalorder %v166, 18
    %v217 = vsel %vm216, %v209, %v213
    %v218 = vsel %vm216, %v211, %v215
    %v219 = vsel %vm216, %v205, %v209
    %v220 = vsel %vm216, %v207, %v211
    %v221 = vsel %vm216, %v201, %v205
    %v222 = vsel %vm216, %v203, %v207
    %v223 = vsel %vm216, %v197, %v201
    %v224 = vsel %vm216, %v199, %v203
    %v225 = vsel %vm216, %v193, %v197
    %v226 = vsel %vm216, %v195, %v199
    %v227 = vsel %vm216, %v213, %v193
    %v228 = vsel %vm216, %v215, %v195
    %v229 = vpack.c.bf16 %v225, %v227
    %v230 = vpack.c.bf16 %v221, %v223
    %v231 = vpack.c.bf16 %v217, %v219
    %v232 = vpack.c.bf16 %v226, %v228
    %v233 = vpack.c.bf16 %v222, %v224
    %v234 = vpack.c.bf16 %v218, %v220
    %235 = vst [vmem:[#allocation2 + $0x30] sm:$0xff] %v229
    %236 = vst [vmem:[#allocation2 + $0x38] sm:$0xff] %v230
    %237 = vst [vmem:[#allocation2 + $0x40] sm:$0xff] %v231
    %238 = vst [vmem:[#allocation2 + $0x48] sm:$0xff] %v232
    %239 = vst [vmem:[#allocation2 + $0x50] sm:$0xff] %v233
    %240 = vst [vmem:[#allocation2 + $0x58] sm:$0xff] %v234
    %241 = vrot.lane.b32.xlu0 %v125, 17
    %v242 = vpop.permute.xlu0 %241
    %243 = vrot.lane.b32.xlu0 %v131, 17
    %v244 = vpop.permute.xlu0 %243
    %245 = vrot.lane.b32.xlu0 %v126, 17
    %v246 = vpop.permute.xlu0 %245
    %247 = vrot.lane.b32.xlu0 %v132, 17
    %v248 = vpop.permute.xlu0 %247
    %249 = vrot.lane.b32.xlu0 %v127, 17
    %v250 = vpop.permute.xlu0 %249
    %251 = vrot.lane.b32.xlu0 %v133, 17
    %v252 = vpop.permute.xlu0 %251
    %253 = vrot.lane.b32.xlu0 %v128, 17
    %v254 = vpop.permute.xlu0 %253
    %255 = vrot.lane.b32.xlu0 %v134, 17
    %v256 = vpop.permute.xlu0 %255
    %257 = vrot.lane.b32.xlu0 %v129, 17
    %v258 = vpop.permute.xlu0 %257
    %259 = vrot.lane.b32.xlu0 %v135, 17
    %v260 = vpop.permute.xlu0 %259
    %261 = vrot.lane.b32.xlu0 %v130, 17
    %v262 = vpop.permute.xlu0 %261
    %263 = vrot.lane.b32.xlu0 %v136, 17
    %v264 = vpop.permute.xlu0 %263
    %vm265 = vcmp.lt.s32.totalorder %v166, 17
    %v266 = vsel %vm265, %v258, %v262
    %v267 = vsel %vm265, %v260, %v264
    %v268 = vsel %vm265, %v254, %v258
    %v269 = vsel %vm265, %v256, %v260
    %v270 = vsel %vm265, %v250, %v254
    %v271 = vsel %vm265, %v252, %v256
    %v272 = vsel %vm265, %v246, %v250
    %v273 = vsel %vm265, %v248, %v252
    %v274 = vsel %vm265, %v242, %v246
    %v275 = vsel %vm265, %v244, %v248
    %v276 = vsel %vm265, %v262, %v242
    %v277 = vsel %vm265, %v264, %v244
    %v278 = vpack.c.bf16 %v274, %v276
    %v279 = vpack.c.bf16 %v270, %v272
    %v280 = vpack.c.bf16 %v266, %v268
    %v281 = vpack.c.bf16 %v275, %v277
    %v282 = vpack.c.bf16 %v271, %v273
    %v283 = vpack.c.bf16 %v267, %v269
    %284 = vst [vmem:[#allocation2 + $0x60] sm:$0xff] %v278
    %285 = vst [vmem:[#allocation2 + $0x68] sm:$0xff] %v279
    %286 = vst [vmem:[#allocation2 + $0x70] sm:$0xff] %v280
    %287 = vst [vmem:[#allocation2 + $0x78] sm:$0xff] %v281
    %288 = vst [vmem:[#allocation2 + $0x80] sm:$0xff] %v282
    %289 = vst [vmem:[#allocation2 + $0x88] sm:$0xff] %v283
    %290 = vrot.lane.b32.xlu0 %v125, 1
    %v291 = vpop.permute.xlu0 %290
    %292 = vrot.lane.b32.xlu0 %v131, 1
    %v293 = vpop.permute.xlu0 %292
    %294 = vrot.lane.b32.xlu0 %v126, 1
    %v295 = vpop.permute.xlu0 %294
    %296 = vrot.lane.b32.xlu0 %v132, 1
    %v297 = vpop.permute.xlu0 %296
    %298 = vrot.lane.b32.xlu0 %v127, 1
    %v299 = vpop.permute.xlu0 %298
    %300 = vrot.lane.b32.xlu0 %v133, 1
    %v301 = vpop.permute.xlu0 %300
    %302 = vrot.lane.b32.xlu0 %v128, 1
    %v303 = vpop.permute.xlu0 %302
    %304 = vrot.lane.b32.xlu0 %v134, 1
    %v305 = vpop.permute.xlu0 %304
    %306 = vrot.lane.b32.xlu0 %v129, 1
    %v307 = vpop.permute.xlu0 %306
    %308 = vrot.lane.b32.xlu0 %v135, 1
    %v309 = vpop.permute.xlu0 %308
    %310 = vrot.lane.b32.xlu0 %v130, 1
    %v311 = vpop.permute.xlu0 %310
    %312 = vrot.lane.b32.xlu0 %v136, 1
    %v313 = vpop.permute.xlu0 %312
    %vm314 = vcmp.lt.s32.totalorder %v166, 1
    %v315 = vsel %vm314, %v307, %v311
    %v316 = vsel %vm314, %v309, %v313
    %v317 = vsel %vm314, %v303, %v307
    %v318 = vsel %vm314, %v305, %v309
    %v319 = vsel %vm314, %v299, %v303
    %v320 = vsel %vm314, %v301, %v305
    %v321 = vsel %vm314, %v295, %v299
    %v322 = vsel %vm314, %v297, %v301
    %v323 = vsel %vm314, %v291, %v295
    %v324 = vsel %vm314, %v293, %v297
    %v325 = vsel %vm314, %v311, %v291
    %v326 = vsel %vm314, %v313, %v293
    %v327 = vpack.c.bf16 %v323, %v325
    %v328 = vpack.c.bf16 %v319, %v321
    %v329 = vpack.c.bf16 %v315, %v317
    %v330 = vpack.c.bf16 %v324, %v326
    %v331 = vpack.c.bf16 %v320, %v322
    %v332 = vpack.c.bf16 %v316, %v318
    %333 = vst [vmem:[#allocation2 + $0x90] sm:$0xff] %v327
    %334 = vst [vmem:[#allocation2 + $0x98] sm:$0xff] %v328
    %335 = vst [vmem:[#allocation2 + $0xa0] sm:$0xff] %v329
    %336 = vst [vmem:[#allocation2 + $0xa8] sm:$0xff] %v330
    %337 = vst [vmem:[#allocation2 + $0xb0] sm:$0xff] %v331
    %338 = vst [vmem:[#allocation2 + $0xb8] sm:$0xff] %v332
    %v339 = vpack.c.bf16 %v126, %v125
    %v340 = vpack.c.bf16 %v128, %v127
    %v341 = vpack.c.bf16 %v130, %v129
    %v342 = vpack.c.bf16 %v132, %v131
    %v343 = vpack.c.bf16 %v134, %v133
    %v344 = vpack.c.bf16 %v136, %v135
    %345 = vst [vmem:[#allocation2 + $0xc0] sm:$0xff] %v339
    %346 = vst [vmem:[#allocation2 + $0xc8] sm:$0xff] %v340
    %347 = vst [vmem:[#allocation2 + $0xd0] sm:$0xff] %v341
    %348 = vst [vmem:[#allocation2 + $0xd8] sm:$0xff] %v342
    %349 = vst [vmem:[#allocation2 + $0xe0] sm:$0xff] %v343
    %350 = vst [vmem:[#allocation2 + $0xe8] sm:$0xff] %v344
    %351 = vrot.lane.b32.xlu0 %v125, 127
    %v352 = vpop.permute.xlu0 %351
    %353 = vrot.lane.b32.xlu0 %v131, 127
    %v354 = vpop.permute.xlu0 %353
    %355 = vrot.lane.b32.xlu0 %v126, 127
    %v356 = vpop.permute.xlu0 %355
    %357 = vrot.lane.b32.xlu0 %v132, 127
    %v358 = vpop.permute.xlu0 %357
    %359 = vrot.lane.b32.xlu0 %v127, 127
    %v360 = vpop.permute.xlu0 %359
    %361 = vrot.lane.b32.xlu0 %v133, 127
    %v362 = vpop.permute.xlu0 %361
    %363 = vrot.lane.b32.xlu0 %v128, 127
    %v364 = vpop.permute.xlu0 %363
    %365 = vrot.lane.b32.xlu0 %v134, 127
    %v366 = vpop.permute.xlu0 %365
    %367 = vrot.lane.b32.xlu0 %v129, 127
    %v368 = vpop.permute.xlu0 %367
    %369 = vrot.lane.b32.xlu0 %v135, 127
    %v370 = vpop.permute.xlu0 %369
    %371 = vrot.lane.b32.xlu0 %v130, 127
    %v372 = vpop.permute.xlu0 %371
    %373 = vrot.lane.b32.xlu0 %v136, 127
    %v374 = vpop.permute.xlu0 %373
    %vm375 = vcmp.lt.s32.totalorder %v166, 127
    %v376 = vsel %vm375, %v368, %v372
    %v377 = vsel %vm375, %v370, %v374
    %v378 = vsel %vm375, %v364, %v368
    %v379 = vsel %vm375, %v366, %v370
    %v380 = vsel %vm375, %v360, %v364
    %v381 = vsel %vm375, %v362, %v366
    %v382 = vsel %vm375, %v356, %v360
    %v383 = vsel %vm375, %v358, %v362
    %v384 = vsel %vm375, %v352, %v356
    %v385 = vsel %vm375, %v354, %v358
    %v386 = vsel %vm375, %v372, %v352
    %v387 = vsel %vm375, %v374, %v354
    %v388 = vpack.c.bf16 %v382, %v384
    %v389 = vpack.c.bf16 %v378, %v380
    %v390 = vpack.c.bf16 %v386, %v376
    %v391 = vpack.c.bf16 %v383, %v385
    %v392 = vpack.c.bf16 %v379, %v381
    %v393 = vpack.c.bf16 %v387, %v377
    %394 = vst [vmem:[#allocation2 + $0xf0] sm:$0xff] %v388
    %395 = vst [vmem:[#allocation2 + $0xf8] sm:$0xff] %v389
    %396 = vst [vmem:[#allocation2 + $0x100] sm:$0xff] %v390
    %397 = vst [vmem:[#allocation2 + $0x108] sm:$0xff] %v391
    %398 = vst [vmem:[#allocation2 + $0x110] sm:$0xff] %v392
    %399 = vst [vmem:[#allocation2 + $0x118] sm:$0xff] %v393
    %400 = vrot.lane.b32.xlu0 %v125, 111
    %v401 = vpop.permute.xlu0 %400
    %402 = vrot.lane.b32.xlu0 %v131, 111
    %v403 = vpop.permute.xlu0 %402
    %404 = vrot.lane.b32.xlu0 %v126, 111
    %v405 = vpop.permute.xlu0 %404
    %406 = vrot.lane.b32.xlu0 %v132, 111
    %v407 = vpop.permute.xlu0 %406
    %408 = vrot.lane.b32.xlu0 %v127, 111
    %v409 = vpop.permute.xlu0 %408
    %410 = vrot.lane.b32.xlu0 %v133, 111
    %v411 = vpop.permute.xlu0 %410
    %412 = vrot.lane.b32.xlu0 %v128, 111
    %v413 = vpop.permute.xlu0 %412
    %414 = vrot.lane.b32.xlu0 %v134, 111
    %v415 = vpop.permute.xlu0 %414
    %416 = vrot.lane.b32.xlu0 %v129, 111
    %v417 = vpop.permute.xlu0 %416
    %418 = vrot.lane.b32.xlu0 %v135, 111
    %v419 = vpop.permute.xlu0 %418
    %420 = vrot.lane.b32.xlu0 %v130, 111
    %v421 = vpop.permute.xlu0 %420
    %422 = vrot.lane.b32.xlu0 %v136, 111
    %v423 = vpop.permute.xlu0 %422
    %vm424 = vcmp.lt.s32.totalorder %v166, 111
    %v425 = vsel %vm424, %v417, %v421
    %v426 = vsel %vm424, %v419, %v423
    %v427 = vsel %vm424, %v413, %v417
    %v428 = vsel %vm424, %v415, %v419
    %v429 = vsel %vm424, %v409, %v413
    %v430 = vsel %vm424, %v411, %v415
    %v431 = vsel %vm424, %v405, %v409
    %v432 = vsel %vm424, %v407, %v411
    %v433 = vsel %vm424, %v401, %v405
    %v434 = vsel %vm424, %v403, %v407
    %v435 = vsel %vm424, %v421, %v401
    %v436 = vsel %vm424, %v423, %v403
    %v437 = vpack.c.bf16 %v431, %v433
    %v438 = vpack.c.bf16 %v427, %v429
    %v439 = vpack.c.bf16 %v435, %v425
    %v440 = vpack.c.bf16 %v432, %v434
    %v441 = vpack.c.bf16 %v428, %v430
    %v442 = vpack.c.bf16 %v436, %v426
    %443 = vst [vmem:[#allocation2 + $0x120] sm:$0xff] %v437
    %444 = vst [vmem:[#allocation2 + $0x128] sm:$0xff] %v438
    %445 = vst [vmem:[#allocation2 + $0x130] sm:$0xff] %v439
    %446 = vst [vmem:[#allocation2 + $0x138] sm:$0xff] %v440
    %447 = vst [vmem:[#allocation2 + $0x140] sm:$0xff] %v441
    %448 = vst [vmem:[#allocation2 + $0x148] sm:$0xff] %v442
    %449 = vrot.lane.b32.xlu0 %v125, 110
    %v450 = vpop.permute.xlu0 %449
    %451 = vrot.lane.b32.xlu0 %v131, 110
    %v452 = vpop.permute.xlu0 %451
    %453 = vrot.lane.b32.xlu0 %v126, 110
    %v454 = vpop.permute.xlu0 %453
    %455 = vrot.lane.b32.xlu0 %v132, 110
    %v456 = vpop.permute.xlu0 %455
    %457 = vrot.lane.b32.xlu0 %v127, 110
    %v458 = vpop.permute.xlu0 %457
    %459 = vrot.lane.b32.xlu0 %v133, 110
    %v460 = vpop.permute.xlu0 %459
    %461 = vrot.lane.b32.xlu0 %v128, 110
    %v462 = vpop.permute.xlu0 %461
    %463 = vrot.lane.b32.xlu0 %v134, 110
    %v464 = vpop.permute.xlu0 %463
    %465 = vrot.lane.b32.xlu0 %v129, 110
    %v466 = vpop.permute.xlu0 %465
    %467 = vrot.lane.b32.xlu0 %v135, 110
    %v468 = vpop.permute.xlu0 %467
    %469 = vrot.lane.b32.xlu0 %v130, 110
    %v470 = vpop.permute.xlu0 %469
    %471 = vrot.lane.b32.xlu0 %v136, 110
    %v472 = vpop.permute.xlu0 %471
    %vm473 = vcmp.lt.s32.totalorder %v166, 110
    %v474 = vsel %vm473, %v466, %v470
    %v475 = vsel %vm473, %v468, %v472
    %v476 = vsel %vm473, %v462, %v466
    %v477 = vsel %vm473, %v464, %v468
    %v478 = vsel %vm473, %v458, %v462
    %v479 = vsel %vm473, %v460, %v464
    %v480 = vsel %vm473, %v454, %v458
    %v481 = vsel %vm473, %v456, %v460
    %v482 = vsel %vm473, %v450, %v454
    %v483 = vsel %vm473, %v452, %v456
    %v484 = vsel %vm473, %v470, %v450
    %v485 = vsel %vm473, %v472, %v452
    %v486 = vpack.c.bf16 %v480, %v482
    %v487 = vpack.c.bf16 %v476, %v478
    %v488 = vpack.c.bf16 %v484, %v474
    %v489 = vpack.c.bf16 %v481, %v483
    %v490 = vpack.c.bf16 %v477, %v479
    %v491 = vpack.c.bf16 %v485, %v475
    %492 = vst [vmem:[#allocation2 + $0x150] sm:$0xff] %v486
    %493 = vst [vmem:[#allocation2 + $0x158] sm:$0xff] %v487
    %494 = vst [vmem:[#allocation2 + $0x160] sm:$0xff] %v488
    %495 = vst [vmem:[#allocation2 + $0x168] sm:$0xff] %v489
    %496 = vst [vmem:[#allocation2 + $0x170] sm:$0xff] %v490
    %497 = vst [vmem:[#allocation2 + $0x178] sm:$0xff] %v491
    %498 = vrot.lane.b32.xlu0 %v125, 109
    %v499 = vpop.permute.xlu0 %498
    %500 = vrot.lane.b32.xlu0 %v131, 109
    %v501 = vpop.permute.xlu0 %500
    %502 = vrot.lane.b32.xlu0 %v126, 109
    %v503 = vpop.permute.xlu0 %502
    %504 = vrot.lane.b32.xlu0 %v132, 109
    %v505 = vpop.permute.xlu0 %504
    %506 = vrot.lane.b32.xlu0 %v127, 109
    %v507 = vpop.permute.xlu0 %506
    %508 = vrot.lane.b32.xlu0 %v133, 109
    %v509 = vpop.permute.xlu0 %508
    %510 = vrot.lane.b32.xlu0 %v128, 109
    %v511 = vpop.permute.xlu0 %510
    %512 = vrot.lane.b32.xlu0 %v134, 109
    %v513 = vpop.permute.xlu0 %512
    %514 = vrot.lane.b32.xlu0 %v129, 109
    %v515 = vpop.permute.xlu0 %514
    %516 = vrot.lane.b32.xlu0 %v135, 109
    %v517 = vpop.permute.xlu0 %516
    %518 = vrot.lane.b32.xlu0 %v130, 109
    %v519 = vpop.permute.xlu0 %518
    %520 = vrot.lane.b32.xlu0 %v136, 109
    %v521 = vpop.permute.xlu0 %520
    %vm522 = vcmp.lt.s32.totalorder %v166, 109
    %v523 = vsel %vm522, %v515, %v519
    %v524 = vsel %vm522, %v517, %v521
    %v525 = vsel %vm522, %v511, %v515
    %v526 = vsel %vm522, %v513, %v517
    %v527 = vsel %vm522, %v507, %v511
    %v528 = vsel %vm522, %v509, %v513
    %v529 = vsel %vm522, %v503, %v507
    %v530 = vsel %vm522, %v505, %v509
    %v531 = vsel %vm522, %v499, %v503
    %v532 = vsel %vm522, %v501, %v505
    %v533 = vsel %vm522, %v519, %v499
    %v534 = vsel %vm522, %v521, %v501
    %v535 = vpack.c.bf16 %v529, %v531
    %v536 = vpack.c.bf16 %v525, %v527
    %v537 = vpack.c.bf16 %v533, %v523
    %v538 = vpack.c.bf16 %v530, %v532
    %v539 = vpack.c.bf16 %v526, %v528
    %v540 = vpack.c.bf16 %v534, %v524
    %541 = vst [vmem:[#allocation2 + $0x180] sm:$0xff] %v535
    %542 = vst [vmem:[#allocation2 + $0x188] sm:$0xff] %v536
    %543 = vst [vmem:[#allocation2 + $0x190] sm:$0xff] %v537
    %544 = vst [vmem:[#allocation2 + $0x198] sm:$0xff] %v538
    %545 = vst [vmem:[#allocation2 + $0x1a0] sm:$0xff] %v539
    %546 = vst [vmem:[#allocation2 + $0x1a8] sm:$0xff] %v540
    %v547 = vld [vmem:[#allocation2] sm:$0xff]
    %v548 = vld [vmem:[#allocation2 + $0x8] sm:$0xff]
    %v549 = vld [vmem:[#allocation2 + $0x10] sm:$0xff]
    %v550 = vld [vmem:[#allocation2 + $0x18] sm:$0xff]
    %v551 = vld [vmem:[#allocation2 + $0x20] sm:$0xff]
    %v552 = vld [vmem:[#allocation2 + $0x28] sm:$0xff]
    %v553 = vld [vmem:[#allocation2 + $0x30] sm:$0xff]
    %v554 = vld [vmem:[#allocation2 + $0x38] sm:$0xff]
    %v555 = vld [vmem:[#allocation2 + $0x40] sm:$0xff]
    %v556 = vld [vmem:[#allocation2 + $0x48] sm:$0xff]
    %v557 = vld [vmem:[#allocation2 + $0x50] sm:$0xff]
    %v558 = vld [vmem:[#allocation2 + $0x58] sm:$0xff]
    %v559 = vld [vmem:[#allocation2 + $0x60] sm:$0xff]
    %v560 = vld [vmem:[#allocation2 + $0x68] sm:$0xff]
    %v561 = vld [vmem:[#allocation2 + $0x70] sm:$0xff]
    %v562 = vld [vmem:[#allocation2 + $0x78] sm:$0xff]
    %v563 = vld [vmem:[#allocation2 + $0x80] sm:$0xff]
    %v564 = vld [vmem:[#allocation2 + $0x88] sm:$0xff]
    %v565 = vld [vmem:[#allocation2 + $0x90] sm:$0xff]
    %v566 = vld [vmem:[#allocation2 + $0x98] sm:$0xff]
    %v567 = vld [vmem:[#allocation2 + $0xa0] sm:$0xff]
    %v568 = vld [vmem:[#allocation2 + $0xa8] sm:$0xff]
    %v569 = vld [vmem:[#allocation2 + $0xb0] sm:$0xff]
    %v570 = vld [vmem:[#allocation2 + $0xb8] sm:$0xff]
    %v571 = vld [vmem:[#allocation2 + $0xc0] sm:$0xff]
    %v572 = vld [vmem:[#allocation2 + $0xc8] sm:$0xff]
    %v573 = vld [vmem:[#allocation2 + $0xd0] sm:$0xff]
    %v574 = vld [vmem:[#allocation2 + $0xd8] sm:$0xff]
    %v575 = vld [vmem:[#allocation2 + $0xe0] sm:$0xff]
    %v576 = vld [vmem:[#allocation2 + $0xe8] sm:$0xff]
    %v577 = vld [vmem:[#allocation2 + $0xf0] sm:$0xff]
    %v578 = vld [vmem:[#allocation2 + $0xf8] sm:$0xff]
    %v579 = vld [vmem:[#allocation2 + $0x100] sm:$0xff]
    %v580 = vld [vmem:[#allocation2 + $0x108] sm:$0xff]
    %v581 = vld [vmem:[#allocation2 + $0x110] sm:$0xff]
    %v582 = vld [vmem:[#allocation2 + $0x118] sm:$0xff]
    %v583 = vld [vmem:[#allocation2 + $0x120] sm:$0xff]
    %v584 = vld [vmem:[#allocation2 + $0x128] sm:$0xff]
    %v585 = vld [vmem:[#allocation2 + $0x130] sm:$0xff]
    %v586 = vld [vmem:[#allocation2 + $0x138] sm:$0xff]
    %v587 = vld [vmem:[#allocation2 + $0x140] sm:$0xff]
    %v588 = vld [vmem:[#allocation2 + $0x148] sm:$0xff]
    %v589 = vld [vmem:[#allocation2 + $0x150] sm:$0xff]
    %v590 = vld [vmem:[#allocation2 + $0x158] sm:$0xff]
    %v591 = vld [vmem:[#allocation2 + $0x160] sm:$0xff]
    %v592 = vld [vmem:[#allocation2 + $0x168] sm:$0xff]
    %v593 = vld [vmem:[#allocation2 + $0x170] sm:$0xff]
    %v594 = vld [vmem:[#allocation2 + $0x178] sm:$0xff]
    %v595 = vld [vmem:[#allocation2 + $0x180] sm:$0xff]
    %v596 = vld [vmem:[#allocation2 + $0x188] sm:$0xff]
    %v597 = vld [vmem:[#allocation2 + $0x190] sm:$0xff]
    %v598 = vld [vmem:[#allocation2 + $0x198] sm:$0xff]
    %v599 = vld [vmem:[#allocation2 + $0x1a0] sm:$0xff]
    %v600 = vld [vmem:[#allocation2 + $0x1a8] sm:$0xff]
    %602 = vset.pattern.permute.xlu0 0
    %603 = vperm.xlu0 %602, %v139
    %v604 = vpop.permute.xlu0 %603
    %607 = vset.pattern.permute.xlu0 0
    %608 = vperm.xlu0 %607, %v140
    %v609 = vpop.permute.xlu0 %608
    %v613 = vunpack.c.l.b16 %v137
    %v614 = vunpack.c.h.b16 %v137
    %v615 = vunpack.c.l.b16 %v138
    %v616 = vunpack.c.h.b16 %v138
    %v617 = vpack.c.b16 %v615, %v613
    %v618 = vpack.c.b16 %v616, %v614
    %v674 = vunpack.c.l.b16 %v547
    %v675 = vunpack.c.h.b16 %v547
    %v676 = vunpack.c.l.b16 %v548
    %v677 = vunpack.c.h.b16 %v548
    %v678 = vunpack.c.l.b16 %v549
    %v679 = vunpack.c.h.b16 %v549
    %v680 = vunpack.c.l.b16 %v550
    %v681 = vunpack.c.h.b16 %v550
    %v682 = vunpack.c.l.b16 %v551
    %v683 = vunpack.c.h.b16 %v551
    %v684 = vunpack.c.l.b16 %v552
    %v685 = vunpack.c.h.b16 %v552
    %v686 = vunpack.c.l.b16 %v553
    %v687 = vunpack.c.h.b16 %v553
    %v688 = vunpack.c.l.b16 %v554
    %v689 = vunpack.c.h.b16 %v554
    %v690 = vunpack.c.l.b16 %v555
    %v691 = vunpack.c.h.b16 %v555
    %v692 = vunpack.c.l.b16 %v556
    %v693 = vunpack.c.h.b16 %v556
    %v694 = vunpack.c.l.b16 %v557
    %v695 = vunpack.c.h.b16 %v557
    %v696 = vunpack.c.l.b16 %v558
    %v697 = vunpack.c.h.b16 %v558
    %v698 = vunpack.c.l.b16 %v559
    %v699 = vunpack.c.h.b16 %v559
    %v700 = vunpack.c.l.b16 %v560
    %v701 = vunpack.c.h.b16 %v560
    %v702 = vunpack.c.l.b16 %v561
    %v703 = vunpack.c.h.b16 %v561
    %v704 = vunpack.c.l.b16 %v562
    %v705 = vunpack.c.h.b16 %v562
    %v706 = vunpack.c.l.b16 %v563
    %v707 = vunpack.c.h.b16 %v563
    %v708 = vunpack.c.l.b16 %v564
    %v709 = vunpack.c.h.b16 %v564
    %v710 = vunpack.c.l.b16 %v565
    %v711 = vunpack.c.h.b16 %v565
    %v712 = vunpack.c.l.b16 %v566
    %v713 = vunpack.c.h.b16 %v566
    %v714 = vunpack.c.l.b16 %v567
    %v715 = vunpack.c.h.b16 %v567
    %v716 = vunpack.c.l.b16 %v568
    %v717 = vunpack.c.h.b16 %v568
    %v718 = vunpack.c.l.b16 %v569
    %v719 = vunpack.c.h.b16 %v569
    %v720 = vunpack.c.l.b16 %v570
    %v721 = vunpack.c.h.b16 %v570
    %v722 = vunpack.c.l.b16 %v571
    %v723 = vunpack.c.h.b16 %v571
    %v724 = vunpack.c.l.b16 %v572
    %v725 = vunpack.c.h.b16 %v572
    %v726 = vunpack.c.l.b16 %v573
    %v727 = vunpack.c.h.b16 %v573
    %v728 = vunpack.c.l.b16 %v574
    %v729 = vunpack.c.h.b16 %v574
    %v730 = vunpack.c.l.b16 %v575
    %v731 = vunpack.c.h.b16 %v575
    %v732 = vunpack.c.l.b16 %v576
    %v733 = vunpack.c.h.b16 %v576
    %v734 = vunpack.c.l.b16 %v577
    %v735 = vunpack.c.h.b16 %v577
    %v736 = vunpack.c.l.b16 %v578
    %v737 = vunpack.c.h.b16 %v578
    %v738 = vunpack.c.l.b16 %v579
    %v739 = vunpack.c.h.b16 %v579
    %v740 = vunpack.c.l.b16 %v580
    %v741 = vunpack.c.h.b16 %v580
    %v742 = vunpack.c.l.b16 %v581
    %v743 = vunpack.c.h.b16 %v581
    %v744 = vunpack.c.l.b16 %v582
    %v745 = vunpack.c.h.b16 %v582
    %v746 = vunpack.c.l.b16 %v583
    %v747 = vunpack.c.h.b16 %v583
    %v748 = vunpack.c.l.b16 %v584
    %v749 = vunpack.c.h.b16 %v584
    %v750 = vunpack.c.l.b16 %v585
    %v751 = vunpack.c.h.b16 %v585
    %v752 = vunpack.c.l.b16 %v586
    %v753 = vunpack.c.h.b16 %v586
    %v754 = vunpack.c.l.b16 %v587
    %v755 = vunpack.c.h.b16 %v587
    %v756 = vunpack.c.l.b16 %v588
    %v757 = vunpack.c.h.b16 %v588
    %v758 = vunpack.c.l.b16 %v589
    %v759 = vunpack.c.h.b16 %v589
    %v760 = vunpack.c.l.b16 %v590
    %v761 = vunpack.c.h.b16 %v590
    %v762 = vunpack.c.l.b16 %v591
    %v763 = vunpack.c.h.b16 %v591
    %v764 = vunpack.c.l.b16 %v592
    %v765 = vunpack.c.h.b16 %v592
    %v766 = vunpack.c.l.b16 %v593
    %v767 = vunpack.c.h.b16 %v593
    %v768 = vunpack.c.l.b16 %v594
    %v769 = vunpack.c.h.b16 %v594
    %v770 = vunpack.c.l.b16 %v595
    %v771 = vunpack.c.h.b16 %v595
    %v772 = vunpack.c.l.b16 %v596
    %v773 = vunpack.c.h.b16 %v596
    %v774 = vunpack.c.l.b16 %v597
    %v775 = vunpack.c.h.b16 %v597
    %v776 = vunpack.c.l.b16 %v598
    %v777 = vunpack.c.h.b16 %v598
    %v778 = vunpack.c.l.b16 %v599
    %v779 = vunpack.c.h.b16 %v599
    %v780 = vunpack.c.l.b16 %v600
    %v781 = vunpack.c.h.b16 %v600
    %v782 = vpack.c.b16 %v680, %v674
    %v783 = vpack.c.b16 %v681, %v675
    %v784 = vpack.c.b16 %v682, %v676
    %v785 = vpack.c.b16 %v683, %v677
    %v786 = vpack.c.b16 %v684, %v678
    %v787 = vpack.c.b16 %v685, %v679
    %v788 = vpack.c.b16 %v692, %v686
    %v789 = vpack.c.b16 %v693, %v687
    %v790 = vpack.c.b16 %v694, %v688
    %v791 = vpack.c.b16 %v695, %v689
    %v792 = vpack.c.b16 %v696, %v690
    %v793 = vpack.c.b16 %v697, %v691
    %v794 = vpack.c.b16 %v704, %v698
    %v795 = vpack.c.b16 %v705, %v699
    %v796 = vpack.c.b16 %v706, %v700
    %v797 = vpack.c.b16 %v707, %v701
    %v798 = vpack.c.b16 %v708, %v702
    %v799 = vpack.c.b16 %v709, %v703
    %v800 = vpack.c.b16 %v716, %v710
    %v801 = vpack.c.b16 %v717, %v711
    %v802 = vpack.c.b16 %v718, %v712
    %v803 = vpack.c.b16 %v719, %v713
    %v804 = vpack.c.b16 %v720, %v714
    %v805 = vpack.c.b16 %v721, %v715
    %v806 = vpack.c.b16 %v728, %v722
    %v807 = vpack.c.b16 %v729, %v723
    %v808 = vpack.c.b16 %v730, %v724
    %v809 = vpack.c.b16 %v731, %v725
    %v810 = vpack.c.b16 %v732, %v726
    %v811 = vpack.c.b16 %v733, %v727
    %v812 = vpack.c.b16 %v740, %v734
    %v813 = vpack.c.b16 %v741, %v735
    %v814 = vpack.c.b16 %v742, %v736
    %v815 = vpack.c.b16 %v743, %v737
    %v816 = vpack.c.b16 %v744, %v738
    %v817 = vpack.c.b16 %v745, %v739
    %v818 = vpack.c.b16 %v752, %v746
    %v819 = vpack.c.b16 %v753, %v747
    %v820 = vpack.c.b16 %v754, %v748
    %v821 = vpack.c.b16 %v755, %v749
    %v822 = vpack.c.b16 %v756, %v750
    %v823 = vpack.c.b16 %v757, %v751
    %v824 = vpack.c.b16 %v764, %v758
    %v825 = vpack.c.b16 %v765, %v759
    %v826 = vpack.c.b16 %v766, %v760
    %v827 = vpack.c.b16 %v767, %v761
    %v828 = vpack.c.b16 %v768, %v762
    %v829 = vpack.c.b16 %v769, %v763
    %v830 = vpack.c.b16 %v776, %v770
    %v831 = vpack.c.b16 %v777, %v771
    %v832 = vpack.c.b16 %v778, %v772
    %v833 = vpack.c.b16 %v779, %v773
    %v834 = vpack.c.b16 %v780, %v774
    %v835 = vpack.c.b16 %v781, %v775
    %vm890 = vcmask 130048
    %v892 = vsel %vm890, %v618, 0
    %894 = vmatpush.bf16.msra.mxu0 %v824
    %895 = vmatpush.bf16.msra.mxu0 %v818
    %896 = vmatpush.bf16.msra.mxu0 %v812
    %897 = vmatpush.bf16.msra.mxu0 %v806
    %898 = vmatpush.bf16.msra.mxu0 %v800
    %899 = vmatpush.bf16.msra.mxu0 %v794
    %900 = vmatpush.bf16.msra.mxu0 %v788
    %901 = vmatpush.bf16.msra.mxu0 %v782
    %902 = vmatmul.bf16.gmra.mxu0 %v617
    %v903 = vpop.f32.mrf.mxu0
    %v904 = vadd.f32 %v604, %v903
    %v905 = vpop.f32.mrf.mxu0
    %v906 = vadd.f32 %v609, %v905
    %907 = vdwg.mxu0
    %908 = vmatpush.bf16.msra.mxu0 0
    %909 = vmatpush.bf16.msra.mxu0 0
    %910 = vmatpush.bf16.msra.mxu0 0
    %911 = vmatpush.bf16.msra.mxu0 0
    %912 = vmatpush.bf16.msra.mxu0 0
    %913 = vmatpush.bf16.msra.mxu0 0
    %914 = vmatpush.bf16.msra.mxu0 0
    %915 = vmatpush.bf16.msra.mxu0 %v830
    %916 = vmatmul.bf16.gmra.mxu0 %v892
    %v917 = vpop.f32.mrf.mxu0
    %v918 = vadd.f32 %v904, %v917
    %v919 = vpop.f32.mrf.mxu0
    %v920 = vadd.f32 %v906, %v919
    %921 = vdwg.mxu0
    %922 = vmatpush.bf16.msra.mxu0 %v825
    %923 = vmatpush.bf16.msra.mxu0 %v819
    %924 = vmatpush.bf16.msra.mxu0 %v813
    %925 = vmatpush.bf16.msra.mxu0 %v807
    %926 = vmatpush.bf16.msra.mxu0 %v801
    %927 = vmatpush.bf16.msra.mxu0 %v795
    %928 = vmatpush.bf16.msra.mxu0 %v789
    %929 = vmatpush.bf16.msra.mxu0 %v783
    %930 = vmatmul.bf16.gmra.mxu0 %v617
    %v931 = vpop.f32.mrf.mxu0
    %v932 = vadd.f32 %v604, %v931
    %v933 = vpop.f32.mrf.mxu0
    %v934 = vadd.f32 %v609, %v933
    %935 = vdwg.mxu0
    %936 = vmatpush.bf16.msra.mxu0 0
    %937 = vmatpush.bf16.msra.mxu0 0
    %938 = vmatpush.bf16.msra.mxu0 0
    %939 = vmatpush.bf16.msra.mxu0 0
    %940 = vmatpush.bf16.msra.mxu0 0
    %941 = vmatpush.bf16.msra.mxu0 0
    %942 = vmatpush.bf16.msra.mxu0 0
    %943 = vmatpush.bf16.msra.mxu0 %v831
    %944 = vmatmul.bf16.gmra.mxu0 %v892
    %v945 = vpop.f32.mrf.mxu0
    %v946 = vadd.f32 %v932, %v945
    %v947 = vpop.f32.mrf.mxu0
    %v948 = vadd.f32 %v934, %v947
    %949 = vdwg.mxu0
    %950 = vmatpush.bf16.msra.mxu0 %v826
    %951 = vmatpush.bf16.msra.mxu0 %v820
    %952 = vmatpush.bf16.msra.mxu0 %v814
    %953 = vmatpush.bf16.msra.mxu0 %v808
    %954 = vmatpush.bf16.msra.mxu0 %v802
    %955 = vmatpush.bf16.msra.mxu0 %v796
    %956 = vmatpush.bf16.msra.mxu0 %v790
    %957 = vmatpush.bf16.msra.mxu0 %v784
    %958 = vmatmul.bf16.gmra.mxu0 %v617
    %v959 = vpop.f32.mrf.mxu0
    %v960 = vadd.f32 %v604, %v959
    %v961 = vpop.f32.mrf.mxu0
    %v962 = vadd.f32 %v609, %v961
    %963 = vdwg.mxu0
    %964 = vmatpush.bf16.msra.mxu0 0
    %965 = vmatpush.bf16.msra.mxu0 0
    %966 = vmatpush.bf16.msra.mxu0 0
    %967 = vmatpush.bf16.msra.mxu0 0
    %968 = vmatpush.bf16.msra.mxu0 0
    %969 = vmatpush.bf16.msra.mxu0 0
    %970 = vmatpush.bf16.msra.mxu0 0
    %971 = vmatpush.bf16.msra.mxu0 %v832
    %972 = vmatmul.bf16.gmra.mxu0 %v892
    %v973 = vpop.f32.mrf.mxu0
    %v974 = vadd.f32 %v960, %v973
    %v975 = vpop.f32.mrf.mxu0
    %v976 = vadd.f32 %v962, %v975
    %977 = vdwg.mxu0
    %978 = vmatpush.bf16.msra.mxu0 %v827
    %979 = vmatpush.bf16.msra.mxu0 %v821
    %980 = vmatpush.bf16.msra.mxu0 %v815
    %981 = vmatpush.bf16.msra.mxu0 %v809
    %982 = vmatpush.bf16.msra.mxu0 %v803
    %983 = vmatpush.bf16.msra.mxu0 %v797
    %984 = vmatpush.bf16.msra.mxu0 %v791
    %985 = vmatpush.bf16.msra.mxu0 %v785
    %986 = vmatmul.bf16.gmra.mxu0 %v617
    %v987 = vpop.f32.mrf.mxu0
    %v988 = vadd.f32 %v604, %v987
    %v989 = vpop.f32.mrf.mxu0
    %v990 = vadd.f32 %v609, %v989
    %991 = vdwg.mxu0
    %992 = vmatpush.bf16.msra.mxu0 0
    %993 = vmatpush.bf16.msra.mxu0 0
    %994 = vmatpush.bf16.msra.mxu0 0
    %995 = vmatpush.bf16.msra.mxu0 0
    %996 = vmatpush.bf16.msra.mxu0 0
    %997 = vmatpush.bf16.msra.mxu0 0
    %998 = vmatpush.bf16.msra.mxu0 0
    %999 = vmatpush.bf16.msra.mxu0 %v833
    %1000 = vmatmul.bf16.gmra.mxu0 %v892
    %v1001 = vpop.f32.mrf.mxu0
    %v1002 = vadd.f32 %v988, %v1001
    %v1003 = vpop.f32.mrf.mxu0
    %v1004 = vadd.f32 %v990, %v1003
    %1005 = vdwg.mxu0
    %1006 = vmatpush.bf16.msra.mxu0 %v828
    %1007 = vmatpush.bf16.msra.mxu0 %v822
    %1008 = vmatpush.bf16.msra.mxu0 %v816
    %1009 = vmatpush.bf16.msra.mxu0 %v810
    %1010 = vmatpush.bf16.msra.mxu0 %v804
    %1011 = vmatpush.bf16.msra.mxu0 %v798
    %1012 = vmatpush.bf16.msra.mxu0 %v792
    %1013 = vmatpush.bf16.msra.mxu0 %v786
    %1014 = vmatmul.bf16.gmra.mxu0 %v617
    %v1015 = vpop.f32.mrf.mxu0
    %v1016 = vadd.f32 %v604, %v1015
    %v1017 = vpop.f32.mrf.mxu0
    %v1018 = vadd.f32 %v609, %v1017
    %1019 = vdwg.mxu0
    %1020 = vmatpush.bf16.msra.mxu0 0
    %1021 = vmatpush.bf16.msra.mxu0 0
    %1022 = vmatpush.bf16.msra.mxu0 0
    %1023 = vmatpush.bf16.msra.mxu0 0
    %1024 = vmatpush.bf16.msra.mxu0 0
    %1025 = vmatpush.bf16.msra.mxu0 0
    %1026 = vmatpush.bf16.msra.mxu0 0
    %1027 = vmatpush.bf16.msra.mxu0 %v834
    %1028 = vmatmul.bf16.gmra.mxu0 %v892
    %v1029 = vpop.f32.mrf.mxu0
    %v1030 = vadd.f32 %v1016, %v1029
    %v1031 = vpop.f32.mrf.mxu0
    %v1032 = vadd.f32 %v1018, %v1031
    %1033 = vdwg.mxu0
    %1034 = vmatpush.bf16.msra.mxu0 %v829
    %1035 = vmatpush.bf16.msra.mxu0 %v823
    %1036 = vmatpush.bf16.msra.mxu0 %v817
    %1037 = vmatpush.bf16.msra.mxu0 %v811
    %1038 = vmatpush.bf16.msra.mxu0 %v805
    %1039 = vmatpush.bf16.msra.mxu0 %v799
    %1040 = vmatpush.bf16.msra.mxu0 %v793
    %1041 = vmatpush.bf16.msra.mxu0 %v787
    %1042 = vmatmul.bf16.gmra.mxu0 %v617
    %v1043 = vpop.f32.mrf.mxu0
    %v1044 = vadd.f32 %v604, %v1043
    %v1045 = vpop.f32.mrf.mxu0
    %v1046 = vadd.f32 %v609, %v1045
    %1047 = vdwg.mxu0
    %1048 = vmatpush.bf16.msra.mxu0 0
    %1049 = vmatpush.bf16.msra.mxu0 0
    %1050 = vmatpush.bf16.msra.mxu0 0
    %1051 = vmatpush.bf16.msra.mxu0 0
    %1052 = vmatpush.bf16.msra.mxu0 0
    %1053 = vmatpush.bf16.msra.mxu0 0
    %1054 = vmatpush.bf16.msra.mxu0 0
    %1055 = vmatpush.bf16.msra.mxu0 %v835
    %1056 = vmatmul.bf16.gmra.mxu0 %v892
    %v1057 = vpop.f32.mrf.mxu0
    %v1058 = vadd.f32 %v1044, %v1057
    %v1059 = vpop.f32.mrf.mxu0
    %v1060 = vadd.f32 %v1046, %v1059
    %1061 = vdwg.mxu0
    %vm1062 = vcmp.ge.f32.partialorder %v918, 0.0
    %vm1063 = vcmp.ge.f32.partialorder %v946, 0.0
    %vm1064 = vcmp.ge.f32.partialorder %v974, 0.0
    %vm1065 = vcmp.ge.f32.partialorder %v1002, 0.0
    %vm1066 = vcmp.ge.f32.partialorder %v1030, 0.0
    %vm1067 = vcmp.ge.f32.partialorder %v1058, 0.0
    %vm1068 = vcmp.ge.f32.partialorder %v920, 0.0
    %vm1069 = vcmp.ge.f32.partialorder %v948, 0.0
    %vm1070 = vcmp.ge.f32.partialorder %v976, 0.0
    %vm1071 = vcmp.ge.f32.partialorder %v1004, 0.0
    %vm1072 = vcmp.ge.f32.partialorder %v1032, 0.0
    %vm1073 = vcmp.ge.f32.partialorder %v1060, 0.0
    %v1074 = vmul.f32 %v918, 0.2
    %v1075 = vmul.f32 %v946, 0.2
    %v1076 = vmul.f32 %v974, 0.2
    %v1077 = vmul.f32 %v1002, 0.2
    %v1078 = vmul.f32 %v1030, 0.2
    %v1079 = vmul.f32 %v1058, 0.2
    %v1080 = vmul.f32 %v920, 0.2
    %v1081 = vmul.f32 %v948, 0.2
    %v1082 = vmul.f32 %v976, 0.2
    %v1083 = vmul.f32 %v1004, 0.2
    %v1084 = vmul.f32 %v1032, 0.2
    %v1085 = vmul.f32 %v1060, 0.2
    %v1086 = vsel %vm1062, %v918, %v1074
    %v1087 = vsel %vm1063, %v946, %v1075
    %v1088 = vsel %vm1064, %v974, %v1076
    %v1089 = vsel %vm1065, %v1002, %v1077
    %v1090 = vsel %vm1066, %v1030, %v1078
    %v1091 = vsel %vm1067, %v1058, %v1079
    %v1092 = vsel %vm1068, %v920, %v1080
    %v1093 = vsel %vm1069, %v948, %v1081
    %v1094 = vsel %vm1070, %v976, %v1082
    %v1095 = vsel %vm1071, %v1004, %v1083
    %v1096 = vsel %vm1072, %v1032, %v1084
    %v1097 = vsel %vm1073, %v1060, %v1085
    %v1099 = vperm.slane %v124, 0
    %v1100 = vperm.slane %v124, 1
    %v1101 = vperm.slane %v124, 2
    %v1102 = vperm.slane %v124, 3
    %v1103 = vperm.slane %v124, 4
    %v1104 = vperm.slane %v124, 5
    %v1111 = vmul.f32 %v1086, %v1099
    %v1112 = vmul.f32 %v1087, %v1100
    %v1113 = vmul.f32 %v1088, %v1101
    %v1114 = vmul.f32 %v1089, %v1102
    %v1115 = vmul.f32 %v1090, %v1103
    %v1116 = vmul.f32 %v1091, %v1104
    %v1117 = vmul.f32 %v1092, %v1099
    %v1118 = vmul.f32 %v1093, %v1100
    %v1119 = vmul.f32 %v1094, %v1101
    %v1120 = vmul.f32 %v1095, %v1102
    %v1121 = vmul.f32 %v1096, %v1103
    %v1122 = vmul.f32 %v1097, %v1104
    %v1123 = vld [vmem:[%s7] sm:$0xff]
    %v1124 = vld [vmem:[%s7 + $0x8] sm:$0xff]
    %v1125 = vld [vmem:[%s3] sm:$0xff]
    %v1126 = vld [vmem:[%s3 + $0x8] sm:$0xff]
    %1127 = vrot.lane.b32.xlu0 %v1111, 19
    %v1128 = vpop.permute.xlu0 %1127
    %1129 = vrot.lane.b32.xlu0 %v1117, 19
    %v1130 = vpop.permute.xlu0 %1129
    %1131 = vrot.lane.b32.xlu0 %v1112, 19
    %v1132 = vpop.permute.xlu0 %1131
    %1133 = vrot.lane.b32.xlu0 %v1118, 19
    %v1134 = vpop.permute.xlu0 %1133
    %1135 = vrot.lane.b32.xlu0 %v1113, 19
    %v1136 = vpop.permute.xlu0 %1135
    %1137 = vrot.lane.b32.xlu0 %v1119, 19
    %v1138 = vpop.permute.xlu0 %1137
    %1139 = vrot.lane.b32.xlu0 %v1114, 19
    %v1140 = vpop.permute.xlu0 %1139
    %1141 = vrot.lane.b32.xlu0 %v1120, 19
    %v1142 = vpop.permute.xlu0 %1141
    %1143 = vrot.lane.b32.xlu0 %v1115, 19
    %v1144 = vpop.permute.xlu0 %1143
    %1145 = vrot.lane.b32.xlu0 %v1121, 19
    %v1146 = vpop.permute.xlu0 %1145
    %1147 = vrot.lane.b32.xlu0 %v1116, 19
    %v1148 = vpop.permute.xlu0 %1147
    %1149 = vrot.lane.b32.xlu0 %v1122, 19
    %v1150 = vpop.permute.xlu0 %1149
    %v1151 = vsel %vm167, %v1144, %v1148
    %v1152 = vsel %vm167, %v1146, %v1150
    %v1153 = vsel %vm167, %v1140, %v1144
    %v1154 = vsel %vm167, %v1142, %v1146
    %v1155 = vsel %vm167, %v1136, %v1140
    %v1156 = vsel %vm167, %v1138, %v1142
    %v1157 = vsel %vm167, %v1132, %v1136
    %v1158 = vsel %vm167, %v1134, %v1138
    %v1159 = vsel %vm167, %v1128, %v1132
    %v1160 = vsel %vm167, %v1130, %v1134
    %v1161 = vsel %vm167, %v1148, %v1128
    %v1162 = vsel %vm167, %v1150, %v1130
    %v1163 = vpack.c.bf16 %v1159, %v1161
    %v1164 = vpack.c.bf16 %v1155, %v1157
    %v1165 = vpack.c.bf16 %v1151, %v1153
    %v1166 = vpack.c.bf16 %v1160, %v1162
    %v1167 = vpack.c.bf16 %v1156, %v1158
    %v1168 = vpack.c.bf16 %v1152, %v1154
    %1169 = vst [vmem:[#allocation2] sm:$0xff] %v1163
    %1170 = vst [vmem:[#allocation2 + $0x8] sm:$0xff] %v1164
    %1171 = vst [vmem:[#allocation2 + $0x10] sm:$0xff] %v1165
    %1172 = vst [vmem:[#allocation2 + $0x18] sm:$0xff] %v1166
    %1173 = vst [vmem:[#allocation2 + $0x20] sm:$0xff] %v1167
    %1174 = vst [vmem:[#allocation2 + $0x28] sm:$0xff] %v1168
    %1175 = vrot.lane.b32.xlu0 %v1111, 18
    %v1176 = vpop.permute.xlu0 %1175
    %1177 = vrot.lane.b32.xlu0 %v1117, 18
    %v1178 = vpop.permute.xlu0 %1177
    %1179 = vrot.lane.b32.xlu0 %v1112, 18
    %v1180 = vpop.permute.xlu0 %1179
    %1181 = vrot.lane.b32.xlu0 %v1118, 18
    %v1182 = vpop.permute.xlu0 %1181
    %1183 = vrot.lane.b32.xlu0 %v1113, 18
    %v1184 = vpop.permute.xlu0 %1183
    %1185 = vrot.lane.b32.xlu0 %v1119, 18
    %v1186 = vpop.permute.xlu0 %1185
    %1187 = vrot.lane.b32.xlu0 %v1114, 18
    %v1188 = vpop.permute.xlu0 %1187
    %1189 = vrot.lane.b32.xlu0 %v1120, 18
    %v1190 = vpop.permute.xlu0 %1189
    %1191 = vrot.lane.b32.xlu0 %v1115, 18
    %v1192 = vpop.permute.xlu0 %1191
    %1193 = vrot.lane.b32.xlu0 %v1121, 18
    %v1194 = vpop.permute.xlu0 %1193
    %1195 = vrot.lane.b32.xlu0 %v1116, 18
    %v1196 = vpop.permute.xlu0 %1195
    %1197 = vrot.lane.b32.xlu0 %v1122, 18
    %v1198 = vpop.permute.xlu0 %1197
    %v1199 = vsel %vm216, %v1192, %v1196
    %v1200 = vsel %vm216, %v1194, %v1198
    %v1201 = vsel %vm216, %v1188, %v1192
    %v1202 = vsel %vm216, %v1190, %v1194
    %v1203 = vsel %vm216, %v1184, %v1188
    %v1204 = vsel %vm216, %v1186, %v1190
    %v1205 = vsel %vm216, %v1180, %v1184
    %v1206 = vsel %vm216, %v1182, %v1186
    %v1207 = vsel %vm216, %v1176, %v1180
    %v1208 = vsel %vm216, %v1178, %v1182
    %v1209 = vsel %vm216, %v1196, %v1176
    %v1210 = vsel %vm216, %v1198, %v1178
    %v1211 = vpack.c.bf16 %v1207, %v1209
    %v1212 = vpack.c.bf16 %v1203, %v1205
    %v1213 = vpack.c.bf16 %v1199, %v1201
    %v1214 = vpack.c.bf16 %v1208, %v1210
    %v1215 = vpack.c.bf16 %v1204, %v1206
    %v1216 = vpack.c.bf16 %v1200, %v1202
    %1217 = vst [vmem:[#allocation2 + $0x30] sm:$0xff] %v1211
    %1218 = vst [vmem:[#allocation2 + $0x38] sm:$0xff] %v1212
    %1219 = vst [vmem:[#allocation2 + $0x40] sm:$0xff] %v1213
    %1220 = vst [vmem:[#allocation2 + $0x48] sm:$0xff] %v1214
    %1221 = vst [vmem:[#allocation2 + $0x50] sm:$0xff] %v1215
    %1222 = vst [vmem:[#allocation2 + $0x58] sm:$0xff] %v1216
    %1223 = vrot.lane.b32.xlu0 %v1111, 17
    %v1224 = vpop.permute.xlu0 %1223
    %1225 = vrot.lane.b32.xlu0 %v1117, 17
    %v1226 = vpop.permute.xlu0 %1225
    %1227 = vrot.lane.b32.xlu0 %v1112, 17
    %v1228 = vpop.permute.xlu0 %1227
    %1229 = vrot.lane.b32.xlu0 %v1118, 17
    %v1230 = vpop.permute.xlu0 %1229
    %1231 = vrot.lane.b32.xlu0 %v1113, 17
    %v1232 = vpop.permute.xlu0 %1231
    %1233 = vrot.lane.b32.xlu0 %v1119, 17
    %v1234 = vpop.permute.xlu0 %1233
    %1235 = vrot.lane.b32.xlu0 %v1114, 17
    %v1236 = vpop.permute.xlu0 %1235
    %1237 = vrot.lane.b32.xlu0 %v1120, 17
    %v1238 = vpop.permute.xlu0 %1237
    %1239 = vrot.lane.b32.xlu0 %v1115, 17
    %v1240 = vpop.permute.xlu0 %1239
    %1241 = vrot.lane.b32.xlu0 %v1121, 17
    %v1242 = vpop.permute.xlu0 %1241
    %1243 = vrot.lane.b32.xlu0 %v1116, 17
    %v1244 = vpop.permute.xlu0 %1243
    %1245 = vrot.lane.b32.xlu0 %v1122, 17
    %v1246 = vpop.permute.xlu0 %1245
    %v1247 = vsel %vm265, %v1240, %v1244
    %v1248 = vsel %vm265, %v1242, %v1246
    %v1249 = vsel %vm265, %v1236, %v1240
    %v1250 = vsel %vm265, %v1238, %v1242
    %v1251 = vsel %vm265, %v1232, %v1236
    %v1252 = vsel %vm265, %v1234, %v1238
    %v1253 = vsel %vm265, %v1228, %v1232
    %v1254 = vsel %vm265, %v1230, %v1234
    %v1255 = vsel %vm265, %v1224, %v1228
    %v1256 = vsel %vm265, %v1226, %v1230
    %v1257 = vsel %vm265, %v1244, %v1224
    %v1258 = vsel %vm265, %v1246, %v1226
    %v1259 = vpack.c.bf16 %v1255, %v1257
    %v1260 = vpack.c.bf16 %v1251, %v1253
    %v1261 = vpack.c.bf16 %v1247, %v1249
    %v1262 = vpack.c.bf16 %v1256, %v1258
    %v1263 = vpack.c.bf16 %v1252, %v1254
    %v1264 = vpack.c.bf16 %v1248, %v1250
    %1265 = vst [vmem:[#allocation2 + $0x60] sm:$0xff] %v1259
    %1266 = vst [vmem:[#allocation2 + $0x68] sm:$0xff] %v1260
    %1267 = vst [vmem:[#allocation2 + $0x70] sm:$0xff] %v1261
    %1268 = vst [vmem:[#allocation2 + $0x78] sm:$0xff] %v1262
    %1269 = vst [vmem:[#allocation2 + $0x80] sm:$0xff] %v1263
    %1270 = vst [vmem:[#allocation2 + $0x88] sm:$0xff] %v1264
    %1271 = vrot.lane.b32.xlu0 %v1111, 1
    %v1272 = vpop.permute.xlu0 %1271
    %1273 = vrot.lane.b32.xlu0 %v1117, 1
    %v1274 = vpop.permute.xlu0 %1273
    %1275 = vrot.lane.b32.xlu0 %v1112, 1
    %v1276 = vpop.permute.xlu0 %1275
    %1277 = vrot.lane.b32.xlu0 %v1118, 1
    %v1278 = vpop.permute.xlu0 %1277
    %1279 = vrot.lane.b32.xlu0 %v1113, 1
    %v1280 = vpop.permute.xlu0 %1279
    %1281 = vrot.lane.b32.xlu0 %v1119, 1
    %v1282 = vpop.permute.xlu0 %1281
    %1283 = vrot.lane.b32.xlu0 %v1114, 1
    %v1284 = vpop.permute.xlu0 %1283
    %1285 = vrot.lane.b32.xlu0 %v1120, 1
    %v1286 = vpop.permute.xlu0 %1285
    %1287 = vrot.lane.b32.xlu0 %v1115, 1
    %v1288 = vpop.permute.xlu0 %1287
    %1289 = vrot.lane.b32.xlu0 %v1121, 1
    %v1290 = vpop.permute.xlu0 %1289
    %1291 = vrot.lane.b32.xlu0 %v1116, 1
    %v1292 = vpop.permute.xlu0 %1291
    %1293 = vrot.lane.b32.xlu0 %v1122, 1
    %v1294 = vpop.permute.xlu0 %1293
    %v1295 = vsel %vm314, %v1288, %v1292
    %v1296 = vsel %vm314, %v1290, %v1294
    %v1297 = vsel %vm314, %v1284, %v1288
    %v1298 = vsel %vm314, %v1286, %v1290
    %v1299 = vsel %vm314, %v1280, %v1284
    %v1300 = vsel %vm314, %v1282, %v1286
    %v1301 = vsel %vm314, %v1276, %v1280
    %v1302 = vsel %vm314, %v1278, %v1282
    %v1303 = vsel %vm314, %v1272, %v1276
    %v1304 = vsel %vm314, %v1274, %v1278
    %v1305 = vsel %vm314, %v1292, %v1272
    %v1306 = vsel %vm314, %v1294, %v1274
    %v1307 = vpack.c.bf16 %v1303, %v1305
    %v1308 = vpack.c.bf16 %v1299, %v1301
    %v1309 = vpack.c.bf16 %v1295, %v1297
    %v1310 = vpack.c.bf16 %v1304, %v1306
    %v1311 = vpack.c.bf16 %v1300, %v1302
    %v1312 = vpack.c.bf16 %v1296, %v1298
    %1313 = vst [vmem:[#allocation2 + $0x90] sm:$0xff] %v1307
    %1314 = vst [vmem:[#allocation2 + $0x98] sm:$0xff] %v1308
    %1315 = vst [vmem:[#allocation2 + $0xa0] sm:$0xff] %v1309
    %1316 = vst [vmem:[#allocation2 + $0xa8] sm:$0xff] %v1310
    %1317 = vst [vmem:[#allocation2 + $0xb0] sm:$0xff] %v1311
    %1318 = vst [vmem:[#allocation2 + $0xb8] sm:$0xff] %v1312
    %v1319 = vpack.c.bf16 %v1112, %v1111
    %v1320 = vpack.c.bf16 %v1114, %v1113
    %v1321 = vpack.c.bf16 %v1116, %v1115
    %v1322 = vpack.c.bf16 %v1118, %v1117
    %v1323 = vpack.c.bf16 %v1120, %v1119
    %v1324 = vpack.c.bf16 %v1122, %v1121
    %1325 = vst [vmem:[#allocation2 + $0xc0] sm:$0xff] %v1319
    %1326 = vst [vmem:[#allocation2 + $0xc8] sm:$0xff] %v1320
    %1327 = vst [vmem:[#allocation2 + $0xd0] sm:$0xff] %v1321
    %1328 = vst [vmem:[#allocation2 + $0xd8] sm:$0xff] %v1322
    %1329 = vst [vmem:[#allocation2 + $0xe0] sm:$0xff] %v1323
    %1330 = vst [vmem:[#allocation2 + $0xe8] sm:$0xff] %v1324
    %1331 = vrot.lane.b32.xlu0 %v1111, 127
    %v1332 = vpop.permute.xlu0 %1331
    %1333 = vrot.lane.b32.xlu0 %v1117, 127
    %v1334 = vpop.permute.xlu0 %1333
    %1335 = vrot.lane.b32.xlu0 %v1112, 127
    %v1336 = vpop.permute.xlu0 %1335
    %1337 = vrot.lane.b32.xlu0 %v1118, 127
    %v1338 = vpop.permute.xlu0 %1337
    %1339 = vrot.lane.b32.xlu0 %v1113, 127
    %v1340 = vpop.permute.xlu0 %1339
    %1341 = vrot.lane.b32.xlu0 %v1119, 127
    %v1342 = vpop.permute.xlu0 %1341
    %1343 = vrot.lane.b32.xlu0 %v1114, 127
    %v1344 = vpop.permute.xlu0 %1343
    %1345 = vrot.lane.b32.xlu0 %v1120, 127
    %v1346 = vpop.permute.xlu0 %1345
    %1347 = vrot.lane.b32.xlu0 %v1115, 127
    %v1348 = vpop.permute.xlu0 %1347
    %1349 = vrot.lane.b32.xlu0 %v1121, 127
    %v1350 = vpop.permute.xlu0 %1349
    %1351 = vrot.lane.b32.xlu0 %v1116, 127
    %v1352 = vpop.permute.xlu0 %1351
    %1353 = vrot.lane.b32.xlu0 %v1122, 127
    %v1354 = vpop.permute.xlu0 %1353
    %v1355 = vsel %vm375, %v1348, %v1352
    %v1356 = vsel %vm375, %v1350, %v1354
    %v1357 = vsel %vm375, %v1344, %v1348
    %v1358 = vsel %vm375, %v1346, %v1350
    %v1359 = vsel %vm375, %v1340, %v1344
    %v1360 = vsel %vm375, %v1342, %v1346
    %v1361 = vsel %vm375, %v1336, %v1340
    %v1362 = vsel %vm375, %v1338, %v1342
    %v1363 = vsel %vm375, %v1332, %v1336
    %v1364 = vsel %vm375, %v1334, %v1338
    %v1365 = vsel %vm375, %v1352, %v1332
    %v1366 = vsel %vm375, %v1354, %v1334
    %v1367 = vpack.c.bf16 %v1361, %v1363
    %v1368 = vpack.c.bf16 %v1357, %v1359
    %v1369 = vpack.c.bf16 %v1365, %v1355
    %v1370 = vpack.c.bf16 %v1362, %v1364
    %v1371 = vpack.c.bf16 %v1358, %v1360
    %v1372 = vpack.c.bf16 %v1366, %v1356
    %1373 = vst [vmem:[#allocation2 + $0xf0] sm:$0xff] %v1367
    %1374 = vst [vmem:[#allocation2 + $0xf8] sm:$0xff] %v1368
    %1375 = vst [vmem:[#allocation2 + $0x100] sm:$0xff] %v1369
    %1376 = vst [vmem:[#allocation2 + $0x108] sm:$0xff] %v1370
    %1377 = vst [vmem:[#allocation2 + $0x110] sm:$0xff] %v1371
    %1378 = vst [vmem:[#allocation2 + $0x118] sm:$0xff] %v1372
    %1379 = vrot.lane.b32.xlu0 %v1111, 111
    %v1380 = vpop.permute.xlu0 %1379
    %1381 = vrot.lane.b32.xlu0 %v1117, 111
    %v1382 = vpop.permute.xlu0 %1381
    %1383 = vrot.lane.b32.xlu0 %v1112, 111
    %v1384 = vpop.permute.xlu0 %1383
    %1385 = vrot.lane.b32.xlu0 %v1118, 111
    %v1386 = vpop.permute.xlu0 %1385
    %1387 = vrot.lane.b32.xlu0 %v1113, 111
    %v1388 = vpop.permute.xlu0 %1387
    %1389 = vrot.lane.b32.xlu0 %v1119, 111
    %v1390 = vpop.permute.xlu0 %1389
    %1391 = vrot.lane.b32.xlu0 %v1114, 111
    %v1392 = vpop.permute.xlu0 %1391
    %1393 = vrot.lane.b32.xlu0 %v1120, 111
    %v1394 = vpop.permute.xlu0 %1393
    %1395 = vrot.lane.b32.xlu0 %v1115, 111
    %v1396 = vpop.permute.xlu0 %1395
    %1397 = vrot.lane.b32.xlu0 %v1121, 111
    %v1398 = vpop.permute.xlu0 %1397
    %1399 = vrot.lane.b32.xlu0 %v1116, 111
    %v1400 = vpop.permute.xlu0 %1399
    %1401 = vrot.lane.b32.xlu0 %v1122, 111
    %v1402 = vpop.permute.xlu0 %1401
    %v1403 = vsel %vm424, %v1396, %v1400
    %v1404 = vsel %vm424, %v1398, %v1402
    %v1405 = vsel %vm424, %v1392, %v1396
    %v1406 = vsel %vm424, %v1394, %v1398
    %v1407 = vsel %vm424, %v1388, %v1392
    %v1408 = vsel %vm424, %v1390, %v1394
    %v1409 = vsel %vm424, %v1384, %v1388
    %v1410 = vsel %vm424, %v1386, %v1390
    %v1411 = vsel %vm424, %v1380, %v1384
    %v1412 = vsel %vm424, %v1382, %v1386
    %v1413 = vsel %vm424, %v1400, %v1380
    %v1414 = vsel %vm424, %v1402, %v1382
    %v1415 = vpack.c.bf16 %v1409, %v1411
    %v1416 = vpack.c.bf16 %v1405, %v1407
    %v1417 = vpack.c.bf16 %v1413, %v1403
    %v1418 = vpack.c.bf16 %v1410, %v1412
    %v1419 = vpack.c.bf16 %v1406, %v1408
    %v1420 = vpack.c.bf16 %v1414, %v1404
    %1421 = vst [vmem:[#allocation2 + $0x120] sm:$0xff] %v1415
    %1422 = vst [vmem:[#allocation2 + $0x128] sm:$0xff] %v1416
    %1423 = vst [vmem:[#allocation2 + $0x130] sm:$0xff] %v1417
    %1424 = vst [vmem:[#allocation2 + $0x138] sm:$0xff] %v1418
    %1425 = vst [vmem:[#allocation2 + $0x140] sm:$0xff] %v1419
    %1426 = vst [vmem:[#allocation2 + $0x148] sm:$0xff] %v1420
    %1427 = vrot.lane.b32.xlu0 %v1111, 110
    %v1428 = vpop.permute.xlu0 %1427
    %1429 = vrot.lane.b32.xlu0 %v1117, 110
    %v1430 = vpop.permute.xlu0 %1429
    %1431 = vrot.lane.b32.xlu0 %v1112, 110
    %v1432 = vpop.permute.xlu0 %1431
    %1433 = vrot.lane.b32.xlu0 %v1118, 110
    %v1434 = vpop.permute.xlu0 %1433
    %1435 = vrot.lane.b32.xlu0 %v1113, 110
    %v1436 = vpop.permute.xlu0 %1435
    %1437 = vrot.lane.b32.xlu0 %v1119, 110
    %v1438 = vpop.permute.xlu0 %1437
    %1439 = vrot.lane.b32.xlu0 %v1114, 110
    %v1440 = vpop.permute.xlu0 %1439
    %1441 = vrot.lane.b32.xlu0 %v1120, 110
    %v1442 = vpop.permute.xlu0 %1441
    %1443 = vrot.lane.b32.xlu0 %v1115, 110
    %v1444 = vpop.permute.xlu0 %1443
    %1445 = vrot.lane.b32.xlu0 %v1121, 110
    %v1446 = vpop.permute.xlu0 %1445
    %1447 = vrot.lane.b32.xlu0 %v1116, 110
    %v1448 = vpop.permute.xlu0 %1447
    %1449 = vrot.lane.b32.xlu0 %v1122, 110
    %v1450 = vpop.permute.xlu0 %1449
    %v1451 = vsel %vm473, %v1444, %v1448
    %v1452 = vsel %vm473, %v1446, %v1450
    %v1453 = vsel %vm473, %v1440, %v1444
    %v1454 = vsel %vm473, %v1442, %v1446
    %v1455 = vsel %vm473, %v1436, %v1440
    %v1456 = vsel %vm473, %v1438, %v1442
    %v1457 = vsel %vm473, %v1432, %v1436
    %v1458 = vsel %vm473, %v1434, %v1438
    %v1459 = vsel %vm473, %v1428, %v1432
    %v1460 = vsel %vm473, %v1430, %v1434
    %v1461 = vsel %vm473, %v1448, %v1428
    %v1462 = vsel %vm473, %v1450, %v1430
    %v1463 = vpack.c.bf16 %v1457, %v1459
    %v1464 = vpack.c.bf16 %v1453, %v1455
    %v1465 = vpack.c.bf16 %v1461, %v1451
    %v1466 = vpack.c.bf16 %v1458, %v1460
    %v1467 = vpack.c.bf16 %v1454, %v1456
    %v1468 = vpack.c.bf16 %v1462, %v1452
    %1469 = vst [vmem:[#allocation2 + $0x150] sm:$0xff] %v1463
    %1470 = vst [vmem:[#allocation2 + $0x158] sm:$0xff] %v1464
    %1471 = vst [vmem:[#allocation2 + $0x160] sm:$0xff] %v1465
    %1472 = vst [vmem:[#allocation2 + $0x168] sm:$0xff] %v1466
    %1473 = vst [vmem:[#allocation2 + $0x170] sm:$0xff] %v1467
    %1474 = vst [vmem:[#allocation2 + $0x178] sm:$0xff] %v1468
    %1475 = vrot.lane.b32.xlu0 %v1111, 109
    %v1476 = vpop.permute.xlu0 %1475
    %1477 = vrot.lane.b32.xlu0 %v1117, 109
    %v1478 = vpop.permute.xlu0 %1477
    %1479 = vrot.lane.b32.xlu0 %v1112, 109
    %v1480 = vpop.permute.xlu0 %1479
    %1481 = vrot.lane.b32.xlu0 %v1118, 109
    %v1482 = vpop.permute.xlu0 %1481
    %1483 = vrot.lane.b32.xlu0 %v1113, 109
    %v1484 = vpop.permute.xlu0 %1483
    %1485 = vrot.lane.b32.xlu0 %v1119, 109
    %v1486 = vpop.permute.xlu0 %1485
    %1487 = vrot.lane.b32.xlu0 %v1114, 109
    %v1488 = vpop.permute.xlu0 %1487
    %1489 = vrot.lane.b32.xlu0 %v1120, 109
    %v1490 = vpop.permute.xlu0 %1489
    %1491 = vrot.lane.b32.xlu0 %v1115, 109
    %v1492 = vpop.permute.xlu0 %1491
    %1493 = vrot.lane.b32.xlu0 %v1121, 109
    %v1494 = vpop.permute.xlu0 %1493
    %1495 = vrot.lane.b32.xlu0 %v1116, 109
    %v1496 = vpop.permute.xlu0 %1495
    %1497 = vrot.lane.b32.xlu0 %v1122, 109
    %v1498 = vpop.permute.xlu0 %1497
    %v1499 = vsel %vm522, %v1492, %v1496
    %v1500 = vsel %vm522, %v1494, %v1498
    %v1501 = vsel %vm522, %v1488, %v1492
    %v1502 = vsel %vm522, %v1490, %v1494
    %v1503 = vsel %vm522, %v1484, %v1488
    %v1504 = vsel %vm522, %v1486, %v1490
    %v1505 = vsel %vm522, %v1480, %v1484
    %v1506 = vsel %vm522, %v1482, %v1486
    %v1507 = vsel %vm522, %v1476, %v1480
    %v1508 = vsel %vm522, %v1478, %v1482
    %v1509 = vsel %vm522, %v1496, %v1476
    %v1510 = vsel %vm522, %v1498, %v1478
    %v1511 = vpack.c.bf16 %v1505, %v1507
    %v1512 = vpack.c.bf16 %v1501, %v1503
    %v1513 = vpack.c.bf16 %v1509, %v1499
    %v1514 = vpack.c.bf16 %v1506, %v1508
    %v1515 = vpack.c.bf16 %v1502, %v1504
    %v1516 = vpack.c.bf16 %v1510, %v1500
    %1517 = vst [vmem:[#allocation2 + $0x180] sm:$0xff] %v1511
    %1518 = vst [vmem:[#allocation2 + $0x188] sm:$0xff] %v1512
    %1519 = vst [vmem:[#allocation2 + $0x190] sm:$0xff] %v1513
    %1520 = vst [vmem:[#allocation2 + $0x198] sm:$0xff] %v1514
    %1521 = vst [vmem:[#allocation2 + $0x1a0] sm:$0xff] %v1515
    %1522 = vst [vmem:[#allocation2 + $0x1a8] sm:$0xff] %v1516
    %v1523 = vld [vmem:[#allocation2] sm:$0xff]
    %v1524 = vld [vmem:[#allocation2 + $0x8] sm:$0xff]
    %v1525 = vld [vmem:[#allocation2 + $0x10] sm:$0xff]
    %v1526 = vld [vmem:[#allocation2 + $0x18] sm:$0xff]
    %v1527 = vld [vmem:[#allocation2 + $0x20] sm:$0xff]
    %v1528 = vld [vmem:[#allocation2 + $0x28] sm:$0xff]
    %v1529 = vld [vmem:[#allocation2 + $0x30] sm:$0xff]
    %v1530 = vld [vmem:[#allocation2 + $0x38] sm:$0xff]
    %v1531 = vld [vmem:[#allocation2 + $0x40] sm:$0xff]
    %v1532 = vld [vmem:[#allocation2 + $0x48] sm:$0xff]
    %v1533 = vld [vmem:[#allocation2 + $0x50] sm:$0xff]
    %v1534 = vld [vmem:[#allocation2 + $0x58] sm:$0xff]
    %v1535 = vld [vmem:[#allocation2 + $0x60] sm:$0xff]
    %v1536 = vld [vmem:[#allocation2 + $0x68] sm:$0xff]
    %v1537 = vld [vmem:[#allocation2 + $0x70] sm:$0xff]
    %v1538 = vld [vmem:[#allocation2 + $0x78] sm:$0xff]
    %v1539 = vld [vmem:[#allocation2 + $0x80] sm:$0xff]
    %v1540 = vld [vmem:[#allocation2 + $0x88] sm:$0xff]
    %v1541 = vld [vmem:[#allocation2 + $0x90] sm:$0xff]
    %v1542 = vld [vmem:[#allocation2 + $0x98] sm:$0xff]
    %v1543 = vld [vmem:[#allocation2 + $0xa0] sm:$0xff]
    %v1544 = vld [vmem:[#allocation2 + $0xa8] sm:$0xff]
    %v1545 = vld [vmem:[#allocation2 + $0xb0] sm:$0xff]
    %v1546 = vld [vmem:[#allocation2 + $0xb8] sm:$0xff]
    %v1547 = vld [vmem:[#allocation2 + $0xc0] sm:$0xff]
    %v1548 = vld [vmem:[#allocation2 + $0xc8] sm:$0xff]
    %v1549 = vld [vmem:[#allocation2 + $0xd0] sm:$0xff]
    %v1550 = vld [vmem:[#allocation2 + $0xd8] sm:$0xff]
    %v1551 = vld [vmem:[#allocation2 + $0xe0] sm:$0xff]
    %v1552 = vld [vmem:[#allocation2 + $0xe8] sm:$0xff]
    %v1553 = vld [vmem:[#allocation2 + $0xf0] sm:$0xff]
    %v1554 = vld [vmem:[#allocation2 + $0xf8] sm:$0xff]
    %v1555 = vld [vmem:[#allocation2 + $0x100] sm:$0xff]
    %v1556 = vld [vmem:[#allocation2 + $0x108] sm:$0xff]
    %v1557 = vld [vmem:[#allocation2 + $0x110] sm:$0xff]
    %v1558 = vld [vmem:[#allocation2 + $0x118] sm:$0xff]
    %v1559 = vld [vmem:[#allocation2 + $0x120] sm:$0xff]
    %v1560 = vld [vmem:[#allocation2 + $0x128] sm:$0xff]
    %v1561 = vld [vmem:[#allocation2 + $0x130] sm:$0xff]
    %v1562 = vld [vmem:[#allocation2 + $0x138] sm:$0xff]
    %v1563 = vld [vmem:[#allocation2 + $0x140] sm:$0xff]
    %v1564 = vld [vmem:[#allocation2 + $0x148] sm:$0xff]
    %v1565 = vld [vmem:[#allocation2 + $0x150] sm:$0xff]
    %v1566 = vld [vmem:[#allocation2 + $0x158] sm:$0xff]
    %v1567 = vld [vmem:[#allocation2 + $0x160] sm:$0xff]
    %v1568 = vld [vmem:[#allocation2 + $0x168] sm:$0xff]
    %v1569 = vld [vmem:[#allocation2 + $0x170] sm:$0xff]
    %v1570 = vld [vmem:[#allocation2 + $0x178] sm:$0xff]
    %v1571 = vld [vmem:[#allocation2 + $0x180] sm:$0xff]
    %v1572 = vld [vmem:[#allocation2 + $0x188] sm:$0xff]
    %v1573 = vld [vmem:[#allocation2 + $0x190] sm:$0xff]
    %v1574 = vld [vmem:[#allocation2 + $0x198] sm:$0xff]
    %v1575 = vld [vmem:[#allocation2 + $0x1a0] sm:$0xff]
    %v1576 = vld [vmem:[#allocation2 + $0x1a8] sm:$0xff]
    %1578 = vset.pattern.permute.xlu0 0
    %1579 = vperm.xlu0 %1578, %v1125
    %v1580 = vpop.permute.xlu0 %1579
    %1583 = vset.pattern.permute.xlu0 0
    %1584 = vperm.xlu0 %1583, %v1126
    %v1585 = vpop.permute.xlu0 %1584
    %v1589 = vunpack.c.l.b16 %v1123
    %v1590 = vunpack.c.h.b16 %v1123
    %v1591 = vunpack.c.l.b16 %v1124
    %v1592 = vunpack.c.h.b16 %v1124
    %v1593 = vpack.c.b16 %v1591, %v1589
    %v1594 = vpack.c.b16 %v1592, %v1590
    %v1650 = vunpack.c.l.b16 %v1523
    %v1651 = vunpack.c.h.b16 %v1523
    %v1652 = vunpack.c.l.b16 %v1524
    %v1653 = vunpack.c.h.b16 %v1524
    %v1654 = vunpack.c.l.b16 %v1525
    %v1655 = vunpack.c.h.b16 %v1525
    %v1656 = vunpack.c.l.b16 %v1526
    %v1657 = vunpack.c.h.b16 %v1526
    %v1658 = vunpack.c.l.b16 %v1527
    %v1659 = vunpack.c.h.b16 %v1527
    %v1660 = vunpack.c.l.b16 %v1528
    %v1661 = vunpack.c.h.b16 %v1528
    %v1662 = vunpack.c.l.b16 %v1529
    %v1663 = vunpack.c.h.b16 %v1529
    %v1664 = vunpack.c.l.b16 %v1530
    %v1665 = vunpack.c.h.b16 %v1530
    %v1666 = vunpack.c.l.b16 %v1531
    %v1667 = vunpack.c.h.b16 %v1531
    %v1668 = vunpack.c.l.b16 %v1532
    %v1669 = vunpack.c.h.b16 %v1532
    %v1670 = vunpack.c.l.b16 %v1533
    %v1671 = vunpack.c.h.b16 %v1533
    %v1672 = vunpack.c.l.b16 %v1534
    %v1673 = vunpack.c.h.b16 %v1534
    %v1674 = vunpack.c.l.b16 %v1535
    %v1675 = vunpack.c.h.b16 %v1535
    %v1676 = vunpack.c.l.b16 %v1536
    %v1677 = vunpack.c.h.b16 %v1536
    %v1678 = vunpack.c.l.b16 %v1537
    %v1679 = vunpack.c.h.b16 %v1537
    %v1680 = vunpack.c.l.b16 %v1538
    %v1681 = vunpack.c.h.b16 %v1538
    %v1682 = vunpack.c.l.b16 %v1539
    %v1683 = vunpack.c.h.b16 %v1539
    %v1684 = vunpack.c.l.b16 %v1540
    %v1685 = vunpack.c.h.b16 %v1540
    %v1686 = vunpack.c.l.b16 %v1541
    %v1687 = vunpack.c.h.b16 %v1541
    %v1688 = vunpack.c.l.b16 %v1542
    %v1689 = vunpack.c.h.b16 %v1542
    %v1690 = vunpack.c.l.b16 %v1543
    %v1691 = vunpack.c.h.b16 %v1543
    %v1692 = vunpack.c.l.b16 %v1544
    %v1693 = vunpack.c.h.b16 %v1544
    %v1694 = vunpack.c.l.b16 %v1545
    %v1695 = vunpack.c.h.b16 %v1545
    %v1696 = vunpack.c.l.b16 %v1546
    %v1697 = vunpack.c.h.b16 %v1546
    %v1698 = vunpack.c.l.b16 %v1547
    %v1699 = vunpack.c.h.b16 %v1547
    %v1700 = vunpack.c.l.b16 %v1548
    %v1701 = vunpack.c.h.b16 %v1548
    %v1702 = vunpack.c.l.b16 %v1549
    %v1703 = vunpack.c.h.b16 %v1549
    %v1704 = vunpack.c.l.b16 %v1550
    %v1705 = vunpack.c.h.b16 %v1550
    %v1706 = vunpack.c.l.b16 %v1551
    %v1707 = vunpack.c.h.b16 %v1551
    %v1708 = vunpack.c.l.b16 %v1552
    %v1709 = vunpack.c.h.b16 %v1552
    %v1710 = vunpack.c.l.b16 %v1553
    %v1711 = vunpack.c.h.b16 %v1553
    %v1712 = vunpack.c.l.b16 %v1554
    %v1713 = vunpack.c.h.b16 %v1554
    %v1714 = vunpack.c.l.b16 %v1555
    %v1715 = vunpack.c.h.b16 %v1555
    %v1716 = vunpack.c.l.b16 %v1556
    %v1717 = vunpack.c.h.b16 %v1556
    %v1718 = vunpack.c.l.b16 %v1557
    %v1719 = vunpack.c.h.b16 %v1557
    %v1720 = vunpack.c.l.b16 %v1558
    %v1721 = vunpack.c.h.b16 %v1558
    %v1722 = vunpack.c.l.b16 %v1559
    %v1723 = vunpack.c.h.b16 %v1559
    %v1724 = vunpack.c.l.b16 %v1560
    %v1725 = vunpack.c.h.b16 %v1560
    %v1726 = vunpack.c.l.b16 %v1561
    %v1727 = vunpack.c.h.b16 %v1561
    %v1728 = vunpack.c.l.b16 %v1562
    %v1729 = vunpack.c.h.b16 %v1562
    %v1730 = vunpack.c.l.b16 %v1563
    %v1731 = vunpack.c.h.b16 %v1563
    %v1732 = vunpack.c.l.b16 %v1564
    %v1733 = vunpack.c.h.b16 %v1564
    %v1734 = vunpack.c.l.b16 %v1565
    %v1735 = vunpack.c.h.b16 %v1565
    %v1736 = vunpack.c.l.b16 %v1566
    %v1737 = vunpack.c.h.b16 %v1566
    %v1738 = vunpack.c.l.b16 %v1567
    %v1739 = vunpack.c.h.b16 %v1567
    %v1740 = vunpack.c.l.b16 %v1568
    %v1741 = vunpack.c.h.b16 %v1568
    %v1742 = vunpack.c.l.b16 %v1569
    %v1743 = vunpack.c.h.b16 %v1569
    %v1744 = vunpack.c.l.b16 %v1570
    %v1745 = vunpack.c.h.b16 %v1570
    %v1746 = vunpack.c.l.b16 %v1571
    %v1747 = vunpack.c.h.b16 %v1571
    %v1748 = vunpack.c.l.b16 %v1572
    %v1749 = vunpack.c.h.b16 %v1572
    %v1750 = vunpack.c.l.b16 %v1573
    %v1751 = vunpack.c.h.b16 %v1573
    %v1752 = vunpack.c.l.b16 %v1574
    %v1753 = vunpack.c.h.b16 %v1574
    %v1754 = vunpack.c.l.b16 %v1575
    %v1755 = vunpack.c.h.b16 %v1575
    %v1756 = vunpack.c.l.b16 %v1576
    %v1757 = vunpack.c.h.b16 %v1576
    %v1758 = vpack.c.b16 %v1656, %v1650
    %v1759 = vpack.c.b16 %v1657, %v1651
    %v1760 = vpack.c.b16 %v1658, %v1652
    %v1761 = vpack.c.b16 %v1659, %v1653
    %v1762 = vpack.c.b16 %v1660, %v1654
    %v1763 = vpack.c.b16 %v1661, %v1655
    %v1764 = vpack.c.b16 %v1668, %v1662
    %v1765 = vpack.c.b16 %v1669, %v1663
    %v1766 = vpack.c.b16 %v1670, %v1664
    %v1767 = vpack.c.b16 %v1671, %v1665
    %v1768 = vpack.c.b16 %v1672, %v1666
    %v1769 = vpack.c.b16 %v1673, %v1667
    %v1770 = vpack.c.b16 %v1680, %v1674
    %v1771 = vpack.c.b16 %v1681, %v1675
    %v1772 = vpack.c.b16 %v1682, %v1676
    %v1773 = vpack.c.b16 %v1683, %v1677
    %v1774 = vpack.c.b16 %v1684, %v1678
    %v1775 = vpack.c.b16 %v1685, %v1679
    %v1776 = vpack.c.b16 %v1692, %v1686
    %v1777 = vpack.c.b16 %v1693, %v1687
    %v1778 = vpack.c.b16 %v1694, %v1688
    %v1779 = vpack.c.b16 %v1695, %v1689
    %v1780 = vpack.c.b16 %v1696, %v1690
    %v1781 = vpack.c.b16 %v1697, %v1691
    %v1782 = vpack.c.b16 %v1704, %v1698
    %v1783 = vpack.c.b16 %v1705, %v1699
    %v1784 = vpack.c.b16 %v1706, %v1700
    %v1785 = vpack.c.b16 %v1707, %v1701
    %v1786 = vpack.c.b16 %v1708, %v1702
    %v1787 = vpack.c.b16 %v1709, %v1703
    %v1788 = vpack.c.b16 %v1716, %v1710
    %v1789 = vpack.c.b16 %v1717, %v1711
    %v1790 = vpack.c.b16 %v1718, %v1712
    %v1791 = vpack.c.b16 %v1719, %v1713
    %v1792 = vpack.c.b16 %v1720, %v1714
    %v1793 = vpack.c.b16 %v1721, %v1715
    %v1794 = vpack.c.b16 %v1728, %v1722
    %v1795 = vpack.c.b16 %v1729, %v1723
    %v1796 = vpack.c.b16 %v1730, %v1724
    %v1797 = vpack.c.b16 %v1731, %v1725
    %v1798 = vpack.c.b16 %v1732, %v1726
    %v1799 = vpack.c.b16 %v1733, %v1727
    %v1800 = vpack.c.b16 %v1740, %v1734
    %v1801 = vpack.c.b16 %v1741, %v1735
    %v1802 = vpack.c.b16 %v1742, %v1736
    %v1803 = vpack.c.b16 %v1743, %v1737
    %v1804 = vpack.c.b16 %v1744, %v1738
    %v1805 = vpack.c.b16 %v1745, %v1739
    %v1806 = vpack.c.b16 %v1752, %v1746
    %v1807 = vpack.c.b16 %v1753, %v1747
    %v1808 = vpack.c.b16 %v1754, %v1748
    %v1809 = vpack.c.b16 %v1755, %v1749
    %v1810 = vpack.c.b16 %v1756, %v1750
    %v1811 = vpack.c.b16 %v1757, %v1751
    %v1867 = vsel %vm890, %v1594, 0
    %1869 = vmatpush.bf16.msra.mxu0 %v1800
    %1870 = vmatpush.bf16.msra.mxu0 %v1794
    %1871 = vmatpush.bf16.msra.mxu0 %v1788
    %1872 = vmatpush.bf16.msra.mxu0 %v1782
    %1873 = vmatpush.bf16.msra.mxu0 %v1776
    %1874 = vmatpush.bf16.msra.mxu0 %v1770
    %1875 = vmatpush.bf16.msra.mxu0 %v1764
    %1876 = vmatpush.bf16.msra.mxu0 %v1758
    %1877 = vmatmul.bf16.gmra.mxu0 %v1593
    %v1878 = vpop.f32.mrf.mxu0
    %v1879 = vadd.f32 %v1580, %v1878
    %v1880 = vpop.f32.mrf.mxu0
    %v1881 = vadd.f32 %v1585, %v1880
    %1882 = vdwg.mxu0
    %1883 = vmatpush.bf16.msra.mxu0 0
    %1884 = vmatpush.bf16.msra.mxu0 0
    %1885 = vmatpush.bf16.msra.mxu0 0
    %1886 = vmatpush.bf16.msra.mxu0 0
    %1887 = vmatpush.bf16.msra.mxu0 0
    %1888 = vmatpush.bf16.msra.mxu0 0
    %1889 = vmatpush.bf16.msra.mxu0 0
    %1890 = vmatpush.bf16.msra.mxu0 %v1806
    %1891 = vmatmul.bf16.gmra.mxu0 %v1867
    %v1892 = vpop.f32.mrf.mxu0
    %v1893 = vadd.f32 %v1879, %v1892
    %v1894 = vpop.f32.mrf.mxu0
    %v1895 = vadd.f32 %v1881, %v1894
    %1896 = vdwg.mxu0
    %1897 = vmatpush.bf16.msra.mxu0 %v1801
    %1898 = vmatpush.bf16.msra.mxu0 %v1795
    %1899 = vmatpush.bf16.msra.mxu0 %v1789
    %1900 = vmatpush.bf16.msra.mxu0 %v1783
    %1901 = vmatpush.bf16.msra.mxu0 %v1777
    %1902 = vmatpush.bf16.msra.mxu0 %v1771
    %1903 = vmatpush.bf16.msra.mxu0 %v1765
    %1904 = vmatpush.bf16.msra.mxu0 %v1759
    %1905 = vmatmul.bf16.gmra.mxu0 %v1593
    %v1906 = vpop.f32.mrf.mxu0
    %v1907 = vadd.f32 %v1580, %v1906
    %v1908 = vpop.f32.mrf.mxu0
    %v1909 = vadd.f32 %v1585, %v1908
    %1910 = vdwg.mxu0
    %1911 = vmatpush.bf16.msra.mxu0 0
    %1912 = vmatpush.bf16.msra.mxu0 0
    %1913 = vmatpush.bf16.msra.mxu0 0
    %1914 = vmatpush.bf16.msra.mxu0 0
    %1915 = vmatpush.bf16.msra.mxu0 0
    %1916 = vmatpush.bf16.msra.mxu0 0
    %1917 = vmatpush.bf16.msra.mxu0 0
    %1918 = vmatpush.bf16.msra.mxu0 %v1807
    %1919 = vmatmul.bf16.gmra.mxu0 %v1867
    %v1920 = vpop.f32.mrf.mxu0
    %v1921 = vadd.f32 %v1907, %v1920
    %v1922 = vpop.f32.mrf.mxu0
    %v1923 = vadd.f32 %v1909, %v1922
    %1924 = vdwg.mxu0
    %1925 = vmatpush.bf16.msra.mxu0 %v1802
    %1926 = vmatpush.bf16.msra.mxu0 %v1796
    %1927 = vmatpush.bf16.msra.mxu0 %v1790
    %1928 = vmatpush.bf16.msra.mxu0 %v1784
    %1929 = vmatpush.bf16.msra.mxu0 %v1778
    %1930 = vmatpush.bf16.msra.mxu0 %v1772
    %1931 = vmatpush.bf16.msra.mxu0 %v1766
    %1932 = vmatpush.bf16.msra.mxu0 %v1760
    %1933 = vmatmul.bf16.gmra.mxu0 %v1593
    %v1934 = vpop.f32.mrf.mxu0
    %v1935 = vadd.f32 %v1580, %v1934
    %v1936 = vpop.f32.mrf.mxu0
    %v1937 = vadd.f32 %v1585, %v1936
    %1938 = vdwg.mxu0
    %1939 = vmatpush.bf16.msra.mxu0 0
    %1940 = vmatpush.bf16.msra.mxu0 0
    %1941 = vmatpush.bf16.msra.mxu0 0
    %1942 = vmatpush.bf16.msra.mxu0 0
    %1943 = vmatpush.bf16.msra.mxu0 0
    %1944 = vmatpush.bf16.msra.mxu0 0
    %1945 = vmatpush.bf16.msra.mxu0 0
    %1946 = vmatpush.bf16.msra.mxu0 %v1808
    %1947 = vmatmul.bf16.gmra.mxu0 %v1867
    %v1948 = vpop.f32.mrf.mxu0
    %v1949 = vadd.f32 %v1935, %v1948
    %v1950 = vpop.f32.mrf.mxu0
    %v1951 = vadd.f32 %v1937, %v1950
    %1952 = vdwg.mxu0
    %1953 = vmatpush.bf16.msra.mxu0 %v1803
    %1954 = vmatpush.bf16.msra.mxu0 %v1797
    %1955 = vmatpush.bf16.msra.mxu0 %v1791
    %1956 = vmatpush.bf16.msra.mxu0 %v1785
    %1957 = vmatpush.bf16.msra.mxu0 %v1779
    %1958 = vmatpush.bf16.msra.mxu0 %v1773
    %1959 = vmatpush.bf16.msra.mxu0 %v1767
    %1960 = vmatpush.bf16.msra.mxu0 %v1761
    %1961 = vmatmul.bf16.gmra.mxu0 %v1593
    %v1962 = vpop.f32.mrf.mxu0
    %v1963 = vadd.f32 %v1580, %v1962
    %v1964 = vpop.f32.mrf.mxu0
    %v1965 = vadd.f32 %v1585, %v1964
    %1966 = vdwg.mxu0
    %1967 = vmatpush.bf16.msra.mxu0 0
    %1968 = vmatpush.bf16.msra.mxu0 0
    %1969 = vmatpush.bf16.msra.mxu0 0
    %1970 = vmatpush.bf16.msra.mxu0 0
    %1971 = vmatpush.bf16.msra.mxu0 0
    %1972 = vmatpush.bf16.msra.mxu0 0
    %1973 = vmatpush.bf16.msra.mxu0 0
    %1974 = vmatpush.bf16.msra.mxu0 %v1809
    %1975 = vmatmul.bf16.gmra.mxu0 %v1867
    %v1976 = vpop.f32.mrf.mxu0
    %v1977 = vadd.f32 %v1963, %v1976
    %v1978 = vpop.f32.mrf.mxu0
    %v1979 = vadd.f32 %v1965, %v1978
    %1980 = vdwg.mxu0
    %1981 = vmatpush.bf16.msra.mxu0 %v1804
    %1982 = vmatpush.bf16.msra.mxu0 %v1798
    %1983 = vmatpush.bf16.msra.mxu0 %v1792
    %1984 = vmatpush.bf16.msra.mxu0 %v1786
    %1985 = vmatpush.bf16.msra.mxu0 %v1780
    %1986 = vmatpush.bf16.msra.mxu0 %v1774
    %1987 = vmatpush.bf16.msra.mxu0 %v1768
    %1988 = vmatpush.bf16.msra.mxu0 %v1762
    %1989 = vmatmul.bf16.gmra.mxu0 %v1593
    %v1990 = vpop.f32.mrf.mxu0
    %v1991 = vadd.f32 %v1580, %v1990
    %v1992 = vpop.f32.mrf.mxu0
    %v1993 = vadd.f32 %v1585, %v1992
    %1994 = vdwg.mxu0
    %1995 = vmatpush.bf16.msra.mxu0 0
    %1996 = vmatpush.bf16.msra.mxu0 0
    %1997 = vmatpush.bf16.msra.mxu0 0
    %1998 = vmatpush.bf16.msra.mxu0 0
    %1999 = vmatpush.bf16.msra.mxu0 0
    %2000 = vmatpush.bf16.msra.mxu0 0
    %2001 = vmatpush.bf16.msra.mxu0 0
    %2002 = vmatpush.bf16.msra.mxu0 %v1810
    %2003 = vmatmul.bf16.gmra.mxu0 %v1867
    %v2004 = vpop.f32.mrf.mxu0
    %v2005 = vadd.f32 %v1991, %v2004
    %v2006 = vpop.f32.mrf.mxu0
    %v2007 = vadd.f32 %v1993, %v2006
    %2008 = vdwg.mxu0
    %2009 = vmatpush.bf16.msra.mxu0 %v1805
    %2010 = vmatpush.bf16.msra.mxu0 %v1799
    %2011 = vmatpush.bf16.msra.mxu0 %v1793
    %2012 = vmatpush.bf16.msra.mxu0 %v1787
    %2013 = vmatpush.bf16.msra.mxu0 %v1781
    %2014 = vmatpush.bf16.msra.mxu0 %v1775
    %2015 = vmatpush.bf16.msra.mxu0 %v1769
    %2016 = vmatpush.bf16.msra.mxu0 %v1763
    %2017 = vmatmul.bf16.gmra.mxu0 %v1593
    %v2018 = vpop.f32.mrf.mxu0
    %v2019 = vadd.f32 %v1580, %v2018
    %v2020 = vpop.f32.mrf.mxu0
    %v2021 = vadd.f32 %v1585, %v2020
    %2022 = vdwg.mxu0
    %2023 = vmatpush.bf16.msra.mxu0 0
    %2024 = vmatpush.bf16.msra.mxu0 0
    %2025 = vmatpush.bf16.msra.mxu0 0
    %2026 = vmatpush.bf16.msra.mxu0 0
    %2027 = vmatpush.bf16.msra.mxu0 0
    %2028 = vmatpush.bf16.msra.mxu0 0
    %2029 = vmatpush.bf16.msra.mxu0 0
    %2030 = vmatpush.bf16.msra.mxu0 %v1811
    %2031 = vmatmul.bf16.gmra.mxu0 %v1867
    %v2032 = vpop.f32.mrf.mxu0
    %v2033 = vadd.f32 %v2019, %v2032
    %v2034 = vpop.f32.mrf.mxu0
    %v2035 = vadd.f32 %v2021, %v2034
    %2036 = vdwg.mxu0
    %vm2037 = vcmp.ge.f32.partialorder %v1893, 0.0
    %vm2038 = vcmp.ge.f32.partialorder %v1921, 0.0
    %vm2039 = vcmp.ge.f32.partialorder %v1949, 0.0
    %vm2040 = vcmp.ge.f32.partialorder %v1977, 0.0
    %vm2041 = vcmp.ge.f32.partialorder %v2005, 0.0
    %vm2042 = vcmp.ge.f32.partialorder %v2033, 0.0
    %vm2043 = vcmp.ge.f32.partialorder %v1895, 0.0
    %vm2044 = vcmp.ge.f32.partialorder %v1923, 0.0
    %vm2045 = vcmp.ge.f32.partialorder %v1951, 0.0
    %vm2046 = vcmp.ge.f32.partialorder %v1979, 0.0
    %vm2047 = vcmp.ge.f32.partialorder %v2007, 0.0
    %vm2048 = vcmp.ge.f32.partialorder %v2035, 0.0
    %v2049 = vmul.f32 %v1893, 0.2
    %v2050 = vmul.f32 %v1921, 0.2
    %v2051 = vmul.f32 %v1949, 0.2
    %v2052 = vmul.f32 %v1977, 0.2
    %v2053 = vmul.f32 %v2005, 0.2
    %v2054 = vmul.f32 %v2033, 0.2
    %v2055 = vmul.f32 %v1895, 0.2
    %v2056 = vmul.f32 %v1923, 0.2
    %v2057 = vmul.f32 %v1951, 0.2
    %v2058 = vmul.f32 %v1979, 0.2
    %v2059 = vmul.f32 %v2007, 0.2
    %v2060 = vmul.f32 %v2035, 0.2
    %v2061 = vsel %vm2037, %v1893, %v2049
    %v2062 = vsel %vm2038, %v1921, %v2050
    %v2063 = vsel %vm2039, %v1949, %v2051
    %v2064 = vsel %vm2040, %v1977, %v2052
    %v2065 = vsel %vm2041, %v2005, %v2053
    %v2066 = vsel %vm2042, %v2033, %v2054
    %v2067 = vsel %vm2043, %v1895, %v2055
    %v2068 = vsel %vm2044, %v1923, %v2056
    %v2069 = vsel %vm2045, %v1951, %v2057
    %v2070 = vsel %vm2046, %v1979, %v2058
    %v2071 = vsel %vm2047, %v2007, %v2059
    %v2072 = vsel %vm2048, %v2035, %v2060
    %v2073 = vmul.f32 %v2061, %v1099
    %v2074 = vmul.f32 %v2062, %v1100
    %v2075 = vmul.f32 %v2063, %v1101
    %v2076 = vmul.f32 %v2064, %v1102
    %v2077 = vmul.f32 %v2065, %v1103
    %v2078 = vmul.f32 %v2066, %v1104
    %v2079 = vmul.f32 %v2067, %v1099
    %v2080 = vmul.f32 %v2068, %v1100
    %v2081 = vmul.f32 %v2069, %v1101
    %v2082 = vmul.f32 %v2070, %v1102
    %v2083 = vmul.f32 %v2071, %v1103
    %v2084 = vmul.f32 %v2072, %v1104
    %v2085 = vld [vmem:[%s9] sm:$0xff]
    %v2086 = vld [vmem:[%s9 + $0x8] sm:$0xff]
    %v2087 = vld [vmem:[%s5] sm:$0xff]
    %v2088 = vld [vmem:[%s5 + $0x8] sm:$0xff]
    %2089 = vrot.lane.b32.xlu0 %v2073, 19
    %v2090 = vpop.permute.xlu0 %2089
    %2091 = vrot.lane.b32.xlu0 %v2079, 19
    %v2092 = vpop.permute.xlu0 %2091
    %2093 = vrot.lane.b32.xlu0 %v2074, 19
    %v2094 = vpop.permute.xlu0 %2093
    %2095 = vrot.lane.b32.xlu0 %v2080, 19
    %v2096 = vpop.permute.xlu0 %2095
    %2097 = vrot.lane.b32.xlu0 %v2075, 19
    %v2098 = vpop.permute.xlu0 %2097
    %2099 = vrot.lane.b32.xlu0 %v2081, 19
    %v2100 = vpop.permute.xlu0 %2099
    %2101 = vrot.lane.b32.xlu0 %v2076, 19
    %v2102 = vpop.permute.xlu0 %2101
    %2103 = vrot.lane.b32.xlu0 %v2082, 19
    %v2104 = vpop.permute.xlu0 %2103
    %2105 = vrot.lane.b32.xlu0 %v2077, 19
    %v2106 = vpop.permute.xlu0 %2105
    %2107 = vrot.lane.b32.xlu0 %v2083, 19
    %v2108 = vpop.permute.xlu0 %2107
    %2109 = vrot.lane.b32.xlu0 %v2078, 19
    %v2110 = vpop.permute.xlu0 %2109
    %2111 = vrot.lane.b32.xlu0 %v2084, 19
    %v2112 = vpop.permute.xlu0 %2111
    %v2113 = vsel %vm167, %v2106, %v2110
    %v2114 = vsel %vm167, %v2108, %v2112
    %v2115 = vsel %vm167, %v2102, %v2106
    %v2116 = vsel %vm167, %v2104, %v2108
    %v2117 = vsel %vm167, %v2098, %v2102
    %v2118 = vsel %vm167, %v2100, %v2104
    %v2119 = vsel %vm167, %v2094, %v2098
    %v2120 = vsel %vm167, %v2096, %v2100
    %v2121 = vsel %vm167, %v2090, %v2094
    %v2122 = vsel %vm167, %v2092, %v2096
    %v2123 = vsel %vm167, %v2110, %v2090
    %v2124 = vsel %vm167, %v2112, %v2092
    %v2125 = vpack.c.bf16 %v2121, %v2123
    %v2126 = vpack.c.bf16 %v2117, %v2119
    %v2127 = vpack.c.bf16 %v2113, %v2115
    %v2128 = vpack.c.bf16 %v2122, %v2124
    %v2129 = vpack.c.bf16 %v2118, %v2120
    %v2130 = vpack.c.bf16 %v2114, %v2116
    %2131 = vst [vmem:[#allocation2] sm:$0xff] %v2125
    %2132 = vst [vmem:[#allocation2 + $0x8] sm:$0xff] %v2126
    %2133 = vst [vmem:[#allocation2 + $0x10] sm:$0xff] %v2127
    %2134 = vst [vmem:[#allocation2 + $0x18] sm:$0xff] %v2128
    %2135 = vst [vmem:[#allocation2 + $0x20] sm:$0xff] %v2129
    %2136 = vst [vmem:[#allocation2 + $0x28] sm:$0xff] %v2130
    %2137 = vrot.lane.b32.xlu0 %v2073, 18
    %v2138 = vpop.permute.xlu0 %2137
    %2139 = vrot.lane.b32.xlu0 %v2079, 18
    %v2140 = vpop.permute.xlu0 %2139
    %2141 = vrot.lane.b32.xlu0 %v2074, 18
    %v2142 = vpop.permute.xlu0 %2141
    %2143 = vrot.lane.b32.xlu0 %v2080, 18
    %v2144 = vpop.permute.xlu0 %2143
    %2145 = vrot.lane.b32.xlu0 %v2075, 18
    %v2146 = vpop.permute.xlu0 %2145
    %2147 = vrot.lane.b32.xlu0 %v2081, 18
    %v2148 = vpop.permute.xlu0 %2147
    %2149 = vrot.lane.b32.xlu0 %v2076, 18
    %v2150 = vpop.permute.xlu0 %2149
    %2151 = vrot.lane.b32.xlu0 %v2082, 18
    %v2152 = vpop.permute.xlu0 %2151
    %2153 = vrot.lane.b32.xlu0 %v2077, 18
    %v2154 = vpop.permute.xlu0 %2153
    %2155 = vrot.lane.b32.xlu0 %v2083, 18
    %v2156 = vpop.permute.xlu0 %2155
    %2157 = vrot.lane.b32.xlu0 %v2078, 18
    %v2158 = vpop.permute.xlu0 %2157
    %2159 = vrot.lane.b32.xlu0 %v2084, 18
    %v2160 = vpop.permute.xlu0 %2159
    %v2161 = vsel %vm216, %v2154, %v2158
    %v2162 = vsel %vm216, %v2156, %v2160
    %v2163 = vsel %vm216, %v2150, %v2154
    %v2164 = vsel %vm216, %v2152, %v2156
    %v2165 = vsel %vm216, %v2146, %v2150
    %v2166 = vsel %vm216, %v2148, %v2152
    %v2167 = vsel %vm216, %v2142, %v2146
    %v2168 = vsel %vm216, %v2144, %v2148
    %v2169 = vsel %vm216, %v2138, %v2142
    %v2170 = vsel %vm216, %v2140, %v2144
    %v2171 = vsel %vm216, %v2158, %v2138
    %v2172 = vsel %vm216, %v2160, %v2140
    %v2173 = vpack.c.bf16 %v2169, %v2171
    %v2174 = vpack.c.bf16 %v2165, %v2167
    %v2175 = vpack.c.bf16 %v2161, %v2163
    %v2176 = vpack.c.bf16 %v2170, %v2172
    %v2177 = vpack.c.bf16 %v2166, %v2168
    %v2178 = vpack.c.bf16 %v2162, %v2164
    %2179 = vst [vmem:[#allocation2 + $0x30] sm:$0xff] %v2173
    %2180 = vst [vmem:[#allocation2 + $0x38] sm:$0xff] %v2174
    %2181 = vst [vmem:[#allocation2 + $0x40] sm:$0xff] %v2175
    %2182 = vst [vmem:[#allocation2 + $0x48] sm:$0xff] %v2176
    %2183 = vst [vmem:[#allocation2 + $0x50] sm:$0xff] %v2177
    %2184 = vst [vmem:[#allocation2 + $0x58] sm:$0xff] %v2178
    %2185 = vrot.lane.b32.xlu0 %v2073, 17
    %v2186 = vpop.permute.xlu0 %2185
    %2187 = vrot.lane.b32.xlu0 %v2079, 17
    %v2188 = vpop.permute.xlu0 %2187
    %2189 = vrot.lane.b32.xlu0 %v2074, 17
    %v2190 = vpop.permute.xlu0 %2189
    %2191 = vrot.lane.b32.xlu0 %v2080, 17
    %v2192 = vpop.permute.xlu0 %2191
    %2193 = vrot.lane.b32.xlu0 %v2075, 17
    %v2194 = vpop.permute.xlu0 %2193
    %2195 = vrot.lane.b32.xlu0 %v2081, 17
    %v2196 = vpop.permute.xlu0 %2195
    %2197 = vrot.lane.b32.xlu0 %v2076, 17
    %v2198 = vpop.permute.xlu0 %2197
    %2199 = vrot.lane.b32.xlu0 %v2082, 17
    %v2200 = vpop.permute.xlu0 %2199
    %2201 = vrot.lane.b32.xlu0 %v2077, 17
    %v2202 = vpop.permute.xlu0 %2201
    %2203 = vrot.lane.b32.xlu0 %v2083, 17
    %v2204 = vpop.permute.xlu0 %2203
    %2205 = vrot.lane.b32.xlu0 %v2078, 17
    %v2206 = vpop.permute.xlu0 %2205
    %2207 = vrot.lane.b32.xlu0 %v2084, 17
    %v2208 = vpop.permute.xlu0 %2207
    %v2209 = vsel %vm265, %v2202, %v2206
    %v2210 = vsel %vm265, %v2204, %v2208
    %v2211 = vsel %vm265, %v2198, %v2202
    %v2212 = vsel %vm265, %v2200, %v2204
    %v2213 = vsel %vm265, %v2194, %v2198
    %v2214 = vsel %vm265, %v2196, %v2200
    %v2215 = vsel %vm265, %v2190, %v2194
    %v2216 = vsel %vm265, %v2192, %v2196
    %v2217 = vsel %vm265, %v2186, %v2190
    %v2218 = vsel %vm265, %v2188, %v2192
    %v2219 = vsel %vm265, %v2206, %v2186
    %v2220 = vsel %vm265, %v2208, %v2188
    %v2221 = vpack.c.bf16 %v2217, %v2219
    %v2222 = vpack.c.bf16 %v2213, %v2215
    %v2223 = vpack.c.bf16 %v2209, %v2211
    %v2224 = vpack.c.bf16 %v2218, %v2220
    %v2225 = vpack.c.bf16 %v2214, %v2216
    %v2226 = vpack.c.bf16 %v2210, %v2212
    %2227 = vst [vmem:[#allocation2 + $0x60] sm:$0xff] %v2221
    %2228 = vst [vmem:[#allocation2 + $0x68] sm:$0xff] %v2222
    %2229 = vst [vmem:[#allocation2 + $0x70] sm:$0xff] %v2223
    %2230 = vst [vmem:[#allocation2 + $0x78] sm:$0xff] %v2224
    %2231 = vst [vmem:[#allocation2 + $0x80] sm:$0xff] %v2225
    %2232 = vst [vmem:[#allocation2 + $0x88] sm:$0xff] %v2226
    %2233 = vrot.lane.b32.xlu0 %v2073, 1
    %v2234 = vpop.permute.xlu0 %2233
    %2235 = vrot.lane.b32.xlu0 %v2079, 1
    %v2236 = vpop.permute.xlu0 %2235
    %2237 = vrot.lane.b32.xlu0 %v2074, 1
    %v2238 = vpop.permute.xlu0 %2237
    %2239 = vrot.lane.b32.xlu0 %v2080, 1
    %v2240 = vpop.permute.xlu0 %2239
    %2241 = vrot.lane.b32.xlu0 %v2075, 1
    %v2242 = vpop.permute.xlu0 %2241
    %2243 = vrot.lane.b32.xlu0 %v2081, 1
    %v2244 = vpop.permute.xlu0 %2243
    %2245 = vrot.lane.b32.xlu0 %v2076, 1
    %v2246 = vpop.permute.xlu0 %2245
    %2247 = vrot.lane.b32.xlu0 %v2082, 1
    %v2248 = vpop.permute.xlu0 %2247
    %2249 = vrot.lane.b32.xlu0 %v2077, 1
    %v2250 = vpop.permute.xlu0 %2249
    %2251 = vrot.lane.b32.xlu0 %v2083, 1
    %v2252 = vpop.permute.xlu0 %2251
    %2253 = vrot.lane.b32.xlu0 %v2078, 1
    %v2254 = vpop.permute.xlu0 %2253
    %2255 = vrot.lane.b32.xlu0 %v2084, 1
    %v2256 = vpop.permute.xlu0 %2255
    %v2257 = vsel %vm314, %v2250, %v2254
    %v2258 = vsel %vm314, %v2252, %v2256
    %v2259 = vsel %vm314, %v2246, %v2250
    %v2260 = vsel %vm314, %v2248, %v2252
    %v2261 = vsel %vm314, %v2242, %v2246
    %v2262 = vsel %vm314, %v2244, %v2248
    %v2263 = vsel %vm314, %v2238, %v2242
    %v2264 = vsel %vm314, %v2240, %v2244
    %v2265 = vsel %vm314, %v2234, %v2238
    %v2266 = vsel %vm314, %v2236, %v2240
    %v2267 = vsel %vm314, %v2254, %v2234
    %v2268 = vsel %vm314, %v2256, %v2236
    %v2269 = vpack.c.bf16 %v2265, %v2267
    %v2270 = vpack.c.bf16 %v2261, %v2263
    %v2271 = vpack.c.bf16 %v2257, %v2259
    %v2272 = vpack.c.bf16 %v2266, %v2268
    %v2273 = vpack.c.bf16 %v2262, %v2264
    %v2274 = vpack.c.bf16 %v2258, %v2260
    %2275 = vst [vmem:[#allocation2 + $0x90] sm:$0xff] %v2269
    %2276 = vst [vmem:[#allocation2 + $0x98] sm:$0xff] %v2270
    %2277 = vst [vmem:[#allocation2 + $0xa0] sm:$0xff] %v2271
    %2278 = vst [vmem:[#allocation2 + $0xa8] sm:$0xff] %v2272
    %2279 = vst [vmem:[#allocation2 + $0xb0] sm:$0xff] %v2273
    %2280 = vst [vmem:[#allocation2 + $0xb8] sm:$0xff] %v2274
    %v2281 = vpack.c.bf16 %v2074, %v2073
    %v2282 = vpack.c.bf16 %v2076, %v2075
    %v2283 = vpack.c.bf16 %v2078, %v2077
    %v2284 = vpack.c.bf16 %v2080, %v2079
    %v2285 = vpack.c.bf16 %v2082, %v2081
    %v2286 = vpack.c.bf16 %v2084, %v2083
    %2287 = vst [vmem:[#allocation2 + $0xc0] sm:$0xff] %v2281
    %2288 = vst [vmem:[#allocation2 + $0xc8] sm:$0xff] %v2282
    %2289 = vst [vmem:[#allocation2 + $0xd0] sm:$0xff] %v2283
    %2290 = vst [vmem:[#allocation2 + $0xd8] sm:$0xff] %v2284
    %2291 = vst [vmem:[#allocation2 + $0xe0] sm:$0xff] %v2285
    %2292 = vst [vmem:[#allocation2 + $0xe8] sm:$0xff] %v2286
    %2293 = vrot.lane.b32.xlu0 %v2073, 127
    %v2294 = vpop.permute.xlu0 %2293
    %2295 = vrot.lane.b32.xlu0 %v2079, 127
    %v2296 = vpop.permute.xlu0 %2295
    %2297 = vrot.lane.b32.xlu0 %v2074, 127
    %v2298 = vpop.permute.xlu0 %2297
    %2299 = vrot.lane.b32.xlu0 %v2080, 127
    %v2300 = vpop.permute.xlu0 %2299
    %2301 = vrot.lane.b32.xlu0 %v2075, 127
    %v2302 = vpop.permute.xlu0 %2301
    %2303 = vrot.lane.b32.xlu0 %v2081, 127
    %v2304 = vpop.permute.xlu0 %2303
    %2305 = vrot.lane.b32.xlu0 %v2076, 127
    %v2306 = vpop.permute.xlu0 %2305
    %2307 = vrot.lane.b32.xlu0 %v2082, 127
    %v2308 = vpop.permute.xlu0 %2307
    %2309 = vrot.lane.b32.xlu0 %v2077, 127
    %v2310 = vpop.permute.xlu0 %2309
    %2311 = vrot.lane.b32.xlu0 %v2083, 127
    %v2312 = vpop.permute.xlu0 %2311
    %2313 = vrot.lane.b32.xlu0 %v2078, 127
    %v2314 = vpop.permute.xlu0 %2313
    %2315 = vrot.lane.b32.xlu0 %v2084, 127
    %v2316 = vpop.permute.xlu0 %2315
    %v2317 = vsel %vm375, %v2310, %v2314
    %v2318 = vsel %vm375, %v2312, %v2316
    %v2319 = vsel %vm375, %v2306, %v2310
    %v2320 = vsel %vm375, %v2308, %v2312
    %v2321 = vsel %vm375, %v2302, %v2306
    %v2322 = vsel %vm375, %v2304, %v2308
    %v2323 = vsel %vm375, %v2298, %v2302
    %v2324 = vsel %vm375, %v2300, %v2304
    %v2325 = vsel %vm375, %v2294, %v2298
    %v2326 = vsel %vm375, %v2296, %v2300
    %v2327 = vsel %vm375, %v2314, %v2294
    %v2328 = vsel %vm375, %v2316, %v2296
    %v2329 = vpack.c.bf16 %v2323, %v2325
    %v2330 = vpack.c.bf16 %v2319, %v2321
    %v2331 = vpack.c.bf16 %v2327, %v2317
    %v2332 = vpack.c.bf16 %v2324, %v2326
    %v2333 = vpack.c.bf16 %v2320, %v2322
    %v2334 = vpack.c.bf16 %v2328, %v2318
    %2335 = vst [vmem:[#allocation2 + $0xf0] sm:$0xff] %v2329
    %2336 = vst [vmem:[#allocation2 + $0xf8] sm:$0xff] %v2330
    %2337 = vst [vmem:[#allocation2 + $0x100] sm:$0xff] %v2331
    %2338 = vst [vmem:[#allocation2 + $0x108] sm:$0xff] %v2332
    %2339 = vst [vmem:[#allocation2 + $0x110] sm:$0xff] %v2333
    %2340 = vst [vmem:[#allocation2 + $0x118] sm:$0xff] %v2334
    %2341 = vrot.lane.b32.xlu0 %v2073, 111
    %v2342 = vpop.permute.xlu0 %2341
    %2343 = vrot.lane.b32.xlu0 %v2079, 111
    %v2344 = vpop.permute.xlu0 %2343
    %2345 = vrot.lane.b32.xlu0 %v2074, 111
    %v2346 = vpop.permute.xlu0 %2345
    %2347 = vrot.lane.b32.xlu0 %v2080, 111
    %v2348 = vpop.permute.xlu0 %2347
    %2349 = vrot.lane.b32.xlu0 %v2075, 111
    %v2350 = vpop.permute.xlu0 %2349
    %2351 = vrot.lane.b32.xlu0 %v2081, 111
    %v2352 = vpop.permute.xlu0 %2351
    %2353 = vrot.lane.b32.xlu0 %v2076, 111
    %v2354 = vpop.permute.xlu0 %2353
    %2355 = vrot.lane.b32.xlu0 %v2082, 111
    %v2356 = vpop.permute.xlu0 %2355
    %2357 = vrot.lane.b32.xlu0 %v2077, 111
    %v2358 = vpop.permute.xlu0 %2357
    %2359 = vrot.lane.b32.xlu0 %v2083, 111
    %v2360 = vpop.permute.xlu0 %2359
    %2361 = vrot.lane.b32.xlu0 %v2078, 111
    %v2362 = vpop.permute.xlu0 %2361
    %2363 = vrot.lane.b32.xlu0 %v2084, 111
    %v2364 = vpop.permute.xlu0 %2363
    %v2365 = vsel %vm424, %v2358, %v2362
    %v2366 = vsel %vm424, %v2360, %v2364
    %v2367 = vsel %vm424, %v2354, %v2358
    %v2368 = vsel %vm424, %v2356, %v2360
    %v2369 = vsel %vm424, %v2350, %v2354
    %v2370 = vsel %vm424, %v2352, %v2356
    %v2371 = vsel %vm424, %v2346, %v2350
    %v2372 = vsel %vm424, %v2348, %v2352
    %v2373 = vsel %vm424, %v2342, %v2346
    %v2374 = vsel %vm424, %v2344, %v2348
    %v2375 = vsel %vm424, %v2362, %v2342
    %v2376 = vsel %vm424, %v2364, %v2344
    %v2377 = vpack.c.bf16 %v2371, %v2373
    %v2378 = vpack.c.bf16 %v2367, %v2369
    %v2379 = vpack.c.bf16 %v2375, %v2365
    %v2380 = vpack.c.bf16 %v2372, %v2374
    %v2381 = vpack.c.bf16 %v2368, %v2370
    %v2382 = vpack.c.bf16 %v2376, %v2366
    %2383 = vst [vmem:[#allocation2 + $0x120] sm:$0xff] %v2377
    %2384 = vst [vmem:[#allocation2 + $0x128] sm:$0xff] %v2378
    %2385 = vst [vmem:[#allocation2 + $0x130] sm:$0xff] %v2379
    %2386 = vst [vmem:[#allocation2 + $0x138] sm:$0xff] %v2380
    %2387 = vst [vmem:[#allocation2 + $0x140] sm:$0xff] %v2381
    %2388 = vst [vmem:[#allocation2 + $0x148] sm:$0xff] %v2382
    %2389 = vrot.lane.b32.xlu0 %v2073, 110
    %v2390 = vpop.permute.xlu0 %2389
    %2391 = vrot.lane.b32.xlu0 %v2079, 110
    %v2392 = vpop.permute.xlu0 %2391
    %2393 = vrot.lane.b32.xlu0 %v2074, 110
    %v2394 = vpop.permute.xlu0 %2393
    %2395 = vrot.lane.b32.xlu0 %v2080, 110
    %v2396 = vpop.permute.xlu0 %2395
    %2397 = vrot.lane.b32.xlu0 %v2075, 110
    %v2398 = vpop.permute.xlu0 %2397
    %2399 = vrot.lane.b32.xlu0 %v2081, 110
    %v2400 = vpop.permute.xlu0 %2399
    %2401 = vrot.lane.b32.xlu0 %v2076, 110
    %v2402 = vpop.permute.xlu0 %2401
    %2403 = vrot.lane.b32.xlu0 %v2082, 110
    %v2404 = vpop.permute.xlu0 %2403
    %2405 = vrot.lane.b32.xlu0 %v2077, 110
    %v2406 = vpop.permute.xlu0 %2405
    %2407 = vrot.lane.b32.xlu0 %v2083, 110
    %v2408 = vpop.permute.xlu0 %2407
    %2409 = vrot.lane.b32.xlu0 %v2078, 110
    %v2410 = vpop.permute.xlu0 %2409
    %2411 = vrot.lane.b32.xlu0 %v2084, 110
    %v2412 = vpop.permute.xlu0 %2411
    %v2413 = vsel %vm473, %v2406, %v2410
    %v2414 = vsel %vm473, %v2408, %v2412
    %v2415 = vsel %vm473, %v2402, %v2406
    %v2416 = vsel %vm473, %v2404, %v2408
    %v2417 = vsel %vm473, %v2398, %v2402
    %v2418 = vsel %vm473, %v2400, %v2404
    %v2419 = vsel %vm473, %v2394, %v2398
    %v2420 = vsel %vm473, %v2396, %v2400
    %v2421 = vsel %vm473, %v2390, %v2394
    %v2422 = vsel %vm473, %v2392, %v2396
    %v2423 = vsel %vm473, %v2410, %v2390
    %v2424 = vsel %vm473, %v2412, %v2392
    %v2425 = vpack.c.bf16 %v2419, %v2421
    %v2426 = vpack.c.bf16 %v2415, %v2417
    %v2427 = vpack.c.bf16 %v2423, %v2413
    %v2428 = vpack.c.bf16 %v2420, %v2422
    %v2429 = vpack.c.bf16 %v2416, %v2418
    %v2430 = vpack.c.bf16 %v2424, %v2414
    %2431 = vst [vmem:[#allocation2 + $0x150] sm:$0xff] %v2425
    %2432 = vst [vmem:[#allocation2 + $0x158] sm:$0xff] %v2426
    %2433 = vst [vmem:[#allocation2 + $0x160] sm:$0xff] %v2427
    %2434 = vst [vmem:[#allocation2 + $0x168] sm:$0xff] %v2428
    %2435 = vst [vmem:[#allocation2 + $0x170] sm:$0xff] %v2429
    %2436 = vst [vmem:[#allocation2 + $0x178] sm:$0xff] %v2430
    %2437 = vrot.lane.b32.xlu0 %v2073, 109
    %v2438 = vpop.permute.xlu0 %2437
    %2439 = vrot.lane.b32.xlu0 %v2079, 109
    %v2440 = vpop.permute.xlu0 %2439
    %2441 = vrot.lane.b32.xlu0 %v2074, 109
    %v2442 = vpop.permute.xlu0 %2441
    %2443 = vrot.lane.b32.xlu0 %v2080, 109
    %v2444 = vpop.permute.xlu0 %2443
    %2445 = vrot.lane.b32.xlu0 %v2075, 109
    %v2446 = vpop.permute.xlu0 %2445
    %2447 = vrot.lane.b32.xlu0 %v2081, 109
    %v2448 = vpop.permute.xlu0 %2447
    %2449 = vrot.lane.b32.xlu0 %v2076, 109
    %v2450 = vpop.permute.xlu0 %2449
    %2451 = vrot.lane.b32.xlu0 %v2082, 109
    %v2452 = vpop.permute.xlu0 %2451
    %2453 = vrot.lane.b32.xlu0 %v2077, 109
    %v2454 = vpop.permute.xlu0 %2453
    %2455 = vrot.lane.b32.xlu0 %v2083, 109
    %v2456 = vpop.permute.xlu0 %2455
    %2457 = vrot.lane.b32.xlu0 %v2078, 109
    %v2458 = vpop.permute.xlu0 %2457
    %2459 = vrot.lane.b32.xlu0 %v2084, 109
    %v2460 = vpop.permute.xlu0 %2459
    %v2461 = vsel %vm522, %v2454, %v2458
    %v2462 = vsel %vm522, %v2456, %v2460
    %v2463 = vsel %vm522, %v2450, %v2454
    %v2464 = vsel %vm522, %v2452, %v2456
    %v2465 = vsel %vm522, %v2446, %v2450
    %v2466 = vsel %vm522, %v2448, %v2452
    %v2467 = vsel %vm522, %v2442, %v2446
    %v2468 = vsel %vm522, %v2444, %v2448
    %v2469 = vsel %vm522, %v2438, %v2442
    %v2470 = vsel %vm522, %v2440, %v2444
    %v2471 = vsel %vm522, %v2458, %v2438
    %v2472 = vsel %vm522, %v2460, %v2440
    %v2473 = vpack.c.bf16 %v2467, %v2469
    %v2474 = vpack.c.bf16 %v2463, %v2465
    %v2475 = vpack.c.bf16 %v2471, %v2461
    %v2476 = vpack.c.bf16 %v2468, %v2470
    %v2477 = vpack.c.bf16 %v2464, %v2466
    %v2478 = vpack.c.bf16 %v2472, %v2462
    %2479 = vst [vmem:[#allocation2 + $0x180] sm:$0xff] %v2473
    %2480 = vst [vmem:[#allocation2 + $0x188] sm:$0xff] %v2474
    %2481 = vst [vmem:[#allocation2 + $0x190] sm:$0xff] %v2475
    %2482 = vst [vmem:[#allocation2 + $0x198] sm:$0xff] %v2476
    %2483 = vst [vmem:[#allocation2 + $0x1a0] sm:$0xff] %v2477
    %2484 = vst [vmem:[#allocation2 + $0x1a8] sm:$0xff] %v2478
    %v2485 = vld [vmem:[#allocation2] sm:$0xff]
    %v2486 = vld [vmem:[#allocation2 + $0x8] sm:$0xff]
    %v2487 = vld [vmem:[#allocation2 + $0x10] sm:$0xff]
    %v2488 = vld [vmem:[#allocation2 + $0x18] sm:$0xff]
    %v2489 = vld [vmem:[#allocation2 + $0x20] sm:$0xff]
    %v2490 = vld [vmem:[#allocation2 + $0x28] sm:$0xff]
    %v2491 = vld [vmem:[#allocation2 + $0x30] sm:$0xff]
    %v2492 = vld [vmem:[#allocation2 + $0x38] sm:$0xff]
    %v2493 = vld [vmem:[#allocation2 + $0x40] sm:$0xff]
    %v2494 = vld [vmem:[#allocation2 + $0x48] sm:$0xff]
    %v2495 = vld [vmem:[#allocation2 + $0x50] sm:$0xff]
    %v2496 = vld [vmem:[#allocation2 + $0x58] sm:$0xff]
    %v2497 = vld [vmem:[#allocation2 + $0x60] sm:$0xff]
    %v2498 = vld [vmem:[#allocation2 + $0x68] sm:$0xff]
    %v2499 = vld [vmem:[#allocation2 + $0x70] sm:$0xff]
    %v2500 = vld [vmem:[#allocation2 + $0x78] sm:$0xff]
    %v2501 = vld [vmem:[#allocation2 + $0x80] sm:$0xff]
    %v2502 = vld [vmem:[#allocation2 + $0x88] sm:$0xff]
    %v2503 = vld [vmem:[#allocation2 + $0x90] sm:$0xff]
    %v2504 = vld [vmem:[#allocation2 + $0x98] sm:$0xff]
    %v2505 = vld [vmem:[#allocation2 + $0xa0] sm:$0xff]
    %v2506 = vld [vmem:[#allocation2 + $0xa8] sm:$0xff]
    %v2507 = vld [vmem:[#allocation2 + $0xb0] sm:$0xff]
    %v2508 = vld [vmem:[#allocation2 + $0xb8] sm:$0xff]
    %v2509 = vld [vmem:[#allocation2 + $0xc0] sm:$0xff]
    %v2510 = vld [vmem:[#allocation2 + $0xc8] sm:$0xff]
    %v2511 = vld [vmem:[#allocation2 + $0xd0] sm:$0xff]
    %v2512 = vld [vmem:[#allocation2 + $0xd8] sm:$0xff]
    %v2513 = vld [vmem:[#allocation2 + $0xe0] sm:$0xff]
    %v2514 = vld [vmem:[#allocation2 + $0xe8] sm:$0xff]
    %v2515 = vld [vmem:[#allocation2 + $0xf0] sm:$0xff]
    %v2516 = vld [vmem:[#allocation2 + $0xf8] sm:$0xff]
    %v2517 = vld [vmem:[#allocation2 + $0x100] sm:$0xff]
    %v2518 = vld [vmem:[#allocation2 + $0x108] sm:$0xff]
    %v2519 = vld [vmem:[#allocation2 + $0x110] sm:$0xff]
    %v2520 = vld [vmem:[#allocation2 + $0x118] sm:$0xff]
    %v2521 = vld [vmem:[#allocation2 + $0x120] sm:$0xff]
    %v2522 = vld [vmem:[#allocation2 + $0x128] sm:$0xff]
    %v2523 = vld [vmem:[#allocation2 + $0x130] sm:$0xff]
    %v2524 = vld [vmem:[#allocation2 + $0x138] sm:$0xff]
    %v2525 = vld [vmem:[#allocation2 + $0x140] sm:$0xff]
    %v2526 = vld [vmem:[#allocation2 + $0x148] sm:$0xff]
    %v2527 = vld [vmem:[#allocation2 + $0x150] sm:$0xff]
    %v2528 = vld [vmem:[#allocation2 + $0x158] sm:$0xff]
    %v2529 = vld [vmem:[#allocation2 + $0x160] sm:$0xff]
    %v2530 = vld [vmem:[#allocation2 + $0x168] sm:$0xff]
    %v2531 = vld [vmem:[#allocation2 + $0x170] sm:$0xff]
    %v2532 = vld [vmem:[#allocation2 + $0x178] sm:$0xff]
    %v2533 = vld [vmem:[#allocation2 + $0x180] sm:$0xff]
    %v2534 = vld [vmem:[#allocation2 + $0x188] sm:$0xff]
    %v2535 = vld [vmem:[#allocation2 + $0x190] sm:$0xff]
    %v2536 = vld [vmem:[#allocation2 + $0x198] sm:$0xff]
    %v2537 = vld [vmem:[#allocation2 + $0x1a0] sm:$0xff]
    %v2538 = vld [vmem:[#allocation2 + $0x1a8] sm:$0xff]
    %2540 = vset.pattern.permute.xlu0 0
    %2541 = vperm.xlu0 %2540, %v2087
    %v2542 = vpop.permute.xlu0 %2541
    %2545 = vset.pattern.permute.xlu0 0
    %2546 = vperm.xlu0 %2545, %v2088
    %v2547 = vpop.permute.xlu0 %2546
    %v2551 = vunpack.c.l.b16 %v2085
    %v2552 = vunpack.c.h.b16 %v2085
    %v2553 = vunpack.c.l.b16 %v2086
    %v2554 = vunpack.c.h.b16 %v2086
    %v2555 = vpack.c.b16 %v2553, %v2551
    %v2556 = vpack.c.b16 %v2554, %v2552
    %v2612 = vunpack.c.l.b16 %v2485
    %v2613 = vunpack.c.h.b16 %v2485
    %v2614 = vunpack.c.l.b16 %v2486
    %v2615 = vunpack.c.h.b16 %v2486
    %v2616 = vunpack.c.l.b16 %v2487
    %v2617 = vunpack.c.h.b16 %v2487
    %v2618 = vunpack.c.l.b16 %v2488
    %v2619 = vunpack.c.h.b16 %v2488
    %v2620 = vunpack.c.l.b16 %v2489
    %v2621 = vunpack.c.h.b16 %v2489
    %v2622 = vunpack.c.l.b16 %v2490
    %v2623 = vunpack.c.h.b16 %v2490
    %v2624 = vunpack.c.l.b16 %v2491
    %v2625 = vunpack.c.h.b16 %v2491
    %v2626 = vunpack.c.l.b16 %v2492
    %v2627 = vunpack.c.h.b16 %v2492
    %v2628 = vunpack.c.l.b16 %v2493
    %v2629 = vunpack.c.h.b16 %v2493
    %v2630 = vunpack.c.l.b16 %v2494
    %v2631 = vunpack.c.h.b16 %v2494
    %v2632 = vunpack.c.l.b16 %v2495
    %v2633 = vunpack.c.h.b16 %v2495
    %v2634 = vunpack.c.l.b16 %v2496
    %v2635 = vunpack.c.h.b16 %v2496
    %v2636 = vunpack.c.l.b16 %v2497
    %v2637 = vunpack.c.h.b16 %v2497
    %v2638 = vunpack.c.l.b16 %v2498
    %v2639 = vunpack.c.h.b16 %v2498
    %v2640 = vunpack.c.l.b16 %v2499
    %v2641 = vunpack.c.h.b16 %v2499
    %v2642 = vunpack.c.l.b16 %v2500
    %v2643 = vunpack.c.h.b16 %v2500
    %v2644 = vunpack.c.l.b16 %v2501
    %v2645 = vunpack.c.h.b16 %v2501
    %v2646 = vunpack.c.l.b16 %v2502
    %v2647 = vunpack.c.h.b16 %v2502
    %v2648 = vunpack.c.l.b16 %v2503
    %v2649 = vunpack.c.h.b16 %v2503
    %v2650 = vunpack.c.l.b16 %v2504
    %v2651 = vunpack.c.h.b16 %v2504
    %v2652 = vunpack.c.l.b16 %v2505
    %v2653 = vunpack.c.h.b16 %v2505
    %v2654 = vunpack.c.l.b16 %v2506
    %v2655 = vunpack.c.h.b16 %v2506
    %v2656 = vunpack.c.l.b16 %v2507
    %v2657 = vunpack.c.h.b16 %v2507
    %v2658 = vunpack.c.l.b16 %v2508
    %v2659 = vunpack.c.h.b16 %v2508
    %v2660 = vunpack.c.l.b16 %v2509
    %v2661 = vunpack.c.h.b16 %v2509
    %v2662 = vunpack.c.l.b16 %v2510
    %v2663 = vunpack.c.h.b16 %v2510
    %v2664 = vunpack.c.l.b16 %v2511
    %v2665 = vunpack.c.h.b16 %v2511
    %v2666 = vunpack.c.l.b16 %v2512
    %v2667 = vunpack.c.h.b16 %v2512
    %v2668 = vunpack.c.l.b16 %v2513
    %v2669 = vunpack.c.h.b16 %v2513
    %v2670 = vunpack.c.l.b16 %v2514
    %v2671 = vunpack.c.h.b16 %v2514
    %v2672 = vunpack.c.l.b16 %v2515
    %v2673 = vunpack.c.h.b16 %v2515
    %v2674 = vunpack.c.l.b16 %v2516
    %v2675 = vunpack.c.h.b16 %v2516
    %v2676 = vunpack.c.l.b16 %v2517
    %v2677 = vunpack.c.h.b16 %v2517
    %v2678 = vunpack.c.l.b16 %v2518
    %v2679 = vunpack.c.h.b16 %v2518
    %v2680 = vunpack.c.l.b16 %v2519
    %v2681 = vunpack.c.h.b16 %v2519
    %v2682 = vunpack.c.l.b16 %v2520
    %v2683 = vunpack.c.h.b16 %v2520
    %v2684 = vunpack.c.l.b16 %v2521
    %v2685 = vunpack.c.h.b16 %v2521
    %v2686 = vunpack.c.l.b16 %v2522
    %v2687 = vunpack.c.h.b16 %v2522
    %v2688 = vunpack.c.l.b16 %v2523
    %v2689 = vunpack.c.h.b16 %v2523
    %v2690 = vunpack.c.l.b16 %v2524
    %v2691 = vunpack.c.h.b16 %v2524
    %v2692 = vunpack.c.l.b16 %v2525
    %v2693 = vunpack.c.h.b16 %v2525
    %v2694 = vunpack.c.l.b16 %v2526
    %v2695 = vunpack.c.h.b16 %v2526
    %v2696 = vunpack.c.l.b16 %v2527
    %v2697 = vunpack.c.h.b16 %v2527
    %v2698 = vunpack.c.l.b16 %v2528
    %v2699 = vunpack.c.h.b16 %v2528
    %v2700 = vunpack.c.l.b16 %v2529
    %v2701 = vunpack.c.h.b16 %v2529
    %v2702 = vunpack.c.l.b16 %v2530
    %v2703 = vunpack.c.h.b16 %v2530
    %v2704 = vunpack.c.l.b16 %v2531
    %v2705 = vunpack.c.h.b16 %v2531
    %v2706 = vunpack.c.l.b16 %v2532
    %v2707 = vunpack.c.h.b16 %v2532
    %v2708 = vunpack.c.l.b16 %v2533
    %v2709 = vunpack.c.h.b16 %v2533
    %v2710 = vunpack.c.l.b16 %v2534
    %v2711 = vunpack.c.h.b16 %v2534
    %v2712 = vunpack.c.l.b16 %v2535
    %v2713 = vunpack.c.h.b16 %v2535
    %v2714 = vunpack.c.l.b16 %v2536
    %v2715 = vunpack.c.h.b16 %v2536
    %v2716 = vunpack.c.l.b16 %v2537
    %v2717 = vunpack.c.h.b16 %v2537
    %v2718 = vunpack.c.l.b16 %v2538
    %v2719 = vunpack.c.h.b16 %v2538
    %v2720 = vpack.c.b16 %v2618, %v2612
    %v2721 = vpack.c.b16 %v2619, %v2613
    %v2722 = vpack.c.b16 %v2620, %v2614
    %v2723 = vpack.c.b16 %v2621, %v2615
    %v2724 = vpack.c.b16 %v2622, %v2616
    %v2725 = vpack.c.b16 %v2623, %v2617
    %v2726 = vpack.c.b16 %v2630, %v2624
    %v2727 = vpack.c.b16 %v2631, %v2625
    %v2728 = vpack.c.b16 %v2632, %v2626
    %v2729 = vpack.c.b16 %v2633, %v2627
    %v2730 = vpack.c.b16 %v2634, %v2628
    %v2731 = vpack.c.b16 %v2635, %v2629
    %v2732 = vpack.c.b16 %v2642, %v2636
    %v2733 = vpack.c.b16 %v2643, %v2637
    %v2734 = vpack.c.b16 %v2644, %v2638
    %v2735 = vpack.c.b16 %v2645, %v2639
    %v2736 = vpack.c.b16 %v2646, %v2640
    %v2737 = vpack.c.b16 %v2647, %v2641
    %v2738 = vpack.c.b16 %v2654, %v2648
    %v2739 = vpack.c.b16 %v2655, %v2649
    %v2740 = vpack.c.b16 %v2656, %v2650
    %v2741 = vpack.c.b16 %v2657, %v2651
    %v2742 = vpack.c.b16 %v2658, %v2652
    %v2743 = vpack.c.b16 %v2659, %v2653
    %v2744 = vpack.c.b16 %v2666, %v2660
    %v2745 = vpack.c.b16 %v2667, %v2661
    %v2746 = vpack.c.b16 %v2668, %v2662
    %v2747 = vpack.c.b16 %v2669, %v2663
    %v2748 = vpack.c.b16 %v2670, %v2664
    %v2749 = vpack.c.b16 %v2671, %v2665
    %v2750 = vpack.c.b16 %v2678, %v2672
    %v2751 = vpack.c.b16 %v2679, %v2673
    %v2752 = vpack.c.b16 %v2680, %v2674
    %v2753 = vpack.c.b16 %v2681, %v2675
    %v2754 = vpack.c.b16 %v2682, %v2676
    %v2755 = vpack.c.b16 %v2683, %v2677
    %v2756 = vpack.c.b16 %v2690, %v2684
    %v2757 = vpack.c.b16 %v2691, %v2685
    %v2758 = vpack.c.b16 %v2692, %v2686
    %v2759 = vpack.c.b16 %v2693, %v2687
    %v2760 = vpack.c.b16 %v2694, %v2688
    %v2761 = vpack.c.b16 %v2695, %v2689
    %v2762 = vpack.c.b16 %v2702, %v2696
    %v2763 = vpack.c.b16 %v2703, %v2697
    %v2764 = vpack.c.b16 %v2704, %v2698
    %v2765 = vpack.c.b16 %v2705, %v2699
    %v2766 = vpack.c.b16 %v2706, %v2700
    %v2767 = vpack.c.b16 %v2707, %v2701
    %v2768 = vpack.c.b16 %v2714, %v2708
    %v2769 = vpack.c.b16 %v2715, %v2709
    %v2770 = vpack.c.b16 %v2716, %v2710
    %v2771 = vpack.c.b16 %v2717, %v2711
    %v2772 = vpack.c.b16 %v2718, %v2712
    %v2773 = vpack.c.b16 %v2719, %v2713
    %v2829 = vsel %vm890, %v2556, 0
    %2831 = vmatpush.bf16.msra.mxu0 %v2762
    %2832 = vmatpush.bf16.msra.mxu0 %v2756
    %2833 = vmatpush.bf16.msra.mxu0 %v2750
    %2834 = vmatpush.bf16.msra.mxu0 %v2744
    %2835 = vmatpush.bf16.msra.mxu0 %v2738
    %2836 = vmatpush.bf16.msra.mxu0 %v2732
    %2837 = vmatpush.bf16.msra.mxu0 %v2726
    %2838 = vmatpush.bf16.msra.mxu0 %v2720
    %2839 = vmatmul.bf16.gmra.mxu0 %v2555
    %v2840 = vpop.f32.mrf.mxu0
    %v2841 = vadd.f32 %v2542, %v2840
    %v2842 = vpop.f32.mrf.mxu0
    %v2843 = vadd.f32 %v2547, %v2842
    %2844 = vdwg.mxu0
    %2845 = vmatpush.bf16.msra.mxu0 0
    %2846 = vmatpush.bf16.msra.mxu0 0
    %2847 = vmatpush.bf16.msra.mxu0 0
    %2848 = vmatpush.bf16.msra.mxu0 0
    %2849 = vmatpush.bf16.msra.mxu0 0
    %2850 = vmatpush.bf16.msra.mxu0 0
    %2851 = vmatpush.bf16.msra.mxu0 0
    %2852 = vmatpush.bf16.msra.mxu0 %v2768
    %2853 = vmatmul.bf16.gmra.mxu0 %v2829
    %v2854 = vpop.f32.mrf.mxu0
    %v2855 = vadd.f32 %v2841, %v2854
    %v2856 = vpop.f32.mrf.mxu0
    %v2857 = vadd.f32 %v2843, %v2856
    %2858 = vdwg.mxu0
    %2859 = vmatpush.bf16.msra.mxu0 %v2763
    %2860 = vmatpush.bf16.msra.mxu0 %v2757
    %2861 = vmatpush.bf16.msra.mxu0 %v2751
    %2862 = vmatpush.bf16.msra.mxu0 %v2745
    %2863 = vmatpush.bf16.msra.mxu0 %v2739
    %2864 = vmatpush.bf16.msra.mxu0 %v2733
    %2865 = vmatpush.bf16.msra.mxu0 %v2727
    %2866 = vmatpush.bf16.msra.mxu0 %v2721
    %2867 = vmatmul.bf16.gmra.mxu0 %v2555
    %v2868 = vpop.f32.mrf.mxu0
    %v2869 = vadd.f32 %v2542, %v2868
    %v2870 = vpop.f32.mrf.mxu0
    %v2871 = vadd.f32 %v2547, %v2870
    %2872 = vdwg.mxu0
    %2873 = vmatpush.bf16.msra.mxu0 0
    %2874 = vmatpush.bf16.msra.mxu0 0
    %2875 = vmatpush.bf16.msra.mxu0 0
    %2876 = vmatpush.bf16.msra.mxu0 0
    %2877 = vmatpush.bf16.msra.mxu0 0
    %2878 = vmatpush.bf16.msra.mxu0 0
    %2879 = vmatpush.bf16.msra.mxu0 0
    %2880 = vmatpush.bf16.msra.mxu0 %v2769
    %2881 = vmatmul.bf16.gmra.mxu0 %v2829
    %v2882 = vpop.f32.mrf.mxu0
    %v2883 = vadd.f32 %v2869, %v2882
    %v2884 = vpop.f32.mrf.mxu0
    %v2885 = vadd.f32 %v2871, %v2884
    %2886 = vdwg.mxu0
    %2887 = vmatpush.bf16.msra.mxu0 %v2764
    %2888 = vmatpush.bf16.msra.mxu0 %v2758
    %2889 = vmatpush.bf16.msra.mxu0 %v2752
    %2890 = vmatpush.bf16.msra.mxu0 %v2746
    %2891 = vmatpush.bf16.msra.mxu0 %v2740
    %2892 = vmatpush.bf16.msra.mxu0 %v2734
    %2893 = vmatpush.bf16.msra.mxu0 %v2728
    %2894 = vmatpush.bf16.msra.mxu0 %v2722
    %2895 = vmatmul.bf16.gmra.mxu0 %v2555
    %v2896 = vpop.f32.mrf.mxu0
    %v2897 = vadd.f32 %v2542, %v2896
    %v2898 = vpop.f32.mrf.mxu0
    %v2899 = vadd.f32 %v2547, %v2898
    %2900 = vdwg.mxu0
    %2901 = vmatpush.bf16.msra.mxu0 0
    %2902 = vmatpush.bf16.msra.mxu0 0
    %2903 = vmatpush.bf16.msra.mxu0 0
    %2904 = vmatpush.bf16.msra.mxu0 0
    %2905 = vmatpush.bf16.msra.mxu0 0
    %2906 = vmatpush.bf16.msra.mxu0 0
    %2907 = vmatpush.bf16.msra.mxu0 0
    %2908 = vmatpush.bf16.msra.mxu0 %v2770
    %2909 = vmatmul.bf16.gmra.mxu0 %v2829
    %v2910 = vpop.f32.mrf.mxu0
    %v2911 = vadd.f32 %v2897, %v2910
    %v2912 = vpop.f32.mrf.mxu0
    %v2913 = vadd.f32 %v2899, %v2912
    %2914 = vdwg.mxu0
    %2915 = vmatpush.bf16.msra.mxu0 %v2765
    %2916 = vmatpush.bf16.msra.mxu0 %v2759
    %2917 = vmatpush.bf16.msra.mxu0 %v2753
    %2918 = vmatpush.bf16.msra.mxu0 %v2747
    %2919 = vmatpush.bf16.msra.mxu0 %v2741
    %2920 = vmatpush.bf16.msra.mxu0 %v2735
    %2921 = vmatpush.bf16.msra.mxu0 %v2729
    %2922 = vmatpush.bf16.msra.mxu0 %v2723
    %2923 = vmatmul.bf16.gmra.mxu0 %v2555
    %v2924 = vpop.f32.mrf.mxu0
    %v2925 = vadd.f32 %v2542, %v2924
    %v2926 = vpop.f32.mrf.mxu0
    %v2927 = vadd.f32 %v2547, %v2926
    %2928 = vdwg.mxu0
    %2929 = vmatpush.bf16.msra.mxu0 0
    %2930 = vmatpush.bf16.msra.mxu0 0
    %2931 = vmatpush.bf16.msra.mxu0 0
    %2932 = vmatpush.bf16.msra.mxu0 0
    %2933 = vmatpush.bf16.msra.mxu0 0
    %2934 = vmatpush.bf16.msra.mxu0 0
    %2935 = vmatpush.bf16.msra.mxu0 0
    %2936 = vmatpush.bf16.msra.mxu0 %v2771
    %2937 = vmatmul.bf16.gmra.mxu0 %v2829
    %v2938 = vpop.f32.mrf.mxu0
    %v2939 = vadd.f32 %v2925, %v2938
    %v2940 = vpop.f32.mrf.mxu0
    %v2941 = vadd.f32 %v2927, %v2940
    %2942 = vdwg.mxu0
    %2943 = vmatpush.bf16.msra.mxu0 %v2766
    %2944 = vmatpush.bf16.msra.mxu0 %v2760
    %2945 = vmatpush.bf16.msra.mxu0 %v2754
    %2946 = vmatpush.bf16.msra.mxu0 %v2748
    %2947 = vmatpush.bf16.msra.mxu0 %v2742
    %2948 = vmatpush.bf16.msra.mxu0 %v2736
    %2949 = vmatpush.bf16.msra.mxu0 %v2730
    %2950 = vmatpush.bf16.msra.mxu0 %v2724
    %2951 = vmatmul.bf16.gmra.mxu0 %v2555
    %v2952 = vpop.f32.mrf.mxu0
    %v2953 = vadd.f32 %v2542, %v2952
    %v2954 = vpop.f32.mrf.mxu0
    %v2955 = vadd.f32 %v2547, %v2954
    %2956 = vdwg.mxu0
    %2957 = vmatpush.bf16.msra.mxu0 0
    %2958 = vmatpush.bf16.msra.mxu0 0
    %2959 = vmatpush.bf16.msra.mxu0 0
    %2960 = vmatpush.bf16.msra.mxu0 0
    %2961 = vmatpush.bf16.msra.mxu0 0
    %2962 = vmatpush.bf16.msra.mxu0 0
    %2963 = vmatpush.bf16.msra.mxu0 0
    %2964 = vmatpush.bf16.msra.mxu0 %v2772
    %2965 = vmatmul.bf16.gmra.mxu0 %v2829
    %v2966 = vpop.f32.mrf.mxu0
    %v2967 = vadd.f32 %v2953, %v2966
    %v2968 = vpop.f32.mrf.mxu0
    %v2969 = vadd.f32 %v2955, %v2968
    %2970 = vdwg.mxu0
    %2971 = vmatpush.bf16.msra.mxu0 %v2767
    %2972 = vmatpush.bf16.msra.mxu0 %v2761
    %2973 = vmatpush.bf16.msra.mxu0 %v2755
    %2974 = vmatpush.bf16.msra.mxu0 %v2749
    %2975 = vmatpush.bf16.msra.mxu0 %v2743
    %2976 = vmatpush.bf16.msra.mxu0 %v2737
    %2977 = vmatpush.bf16.msra.mxu0 %v2731
    %2978 = vmatpush.bf16.msra.mxu0 %v2725
    %2979 = vmatmul.bf16.gmra.mxu0 %v2555
    %v2980 = vpop.f32.mrf.mxu0
    %v2981 = vadd.f32 %v2542, %v2980
    %v2982 = vpop.f32.mrf.mxu0
    %v2983 = vadd.f32 %v2547, %v2982
    %2984 = vdwg.mxu0
    %2985 = vmatpush.bf16.msra.mxu0 0
    %2986 = vmatpush.bf16.msra.mxu0 0
    %2987 = vmatpush.bf16.msra.mxu0 0
    %2988 = vmatpush.bf16.msra.mxu0 0
    %2989 = vmatpush.bf16.msra.mxu0 0
    %2990 = vmatpush.bf16.msra.mxu0 0
    %2991 = vmatpush.bf16.msra.mxu0 0
    %2992 = vmatpush.bf16.msra.mxu0 %v2773
    %2993 = vmatmul.bf16.gmra.mxu0 %v2829
    %v2994 = vpop.f32.mrf.mxu0
    %v2995 = vadd.f32 %v2981, %v2994
    %v2996 = vpop.f32.mrf.mxu0
    %v2997 = vadd.f32 %v2983, %v2996
    %2998 = vdwg.mxu0
    %v2999 = vmul.f32 %v2855, 0.1
    %v3000 = vmul.f32 %v2883, 0.1
    %v3001 = vmul.f32 %v2911, 0.1
    %v3002 = vmul.f32 %v2939, 0.1
    %v3003 = vmul.f32 %v2967, 0.1
    %v3004 = vmul.f32 %v2995, 0.1
    %v3005 = vmul.f32 %v2857, 0.1
    %v3006 = vmul.f32 %v2885, 0.1
    %v3007 = vmul.f32 %v2913, 0.1
    %v3008 = vmul.f32 %v2941, 0.1
    %v3009 = vmul.f32 %v2969, 0.1
    %v3010 = vmul.f32 %v2997, 0.1
    %v3011 = vadd.f32 %v1111, %v2999
    %v3012 = vadd.f32 %v1112, %v3000
    %v3013 = vadd.f32 %v1113, %v3001
    %v3014 = vadd.f32 %v1114, %v3002
    %v3015 = vadd.f32 %v1115, %v3003
    %v3016 = vadd.f32 %v1116, %v3004
    %v3017 = vadd.f32 %v1117, %v3005
    %v3018 = vadd.f32 %v1118, %v3006
    %v3019 = vadd.f32 %v1119, %v3007
    %v3020 = vadd.f32 %v1120, %v3008
    %v3021 = vadd.f32 %v1121, %v3009
    %v3022 = vadd.f32 %v1122, %v3010
    %vm3023 = vcmp.ge.f32.partialorder %v3011, 0.0
    %vm3024 = vcmp.ge.f32.partialorder %v3012, 0.0
    %vm3025 = vcmp.ge.f32.partialorder %v3013, 0.0
    %vm3026 = vcmp.ge.f32.partialorder %v3014, 0.0
    %vm3027 = vcmp.ge.f32.partialorder %v3015, 0.0
    %vm3028 = vcmp.ge.f32.partialorder %v3016, 0.0
    %vm3029 = vcmp.ge.f32.partialorder %v3017, 0.0
    %vm3030 = vcmp.ge.f32.partialorder %v3018, 0.0
    %vm3031 = vcmp.ge.f32.partialorder %v3019, 0.0
    %vm3032 = vcmp.ge.f32.partialorder %v3020, 0.0
    %vm3033 = vcmp.ge.f32.partialorder %v3021, 0.0
    %vm3034 = vcmp.ge.f32.partialorder %v3022, 0.0
    %v3035 = vmul.f32 %v3011, 0.2
    %v3036 = vmul.f32 %v3012, 0.2
    %v3037 = vmul.f32 %v3013, 0.2
    %v3038 = vmul.f32 %v3014, 0.2
    %v3039 = vmul.f32 %v3015, 0.2
    %v3040 = vmul.f32 %v3016, 0.2
    %v3041 = vmul.f32 %v3017, 0.2
    %v3042 = vmul.f32 %v3018, 0.2
    %v3043 = vmul.f32 %v3019, 0.2
    %v3044 = vmul.f32 %v3020, 0.2
    %v3045 = vmul.f32 %v3021, 0.2
    %v3046 = vmul.f32 %v3022, 0.2
    %v3047 = vsel %vm3023, %v3011, %v3035
    %v3048 = vsel %vm3024, %v3012, %v3036
    %v3049 = vsel %vm3025, %v3013, %v3037
    %v3050 = vsel %vm3026, %v3014, %v3038
    %v3051 = vsel %vm3027, %v3015, %v3039
    %v3052 = vsel %vm3028, %v3016, %v3040
    %v3053 = vsel %vm3029, %v3017, %v3041
    %v3054 = vsel %vm3030, %v3018, %v3042
    %v3055 = vsel %vm3031, %v3019, %v3043
    %v3056 = vsel %vm3032, %v3020, %v3044
    %v3057 = vsel %vm3033, %v3021, %v3045
    %v3058 = vsel %vm3034, %v3022, %v3046
    %v3059 = vmul.f32 %v3047, %v1099
    %v3060 = vmul.f32 %v3048, %v1100
    %v3061 = vmul.f32 %v3049, %v1101
    %v3062 = vmul.f32 %v3050, %v1102
    %v3063 = vmul.f32 %v3051, %v1103
    %v3064 = vmul.f32 %v3052, %v1104
    %v3065 = vmul.f32 %v3053, %v1099
    %v3066 = vmul.f32 %v3054, %v1100
    %v3067 = vmul.f32 %v3055, %v1101
    %v3068 = vmul.f32 %v3056, %v1102
    %v3069 = vmul.f32 %v3057, %v1103
    %v3070 = vmul.f32 %v3058, %v1104
    %v3071 = vld [vmem:[%s19] sm:$0xf]
    %v3072 = vld [vmem:[%s19 + $0x4] sm:$0xf]
    %v3073 = vpack.c.bf16 %v3060, %v3059
    %v3074 = vpack.c.bf16 %v3062, %v3061
    %v3075 = vpack.c.bf16 %v3064, %v3063
    %v3076 = vpack.c.bf16 %v3066, %v3065
    %v3077 = vpack.c.bf16 %v3068, %v3067
    %v3078 = vpack.c.bf16 %v3070, %v3069
    %v3079 = vld [vmem:[%s15] sm:$0xff]
    %v3080 = vld [vmem:[%s15 + $0x8] sm:$0xff]
    %v3081 = vld [vmem:[%s11] sm:$0xff]
    %v3082 = vld [vmem:[%s11 + $0x8] sm:$0xff]
    %3083 = vrot.lane.b32.xlu0 %v3059, 19
    %v3084 = vpop.permute.xlu0 %3083
    %3085 = vrot.lane.b32.xlu0 %v3065, 19
    %v3086 = vpop.permute.xlu0 %3085
    %3087 = vrot.lane.b32.xlu0 %v3060, 19
    %v3088 = vpop.permute.xlu0 %3087
    %3089 = vrot.lane.b32.xlu0 %v3066, 19
    %v3090 = vpop.permute.xlu0 %3089
    %3091 = vrot.lane.b32.xlu0 %v3061, 19
    %v3092 = vpop.permute.xlu0 %3091
    %3093 = vrot.lane.b32.xlu0 %v3067, 19
    %v3094 = vpop.permute.xlu0 %3093
    %3095 = vrot.lane.b32.xlu0 %v3062, 19
    %v3096 = vpop.permute.xlu0 %3095
    %3097 = vrot.lane.b32.xlu0 %v3068, 19
    %v3098 = vpop.permute.xlu0 %3097
    %3099 = vrot.lane.b32.xlu0 %v3063, 19
    %v3100 = vpop.permute.xlu0 %3099
    %3101 = vrot.lane.b32.xlu0 %v3069, 19
    %v3102 = vpop.permute.xlu0 %3101
    %3103 = vrot.lane.b32.xlu0 %v3064, 19
    %v3104 = vpop.permute.xlu0 %3103
    %3105 = vrot.lane.b32.xlu0 %v3070, 19
    %v3106 = vpop.permute.xlu0 %3105
    %v3107 = vsel %vm167, %v3100, %v3104
    %v3108 = vsel %vm167, %v3102, %v3106
    %v3109 = vsel %vm167, %v3096, %v3100
    %v3110 = vsel %vm167, %v3098, %v3102
    %v3111 = vsel %vm167, %v3092, %v3096
    %v3112 = vsel %vm167, %v3094, %v3098
    %v3113 = vsel %vm167, %v3088, %v3092
    %v3114 = vsel %vm167, %v3090, %v3094
    %v3115 = vsel %vm167, %v3084, %v3088
    %v3116 = vsel %vm167, %v3086, %v3090
    %v3117 = vsel %vm167, %v3104, %v3084
    %v3118 = vsel %vm167, %v3106, %v3086
    %v3119 = vpack.c.bf16 %v3115, %v3117
    %v3120 = vpack.c.bf16 %v3111, %v3113
    %v3121 = vpack.c.bf16 %v3107, %v3109
    %v3122 = vpack.c.bf16 %v3116, %v3118
    %v3123 = vpack.c.bf16 %v3112, %v3114
    %v3124 = vpack.c.bf16 %v3108, %v3110
    %3125 = vst [vmem:[#allocation2] sm:$0xff] %v3119
    %3126 = vst [vmem:[#allocation2 + $0x8] sm:$0xff] %v3120
    %3127 = vst [vmem:[#allocation2 + $0x10] sm:$0xff] %v3121
    %3128 = vst [vmem:[#allocation2 + $0x18] sm:$0xff] %v3122
    %3129 = vst [vmem:[#allocation2 + $0x20] sm:$0xff] %v3123
    %3130 = vst [vmem:[#allocation2 + $0x28] sm:$0xff] %v3124
    %3131 = vrot.lane.b32.xlu0 %v3059, 18
    %v3132 = vpop.permute.xlu0 %3131
    %3133 = vrot.lane.b32.xlu0 %v3065, 18
    %v3134 = vpop.permute.xlu0 %3133
    %3135 = vrot.lane.b32.xlu0 %v3060, 18
    %v3136 = vpop.permute.xlu0 %3135
    %3137 = vrot.lane.b32.xlu0 %v3066, 18
    %v3138 = vpop.permute.xlu0 %3137
    %3139 = vrot.lane.b32.xlu0 %v3061, 18
    %v3140 = vpop.permute.xlu0 %3139
    %3141 = vrot.lane.b32.xlu0 %v3067, 18
    %v3142 = vpop.permute.xlu0 %3141
    %3143 = vrot.lane.b32.xlu0 %v3062, 18
    %v3144 = vpop.permute.xlu0 %3143
    %3145 = vrot.lane.b32.xlu0 %v3068, 18
    %v3146 = vpop.permute.xlu0 %3145
    %3147 = vrot.lane.b32.xlu0 %v3063, 18
    %v3148 = vpop.permute.xlu0 %3147
    %3149 = vrot.lane.b32.xlu0 %v3069, 18
    %v3150 = vpop.permute.xlu0 %3149
    %3151 = vrot.lane.b32.xlu0 %v3064, 18
    %v3152 = vpop.permute.xlu0 %3151
    %3153 = vrot.lane.b32.xlu0 %v3070, 18
    %v3154 = vpop.permute.xlu0 %3153
    %v3155 = vsel %vm216, %v3148, %v3152
    %v3156 = vsel %vm216, %v3150, %v3154
    %v3157 = vsel %vm216, %v3144, %v3148
    %v3158 = vsel %vm216, %v3146, %v3150
    %v3159 = vsel %vm216, %v3140, %v3144
    %v3160 = vsel %vm216, %v3142, %v3146
    %v3161 = vsel %vm216, %v3136, %v3140
    %v3162 = vsel %vm216, %v3138, %v3142
    %v3163 = vsel %vm216, %v3132, %v3136
    %v3164 = vsel %vm216, %v3134, %v3138
    %v3165 = vsel %vm216, %v3152, %v3132
    %v3166 = vsel %vm216, %v3154, %v3134
    %v3167 = vpack.c.bf16 %v3163, %v3165
    %v3168 = vpack.c.bf16 %v3159, %v3161
    %v3169 = vpack.c.bf16 %v3155, %v3157
    %v3170 = vpack.c.bf16 %v3164, %v3166
    %v3171 = vpack.c.bf16 %v3160, %v3162
    %v3172 = vpack.c.bf16 %v3156, %v3158
    %3173 = vst [vmem:[#allocation2 + $0x30] sm:$0xff] %v3167
    %3174 = vst [vmem:[#allocation2 + $0x38] sm:$0xff] %v3168
    %3175 = vst [vmem:[#allocation2 + $0x40] sm:$0xff] %v3169
    %3176 = vst [vmem:[#allocation2 + $0x48] sm:$0xff] %v3170
    %3177 = vst [vmem:[#allocation2 + $0x50] sm:$0xff] %v3171
    %3178 = vst [vmem:[#allocation2 + $0x58] sm:$0xff] %v3172
    %3179 = vrot.lane.b32.xlu0 %v3059, 17
    %v3180 = vpop.permute.xlu0 %3179
    %3181 = vrot.lane.b32.xlu0 %v3065, 17
    %v3182 = vpop.permute.xlu0 %3181
    %3183 = vrot.lane.b32.xlu0 %v3060, 17
    %v3184 = vpop.permute.xlu0 %3183
    %3185 = vrot.lane.b32.xlu0 %v3066, 17
    %v3186 = vpop.permute.xlu0 %3185
    %3187 = vrot.lane.b32.xlu0 %v3061, 17
    %v3188 = vpop.permute.xlu0 %3187
    %3189 = vrot.lane.b32.xlu0 %v3067, 17
    %v3190 = vpop.permute.xlu0 %3189
    %3191 = vrot.lane.b32.xlu0 %v3062, 17
    %v3192 = vpop.permute.xlu0 %3191
    %3193 = vrot.lane.b32.xlu0 %v3068, 17
    %v3194 = vpop.permute.xlu0 %3193
    %3195 = vrot.lane.b32.xlu0 %v3063, 17
    %v3196 = vpop.permute.xlu0 %3195
    %3197 = vrot.lane.b32.xlu0 %v3069, 17
    %v3198 = vpop.permute.xlu0 %3197
    %3199 = vrot.lane.b32.xlu0 %v3064, 17
    %v3200 = vpop.permute.xlu0 %3199
    %3201 = vrot.lane.b32.xlu0 %v3070, 17
    %v3202 = vpop.permute.xlu0 %3201
    %v3203 = vsel %vm265, %v3196, %v3200
    %v3204 = vsel %vm265, %v3198, %v3202
    %v3205 = vsel %vm265, %v3192, %v3196
    %v3206 = vsel %vm265, %v3194, %v3198
    %v3207 = vsel %vm265, %v3188, %v3192
    %v3208 = vsel %vm265, %v3190, %v3194
    %v3209 = vsel %vm265, %v3184, %v3188
    %v3210 = vsel %vm265, %v3186, %v3190
    %v3211 = vsel %vm265, %v3180, %v3184
    %v3212 = vsel %vm265, %v3182, %v3186
    %v3213 = vsel %vm265, %v3200, %v3180
    %v3214 = vsel %vm265, %v3202, %v3182
    %v3215 = vpack.c.bf16 %v3211, %v3213
    %v3216 = vpack.c.bf16 %v3207, %v3209
    %v3217 = vpack.c.bf16 %v3203, %v3205
    %v3218 = vpack.c.bf16 %v3212, %v3214
    %v3219 = vpack.c.bf16 %v3208, %v3210
    %v3220 = vpack.c.bf16 %v3204, %v3206
    %3221 = vst [vmem:[#allocation2 + $0x60] sm:$0xff] %v3215
    %3222 = vst [vmem:[#allocation2 + $0x68] sm:$0xff] %v3216
    %3223 = vst [vmem:[#allocation2 + $0x70] sm:$0xff] %v3217
    %3224 = vst [vmem:[#allocation2 + $0x78] sm:$0xff] %v3218
    %3225 = vst [vmem:[#allocation2 + $0x80] sm:$0xff] %v3219
    %3226 = vst [vmem:[#allocation2 + $0x88] sm:$0xff] %v3220
    %3227 = vrot.lane.b32.xlu0 %v3059, 1
    %v3228 = vpop.permute.xlu0 %3227
    %3229 = vrot.lane.b32.xlu0 %v3065, 1
    %v3230 = vpop.permute.xlu0 %3229
    %3231 = vrot.lane.b32.xlu0 %v3060, 1
    %v3232 = vpop.permute.xlu0 %3231
    %3233 = vrot.lane.b32.xlu0 %v3066, 1
    %v3234 = vpop.permute.xlu0 %3233
    %3235 = vrot.lane.b32.xlu0 %v3061, 1
    %v3236 = vpop.permute.xlu0 %3235
    %3237 = vrot.lane.b32.xlu0 %v3067, 1
    %v3238 = vpop.permute.xlu0 %3237
    %3239 = vrot.lane.b32.xlu0 %v3062, 1
    %v3240 = vpop.permute.xlu0 %3239
    %3241 = vrot.lane.b32.xlu0 %v3068, 1
    %v3242 = vpop.permute.xlu0 %3241
    %3243 = vrot.lane.b32.xlu0 %v3063, 1
    %v3244 = vpop.permute.xlu0 %3243
    %3245 = vrot.lane.b32.xlu0 %v3069, 1
    %v3246 = vpop.permute.xlu0 %3245
    %3247 = vrot.lane.b32.xlu0 %v3064, 1
    %v3248 = vpop.permute.xlu0 %3247
    %3249 = vrot.lane.b32.xlu0 %v3070, 1
    %v3250 = vpop.permute.xlu0 %3249
    %v3251 = vsel %vm314, %v3244, %v3248
    %v3252 = vsel %vm314, %v3246, %v3250
    %v3253 = vsel %vm314, %v3240, %v3244
    %v3254 = vsel %vm314, %v3242, %v3246
    %v3255 = vsel %vm314, %v3236, %v3240
    %v3256 = vsel %vm314, %v3238, %v3242
    %v3257 = vsel %vm314, %v3232, %v3236
    %v3258 = vsel %vm314, %v3234, %v3238
    %v3259 = vsel %vm314, %v3228, %v3232
    %v3260 = vsel %vm314, %v3230, %v3234
    %v3261 = vsel %vm314, %v3248, %v3228
    %v3262 = vsel %vm314, %v3250, %v3230
    %v3263 = vpack.c.bf16 %v3259, %v3261
    %v3264 = vpack.c.bf16 %v3255, %v3257
    %v3265 = vpack.c.bf16 %v3251, %v3253
    %v3266 = vpack.c.bf16 %v3260, %v3262
    %v3267 = vpack.c.bf16 %v3256, %v3258
    %v3268 = vpack.c.bf16 %v3252, %v3254
    %3269 = vst [vmem:[#allocation2 + $0x90] sm:$0xff] %v3263
    %3270 = vst [vmem:[#allocation2 + $0x98] sm:$0xff] %v3264
    %3271 = vst [vmem:[#allocation2 + $0xa0] sm:$0xff] %v3265
    %3272 = vst [vmem:[#allocation2 + $0xa8] sm:$0xff] %v3266
    %3273 = vst [vmem:[#allocation2 + $0xb0] sm:$0xff] %v3267
    %3274 = vst [vmem:[#allocation2 + $0xb8] sm:$0xff] %v3268
    %3275 = vst [vmem:[#allocation2 + $0xc0] sm:$0xff] %v3073
    %3276 = vst [vmem:[#allocation2 + $0xc8] sm:$0xff] %v3074
    %3277 = vst [vmem:[#allocation2 + $0xd0] sm:$0xff] %v3075
    %3278 = vst [vmem:[#allocation2 + $0xd8] sm:$0xff] %v3076
    %3279 = vst [vmem:[#allocation2 + $0xe0] sm:$0xff] %v3077
    %3280 = vst [vmem:[#allocation2 + $0xe8] sm:$0xff] %v3078
    %3281 = vrot.lane.b32.xlu0 %v3059, 127
    %v3282 = vpop.permute.xlu0 %3281
    %3283 = vrot.lane.b32.xlu0 %v3065, 127
    %v3284 = vpop.permute.xlu0 %3283
    %3285 = vrot.lane.b32.xlu0 %v3060, 127
    %v3286 = vpop.permute.xlu0 %3285
    %3287 = vrot.lane.b32.xlu0 %v3066, 127
    %v3288 = vpop.permute.xlu0 %3287
    %3289 = vrot.lane.b32.xlu0 %v3061, 127
    %v3290 = vpop.permute.xlu0 %3289
    %3291 = vrot.lane.b32.xlu0 %v3067, 127
    %v3292 = vpop.permute.xlu0 %3291
    %3293 = vrot.lane.b32.xlu0 %v3062, 127
    %v3294 = vpop.permute.xlu0 %3293
    %3295 = vrot.lane.b32.xlu0 %v3068, 127
    %v3296 = vpop.permute.xlu0 %3295
    %3297 = vrot.lane.b32.xlu0 %v3063, 127
    %v3298 = vpop.permute.xlu0 %3297
    %3299 = vrot.lane.b32.xlu0 %v3069, 127
    %v3300 = vpop.permute.xlu0 %3299
    %3301 = vrot.lane.b32.xlu0 %v3064, 127
    %v3302 = vpop.permute.xlu0 %3301
    %3303 = vrot.lane.b32.xlu0 %v3070, 127
    %v3304 = vpop.permute.xlu0 %3303
    %v3305 = vsel %vm375, %v3298, %v3302
    %v3306 = vsel %vm375, %v3300, %v3304
    %v3307 = vsel %vm375, %v3294, %v3298
    %v3308 = vsel %vm375, %v3296, %v3300
    %v3309 = vsel %vm375, %v3290, %v3294
    %v3310 = vsel %vm375, %v3292, %v3296
    %v3311 = vsel %vm375, %v3286, %v3290
    %v3312 = vsel %vm375, %v3288, %v3292
    %v3313 = vsel %vm375, %v3282, %v3286
    %v3314 = vsel %vm375, %v3284, %v3288
    %v3315 = vsel %vm375, %v3302, %v3282
    %v3316 = vsel %vm375, %v3304, %v3284
    %v3317 = vpack.c.bf16 %v3311, %v3313
    %v3318 = vpack.c.bf16 %v3307, %v3309
    %v3319 = vpack.c.bf16 %v3315, %v3305
    %v3320 = vpack.c.bf16 %v3312, %v3314
    %v3321 = vpack.c.bf16 %v3308, %v3310
    %v3322 = vpack.c.bf16 %v3316, %v3306
    %3323 = vst [vmem:[#allocation2 + $0xf0] sm:$0xff] %v3317
    %3324 = vst [vmem:[#allocation2 + $0xf8] sm:$0xff] %v3318
    %3325 = vst [vmem:[#allocation2 + $0x100] sm:$0xff] %v3319
    %3326 = vst [vmem:[#allocation2 + $0x108] sm:$0xff] %v3320
    %3327 = vst [vmem:[#allocation2 + $0x110] sm:$0xff] %v3321
    %3328 = vst [vmem:[#allocation2 + $0x118] sm:$0xff] %v3322
    %3329 = vrot.lane.b32.xlu0 %v3059, 111
    %v3330 = vpop.permute.xlu0 %3329
    %3331 = vrot.lane.b32.xlu0 %v3065, 111
    %v3332 = vpop.permute.xlu0 %3331
    %3333 = vrot.lane.b32.xlu0 %v3060, 111
    %v3334 = vpop.permute.xlu0 %3333
    %3335 = vrot.lane.b32.xlu0 %v3066, 111
    %v3336 = vpop.permute.xlu0 %3335
    %3337 = vrot.lane.b32.xlu0 %v3061, 111
    %v3338 = vpop.permute.xlu0 %3337
    %3339 = vrot.lane.b32.xlu0 %v3067, 111
    %v3340 = vpop.permute.xlu0 %3339
    %3341 = vrot.lane.b32.xlu0 %v3062, 111
    %v3342 = vpop.permute.xlu0 %3341
    %3343 = vrot.lane.b32.xlu0 %v3068, 111
    %v3344 = vpop.permute.xlu0 %3343
    %3345 = vrot.lane.b32.xlu0 %v3063, 111
    %v3346 = vpop.permute.xlu0 %3345
    %3347 = vrot.lane.b32.xlu0 %v3069, 111
    %v3348 = vpop.permute.xlu0 %3347
    %3349 = vrot.lane.b32.xlu0 %v3064, 111
    %v3350 = vpop.permute.xlu0 %3349
    %3351 = vrot.lane.b32.xlu0 %v3070, 111
    %v3352 = vpop.permute.xlu0 %3351
    %v3353 = vsel %vm424, %v3346, %v3350
    %v3354 = vsel %vm424, %v3348, %v3352
    %v3355 = vsel %vm424, %v3342, %v3346
    %v3356 = vsel %vm424, %v3344, %v3348
    %v3357 = vsel %vm424, %v3338, %v3342
    %v3358 = vsel %vm424, %v3340, %v3344
    %v3359 = vsel %vm424, %v3334, %v3338
    %v3360 = vsel %vm424, %v3336, %v3340
    %v3361 = vsel %vm424, %v3330, %v3334
    %v3362 = vsel %vm424, %v3332, %v3336
    %v3363 = vsel %vm424, %v3350, %v3330
    %v3364 = vsel %vm424, %v3352, %v3332
    %v3365 = vpack.c.bf16 %v3359, %v3361
    %v3366 = vpack.c.bf16 %v3355, %v3357
    %v3367 = vpack.c.bf16 %v3363, %v3353
    %v3368 = vpack.c.bf16 %v3360, %v3362
    %v3369 = vpack.c.bf16 %v3356, %v3358
    %v3370 = vpack.c.bf16 %v3364, %v3354
    %3371 = vst [vmem:[#allocation2 + $0x120] sm:$0xff] %v3365
    %3372 = vst [vmem:[#allocation2 + $0x128] sm:$0xff] %v3366
    %3373 = vst [vmem:[#allocation2 + $0x130] sm:$0xff] %v3367
    %3374 = vst [vmem:[#allocation2 + $0x138] sm:$0xff] %v3368
    %3375 = vst [vmem:[#allocation2 + $0x140] sm:$0xff] %v3369
    %3376 = vst [vmem:[#allocation2 + $0x148] sm:$0xff] %v3370
    %3377 = vrot.lane.b32.xlu0 %v3059, 110
    %v3378 = vpop.permute.xlu0 %3377
    %3379 = vrot.lane.b32.xlu0 %v3065, 110
    %v3380 = vpop.permute.xlu0 %3379
    %3381 = vrot.lane.b32.xlu0 %v3060, 110
    %v3382 = vpop.permute.xlu0 %3381
    %3383 = vrot.lane.b32.xlu0 %v3066, 110
    %v3384 = vpop.permute.xlu0 %3383
    %3385 = vrot.lane.b32.xlu0 %v3061, 110
    %v3386 = vpop.permute.xlu0 %3385
    %3387 = vrot.lane.b32.xlu0 %v3067, 110
    %v3388 = vpop.permute.xlu0 %3387
    %3389 = vrot.lane.b32.xlu0 %v3062, 110
    %v3390 = vpop.permute.xlu0 %3389
    %3391 = vrot.lane.b32.xlu0 %v3068, 110
    %v3392 = vpop.permute.xlu0 %3391
    %3393 = vrot.lane.b32.xlu0 %v3063, 110
    %v3394 = vpop.permute.xlu0 %3393
    %3395 = vrot.lane.b32.xlu0 %v3069, 110
    %v3396 = vpop.permute.xlu0 %3395
    %3397 = vrot.lane.b32.xlu0 %v3064, 110
    %v3398 = vpop.permute.xlu0 %3397
    %3399 = vrot.lane.b32.xlu0 %v3070, 110
    %v3400 = vpop.permute.xlu0 %3399
    %v3401 = vsel %vm473, %v3394, %v3398
    %v3402 = vsel %vm473, %v3396, %v3400
    %v3403 = vsel %vm473, %v3390, %v3394
    %v3404 = vsel %vm473, %v3392, %v3396
    %v3405 = vsel %vm473, %v3386, %v3390
    %v3406 = vsel %vm473, %v3388, %v3392
    %v3407 = vsel %vm473, %v3382, %v3386
    %v3408 = vsel %vm473, %v3384, %v3388
    %v3409 = vsel %vm473, %v3378, %v3382
    %v3410 = vsel %vm473, %v3380, %v3384
    %v3411 = vsel %vm473, %v3398, %v3378
    %v3412 = vsel %vm473, %v3400, %v3380
    %v3413 = vpack.c.bf16 %v3407, %v3409
    %v3414 = vpack.c.bf16 %v3403, %v3405
    %v3415 = vpack.c.bf16 %v3411, %v3401
    %v3416 = vpack.c.bf16 %v3408, %v3410
    %v3417 = vpack.c.bf16 %v3404, %v3406
    %v3418 = vpack.c.bf16 %v3412, %v3402
    %3419 = vst [vmem:[#allocation2 + $0x150] sm:$0xff] %v3413
    %3420 = vst [vmem:[#allocation2 + $0x158] sm:$0xff] %v3414
    %3421 = vst [vmem:[#allocation2 + $0x160] sm:$0xff] %v3415
    %3422 = vst [vmem:[#allocation2 + $0x168] sm:$0xff] %v3416
    %3423 = vst [vmem:[#allocation2 + $0x170] sm:$0xff] %v3417
    %3424 = vst [vmem:[#allocation2 + $0x178] sm:$0xff] %v3418
    %3425 = vrot.lane.b32.xlu0 %v3059, 109
    %v3426 = vpop.permute.xlu0 %3425
    %3427 = vrot.lane.b32.xlu0 %v3065, 109
    %v3428 = vpop.permute.xlu0 %3427
    %3429 = vrot.lane.b32.xlu0 %v3060, 109
    %v3430 = vpop.permute.xlu0 %3429
    %3431 = vrot.lane.b32.xlu0 %v3066, 109
    %v3432 = vpop.permute.xlu0 %3431
    %3433 = vrot.lane.b32.xlu0 %v3061, 109
    %v3434 = vpop.permute.xlu0 %3433
    %3435 = vrot.lane.b32.xlu0 %v3067, 109
    %v3436 = vpop.permute.xlu0 %3435
    %3437 = vrot.lane.b32.xlu0 %v3062, 109
    %v3438 = vpop.permute.xlu0 %3437
    %3439 = vrot.lane.b32.xlu0 %v3068, 109
    %v3440 = vpop.permute.xlu0 %3439
    %3441 = vrot.lane.b32.xlu0 %v3063, 109
    %v3442 = vpop.permute.xlu0 %3441
    %3443 = vrot.lane.b32.xlu0 %v3069, 109
    %v3444 = vpop.permute.xlu0 %3443
    %3445 = vrot.lane.b32.xlu0 %v3064, 109
    %v3446 = vpop.permute.xlu0 %3445
    %3447 = vrot.lane.b32.xlu0 %v3070, 109
    %v3448 = vpop.permute.xlu0 %3447
    %v3449 = vsel %vm522, %v3442, %v3446
    %v3450 = vsel %vm522, %v3444, %v3448
    %v3451 = vsel %vm522, %v3438, %v3442
    %v3452 = vsel %vm522, %v3440, %v3444
    %v3453 = vsel %vm522, %v3434, %v3438
    %v3454 = vsel %vm522, %v3436, %v3440
    %v3455 = vsel %vm522, %v3430, %v3434
    %v3456 = vsel %vm522, %v3432, %v3436
    %v3457 = vsel %vm522, %v3426, %v3430
    %v3458 = vsel %vm522, %v3428, %v3432
    %v3459 = vsel %vm522, %v3446, %v3426
    %v3460 = vsel %vm522, %v3448, %v3428
    %v3461 = vpack.c.bf16 %v3455, %v3457
    %v3462 = vpack.c.bf16 %v3451, %v3453
    %v3463 = vpack.c.bf16 %v3459, %v3449
    %v3464 = vpack.c.bf16 %v3456, %v3458
    %v3465 = vpack.c.bf16 %v3452, %v3454
    %v3466 = vpack.c.bf16 %v3460, %v3450
    %3467 = vst [vmem:[#allocation2 + $0x180] sm:$0xff] %v3461
    %3468 = vst [vmem:[#allocation2 + $0x188] sm:$0xff] %v3462
    %3469 = vst [vmem:[#allocation2 + $0x190] sm:$0xff] %v3463
    %3470 = vst [vmem:[#allocation2 + $0x198] sm:$0xff] %v3464
    %3471 = vst [vmem:[#allocation2 + $0x1a0] sm:$0xff] %v3465
    %3472 = vst [vmem:[#allocation2 + $0x1a8] sm:$0xff] %v3466
    %v3473 = vld [vmem:[#allocation2] sm:$0xff]
    %v3474 = vld [vmem:[#allocation2 + $0x8] sm:$0xff]
    %v3475 = vld [vmem:[#allocation2 + $0x10] sm:$0xff]
    %v3476 = vld [vmem:[#allocation2 + $0x18] sm:$0xff]
    %v3477 = vld [vmem:[#allocation2 + $0x20] sm:$0xff]
    %v3478 = vld [vmem:[#allocation2 + $0x28] sm:$0xff]
    %v3479 = vld [vmem:[#allocation2 + $0x30] sm:$0xff]
    %v3480 = vld [vmem:[#allocation2 + $0x38] sm:$0xff]
    %v3481 = vld [vmem:[#allocation2 + $0x40] sm:$0xff]
    %v3482 = vld [vmem:[#allocation2 + $0x48] sm:$0xff]
    %v3483 = vld [vmem:[#allocation2 + $0x50] sm:$0xff]
    %v3484 = vld [vmem:[#allocation2 + $0x58] sm:$0xff]
    %v3485 = vld [vmem:[#allocation2 + $0x60] sm:$0xff]
    %v3486 = vld [vmem:[#allocation2 + $0x68] sm:$0xff]
    %v3487 = vld [vmem:[#allocation2 + $0x70] sm:$0xff]
    %v3488 = vld [vmem:[#allocation2 + $0x78] sm:$0xff]
    %v3489 = vld [vmem:[#allocation2 + $0x80] sm:$0xff]
    %v3490 = vld [vmem:[#allocation2 + $0x88] sm:$0xff]
    %v3491 = vld [vmem:[#allocation2 + $0x90] sm:$0xff]
    %v3492 = vld [vmem:[#allocation2 + $0x98] sm:$0xff]
    %v3493 = vld [vmem:[#allocation2 + $0xa0] sm:$0xff]
    %v3494 = vld [vmem:[#allocation2 + $0xa8] sm:$0xff]
    %v3495 = vld [vmem:[#allocation2 + $0xb0] sm:$0xff]
    %v3496 = vld [vmem:[#allocation2 + $0xb8] sm:$0xff]
    %v3497 = vld [vmem:[#allocation2 + $0xc0] sm:$0xff]
    %v3498 = vld [vmem:[#allocation2 + $0xc8] sm:$0xff]
    %v3499 = vld [vmem:[#allocation2 + $0xd0] sm:$0xff]
    %v3500 = vld [vmem:[#allocation2 + $0xd8] sm:$0xff]
    %v3501 = vld [vmem:[#allocation2 + $0xe0] sm:$0xff]
    %v3502 = vld [vmem:[#allocation2 + $0xe8] sm:$0xff]
    %v3503 = vld [vmem:[#allocation2 + $0xf0] sm:$0xff]
    %v3504 = vld [vmem:[#allocation2 + $0xf8] sm:$0xff]
    %v3505 = vld [vmem:[#allocation2 + $0x100] sm:$0xff]
    %v3506 = vld [vmem:[#allocation2 + $0x108] sm:$0xff]
    %v3507 = vld [vmem:[#allocation2 + $0x110] sm:$0xff]
    %v3508 = vld [vmem:[#allocation2 + $0x118] sm:$0xff]
    %v3509 = vld [vmem:[#allocation2 + $0x120] sm:$0xff]
    %v3510 = vld [vmem:[#allocation2 + $0x128] sm:$0xff]
    %v3511 = vld [vmem:[#allocation2 + $0x130] sm:$0xff]
    %v3512 = vld [vmem:[#allocation2 + $0x138] sm:$0xff]
    %v3513 = vld [vmem:[#allocation2 + $0x140] sm:$0xff]
    %v3514 = vld [vmem:[#allocation2 + $0x148] sm:$0xff]
    %v3515 = vld [vmem:[#allocation2 + $0x150] sm:$0xff]
    %v3516 = vld [vmem:[#allocation2 + $0x158] sm:$0xff]
    %v3517 = vld [vmem:[#allocation2 + $0x160] sm:$0xff]
    %v3518 = vld [vmem:[#allocation2 + $0x168] sm:$0xff]
    %v3519 = vld [vmem:[#allocation2 + $0x170] sm:$0xff]
    %v3520 = vld [vmem:[#allocation2 + $0x178] sm:$0xff]
    %v3521 = vld [vmem:[#allocation2 + $0x180] sm:$0xff]
    %v3522 = vld [vmem:[#allocation2 + $0x188] sm:$0xff]
    %v3523 = vld [vmem:[#allocation2 + $0x190] sm:$0xff]
    %v3524 = vld [vmem:[#allocation2 + $0x198] sm:$0xff]
    %v3525 = vld [vmem:[#allocation2 + $0x1a0] sm:$0xff]
    %v3526 = vld [vmem:[#allocation2 + $0x1a8] sm:$0xff]
    %3528 = vset.pattern.permute.xlu0 0
    %3529 = vperm.xlu0 %3528, %v3081
    %v3530 = vpop.permute.xlu0 %3529
    %3533 = vset.pattern.permute.xlu0 0
    %3534 = vperm.xlu0 %3533, %v3082
    %v3535 = vpop.permute.xlu0 %3534
    %v3539 = vunpack.c.l.b16 %v3079
    %v3540 = vunpack.c.h.b16 %v3079
    %v3541 = vunpack.c.l.b16 %v3080
    %v3542 = vunpack.c.h.b16 %v3080
    %v3543 = vpack.c.b16 %v3541, %v3539
    %v3544 = vpack.c.b16 %v3542, %v3540
    %v3600 = vunpack.c.l.b16 %v3473
    %v3601 = vunpack.c.h.b16 %v3473
    %v3602 = vunpack.c.l.b16 %v3474
    %v3603 = vunpack.c.h.b16 %v3474
    %v3604 = vunpack.c.l.b16 %v3475
    %v3605 = vunpack.c.h.b16 %v3475
    %v3606 = vunpack.c.l.b16 %v3476
    %v3607 = vunpack.c.h.b16 %v3476
    %v3608 = vunpack.c.l.b16 %v3477
    %v3609 = vunpack.c.h.b16 %v3477
    %v3610 = vunpack.c.l.b16 %v3478
    %v3611 = vunpack.c.h.b16 %v3478
    %v3612 = vunpack.c.l.b16 %v3479
    %v3613 = vunpack.c.h.b16 %v3479
    %v3614 = vunpack.c.l.b16 %v3480
    %v3615 = vunpack.c.h.b16 %v3480
    %v3616 = vunpack.c.l.b16 %v3481
    %v3617 = vunpack.c.h.b16 %v3481
    %v3618 = vunpack.c.l.b16 %v3482
    %v3619 = vunpack.c.h.b16 %v3482
    %v3620 = vunpack.c.l.b16 %v3483
    %v3621 = vunpack.c.h.b16 %v3483
    %v3622 = vunpack.c.l.b16 %v3484
    %v3623 = vunpack.c.h.b16 %v3484
    %v3624 = vunpack.c.l.b16 %v3485
    %v3625 = vunpack.c.h.b16 %v3485
    %v3626 = vunpack.c.l.b16 %v3486
    %v3627 = vunpack.c.h.b16 %v3486
    %v3628 = vunpack.c.l.b16 %v3487
    %v3629 = vunpack.c.h.b16 %v3487
    %v3630 = vunpack.c.l.b16 %v3488
    %v3631 = vunpack.c.h.b16 %v3488
    %v3632 = vunpack.c.l.b16 %v3489
    %v3633 = vunpack.c.h.b16 %v3489
    %v3634 = vunpack.c.l.b16 %v3490
    %v3635 = vunpack.c.h.b16 %v3490
    %v3636 = vunpack.c.l.b16 %v3491
    %v3637 = vunpack.c.h.b16 %v3491
    %v3638 = vunpack.c.l.b16 %v3492
    %v3639 = vunpack.c.h.b16 %v3492
    %v3640 = vunpack.c.l.b16 %v3493
    %v3641 = vunpack.c.h.b16 %v3493
    %v3642 = vunpack.c.l.b16 %v3494
    %v3643 = vunpack.c.h.b16 %v3494
    %v3644 = vunpack.c.l.b16 %v3495
    %v3645 = vunpack.c.h.b16 %v3495
    %v3646 = vunpack.c.l.b16 %v3496
    %v3647 = vunpack.c.h.b16 %v3496
    %v3648 = vunpack.c.l.b16 %v3497
    %v3649 = vunpack.c.h.b16 %v3497
    %v3650 = vunpack.c.l.b16 %v3498
    %v3651 = vunpack.c.h.b16 %v3498
    %v3652 = vunpack.c.l.b16 %v3499
    %v3653 = vunpack.c.h.b16 %v3499
    %v3654 = vunpack.c.l.b16 %v3500
    %v3655 = vunpack.c.h.b16 %v3500
    %v3656 = vunpack.c.l.b16 %v3501
    %v3657 = vunpack.c.h.b16 %v3501
    %v3658 = vunpack.c.l.b16 %v3502
    %v3659 = vunpack.c.h.b16 %v3502
    %v3660 = vunpack.c.l.b16 %v3503
    %v3661 = vunpack.c.h.b16 %v3503
    %v3662 = vunpack.c.l.b16 %v3504
    %v3663 = vunpack.c.h.b16 %v3504
    %v3664 = vunpack.c.l.b16 %v3505
    %v3665 = vunpack.c.h.b16 %v3505
    %v3666 = vunpack.c.l.b16 %v3506
    %v3667 = vunpack.c.h.b16 %v3506
    %v3668 = vunpack.c.l.b16 %v3507
    %v3669 = vunpack.c.h.b16 %v3507
    %v3670 = vunpack.c.l.b16 %v3508
    %v3671 = vunpack.c.h.b16 %v3508
    %v3672 = vunpack.c.l.b16 %v3509
    %v3673 = vunpack.c.h.b16 %v3509
    %v3674 = vunpack.c.l.b16 %v3510
    %v3675 = vunpack.c.h.b16 %v3510
    %v3676 = vunpack.c.l.b16 %v3511
    %v3677 = vunpack.c.h.b16 %v3511
    %v3678 = vunpack.c.l.b16 %v3512
    %v3679 = vunpack.c.h.b16 %v3512
    %v3680 = vunpack.c.l.b16 %v3513
    %v3681 = vunpack.c.h.b16 %v3513
    %v3682 = vunpack.c.l.b16 %v3514
    %v3683 = vunpack.c.h.b16 %v3514
    %v3684 = vunpack.c.l.b16 %v3515
    %v3685 = vunpack.c.h.b16 %v3515
    %v3686 = vunpack.c.l.b16 %v3516
    %v3687 = vunpack.c.h.b16 %v3516
    %v3688 = vunpack.c.l.b16 %v3517
    %v3689 = vunpack.c.h.b16 %v3517
    %v3690 = vunpack.c.l.b16 %v3518
    %v3691 = vunpack.c.h.b16 %v3518
    %v3692 = vunpack.c.l.b16 %v3519
    %v3693 = vunpack.c.h.b16 %v3519
    %v3694 = vunpack.c.l.b16 %v3520
    %v3695 = vunpack.c.h.b16 %v3520
    %v3696 = vunpack.c.l.b16 %v3521
    %v3697 = vunpack.c.h.b16 %v3521
    %v3698 = vunpack.c.l.b16 %v3522
    %v3699 = vunpack.c.h.b16 %v3522
    %v3700 = vunpack.c.l.b16 %v3523
    %v3701 = vunpack.c.h.b16 %v3523
    %v3702 = vunpack.c.l.b16 %v3524
    %v3703 = vunpack.c.h.b16 %v3524
    %v3704 = vunpack.c.l.b16 %v3525
    %v3705 = vunpack.c.h.b16 %v3525
    %v3706 = vunpack.c.l.b16 %v3526
    %v3707 = vunpack.c.h.b16 %v3526
    %v3708 = vpack.c.b16 %v3606, %v3600
    %v3709 = vpack.c.b16 %v3607, %v3601
    %v3710 = vpack.c.b16 %v3608, %v3602
    %v3711 = vpack.c.b16 %v3609, %v3603
    %v3712 = vpack.c.b16 %v3610, %v3604
    %v3713 = vpack.c.b16 %v3611, %v3605
    %v3714 = vpack.c.b16 %v3618, %v3612
    %v3715 = vpack.c.b16 %v3619, %v3613
    %v3716 = vpack.c.b16 %v3620, %v3614
    %v3717 = vpack.c.b16 %v3621, %v3615
    %v3718 = vpack.c.b16 %v3622, %v3616
    %v3719 = vpack.c.b16 %v3623, %v3617
    %v3720 = vpack.c.b16 %v3630, %v3624
    %v3721 = vpack.c.b16 %v3631, %v3625
    %v3722 = vpack.c.b16 %v3632, %v3626
    %v3723 = vpack.c.b16 %v3633, %v3627
    %v3724 = vpack.c.b16 %v3634, %v3628
    %v3725 = vpack.c.b16 %v3635, %v3629
    %v3726 = vpack.c.b16 %v3642, %v3636
    %v3727 = vpack.c.b16 %v3643, %v3637
    %v3728 = vpack.c.b16 %v3644, %v3638
    %v3729 = vpack.c.b16 %v3645, %v3639
    %v3730 = vpack.c.b16 %v3646, %v3640
    %v3731 = vpack.c.b16 %v3647, %v3641
    %v3732 = vpack.c.b16 %v3654, %v3648
    %v3733 = vpack.c.b16 %v3655, %v3649
    %v3734 = vpack.c.b16 %v3656, %v3650
    %v3735 = vpack.c.b16 %v3657, %v3651
    %v3736 = vpack.c.b16 %v3658, %v3652
    %v3737 = vpack.c.b16 %v3659, %v3653
    %v3738 = vpack.c.b16 %v3666, %v3660
    %v3739 = vpack.c.b16 %v3667, %v3661
    %v3740 = vpack.c.b16 %v3668, %v3662
    %v3741 = vpack.c.b16 %v3669, %v3663
    %v3742 = vpack.c.b16 %v3670, %v3664
    %v3743 = vpack.c.b16 %v3671, %v3665
    %v3744 = vpack.c.b16 %v3678, %v3672
    %v3745 = vpack.c.b16 %v3679, %v3673
    %v3746 = vpack.c.b16 %v3680, %v3674
    %v3747 = vpack.c.b16 %v3681, %v3675
    %v3748 = vpack.c.b16 %v3682, %v3676
    %v3749 = vpack.c.b16 %v3683, %v3677
    %v3750 = vpack.c.b16 %v3690, %v3684
    %v3751 = vpack.c.b16 %v3691, %v3685
    %v3752 = vpack.c.b16 %v3692, %v3686
    %v3753 = vpack.c.b16 %v3693, %v3687
    %v3754 = vpack.c.b16 %v3694, %v3688
    %v3755 = vpack.c.b16 %v3695, %v3689
    %v3756 = vpack.c.b16 %v3702, %v3696
    %v3757 = vpack.c.b16 %v3703, %v3697
    %v3758 = vpack.c.b16 %v3704, %v3698
    %v3759 = vpack.c.b16 %v3705, %v3699
    %v3760 = vpack.c.b16 %v3706, %v3700
    %v3761 = vpack.c.b16 %v3707, %v3701
    %v3817 = vsel %vm890, %v3544, 0
    %3819 = vmatpush.bf16.msra.mxu0 %v3750
    %3820 = vmatpush.bf16.msra.mxu0 %v3744
    %3821 = vmatpush.bf16.msra.mxu0 %v3738
    %3822 = vmatpush.bf16.msra.mxu0 %v3732
    %3823 = vmatpush.bf16.msra.mxu0 %v3726
    %3824 = vmatpush.bf16.msra.mxu0 %v3720
    %3825 = vmatpush.bf16.msra.mxu0 %v3714
    %3826 = vmatpush.bf16.msra.mxu0 %v3708
    %3827 = vmatmul.bf16.gmra.mxu0 %v3543
    %v3828 = vpop.f32.mrf.mxu0
    %v3829 = vadd.f32 %v3530, %v3828
    %v3830 = vpop.f32.mrf.mxu0
    %v3831 = vadd.f32 %v3535, %v3830
    %3832 = vdwg.mxu0
    %3833 = vmatpush.bf16.msra.mxu0 0
    %3834 = vmatpush.bf16.msra.mxu0 0
    %3835 = vmatpush.bf16.msra.mxu0 0
    %3836 = vmatpush.bf16.msra.mxu0 0
    %3837 = vmatpush.bf16.msra.mxu0 0
    %3838 = vmatpush.bf16.msra.mxu0 0
    %3839 = vmatpush.bf16.msra.mxu0 0
    %3840 = vmatpush.bf16.msra.mxu0 %v3756
    %3841 = vmatmul.bf16.gmra.mxu0 %v3817
    %v3842 = vpop.f32.mrf.mxu0
    %v3843 = vadd.f32 %v3829, %v3842
    %v3844 = vpop.f32.mrf.mxu0
    %v3845 = vadd.f32 %v3831, %v3844
    %3846 = vdwg.mxu0
    %3847 = vmatpush.bf16.msra.mxu0 %v3751
    %3848 = vmatpush.bf16.msra.mxu0 %v3745
    %3849 = vmatpush.bf16.msra.mxu0 %v3739
    %3850 = vmatpush.bf16.msra.mxu0 %v3733
    %3851 = vmatpush.bf16.msra.mxu0 %v3727
    %3852 = vmatpush.bf16.msra.mxu0 %v3721
    %3853 = vmatpush.bf16.msra.mxu0 %v3715
    %3854 = vmatpush.bf16.msra.mxu0 %v3709
    %3855 = vmatmul.bf16.gmra.mxu0 %v3543
    %v3856 = vpop.f32.mrf.mxu0
    %v3857 = vadd.f32 %v3530, %v3856
    %v3858 = vpop.f32.mrf.mxu0
    %v3859 = vadd.f32 %v3535, %v3858
    %3860 = vdwg.mxu0
    %3861 = vmatpush.bf16.msra.mxu0 0
    %3862 = vmatpush.bf16.msra.mxu0 0
    %3863 = vmatpush.bf16.msra.mxu0 0
    %3864 = vmatpush.bf16.msra.mxu0 0
    %3865 = vmatpush.bf16.msra.mxu0 0
    %3866 = vmatpush.bf16.msra.mxu0 0
    %3867 = vmatpush.bf16.msra.mxu0 0
    %3868 = vmatpush.bf16.msra.mxu0 %v3757
    %3869 = vmatmul.bf16.gmra.mxu0 %v3817
    %v3870 = vpop.f32.mrf.mxu0
    %v3871 = vadd.f32 %v3857, %v3870
    %v3872 = vpop.f32.mrf.mxu0
    %v3873 = vadd.f32 %v3859, %v3872
    %3874 = vdwg.mxu0
    %3875 = vmatpush.bf16.msra.mxu0 %v3752
    %3876 = vmatpush.bf16.msra.mxu0 %v3746
    %3877 = vmatpush.bf16.msra.mxu0 %v3740
    %3878 = vmatpush.bf16.msra.mxu0 %v3734
    %3879 = vmatpush.bf16.msra.mxu0 %v3728
    %3880 = vmatpush.bf16.msra.mxu0 %v3722
    %3881 = vmatpush.bf16.msra.mxu0 %v3716
    %3882 = vmatpush.bf16.msra.mxu0 %v3710
    %3883 = vmatmul.bf16.gmra.mxu0 %v3543
    %v3884 = vpop.f32.mrf.mxu0
    %v3885 = vadd.f32 %v3530, %v3884
    %v3886 = vpop.f32.mrf.mxu0
    %v3887 = vadd.f32 %v3535, %v3886
    %3888 = vdwg.mxu0
    %3889 = vmatpush.bf16.msra.mxu0 0
    %3890 = vmatpush.bf16.msra.mxu0 0
    %3891 = vmatpush.bf16.msra.mxu0 0
    %3892 = vmatpush.bf16.msra.mxu0 0
    %3893 = vmatpush.bf16.msra.mxu0 0
    %3894 = vmatpush.bf16.msra.mxu0 0
    %3895 = vmatpush.bf16.msra.mxu0 0
    %3896 = vmatpush.bf16.msra.mxu0 %v3758
    %3897 = vmatmul.bf16.gmra.mxu0 %v3817
    %v3898 = vpop.f32.mrf.mxu0
    %v3899 = vadd.f32 %v3885, %v3898
    %v3900 = vpop.f32.mrf.mxu0
    %v3901 = vadd.f32 %v3887, %v3900
    %3902 = vdwg.mxu0
    %3903 = vmatpush.bf16.msra.mxu0 %v3753
    %3904 = vmatpush.bf16.msra.mxu0 %v3747
    %3905 = vmatpush.bf16.msra.mxu0 %v3741
    %3906 = vmatpush.bf16.msra.mxu0 %v3735
    %3907 = vmatpush.bf16.msra.mxu0 %v3729
    %3908 = vmatpush.bf16.msra.mxu0 %v3723
    %3909 = vmatpush.bf16.msra.mxu0 %v3717
    %3910 = vmatpush.bf16.msra.mxu0 %v3711
    %3911 = vmatmul.bf16.gmra.mxu0 %v3543
    %v3912 = vpop.f32.mrf.mxu0
    %v3913 = vadd.f32 %v3530, %v3912
    %v3914 = vpop.f32.mrf.mxu0
    %v3915 = vadd.f32 %v3535, %v3914
    %3916 = vdwg.mxu0
    %3917 = vmatpush.bf16.msra.mxu0 0
    %3918 = vmatpush.bf16.msra.mxu0 0
    %3919 = vmatpush.bf16.msra.mxu0 0
    %3920 = vmatpush.bf16.msra.mxu0 0
    %3921 = vmatpush.bf16.msra.mxu0 0
    %3922 = vmatpush.bf16.msra.mxu0 0
    %3923 = vmatpush.bf16.msra.mxu0 0
    %3924 = vmatpush.bf16.msra.mxu0 %v3759
    %3925 = vmatmul.bf16.gmra.mxu0 %v3817
    %v3926 = vpop.f32.mrf.mxu0
    %v3927 = vadd.f32 %v3913, %v3926
    %v3928 = vpop.f32.mrf.mxu0
    %v3929 = vadd.f32 %v3915, %v3928
    %3930 = vdwg.mxu0
    %3931 = vmatpush.bf16.msra.mxu0 %v3754
    %3932 = vmatpush.bf16.msra.mxu0 %v3748
    %3933 = vmatpush.bf16.msra.mxu0 %v3742
    %3934 = vmatpush.bf16.msra.mxu0 %v3736
    %3935 = vmatpush.bf16.msra.mxu0 %v3730
    %3936 = vmatpush.bf16.msra.mxu0 %v3724
    %3937 = vmatpush.bf16.msra.mxu0 %v3718
    %3938 = vmatpush.bf16.msra.mxu0 %v3712
    %3939 = vmatmul.bf16.gmra.mxu0 %v3543
    %v3940 = vpop.f32.mrf.mxu0
    %v3941 = vadd.f32 %v3530, %v3940
    %v3942 = vpop.f32.mrf.mxu0
    %v3943 = vadd.f32 %v3535, %v3942
    %3944 = vdwg.mxu0
    %3945 = vmatpush.bf16.msra.mxu0 0
    %3946 = vmatpush.bf16.msra.mxu0 0
    %3947 = vmatpush.bf16.msra.mxu0 0
    %3948 = vmatpush.bf16.msra.mxu0 0
    %3949 = vmatpush.bf16.msra.mxu0 0
    %3950 = vmatpush.bf16.msra.mxu0 0
    %3951 = vmatpush.bf16.msra.mxu0 0
    %3952 = vmatpush.bf16.msra.mxu0 %v3760
    %3953 = vmatmul.bf16.gmra.mxu0 %v3817
    %v3954 = vpop.f32.mrf.mxu0
    %v3955 = vadd.f32 %v3941, %v3954
    %v3956 = vpop.f32.mrf.mxu0
    %v3957 = vadd.f32 %v3943, %v3956
    %3958 = vdwg.mxu0
    %3959 = vmatpush.bf16.msra.mxu0 %v3755
    %3960 = vmatpush.bf16.msra.mxu0 %v3749
    %3961 = vmatpush.bf16.msra.mxu0 %v3743
    %3962 = vmatpush.bf16.msra.mxu0 %v3737
    %3963 = vmatpush.bf16.msra.mxu0 %v3731
    %3964 = vmatpush.bf16.msra.mxu0 %v3725
    %3965 = vmatpush.bf16.msra.mxu0 %v3719
    %3966 = vmatpush.bf16.msra.mxu0 %v3713
    %3967 = vmatmul.bf16.gmra.mxu0 %v3543
    %v3968 = vpop.f32.mrf.mxu0
    %v3969 = vadd.f32 %v3530, %v3968
    %v3970 = vpop.f32.mrf.mxu0
    %v3971 = vadd.f32 %v3535, %v3970
    %3972 = vdwg.mxu0
    %3973 = vmatpush.bf16.msra.mxu0 0
    %3974 = vmatpush.bf16.msra.mxu0 0
    %3975 = vmatpush.bf16.msra.mxu0 0
    %3976 = vmatpush.bf16.msra.mxu0 0
    %3977 = vmatpush.bf16.msra.mxu0 0
    %3978 = vmatpush.bf16.msra.mxu0 0
    %3979 = vmatpush.bf16.msra.mxu0 0
    %3980 = vmatpush.bf16.msra.mxu0 %v3761
    %3981 = vmatmul.bf16.gmra.mxu0 %v3817
    %v3982 = vpop.f32.mrf.mxu0
    %v3983 = vadd.f32 %v3969, %v3982
    %v3984 = vpop.f32.mrf.mxu0
    %v3985 = vadd.f32 %v3971, %v3984
    %3986 = vdwg.mxu0
    %vm3987 = vcmp.ge.f32.partialorder %v3843, 0.0
    %vm3988 = vcmp.ge.f32.partialorder %v3871, 0.0
    %vm3989 = vcmp.ge.f32.partialorder %v3899, 0.0
    %vm3990 = vcmp.ge.f32.partialorder %v3927, 0.0
    %vm3991 = vcmp.ge.f32.partialorder %v3955, 0.0
    %vm3992 = vcmp.ge.f32.partialorder %v3983, 0.0
    %vm3993 = vcmp.ge.f32.partialorder %v3845, 0.0
    %vm3994 = vcmp.ge.f32.partialorder %v3873, 0.0
    %vm3995 = vcmp.ge.f32.partialorder %v3901, 0.0
    %vm3996 = vcmp.ge.f32.partialorder %v3929, 0.0
    %vm3997 = vcmp.ge.f32.partialorder %v3957, 0.0
    %vm3998 = vcmp.ge.f32.partialorder %v3985, 0.0
    %v3999 = vmul.f32 %v3843, 0.2
    %v4000 = vmul.f32 %v3871, 0.2
    %v4001 = vmul.f32 %v3899, 0.2
    %v4002 = vmul.f32 %v3927, 0.2
    %v4003 = vmul.f32 %v3955, 0.2
    %v4004 = vmul.f32 %v3983, 0.2
    %v4005 = vmul.f32 %v3845, 0.2
    %v4006 = vmul.f32 %v3873, 0.2
    %v4007 = vmul.f32 %v3901, 0.2
    %v4008 = vmul.f32 %v3929, 0.2
    %v4009 = vmul.f32 %v3957, 0.2
    %v4010 = vmul.f32 %v3985, 0.2
    %v4011 = vsel %vm3987, %v3843, %v3999
    %v4012 = vsel %vm3988, %v3871, %v4000
    %v4013 = vsel %vm3989, %v3899, %v4001
    %v4014 = vsel %vm3990, %v3927, %v4002
    %v4015 = vsel %vm3991, %v3955, %v4003
    %v4016 = vsel %vm3992, %v3983, %v4004
    %v4017 = vsel %vm3993, %v3845, %v4005
    %v4018 = vsel %vm3994, %v3873, %v4006
    %v4019 = vsel %vm3995, %v3901, %v4007
    %v4020 = vsel %vm3996, %v3929, %v4008
    %v4021 = vsel %vm3997, %v3957, %v4009
    %v4022 = vsel %vm3998, %v3985, %v4010
    %v4023 = vmul.f32 %v4011, %v1099
    %v4024 = vmul.f32 %v4012, %v1100
    %v4025 = vmul.f32 %v4013, %v1101
    %v4026 = vmul.f32 %v4014, %v1102
    %v4027 = vmul.f32 %v4015, %v1103
    %v4028 = vmul.f32 %v4016, %v1104
    %v4029 = vmul.f32 %v4017, %v1099
    %v4030 = vmul.f32 %v4018, %v1100
    %v4031 = vmul.f32 %v4019, %v1101
    %v4032 = vmul.f32 %v4020, %v1102
    %v4033 = vmul.f32 %v4021, %v1103
    %v4034 = vmul.f32 %v4022, %v1104
    %v4035 = vld [vmem:[%s17] sm:$0xff]
    %v4036 = vld [vmem:[%s17 + $0x8] sm:$0xff]
    %v4037 = vld [vmem:[%s13] sm:$0xff]
    %v4038 = vld [vmem:[%s13 + $0x8] sm:$0xff]
    %4039 = vrot.lane.b32.xlu0 %v4023, 19
    %v4040 = vpop.permute.xlu0 %4039
    %4041 = vrot.lane.b32.xlu0 %v4029, 19
    %v4042 = vpop.permute.xlu0 %4041
    %4043 = vrot.lane.b32.xlu0 %v4024, 19
    %v4044 = vpop.permute.xlu0 %4043
    %4045 = vrot.lane.b32.xlu0 %v4030, 19
    %v4046 = vpop.permute.xlu0 %4045
    %4047 = vrot.lane.b32.xlu0 %v4025, 19
    %v4048 = vpop.permute.xlu0 %4047
    %4049 = vrot.lane.b32.xlu0 %v4031, 19
    %v4050 = vpop.permute.xlu0 %4049
    %4051 = vrot.lane.b32.xlu0 %v4026, 19
    %v4052 = vpop.permute.xlu0 %4051
    %4053 = vrot.lane.b32.xlu0 %v4032, 19
    %v4054 = vpop.permute.xlu0 %4053
    %4055 = vrot.lane.b32.xlu0 %v4027, 19
    %v4056 = vpop.permute.xlu0 %4055
    %4057 = vrot.lane.b32.xlu0 %v4033, 19
    %v4058 = vpop.permute.xlu0 %4057
    %4059 = vrot.lane.b32.xlu0 %v4028, 19
    %v4060 = vpop.permute.xlu0 %4059
    %4061 = vrot.lane.b32.xlu0 %v4034, 19
    %v4062 = vpop.permute.xlu0 %4061
    %v4063 = vsel %vm167, %v4056, %v4060
    %v4064 = vsel %vm167, %v4058, %v4062
    %v4065 = vsel %vm167, %v4052, %v4056
    %v4066 = vsel %vm167, %v4054, %v4058
    %v4067 = vsel %vm167, %v4048, %v4052
    %v4068 = vsel %vm167, %v4050, %v4054
    %v4069 = vsel %vm167, %v4044, %v4048
    %v4070 = vsel %vm167, %v4046, %v4050
    %v4071 = vsel %vm167, %v4040, %v4044
    %v4072 = vsel %vm167, %v4042, %v4046
    %v4073 = vsel %vm167, %v4060, %v4040
    %v4074 = vsel %vm167, %v4062, %v4042
    %v4075 = vpack.c.bf16 %v4071, %v4073
    %v4076 = vpack.c.bf16 %v4067, %v4069
    %v4077 = vpack.c.bf16 %v4063, %v4065
    %v4078 = vpack.c.bf16 %v4072, %v4074
    %v4079 = vpack.c.bf16 %v4068, %v4070
    %v4080 = vpack.c.bf16 %v4064, %v4066
    %4081 = vst [vmem:[#allocation2] sm:$0xff] %v4075
    %4082 = vst [vmem:[#allocation2 + $0x8] sm:$0xff] %v4076
    %4083 = vst [vmem:[#allocation2 + $0x10] sm:$0xff] %v4077
    %4084 = vst [vmem:[#allocation2 + $0x18] sm:$0xff] %v4078
    %4085 = vst [vmem:[#allocation2 + $0x20] sm:$0xff] %v4079
    %4086 = vst [vmem:[#allocation2 + $0x28] sm:$0xff] %v4080
    %4087 = vrot.lane.b32.xlu0 %v4023, 18
    %v4088 = vpop.permute.xlu0 %4087
    %4089 = vrot.lane.b32.xlu0 %v4029, 18
    %v4090 = vpop.permute.xlu0 %4089
    %4091 = vrot.lane.b32.xlu0 %v4024, 18
    %v4092 = vpop.permute.xlu0 %4091
    %4093 = vrot.lane.b32.xlu0 %v4030, 18
    %v4094 = vpop.permute.xlu0 %4093
    %4095 = vrot.lane.b32.xlu0 %v4025, 18
    %v4096 = vpop.permute.xlu0 %4095
    %4097 = vrot.lane.b32.xlu0 %v4031, 18
    %v4098 = vpop.permute.xlu0 %4097
    %4099 = vrot.lane.b32.xlu0 %v4026, 18
    %v4100 = vpop.permute.xlu0 %4099
    %4101 = vrot.lane.b32.xlu0 %v4032, 18
    %v4102 = vpop.permute.xlu0 %4101
    %4103 = vrot.lane.b32.xlu0 %v4027, 18
    %v4104 = vpop.permute.xlu0 %4103
    %4105 = vrot.lane.b32.xlu0 %v4033, 18
    %v4106 = vpop.permute.xlu0 %4105
    %4107 = vrot.lane.b32.xlu0 %v4028, 18
    %v4108 = vpop.permute.xlu0 %4107
    %4109 = vrot.lane.b32.xlu0 %v4034, 18
    %v4110 = vpop.permute.xlu0 %4109
    %v4111 = vsel %vm216, %v4104, %v4108
    %v4112 = vsel %vm216, %v4106, %v4110
    %v4113 = vsel %vm216, %v4100, %v4104
    %v4114 = vsel %vm216, %v4102, %v4106
    %v4115 = vsel %vm216, %v4096, %v4100
    %v4116 = vsel %vm216, %v4098, %v4102
    %v4117 = vsel %vm216, %v4092, %v4096
    %v4118 = vsel %vm216, %v4094, %v4098
    %v4119 = vsel %vm216, %v4088, %v4092
    %v4120 = vsel %vm216, %v4090, %v4094
    %v4121 = vsel %vm216, %v4108, %v4088
    %v4122 = vsel %vm216, %v4110, %v4090
    %v4123 = vpack.c.bf16 %v4119, %v4121
    %v4124 = vpack.c.bf16 %v4115, %v4117
    %v4125 = vpack.c.bf16 %v4111, %v4113
    %v4126 = vpack.c.bf16 %v4120, %v4122
    %v4127 = vpack.c.bf16 %v4116, %v4118
    %v4128 = vpack.c.bf16 %v4112, %v4114
    %4129 = vst [vmem:[#allocation2 + $0x30] sm:$0xff] %v4123
    %4130 = vst [vmem:[#allocation2 + $0x38] sm:$0xff] %v4124
    %4131 = vst [vmem:[#allocation2 + $0x40] sm:$0xff] %v4125
    %4132 = vst [vmem:[#allocation2 + $0x48] sm:$0xff] %v4126
    %4133 = vst [vmem:[#allocation2 + $0x50] sm:$0xff] %v4127
    %4134 = vst [vmem:[#allocation2 + $0x58] sm:$0xff] %v4128
    %4135 = vrot.lane.b32.xlu0 %v4023, 17
    %v4136 = vpop.permute.xlu0 %4135
    %4137 = vrot.lane.b32.xlu0 %v4029, 17
    %v4138 = vpop.permute.xlu0 %4137
    %4139 = vrot.lane.b32.xlu0 %v4024, 17
    %v4140 = vpop.permute.xlu0 %4139
    %4141 = vrot.lane.b32.xlu0 %v4030, 17
    %v4142 = vpop.permute.xlu0 %4141
    %4143 = vrot.lane.b32.xlu0 %v4025, 17
    %v4144 = vpop.permute.xlu0 %4143
    %4145 = vrot.lane.b32.xlu0 %v4031, 17
    %v4146 = vpop.permute.xlu0 %4145
    %4147 = vrot.lane.b32.xlu0 %v4026, 17
    %v4148 = vpop.permute.xlu0 %4147
    %4149 = vrot.lane.b32.xlu0 %v4032, 17
    %v4150 = vpop.permute.xlu0 %4149
    %4151 = vrot.lane.b32.xlu0 %v4027, 17
    %v4152 = vpop.permute.xlu0 %4151
    %4153 = vrot.lane.b32.xlu0 %v4033, 17
    %v4154 = vpop.permute.xlu0 %4153
    %4155 = vrot.lane.b32.xlu0 %v4028, 17
    %v4156 = vpop.permute.xlu0 %4155
    %4157 = vrot.lane.b32.xlu0 %v4034, 17
    %v4158 = vpop.permute.xlu0 %4157
    %v4159 = vsel %vm265, %v4152, %v4156
    %v4160 = vsel %vm265, %v4154, %v4158
    %v4161 = vsel %vm265, %v4148, %v4152
    %v4162 = vsel %vm265, %v4150, %v4154
    %v4163 = vsel %vm265, %v4144, %v4148
    %v4164 = vsel %vm265, %v4146, %v4150
    %v4165 = vsel %vm265, %v4140, %v4144
    %v4166 = vsel %vm265, %v4142, %v4146
    %v4167 = vsel %vm265, %v4136, %v4140
    %v4168 = vsel %vm265, %v4138, %v4142
    %v4169 = vsel %vm265, %v4156, %v4136
    %v4170 = vsel %vm265, %v4158, %v4138
    %v4171 = vpack.c.bf16 %v4167, %v4169
    %v4172 = vpack.c.bf16 %v4163, %v4165
    %v4173 = vpack.c.bf16 %v4159, %v4161
    %v4174 = vpack.c.bf16 %v4168, %v4170
    %v4175 = vpack.c.bf16 %v4164, %v4166
    %v4176 = vpack.c.bf16 %v4160, %v4162
    %4177 = vst [vmem:[#allocation2 + $0x60] sm:$0xff] %v4171
    %4178 = vst [vmem:[#allocation2 + $0x68] sm:$0xff] %v4172
    %4179 = vst [vmem:[#allocation2 + $0x70] sm:$0xff] %v4173
    %4180 = vst [vmem:[#allocation2 + $0x78] sm:$0xff] %v4174
    %4181 = vst [vmem:[#allocation2 + $0x80] sm:$0xff] %v4175
    %4182 = vst [vmem:[#allocation2 + $0x88] sm:$0xff] %v4176
    %4183 = vrot.lane.b32.xlu0 %v4023, 1
    %v4184 = vpop.permute.xlu0 %4183
    %4185 = vrot.lane.b32.xlu0 %v4029, 1
    %v4186 = vpop.permute.xlu0 %4185
    %4187 = vrot.lane.b32.xlu0 %v4024, 1
    %v4188 = vpop.permute.xlu0 %4187
    %4189 = vrot.lane.b32.xlu0 %v4030, 1
    %v4190 = vpop.permute.xlu0 %4189
    %4191 = vrot.lane.b32.xlu0 %v4025, 1
    %v4192 = vpop.permute.xlu0 %4191
    %4193 = vrot.lane.b32.xlu0 %v4031, 1
    %v4194 = vpop.permute.xlu0 %4193
    %4195 = vrot.lane.b32.xlu0 %v4026, 1
    %v4196 = vpop.permute.xlu0 %4195
    %4197 = vrot.lane.b32.xlu0 %v4032, 1
    %v4198 = vpop.permute.xlu0 %4197
    %4199 = vrot.lane.b32.xlu0 %v4027, 1
    %v4200 = vpop.permute.xlu0 %4199
    %4201 = vrot.lane.b32.xlu0 %v4033, 1
    %v4202 = vpop.permute.xlu0 %4201
    %4203 = vrot.lane.b32.xlu0 %v4028, 1
    %v4204 = vpop.permute.xlu0 %4203
    %4205 = vrot.lane.b32.xlu0 %v4034, 1
    %v4206 = vpop.permute.xlu0 %4205
    %v4207 = vsel %vm314, %v4200, %v4204
    %v4208 = vsel %vm314, %v4202, %v4206
    %v4209 = vsel %vm314, %v4196, %v4200
    %v4210 = vsel %vm314, %v4198, %v4202
    %v4211 = vsel %vm314, %v4192, %v4196
    %v4212 = vsel %vm314, %v4194, %v4198
    %v4213 = vsel %vm314, %v4188, %v4192
    %v4214 = vsel %vm314, %v4190, %v4194
    %v4215 = vsel %vm314, %v4184, %v4188
    %v4216 = vsel %vm314, %v4186, %v4190
    %v4217 = vsel %vm314, %v4204, %v4184
    %v4218 = vsel %vm314, %v4206, %v4186
    %v4219 = vpack.c.bf16 %v4215, %v4217
    %v4220 = vpack.c.bf16 %v4211, %v4213
    %v4221 = vpack.c.bf16 %v4207, %v4209
    %v4222 = vpack.c.bf16 %v4216, %v4218
    %v4223 = vpack.c.bf16 %v4212, %v4214
    %v4224 = vpack.c.bf16 %v4208, %v4210
    %4225 = vst [vmem:[#allocation2 + $0x90] sm:$0xff] %v4219
    %4226 = vst [vmem:[#allocation2 + $0x98] sm:$0xff] %v4220
    %4227 = vst [vmem:[#allocation2 + $0xa0] sm:$0xff] %v4221
    %4228 = vst [vmem:[#allocation2 + $0xa8] sm:$0xff] %v4222
    %4229 = vst [vmem:[#allocation2 + $0xb0] sm:$0xff] %v4223
    %4230 = vst [vmem:[#allocation2 + $0xb8] sm:$0xff] %v4224
    %v4231 = vpack.c.bf16 %v4024, %v4023
    %v4232 = vpack.c.bf16 %v4026, %v4025
    %v4233 = vpack.c.bf16 %v4028, %v4027
    %v4234 = vpack.c.bf16 %v4030, %v4029
    %v4235 = vpack.c.bf16 %v4032, %v4031
    %v4236 = vpack.c.bf16 %v4034, %v4033
    %4237 = vst [vmem:[#allocation2 + $0xc0] sm:$0xff] %v4231
    %4238 = vst [vmem:[#allocation2 + $0xc8] sm:$0xff] %v4232
    %4239 = vst [vmem:[#allocation2 + $0xd0] sm:$0xff] %v4233
    %4240 = vst [vmem:[#allocation2 + $0xd8] sm:$0xff] %v4234
    %4241 = vst [vmem:[#allocation2 + $0xe0] sm:$0xff] %v4235
    %4242 = vst [vmem:[#allocation2 + $0xe8] sm:$0xff] %v4236
    %4243 = vrot.lane.b32.xlu0 %v4023, 127
    %v4244 = vpop.permute.xlu0 %4243
    %4245 = vrot.lane.b32.xlu0 %v4029, 127
    %v4246 = vpop.permute.xlu0 %4245
    %4247 = vrot.lane.b32.xlu0 %v4024, 127
    %v4248 = vpop.permute.xlu0 %4247
    %4249 = vrot.lane.b32.xlu0 %v4030, 127
    %v4250 = vpop.permute.xlu0 %4249
    %4251 = vrot.lane.b32.xlu0 %v4025, 127
    %v4252 = vpop.permute.xlu0 %4251
    %4253 = vrot.lane.b32.xlu0 %v4031, 127
    %v4254 = vpop.permute.xlu0 %4253
    %4255 = vrot.lane.b32.xlu0 %v4026, 127
    %v4256 = vpop.permute.xlu0 %4255
    %4257 = vrot.lane.b32.xlu0 %v4032, 127
    %v4258 = vpop.permute.xlu0 %4257
    %4259 = vrot.lane.b32.xlu0 %v4027, 127
    %v4260 = vpop.permute.xlu0 %4259
    %4261 = vrot.lane.b32.xlu0 %v4033, 127
    %v4262 = vpop.permute.xlu0 %4261
    %4263 = vrot.lane.b32.xlu0 %v4028, 127
    %v4264 = vpop.permute.xlu0 %4263
    %4265 = vrot.lane.b32.xlu0 %v4034, 127
    %v4266 = vpop.permute.xlu0 %4265
    %v4267 = vsel %vm375, %v4260, %v4264
    %v4268 = vsel %vm375, %v4262, %v4266
    %v4269 = vsel %vm375, %v4256, %v4260
    %v4270 = vsel %vm375, %v4258, %v4262
    %v4271 = vsel %vm375, %v4252, %v4256
    %v4272 = vsel %vm375, %v4254, %v4258
    %v4273 = vsel %vm375, %v4248, %v4252
    %v4274 = vsel %vm375, %v4250, %v4254
    %v4275 = vsel %vm375, %v4244, %v4248
    %v4276 = vsel %vm375, %v4246, %v4250
    %v4277 = vsel %vm375, %v4264, %v4244
    %v4278 = vsel %vm375, %v4266, %v4246
    %v4279 = vpack.c.bf16 %v4273, %v4275
    %v4280 = vpack.c.bf16 %v4269, %v4271
    %v4281 = vpack.c.bf16 %v4277, %v4267
    %v4282 = vpack.c.bf16 %v4274, %v4276
    %v4283 = vpack.c.bf16 %v4270, %v4272
    %v4284 = vpack.c.bf16 %v4278, %v4268
    %4285 = vst [vmem:[#allocation2 + $0xf0] sm:$0xff] %v4279
    %4286 = vst [vmem:[#allocation2 + $0xf8] sm:$0xff] %v4280
    %4287 = vst [vmem:[#allocation2 + $0x100] sm:$0xff] %v4281
    %4288 = vst [vmem:[#allocation2 + $0x108] sm:$0xff] %v4282
    %4289 = vst [vmem:[#allocation2 + $0x110] sm:$0xff] %v4283
    %4290 = vst [vmem:[#allocation2 + $0x118] sm:$0xff] %v4284
    %4291 = vrot.lane.b32.xlu0 %v4023, 111
    %v4292 = vpop.permute.xlu0 %4291
    %4293 = vrot.lane.b32.xlu0 %v4029, 111
    %v4294 = vpop.permute.xlu0 %4293
    %4295 = vrot.lane.b32.xlu0 %v4024, 111
    %v4296 = vpop.permute.xlu0 %4295
    %4297 = vrot.lane.b32.xlu0 %v4030, 111
    %v4298 = vpop.permute.xlu0 %4297
    %4299 = vrot.lane.b32.xlu0 %v4025, 111
    %v4300 = vpop.permute.xlu0 %4299
    %4301 = vrot.lane.b32.xlu0 %v4031, 111
    %v4302 = vpop.permute.xlu0 %4301
    %4303 = vrot.lane.b32.xlu0 %v4026, 111
    %v4304 = vpop.permute.xlu0 %4303
    %4305 = vrot.lane.b32.xlu0 %v4032, 111
    %v4306 = vpop.permute.xlu0 %4305
    %4307 = vrot.lane.b32.xlu0 %v4027, 111
    %v4308 = vpop.permute.xlu0 %4307
    %4309 = vrot.lane.b32.xlu0 %v4033, 111
    %v4310 = vpop.permute.xlu0 %4309
    %4311 = vrot.lane.b32.xlu0 %v4028, 111
    %v4312 = vpop.permute.xlu0 %4311
    %4313 = vrot.lane.b32.xlu0 %v4034, 111
    %v4314 = vpop.permute.xlu0 %4313
    %v4315 = vsel %vm424, %v4308, %v4312
    %v4316 = vsel %vm424, %v4310, %v4314
    %v4317 = vsel %vm424, %v4304, %v4308
    %v4318 = vsel %vm424, %v4306, %v4310
    %v4319 = vsel %vm424, %v4300, %v4304
    %v4320 = vsel %vm424, %v4302, %v4306
    %v4321 = vsel %vm424, %v4296, %v4300
    %v4322 = vsel %vm424, %v4298, %v4302
    %v4323 = vsel %vm424, %v4292, %v4296
    %v4324 = vsel %vm424, %v4294, %v4298
    %v4325 = vsel %vm424, %v4312, %v4292
    %v4326 = vsel %vm424, %v4314, %v4294
    %v4327 = vpack.c.bf16 %v4321, %v4323
    %v4328 = vpack.c.bf16 %v4317, %v4319
    %v4329 = vpack.c.bf16 %v4325, %v4315
    %v4330 = vpack.c.bf16 %v4322, %v4324
    %v4331 = vpack.c.bf16 %v4318, %v4320
    %v4332 = vpack.c.bf16 %v4326, %v4316
    %4333 = vst [vmem:[#allocation2 + $0x120] sm:$0xff] %v4327
    %4334 = vst [vmem:[#allocation2 + $0x128] sm:$0xff] %v4328
    %4335 = vst [vmem:[#allocation2 + $0x130] sm:$0xff] %v4329
    %4336 = vst [vmem:[#allocation2 + $0x138] sm:$0xff] %v4330
    %4337 = vst [vmem:[#allocation2 + $0x140] sm:$0xff] %v4331
    %4338 = vst [vmem:[#allocation2 + $0x148] sm:$0xff] %v4332
    %4339 = vrot.lane.b32.xlu0 %v4023, 110
    %v4340 = vpop.permute.xlu0 %4339
    %4341 = vrot.lane.b32.xlu0 %v4029, 110
    %v4342 = vpop.permute.xlu0 %4341
    %4343 = vrot.lane.b32.xlu0 %v4024, 110
    %v4344 = vpop.permute.xlu0 %4343
    %4345 = vrot.lane.b32.xlu0 %v4030, 110
    %v4346 = vpop.permute.xlu0 %4345
    %4347 = vrot.lane.b32.xlu0 %v4025, 110
    %v4348 = vpop.permute.xlu0 %4347
    %4349 = vrot.lane.b32.xlu0 %v4031, 110
    %v4350 = vpop.permute.xlu0 %4349
    %4351 = vrot.lane.b32.xlu0 %v4026, 110
    %v4352 = vpop.permute.xlu0 %4351
    %4353 = vrot.lane.b32.xlu0 %v4032, 110
    %v4354 = vpop.permute.xlu0 %4353
    %4355 = vrot.lane.b32.xlu0 %v4027, 110
    %v4356 = vpop.permute.xlu0 %4355
    %4357 = vrot.lane.b32.xlu0 %v4033, 110
    %v4358 = vpop.permute.xlu0 %4357
    %4359 = vrot.lane.b32.xlu0 %v4028, 110
    %v4360 = vpop.permute.xlu0 %4359
    %4361 = vrot.lane.b32.xlu0 %v4034, 110
    %v4362 = vpop.permute.xlu0 %4361
    %v4363 = vsel %vm473, %v4356, %v4360
    %v4364 = vsel %vm473, %v4358, %v4362
    %v4365 = vsel %vm473, %v4352, %v4356
    %v4366 = vsel %vm473, %v4354, %v4358
    %v4367 = vsel %vm473, %v4348, %v4352
    %v4368 = vsel %vm473, %v4350, %v4354
    %v4369 = vsel %vm473, %v4344, %v4348
    %v4370 = vsel %vm473, %v4346, %v4350
    %v4371 = vsel %vm473, %v4340, %v4344
    %v4372 = vsel %vm473, %v4342, %v4346
    %v4373 = vsel %vm473, %v4360, %v4340
    %v4374 = vsel %vm473, %v4362, %v4342
    %v4375 = vpack.c.bf16 %v4369, %v4371
    %v4376 = vpack.c.bf16 %v4365, %v4367
    %v4377 = vpack.c.bf16 %v4373, %v4363
    %v4378 = vpack.c.bf16 %v4370, %v4372
    %v4379 = vpack.c.bf16 %v4366, %v4368
    %v4380 = vpack.c.bf16 %v4374, %v4364
    %4381 = vst [vmem:[#allocation2 + $0x150] sm:$0xff] %v4375
    %4382 = vst [vmem:[#allocation2 + $0x158] sm:$0xff] %v4376
    %4383 = vst [vmem:[#allocation2 + $0x160] sm:$0xff] %v4377
    %4384 = vst [vmem:[#allocation2 + $0x168] sm:$0xff] %v4378
    %4385 = vst [vmem:[#allocation2 + $0x170] sm:$0xff] %v4379
    %4386 = vst [vmem:[#allocation2 + $0x178] sm:$0xff] %v4380
    %4387 = vrot.lane.b32.xlu0 %v4023, 109
    %v4388 = vpop.permute.xlu0 %4387
    %4389 = vrot.lane.b32.xlu0 %v4029, 109
    %v4390 = vpop.permute.xlu0 %4389
    %4391 = vrot.lane.b32.xlu0 %v4024, 109
    %v4392 = vpop.permute.xlu0 %4391
    %4393 = vrot.lane.b32.xlu0 %v4030, 109
    %v4394 = vpop.permute.xlu0 %4393
    %4395 = vrot.lane.b32.xlu0 %v4025, 109
    %v4396 = vpop.permute.xlu0 %4395
    %4397 = vrot.lane.b32.xlu0 %v4031, 109
    %v4398 = vpop.permute.xlu0 %4397
    %4399 = vrot.lane.b32.xlu0 %v4026, 109
    %v4400 = vpop.permute.xlu0 %4399
    %4401 = vrot.lane.b32.xlu0 %v4032, 109
    %v4402 = vpop.permute.xlu0 %4401
    %4403 = vrot.lane.b32.xlu0 %v4027, 109
    %v4404 = vpop.permute.xlu0 %4403
    %4405 = vrot.lane.b32.xlu0 %v4033, 109
    %v4406 = vpop.permute.xlu0 %4405
    %4407 = vrot.lane.b32.xlu0 %v4028, 109
    %v4408 = vpop.permute.xlu0 %4407
    %4409 = vrot.lane.b32.xlu0 %v4034, 109
    %v4410 = vpop.permute.xlu0 %4409
    %v4411 = vsel %vm522, %v4404, %v4408
    %v4412 = vsel %vm522, %v4406, %v4410
    %v4413 = vsel %vm522, %v4400, %v4404
    %v4414 = vsel %vm522, %v4402, %v4406
    %v4415 = vsel %vm522, %v4396, %v4400
    %v4416 = vsel %vm522, %v4398, %v4402
    %v4417 = vsel %vm522, %v4392, %v4396
    %v4418 = vsel %vm522, %v4394, %v4398
    %v4419 = vsel %vm522, %v4388, %v4392
    %v4420 = vsel %vm522, %v4390, %v4394
    %v4421 = vsel %vm522, %v4408, %v4388
    %v4422 = vsel %vm522, %v4410, %v4390
    %v4423 = vpack.c.bf16 %v4417, %v4419
    %v4424 = vpack.c.bf16 %v4413, %v4415
    %v4425 = vpack.c.bf16 %v4421, %v4411
    %v4426 = vpack.c.bf16 %v4418, %v4420
    %v4427 = vpack.c.bf16 %v4414, %v4416
    %v4428 = vpack.c.bf16 %v4422, %v4412
    %4429 = vst [vmem:[#allocation2 + $0x180] sm:$0xff] %v4423
    %4430 = vst [vmem:[#allocation2 + $0x188] sm:$0xff] %v4424
    %4431 = vst [vmem:[#allocation2 + $0x190] sm:$0xff] %v4425
    %4432 = vst [vmem:[#allocation2 + $0x198] sm:$0xff] %v4426
    %4433 = vst [vmem:[#allocation2 + $0x1a0] sm:$0xff] %v4427
    %4434 = vst [vmem:[#allocation2 + $0x1a8] sm:$0xff] %v4428
    %v4435 = vld [vmem:[#allocation2] sm:$0xff]
    %v4436 = vld [vmem:[#allocation2 + $0x8] sm:$0xff]
    %v4437 = vld [vmem:[#allocation2 + $0x10] sm:$0xff]
    %v4438 = vld [vmem:[#allocation2 + $0x18] sm:$0xff]
    %v4439 = vld [vmem:[#allocation2 + $0x20] sm:$0xff]
    %v4440 = vld [vmem:[#allocation2 + $0x28] sm:$0xff]
    %v4441 = vld [vmem:[#allocation2 + $0x30] sm:$0xff]
    %v4442 = vld [vmem:[#allocation2 + $0x38] sm:$0xff]
    %v4443 = vld [vmem:[#allocation2 + $0x40] sm:$0xff]
    %v4444 = vld [vmem:[#allocation2 + $0x48] sm:$0xff]
    %v4445 = vld [vmem:[#allocation2 + $0x50] sm:$0xff]
    %v4446 = vld [vmem:[#allocation2 + $0x58] sm:$0xff]
    %v4447 = vld [vmem:[#allocation2 + $0x60] sm:$0xff]
    %v4448 = vld [vmem:[#allocation2 + $0x68] sm:$0xff]
    %v4449 = vld [vmem:[#allocation2 + $0x70] sm:$0xff]
    %v4450 = vld [vmem:[#allocation2 + $0x78] sm:$0xff]
    %v4451 = vld [vmem:[#allocation2 + $0x80] sm:$0xff]
    %v4452 = vld [vmem:[#allocation2 + $0x88] sm:$0xff]
    %v4453 = vld [vmem:[#allocation2 + $0x90] sm:$0xff]
    %v4454 = vld [vmem:[#allocation2 + $0x98] sm:$0xff]
    %v4455 = vld [vmem:[#allocation2 + $0xa0] sm:$0xff]
    %v4456 = vld [vmem:[#allocation2 + $0xa8] sm:$0xff]
    %v4457 = vld [vmem:[#allocation2 + $0xb0] sm:$0xff]
    %v4458 = vld [vmem:[#allocation2 + $0xb8] sm:$0xff]
    %v4459 = vld [vmem:[#allocation2 + $0xc0] sm:$0xff]
    %v4460 = vld [vmem:[#allocation2 + $0xc8] sm:$0xff]
    %v4461 = vld [vmem:[#allocation2 + $0xd0] sm:$0xff]
    %v4462 = vld [vmem:[#allocation2 + $0xd8] sm:$0xff]
    %v4463 = vld [vmem:[#allocation2 + $0xe0] sm:$0xff]
    %v4464 = vld [vmem:[#allocation2 + $0xe8] sm:$0xff]
    %v4465 = vld [vmem:[#allocation2 + $0xf0] sm:$0xff]
    %v4466 = vld [vmem:[#allocation2 + $0xf8] sm:$0xff]
    %v4467 = vld [vmem:[#allocation2 + $0x100] sm:$0xff]
    %v4468 = vld [vmem:[#allocation2 + $0x108] sm:$0xff]
    %v4469 = vld [vmem:[#allocation2 + $0x110] sm:$0xff]
    %v4470 = vld [vmem:[#allocation2 + $0x118] sm:$0xff]
    %v4471 = vld [vmem:[#allocation2 + $0x120] sm:$0xff]
    %v4472 = vld [vmem:[#allocation2 + $0x128] sm:$0xff]
    %v4473 = vld [vmem:[#allocation2 + $0x130] sm:$0xff]
    %v4474 = vld [vmem:[#allocation2 + $0x138] sm:$0xff]
    %v4475 = vld [vmem:[#allocation2 + $0x140] sm:$0xff]
    %v4476 = vld [vmem:[#allocation2 + $0x148] sm:$0xff]
    %v4477 = vld [vmem:[#allocation2 + $0x150] sm:$0xff]
    %v4478 = vld [vmem:[#allocation2 + $0x158] sm:$0xff]
    %v4479 = vld [vmem:[#allocation2 + $0x160] sm:$0xff]
    %v4480 = vld [vmem:[#allocation2 + $0x168] sm:$0xff]
    %v4481 = vld [vmem:[#allocation2 + $0x170] sm:$0xff]
    %v4482 = vld [vmem:[#allocation2 + $0x178] sm:$0xff]
    %v4483 = vld [vmem:[#allocation2 + $0x180] sm:$0xff]
    %v4484 = vld [vmem:[#allocation2 + $0x188] sm:$0xff]
    %v4485 = vld [vmem:[#allocation2 + $0x190] sm:$0xff]
    %v4486 = vld [vmem:[#allocation2 + $0x198] sm:$0xff]
    %v4487 = vld [vmem:[#allocation2 + $0x1a0] sm:$0xff]
    %v4488 = vld [vmem:[#allocation2 + $0x1a8] sm:$0xff]
    %4490 = vset.pattern.permute.xlu0 0
    %4491 = vperm.xlu0 %4490, %v4037
    %v4492 = vpop.permute.xlu0 %4491
    %4495 = vset.pattern.permute.xlu0 0
    %4496 = vperm.xlu0 %4495, %v4038
    %v4497 = vpop.permute.xlu0 %4496
    %v4501 = vunpack.c.l.b16 %v4035
    %v4502 = vunpack.c.h.b16 %v4035
    %v4503 = vunpack.c.l.b16 %v4036
    %v4504 = vunpack.c.h.b16 %v4036
    %v4505 = vpack.c.b16 %v4503, %v4501
    %v4506 = vpack.c.b16 %v4504, %v4502
    %v4562 = vunpack.c.l.b16 %v4435
    %v4563 = vunpack.c.h.b16 %v4435
    %v4564 = vunpack.c.l.b16 %v4436
    %v4565 = vunpack.c.h.b16 %v4436
    %v4566 = vunpack.c.l.b16 %v4437
    %v4567 = vunpack.c.h.b16 %v4437
    %v4568 = vunpack.c.l.b16 %v4438
    %v4569 = vunpack.c.h.b16 %v4438
    %v4570 = vunpack.c.l.b16 %v4439
    %v4571 = vunpack.c.h.b16 %v4439
    %v4572 = vunpack.c.l.b16 %v4440
    %v4573 = vunpack.c.h.b16 %v4440
    %v4574 = vunpack.c.l.b16 %v4441
    %v4575 = vunpack.c.h.b16 %v4441
    %v4576 = vunpack.c.l.b16 %v4442
    %v4577 = vunpack.c.h.b16 %v4442
    %v4578 = vunpack.c.l.b16 %v4443
    %v4579 = vunpack.c.h.b16 %v4443
    %v4580 = vunpack.c.l.b16 %v4444
    %v4581 = vunpack.c.h.b16 %v4444
    %v4582 = vunpack.c.l.b16 %v4445
    %v4583 = vunpack.c.h.b16 %v4445
    %v4584 = vunpack.c.l.b16 %v4446
    %v4585 = vunpack.c.h.b16 %v4446
    %v4586 = vunpack.c.l.b16 %v4447
    %v4587 = vunpack.c.h.b16 %v4447
    %v4588 = vunpack.c.l.b16 %v4448
    %v4589 = vunpack.c.h.b16 %v4448
    %v4590 = vunpack.c.l.b16 %v4449
    %v4591 = vunpack.c.h.b16 %v4449
    %v4592 = vunpack.c.l.b16 %v4450
    %v4593 = vunpack.c.h.b16 %v4450
    %v4594 = vunpack.c.l.b16 %v4451
    %v4595 = vunpack.c.h.b16 %v4451
    %v4596 = vunpack.c.l.b16 %v4452
    %v4597 = vunpack.c.h.b16 %v4452
    %v4598 = vunpack.c.l.b16 %v4453
    %v4599 = vunpack.c.h.b16 %v4453
    %v4600 = vunpack.c.l.b16 %v4454
    %v4601 = vunpack.c.h.b16 %v4454
    %v4602 = vunpack.c.l.b16 %v4455
    %v4603 = vunpack.c.h.b16 %v4455
    %v4604 = vunpack.c.l.b16 %v4456
    %v4605 = vunpack.c.h.b16 %v4456
    %v4606 = vunpack.c.l.b16 %v4457
    %v4607 = vunpack.c.h.b16 %v4457
    %v4608 = vunpack.c.l.b16 %v4458
    %v4609 = vunpack.c.h.b16 %v4458
    %v4610 = vunpack.c.l.b16 %v4459
    %v4611 = vunpack.c.h.b16 %v4459
    %v4612 = vunpack.c.l.b16 %v4460
    %v4613 = vunpack.c.h.b16 %v4460
    %v4614 = vunpack.c.l.b16 %v4461
    %v4615 = vunpack.c.h.b16 %v4461
    %v4616 = vunpack.c.l.b16 %v4462
    %v4617 = vunpack.c.h.b16 %v4462
    %v4618 = vunpack.c.l.b16 %v4463
    %v4619 = vunpack.c.h.b16 %v4463
    %v4620 = vunpack.c.l.b16 %v4464
    %v4621 = vunpack.c.h.b16 %v4464
    %v4622 = vunpack.c.l.b16 %v4465
    %v4623 = vunpack.c.h.b16 %v4465
    %v4624 = vunpack.c.l.b16 %v4466
    %v4625 = vunpack.c.h.b16 %v4466
    %v4626 = vunpack.c.l.b16 %v4467
    %v4627 = vunpack.c.h.b16 %v4467
    %v4628 = vunpack.c.l.b16 %v4468
    %v4629 = vunpack.c.h.b16 %v4468
    %v4630 = vunpack.c.l.b16 %v4469
    %v4631 = vunpack.c.h.b16 %v4469
    %v4632 = vunpack.c.l.b16 %v4470
    %v4633 = vunpack.c.h.b16 %v4470
    %v4634 = vunpack.c.l.b16 %v4471
    %v4635 = vunpack.c.h.b16 %v4471
    %v4636 = vunpack.c.l.b16 %v4472
    %v4637 = vunpack.c.h.b16 %v4472
    %v4638 = vunpack.c.l.b16 %v4473
    %v4639 = vunpack.c.h.b16 %v4473
    %v4640 = vunpack.c.l.b16 %v4474
    %v4641 = vunpack.c.h.b16 %v4474
    %v4642 = vunpack.c.l.b16 %v4475
    %v4643 = vunpack.c.h.b16 %v4475
    %v4644 = vunpack.c.l.b16 %v4476
    %v4645 = vunpack.c.h.b16 %v4476
    %v4646 = vunpack.c.l.b16 %v4477
    %v4647 = vunpack.c.h.b16 %v4477
    %v4648 = vunpack.c.l.b16 %v4478
    %v4649 = vunpack.c.h.b16 %v4478
    %v4650 = vunpack.c.l.b16 %v4479
    %v4651 = vunpack.c.h.b16 %v4479
    %v4652 = vunpack.c.l.b16 %v4480
    %v4653 = vunpack.c.h.b16 %v4480
    %v4654 = vunpack.c.l.b16 %v4481
    %v4655 = vunpack.c.h.b16 %v4481
    %v4656 = vunpack.c.l.b16 %v4482
    %v4657 = vunpack.c.h.b16 %v4482
    %v4658 = vunpack.c.l.b16 %v4483
    %v4659 = vunpack.c.h.b16 %v4483
    %v4660 = vunpack.c.l.b16 %v4484
    %v4661 = vunpack.c.h.b16 %v4484
    %v4662 = vunpack.c.l.b16 %v4485
    %v4663 = vunpack.c.h.b16 %v4485
    %v4664 = vunpack.c.l.b16 %v4486
    %v4665 = vunpack.c.h.b16 %v4486
    %v4666 = vunpack.c.l.b16 %v4487
    %v4667 = vunpack.c.h.b16 %v4487
    %v4668 = vunpack.c.l.b16 %v4488
    %v4669 = vunpack.c.h.b16 %v4488
    %v4670 = vpack.c.b16 %v4568, %v4562
    %v4671 = vpack.c.b16 %v4569, %v4563
    %v4672 = vpack.c.b16 %v4570, %v4564
    %v4673 = vpack.c.b16 %v4571, %v4565
    %v4674 = vpack.c.b16 %v4572, %v4566
    %v4675 = vpack.c.b16 %v4573, %v4567
    %v4676 = vpack.c.b16 %v4580, %v4574
    %v4677 = vpack.c.b16 %v4581, %v4575
    %v4678 = vpack.c.b16 %v4582, %v4576
    %v4679 = vpack.c.b16 %v4583, %v4577
    %v4680 = vpack.c.b16 %v4584, %v4578
    %v4681 = vpack.c.b16 %v4585, %v4579
    %v4682 = vpack.c.b16 %v4592, %v4586
    %v4683 = vpack.c.b16 %v4593, %v4587
    %v4684 = vpack.c.b16 %v4594, %v4588
    %v4685 = vpack.c.b16 %v4595, %v4589
    %v4686 = vpack.c.b16 %v4596, %v4590
    %v4687 = vpack.c.b16 %v4597, %v4591
    %v4688 = vpack.c.b16 %v4604, %v4598
    %v4689 = vpack.c.b16 %v4605, %v4599
    %v4690 = vpack.c.b16 %v4606, %v4600
    %v4691 = vpack.c.b16 %v4607, %v4601
    %v4692 = vpack.c.b16 %v4608, %v4602
    %v4693 = vpack.c.b16 %v4609, %v4603
    %v4694 = vpack.c.b16 %v4616, %v4610
    %v4695 = vpack.c.b16 %v4617, %v4611
    %v4696 = vpack.c.b16 %v4618, %v4612
    %v4697 = vpack.c.b16 %v4619, %v4613
    %v4698 = vpack.c.b16 %v4620, %v4614
    %v4699 = vpack.c.b16 %v4621, %v4615
    %v4700 = vpack.c.b16 %v4628, %v4622
    %v4701 = vpack.c.b16 %v4629, %v4623
    %v4702 = vpack.c.b16 %v4630, %v4624
    %v4703 = vpack.c.b16 %v4631, %v4625
    %v4704 = vpack.c.b16 %v4632, %v4626
    %v4705 = vpack.c.b16 %v4633, %v4627
    %v4706 = vpack.c.b16 %v4640, %v4634
    %v4707 = vpack.c.b16 %v4641, %v4635
    %v4708 = vpack.c.b16 %v4642, %v4636
    %v4709 = vpack.c.b16 %v4643, %v4637
    %v4710 = vpack.c.b16 %v4644, %v4638
    %v4711 = vpack.c.b16 %v4645, %v4639
    %v4712 = vpack.c.b16 %v4652, %v4646
    %v4713 = vpack.c.b16 %v4653, %v4647
    %v4714 = vpack.c.b16 %v4654, %v4648
    %v4715 = vpack.c.b16 %v4655, %v4649
    %v4716 = vpack.c.b16 %v4656, %v4650
    %v4717 = vpack.c.b16 %v4657, %v4651
    %v4718 = vpack.c.b16 %v4664, %v4658
    %v4719 = vpack.c.b16 %v4665, %v4659
    %v4720 = vpack.c.b16 %v4666, %v4660
    %v4721 = vpack.c.b16 %v4667, %v4661
    %v4722 = vpack.c.b16 %v4668, %v4662
    %v4723 = vpack.c.b16 %v4669, %v4663
    %v4779 = vsel %vm890, %v4506, 0
    %4781 = vmatpush.bf16.msra.mxu0 %v4712
    %4782 = vmatpush.bf16.msra.mxu0 %v4706
    %4783 = vmatpush.bf16.msra.mxu0 %v4700
    %4784 = vmatpush.bf16.msra.mxu0 %v4694
    %4785 = vmatpush.bf16.msra.mxu0 %v4688
    %4786 = vmatpush.bf16.msra.mxu0 %v4682
    %4787 = vmatpush.bf16.msra.mxu0 %v4676
    %4788 = vmatpush.bf16.msra.mxu0 %v4670
    %4789 = vmatmul.bf16.gmra.mxu0 %v4505
    %v4790 = vpop.f32.mrf.mxu0
    %v4791 = vadd.f32 %v4492, %v4790
    %v4792 = vpop.f32.mrf.mxu0
    %v4793 = vadd.f32 %v4497, %v4792
    %4794 = vdwg.mxu0
    %4795 = vmatpush.bf16.msra.mxu0 0
    %4796 = vmatpush.bf16.msra.mxu0 0
    %4797 = vmatpush.bf16.msra.mxu0 0
    %4798 = vmatpush.bf16.msra.mxu0 0
    %4799 = vmatpush.bf16.msra.mxu0 0
    %4800 = vmatpush.bf16.msra.mxu0 0
    %4801 = vmatpush.bf16.msra.mxu0 0
    %4802 = vmatpush.bf16.msra.mxu0 %v4718
    %4803 = vmatmul.bf16.gmra.mxu0 %v4779
    %v4804 = vpop.f32.mrf.mxu0
    %v4805 = vadd.f32 %v4791, %v4804
    %v4806 = vpop.f32.mrf.mxu0
    %v4807 = vadd.f32 %v4793, %v4806
    %4808 = vdwg.mxu0
    %4809 = vmatpush.bf16.msra.mxu0 %v4713
    %4810 = vmatpush.bf16.msra.mxu0 %v4707
    %4811 = vmatpush.bf16.msra.mxu0 %v4701
    %4812 = vmatpush.bf16.msra.mxu0 %v4695
    %4813 = vmatpush.bf16.msra.mxu0 %v4689
    %4814 = vmatpush.bf16.msra.mxu0 %v4683
    %4815 = vmatpush.bf16.msra.mxu0 %v4677
    %4816 = vmatpush.bf16.msra.mxu0 %v4671
    %4817 = vmatmul.bf16.gmra.mxu0 %v4505
    %v4818 = vpop.f32.mrf.mxu0
    %v4819 = vadd.f32 %v4492, %v4818
    %v4820 = vpop.f32.mrf.mxu0
    %v4821 = vadd.f32 %v4497, %v4820
    %4822 = vdwg.mxu0
    %4823 = vmatpush.bf16.msra.mxu0 0
    %4824 = vmatpush.bf16.msra.mxu0 0
    %4825 = vmatpush.bf16.msra.mxu0 0
    %4826 = vmatpush.bf16.msra.mxu0 0
    %4827 = vmatpush.bf16.msra.mxu0 0
    %4828 = vmatpush.bf16.msra.mxu0 0
    %4829 = vmatpush.bf16.msra.mxu0 0
    %4830 = vmatpush.bf16.msra.mxu0 %v4719
    %4831 = vmatmul.bf16.gmra.mxu0 %v4779
    %v4832 = vpop.f32.mrf.mxu0
    %v4833 = vadd.f32 %v4819, %v4832
    %v4834 = vpop.f32.mrf.mxu0
    %v4835 = vadd.f32 %v4821, %v4834
    %4836 = vdwg.mxu0
    %4837 = vmatpush.bf16.msra.mxu0 %v4714
    %4838 = vmatpush.bf16.msra.mxu0 %v4708
    %4839 = vmatpush.bf16.msra.mxu0 %v4702
    %4840 = vmatpush.bf16.msra.mxu0 %v4696
    %4841 = vmatpush.bf16.msra.mxu0 %v4690
    %4842 = vmatpush.bf16.msra.mxu0 %v4684
    %4843 = vmatpush.bf16.msra.mxu0 %v4678
    %4844 = vmatpush.bf16.msra.mxu0 %v4672
    %4845 = vmatmul.bf16.gmra.mxu0 %v4505
    %v4846 = vpop.f32.mrf.mxu0
    %v4847 = vadd.f32 %v4492, %v4846
    %v4848 = vpop.f32.mrf.mxu0
    %v4849 = vadd.f32 %v4497, %v4848
    %4850 = vdwg.mxu0
    %4851 = vmatpush.bf16.msra.mxu0 0
    %4852 = vmatpush.bf16.msra.mxu0 0
    %4853 = vmatpush.bf16.msra.mxu0 0
    %4854 = vmatpush.bf16.msra.mxu0 0
    %4855 = vmatpush.bf16.msra.mxu0 0
    %4856 = vmatpush.bf16.msra.mxu0 0
    %4857 = vmatpush.bf16.msra.mxu0 0
    %4858 = vmatpush.bf16.msra.mxu0 %v4720
    %4859 = vmatmul.bf16.gmra.mxu0 %v4779
    %v4860 = vpop.f32.mrf.mxu0
    %v4861 = vadd.f32 %v4847, %v4860
    %v4862 = vpop.f32.mrf.mxu0
    %v4863 = vadd.f32 %v4849, %v4862
    %4864 = vdwg.mxu0
    %4865 = vmatpush.bf16.msra.mxu0 %v4715
    %4866 = vmatpush.bf16.msra.mxu0 %v4709
    %4867 = vmatpush.bf16.msra.mxu0 %v4703
    %4868 = vmatpush.bf16.msra.mxu0 %v4697
    %4869 = vmatpush.bf16.msra.mxu0 %v4691
    %4870 = vmatpush.bf16.msra.mxu0 %v4685
    %4871 = vmatpush.bf16.msra.mxu0 %v4679
    %4872 = vmatpush.bf16.msra.mxu0 %v4673
    %4873 = vmatmul.bf16.gmra.mxu0 %v4505
    %v4874 = vpop.f32.mrf.mxu0
    %v4875 = vadd.f32 %v4492, %v4874
    %v4876 = vpop.f32.mrf.mxu0
    %v4877 = vadd.f32 %v4497, %v4876
    %4878 = vdwg.mxu0
    %4879 = vmatpush.bf16.msra.mxu0 0
    %4880 = vmatpush.bf16.msra.mxu0 0
    %4881 = vmatpush.bf16.msra.mxu0 0
    %4882 = vmatpush.bf16.msra.mxu0 0
    %4883 = vmatpush.bf16.msra.mxu0 0
    %4884 = vmatpush.bf16.msra.mxu0 0
    %4885 = vmatpush.bf16.msra.mxu0 0
    %4886 = vmatpush.bf16.msra.mxu0 %v4721
    %4887 = vmatmul.bf16.gmra.mxu0 %v4779
    %v4888 = vpop.f32.mrf.mxu0
    %v4889 = vadd.f32 %v4875, %v4888
    %v4890 = vpop.f32.mrf.mxu0
    %v4891 = vadd.f32 %v4877, %v4890
    %4892 = vdwg.mxu0
    %4893 = vmatpush.bf16.msra.mxu0 %v4716
    %4894 = vmatpush.bf16.msra.mxu0 %v4710
    %4895 = vmatpush.bf16.msra.mxu0 %v4704
    %4896 = vmatpush.bf16.msra.mxu0 %v4698
    %4897 = vmatpush.bf16.msra.mxu0 %v4692
    %4898 = vmatpush.bf16.msra.mxu0 %v4686
    %4899 = vmatpush.bf16.msra.mxu0 %v4680
    %4900 = vmatpush.bf16.msra.mxu0 %v4674
    %4901 = vmatmul.bf16.gmra.mxu0 %v4505
    %v4902 = vpop.f32.mrf.mxu0
    %v4903 = vadd.f32 %v4492, %v4902
    %v4904 = vpop.f32.mrf.mxu0
    %v4905 = vadd.f32 %v4497, %v4904
    %4906 = vdwg.mxu0
    %4907 = vmatpush.bf16.msra.mxu0 0
    %4908 = vmatpush.bf16.msra.mxu0 0
    %4909 = vmatpush.bf16.msra.mxu0 0
    %4910 = vmatpush.bf16.msra.mxu0 0
    %4911 = vmatpush.bf16.msra.mxu0 0
    %4912 = vmatpush.bf16.msra.mxu0 0
    %4913 = vmatpush.bf16.msra.mxu0 0
    %4914 = vmatpush.bf16.msra.mxu0 %v4722
    %4915 = vmatmul.bf16.gmra.mxu0 %v4779
    %v4916 = vpop.f32.mrf.mxu0
    %v4917 = vadd.f32 %v4903, %v4916
    %v4918 = vpop.f32.mrf.mxu0
    %v4919 = vadd.f32 %v4905, %v4918
    %4920 = vdwg.mxu0
    %4921 = vmatpush.bf16.msra.mxu0 %v4717
    %4922 = vmatpush.bf16.msra.mxu0 %v4711
    %4923 = vmatpush.bf16.msra.mxu0 %v4705
    %4924 = vmatpush.bf16.msra.mxu0 %v4699
    %4925 = vmatpush.bf16.msra.mxu0 %v4693
    %4926 = vmatpush.bf16.msra.mxu0 %v4687
    %4927 = vmatpush.bf16.msra.mxu0 %v4681
    %4928 = vmatpush.bf16.msra.mxu0 %v4675
    %4929 = vmatmul.bf16.gmra.mxu0 %v4505
    %v4930 = vpop.f32.mrf.mxu0
    %v4931 = vadd.f32 %v4492, %v4930
    %v4932 = vpop.f32.mrf.mxu0
    %v4933 = vadd.f32 %v4497, %v4932
    %4934 = vdwg.mxu0
    %4935 = vmatpush.bf16.msra.mxu0 0
    %4936 = vmatpush.bf16.msra.mxu0 0
    %4937 = vmatpush.bf16.msra.mxu0 0
    %4938 = vmatpush.bf16.msra.mxu0 0
    %4939 = vmatpush.bf16.msra.mxu0 0
    %4940 = vmatpush.bf16.msra.mxu0 0
    %4941 = vmatpush.bf16.msra.mxu0 0
    %4942 = vmatpush.bf16.msra.mxu0 %v4723
    %4943 = vmatmul.bf16.gmra.mxu0 %v4779
    %v4944 = vpop.f32.mrf.mxu0
    %v4945 = vadd.f32 %v4931, %v4944
    %v4946 = vpop.f32.mrf.mxu0
    %v4947 = vadd.f32 %v4933, %v4946
    %4948 = vdwg.mxu0
    %v4949 = vmul.f32 %v4805, 0.1
    %v4950 = vmul.f32 %v4833, 0.1
    %v4951 = vmul.f32 %v4861, 0.1
    %v4952 = vmul.f32 %v4889, 0.1
    %v4953 = vmul.f32 %v4917, 0.1
    %v4954 = vmul.f32 %v4945, 0.1
    %v4955 = vmul.f32 %v4807, 0.1
    %v4956 = vmul.f32 %v4835, 0.1
    %v4957 = vmul.f32 %v4863, 0.1
    %v4958 = vmul.f32 %v4891, 0.1
    %v4959 = vmul.f32 %v4919, 0.1
    %v4960 = vmul.f32 %v4947, 0.1
    %v4963 = vunpack.c.l.b16 %v3071
    %v4964 = vunpack.c.l.b16 %v3072
    %v4965 = vpack.c.b16 %v4964, %v4963
    %v4972 = vunpack.c.l.b16 %v3073
    %v4973 = vunpack.c.h.b16 %v3073
    %v4974 = vunpack.c.l.b16 %v3074
    %v4975 = vunpack.c.h.b16 %v3074
    %v4976 = vunpack.c.l.b16 %v3075
    %v4977 = vunpack.c.h.b16 %v3075
    %v4978 = vunpack.c.l.b16 %v3076
    %v4979 = vunpack.c.h.b16 %v3076
    %v4980 = vunpack.c.l.b16 %v3077
    %v4981 = vunpack.c.h.b16 %v3077
    %v4982 = vunpack.c.l.b16 %v3078
    %v4983 = vunpack.c.h.b16 %v3078
    %v4984 = vpack.c.b16 %v4978, %v4972
    %v4985 = vpack.c.b16 %v4979, %v4973
    %v4986 = vpack.c.b16 %v4980, %v4974
    %v4987 = vpack.c.b16 %v4981, %v4975
    %v4988 = vpack.c.b16 %v4982, %v4976
    %v4989 = vpack.c.b16 %v4983, %v4977
    %v4997 = vsel %vm890, %v4965, 0
    %4999 = vmatpush.bf16.msra.mxu0 0
    %5000 = vmatpush.bf16.msra.mxu0 0
    %5001 = vmatpush.bf16.msra.mxu0 0
    %5002 = vmatpush.bf16.msra.mxu0 0
    %5003 = vmatpush.bf16.msra.mxu0 0
    %5004 = vmatpush.bf16.msra.mxu0 0
    %5005 = vmatpush.bf16.msra.mxu0 0
    %5006 = vmatpush.bf16.msra.mxu0 %v4984
    %5007 = vmatmul.bf16.gmra.mxu0 %v4997
    %v5008 = vpop.f32.mrf.mxu0
    %v5009 = vadd.f32 %v4949, %v5008
    %v5010 = vpop.f32.mrf.mxu0
    %v5011 = vadd.f32 %v4955, %v5010
    %5012 = vdwg.mxu0
    %5013 = vmatpush.bf16.msra.mxu0 0
    %5014 = vmatpush.bf16.msra.mxu0 0
    %5015 = vmatpush.bf16.msra.mxu0 0
    %5016 = vmatpush.bf16.msra.mxu0 0
    %5017 = vmatpush.bf16.msra.mxu0 0
    %5018 = vmatpush.bf16.msra.mxu0 0
    %5019 = vmatpush.bf16.msra.mxu0 0
    %5020 = vmatpush.bf16.msra.mxu0 %v4985
    %5021 = vmatmul.bf16.gmra.mxu0 %v4997
    %v5022 = vpop.f32.mrf.mxu0
    %v5023 = vadd.f32 %v4950, %v5022
    %v5024 = vpop.f32.mrf.mxu0
    %v5025 = vadd.f32 %v4956, %v5024
    %5026 = vdwg.mxu0
    %5027 = vmatpush.bf16.msra.mxu0 0
    %5028 = vmatpush.bf16.msra.mxu0 0
    %5029 = vmatpush.bf16.msra.mxu0 0
    %5030 = vmatpush.bf16.msra.mxu0 0
    %5031 = vmatpush.bf16.msra.mxu0 0
    %5032 = vmatpush.bf16.msra.mxu0 0
    %5033 = vmatpush.bf16.msra.mxu0 0
    %5034 = vmatpush.bf16.msra.mxu0 %v4986
    %5035 = vmatmul.bf16.gmra.mxu0 %v4997
    %v5036 = vpop.f32.mrf.mxu0
    %v5037 = vadd.f32 %v4951, %v5036
    %v5038 = vpop.f32.mrf.mxu0
    %v5039 = vadd.f32 %v4957, %v5038
    %5040 = vdwg.mxu0
    %5041 = vmatpush.bf16.msra.mxu0 0
    %5042 = vmatpush.bf16.msra.mxu0 0
    %5043 = vmatpush.bf16.msra.mxu0 0
    %5044 = vmatpush.bf16.msra.mxu0 0
    %5045 = vmatpush.bf16.msra.mxu0 0
    %5046 = vmatpush.bf16.msra.mxu0 0
    %5047 = vmatpush.bf16.msra.mxu0 0
    %5048 = vmatpush.bf16.msra.mxu0 %v4987
    %5049 = vmatmul.bf16.gmra.mxu0 %v4997
    %v5050 = vpop.f32.mrf.mxu0
    %v5051 = vadd.f32 %v4952, %v5050
    %v5052 = vpop.f32.mrf.mxu0
    %v5053 = vadd.f32 %v4958, %v5052
    %5054 = vdwg.mxu0
    %5055 = vmatpush.bf16.msra.mxu0 0
    %5056 = vmatpush.bf16.msra.mxu0 0
    %5057 = vmatpush.bf16.msra.mxu0 0
    %5058 = vmatpush.bf16.msra.mxu0 0
    %5059 = vmatpush.bf16.msra.mxu0 0
    %5060 = vmatpush.bf16.msra.mxu0 0
    %5061 = vmatpush.bf16.msra.mxu0 0
    %5062 = vmatpush.bf16.msra.mxu0 %v4988
    %5063 = vmatmul.bf16.gmra.mxu0 %v4997
    %v5064 = vpop.f32.mrf.mxu0
    %v5065 = vadd.f32 %v4953, %v5064
    %v5066 = vpop.f32.mrf.mxu0
    %v5067 = vadd.f32 %v4959, %v5066
    %5068 = vdwg.mxu0
    %5069 = vmatpush.bf16.msra.mxu0 0
    %5070 = vmatpush.bf16.msra.mxu0 0
    %5071 = vmatpush.bf16.msra.mxu0 0
    %5072 = vmatpush.bf16.msra.mxu0 0
    %5073 = vmatpush.bf16.msra.mxu0 0
    %5074 = vmatpush.bf16.msra.mxu0 0
    %5075 = vmatpush.bf16.msra.mxu0 0
    %5076 = vmatpush.bf16.msra.mxu0 %v4989
    %5077 = vmatmul.bf16.gmra.mxu0 %v4997
    %v5078 = vpop.f32.mrf.mxu0
    %v5079 = vadd.f32 %v4954, %v5078
    %v5080 = vpop.f32.mrf.mxu0
    %v5081 = vadd.f32 %v4960, %v5080
    %5082 = vdwg.mxu0
    %vm5083 = vcmp.ge.f32.partialorder %v5009, 0.0
    %vm5084 = vcmp.ge.f32.partialorder %v5023, 0.0
    %vm5085 = vcmp.ge.f32.partialorder %v5037, 0.0
    %vm5086 = vcmp.ge.f32.partialorder %v5051, 0.0
    %vm5087 = vcmp.ge.f32.partialorder %v5065, 0.0
    %vm5088 = vcmp.ge.f32.partialorder %v5079, 0.0
    %vm5089 = vcmp.ge.f32.partialorder %v5011, 0.0
    %vm5090 = vcmp.ge.f32.partialorder %v5025, 0.0
    %vm5091 = vcmp.ge.f32.partialorder %v5039, 0.0
    %vm5092 = vcmp.ge.f32.partialorder %v5053, 0.0
    %vm5093 = vcmp.ge.f32.partialorder %v5067, 0.0
    %vm5094 = vcmp.ge.f32.partialorder %v5081, 0.0
    %v5095 = vmul.f32 %v5009, 0.2
    %v5096 = vmul.f32 %v5023, 0.2
    %v5097 = vmul.f32 %v5037, 0.2
    %v5098 = vmul.f32 %v5051, 0.2
    %v5099 = vmul.f32 %v5065, 0.2
    %v5100 = vmul.f32 %v5079, 0.2
    %v5101 = vmul.f32 %v5011, 0.2
    %v5102 = vmul.f32 %v5025, 0.2
    %v5103 = vmul.f32 %v5039, 0.2
    %v5104 = vmul.f32 %v5053, 0.2
    %v5105 = vmul.f32 %v5067, 0.2
    %v5106 = vmul.f32 %v5081, 0.2
    %v5107 = vsel %vm5083, %v5009, %v5095
    %v5108 = vsel %vm5084, %v5023, %v5096
    %v5109 = vsel %vm5085, %v5037, %v5097
    %v5110 = vsel %vm5086, %v5051, %v5098
    %v5111 = vsel %vm5087, %v5065, %v5099
    %v5112 = vsel %vm5088, %v5079, %v5100
    %v5113 = vsel %vm5089, %v5011, %v5101
    %v5114 = vsel %vm5090, %v5025, %v5102
    %v5115 = vsel %vm5091, %v5039, %v5103
    %v5116 = vsel %vm5092, %v5053, %v5104
    %v5117 = vsel %vm5093, %v5067, %v5105
    %v5118 = vsel %vm5094, %v5081, %v5106
    %v5119 = vmul.f32 %v5107, %v1099
    %v5120 = vmul.f32 %v5108, %v1100
    %v5121 = vmul.f32 %v5109, %v1101
    %v5122 = vmul.f32 %v5110, %v1102
    %v5123 = vmul.f32 %v5111, %v1103
    %v5124 = vmul.f32 %v5112, %v1104
    %v5125 = vmul.f32 %v5113, %v1099
    %v5126 = vmul.f32 %v5114, %v1100
    %v5127 = vmul.f32 %v5115, %v1101
    %v5128 = vmul.f32 %v5116, %v1102
    %v5129 = vmul.f32 %v5117, %v1103
    %v5130 = vmul.f32 %v5118, %v1104
    %v5131 = vpack.c.bf16 %v5125, %v5119
    %v5132 = vpack.c.bf16 %v5126, %v5120
    %v5133 = vpack.c.bf16 %v5127, %v5121
    %v5134 = vpack.c.bf16 %v5128, %v5122
    %v5135 = vpack.c.bf16 %v5129, %v5123
    %v5136 = vpack.c.bf16 %v5130, %v5124
    %v5137 = vld [vmem:[%s55] sm:$0xff]
    %v5138 = vld [vmem:[%s55 + $0x8] sm:$0xff]
    %v5139 = vld [vmem:[%s55 + $0x10] sm:$0xff]
    %v5140 = vld [vmem:[%s55 + $0x18] sm:$0xff]
    %v5141 = vld [vmem:[%s55 + $0x20] sm:$0xff]
    %v5142 = vld [vmem:[%s55 + $0x28] sm:$0xff]
    %v5143 = vld [vmem:[%s55 + $0x30] sm:$0xff]
    %v5144 = vld [vmem:[%s55 + $0x38] sm:$0xff]
    %v5145 = vld [vmem:[%s55 + $0x40] sm:$0xff]
    %v5146 = vld [vmem:[%s55 + $0x48] sm:$0xff]
    %v5147 = vld [vmem:[%s55 + $0x50] sm:$0xff]
    %v5148 = vld [vmem:[%s55 + $0x58] sm:$0xff]
    %v5149 = vld [vmem:[%s55 + $0x60] sm:$0xff]
    %v5150 = vld [vmem:[%s55 + $0x68] sm:$0xff]
    %v5151 = vld [vmem:[%s55 + $0x70] sm:$0xff]
    %v5152 = vld [vmem:[%s55 + $0x78] sm:$0xff]
    %v5153 = vld [vmem:[%s55 + $0x80] sm:$0xff]
    %v5154 = vld [vmem:[%s55 + $0x88] sm:$0xff]
    %v5155 = vld [vmem:[%s55 + $0x90] sm:$0xff]
    %v5156 = vld [vmem:[%s55 + $0x98] sm:$0xff]
    %v5157 = vld [vmem:[%s55 + $0xa0] sm:$0xff]
    %v5158 = vld [vmem:[%s55 + $0xa8] sm:$0xff]
    %v5159 = vld [vmem:[%s55 + $0xb0] sm:$0xff]
    %v5160 = vld [vmem:[%s55 + $0xb8] sm:$0xff]
    %v5161 = vld [vmem:[%s55 + $0xc0] sm:$0xff]
    %v5162 = vld [vmem:[%s55 + $0xc8] sm:$0xff]
    %v5163 = vld [vmem:[%s55 + $0xd0] sm:$0xff]
    %v5164 = vld [vmem:[%s55 + $0xd8] sm:$0xff]
    %v5165 = vld [vmem:[%s55 + $0xe0] sm:$0xff]
    %v5166 = vld [vmem:[%s55 + $0xe8] sm:$0xff]
    %v5167 = vld [vmem:[%s55 + $0xf0] sm:$0xff]
    %v5168 = vld [vmem:[%s55 + $0xf8] sm:$0xff]
    %v5169 = vld [vmem:[%s55 + $0x100] sm:$0xff]
    %v5170 = vld [vmem:[%s55 + $0x108] sm:$0xff]
    %v5171 = vld [vmem:[%s55 + $0x110] sm:$0xff]
    %v5172 = vld [vmem:[%s55 + $0x118] sm:$0xff]
    %v5173 = vld [vmem:[%s55 + $0x120] sm:$0xff]
    %v5174 = vld [vmem:[%s55 + $0x128] sm:$0xff]
    %v5175 = vld [vmem:[%s55 + $0x130] sm:$0xff]
    %v5176 = vld [vmem:[%s55 + $0x138] sm:$0xff]
    %v5177 = vld [vmem:[%s55 + $0x140] sm:$0xff]
    %v5178 = vld [vmem:[%s55 + $0x148] sm:$0xff]
    %v5179 = vld [vmem:[%s55 + $0x150] sm:$0xff]
    %v5180 = vld [vmem:[%s55 + $0x158] sm:$0xff]
    %v5181 = vld [vmem:[%s55 + $0x160] sm:$0xff]
    %v5182 = vld [vmem:[%s55 + $0x168] sm:$0xff]
    %v5183 = vld [vmem:[%s55 + $0x170] sm:$0xff]
    %v5184 = vld [vmem:[%s55 + $0x178] sm:$0xff]
    %v5185 = vld [vmem:[%s55 + $0x180] sm:$0xff]
    %v5186 = vld [vmem:[%s55 + $0x188] sm:$0xff]
    %v5187 = vld [vmem:[%s55 + $0x190] sm:$0xff]
    %v5188 = vld [vmem:[%s55 + $0x198] sm:$0xff]
    %v5189 = vld [vmem:[%s55 + $0x1a0] sm:$0xff]
    %v5190 = vld [vmem:[%s55 + $0x1a8] sm:$0xff]
    %v5191 = vld [vmem:[%s55 + $0x1b0] sm:$0xff]
    %v5192 = vld [vmem:[%s55 + $0x1b8] sm:$0xff]
    %v5193 = vld [vmem:[%s55 + $0x1c0] sm:$0xff]
    %v5194 = vld [vmem:[%s55 + $0x1c8] sm:$0xff]
    %v5195 = vld [vmem:[%s55 + $0x1d0] sm:$0xff]
    %v5196 = vld [vmem:[%s55 + $0x1d8] sm:$0xff]
    %v5197 = vld [vmem:[%s55 + $0x1e0] sm:$0xff]
    %v5198 = vld [vmem:[%s55 + $0x1e8] sm:$0xff]
    %v5199 = vld [vmem:[%s55 + $0x1f0] sm:$0xff]
    %v5200 = vld [vmem:[%s55 + $0x1f8] sm:$0xff]
    %v5201 = vld [vmem:[%s55 + $0x200] sm:$0xff]
    %v5202 = vld [vmem:[%s55 + $0x208] sm:$0xff]
    %v5203 = vld [vmem:[%s55 + $0x210] sm:$0xff]
    %v5204 = vld [vmem:[%s55 + $0x218] sm:$0xff]
    %v5205 = vld [vmem:[%s55 + $0x220] sm:$0xff]
    %v5206 = vld [vmem:[%s55 + $0x228] sm:$0xff]
    %v5207 = vld [vmem:[%s55 + $0x230] sm:$0xff]
    %v5208 = vld [vmem:[%s55 + $0x238] sm:$0xff]
    %v5209 = vld [vmem:[%s55 + $0x240] sm:$0xff]
    %v5210 = vld [vmem:[%s55 + $0x248] sm:$0xff]
    %v5211 = vld [vmem:[%s55 + $0x250] sm:$0xff]
    %v5212 = vld [vmem:[%s55 + $0x258] sm:$0xff]
    %v5213 = vld [vmem:[%s55 + $0x260] sm:$0xff]
    %v5214 = vld [vmem:[%s55 + $0x268] sm:$0xff]
    %v5215 = vld [vmem:[%s55 + $0x270] sm:$0xff]
    %v5216 = vld [vmem:[%s55 + $0x278] sm:$0xff]
    %v5217 = vld [vmem:[%s55 + $0x280] sm:$0xff]
    %v5218 = vld [vmem:[%s55 + $0x288] sm:$0xff]
    %v5219 = vld [vmem:[%s55 + $0x290] sm:$0xff]
    %v5220 = vld [vmem:[%s55 + $0x298] sm:$0xff]
    %v5221 = vld [vmem:[%s55 + $0x2a0] sm:$0xff]
    %v5222 = vld [vmem:[%s55 + $0x2a8] sm:$0xff]
    %v5223 = vld [vmem:[%s55 + $0x2b0] sm:$0xff]
    %v5224 = vld [vmem:[%s55 + $0x2b8] sm:$0xff]
    %v5225 = vld [vmem:[%s55 + $0x2c0] sm:$0xff]
    %v5226 = vld [vmem:[%s55 + $0x2c8] sm:$0xff]
    %v5227 = vld [vmem:[%s55 + $0x2d0] sm:$0xff]
    %v5228 = vld [vmem:[%s55 + $0x2d8] sm:$0xff]
    %v5229 = vld [vmem:[%s55 + $0x2e0] sm:$0xff]
    %v5230 = vld [vmem:[%s55 + $0x2e8] sm:$0xff]
    %v5231 = vld [vmem:[%s55 + $0x2f0] sm:$0xff]
    %v5232 = vld [vmem:[%s55 + $0x2f8] sm:$0xff]
    %v5329 = vunpack.c.l.b16 %v5137
    %v5330 = vunpack.c.h.b16 %v5137
    %v5331 = vunpack.c.l.b16 %v5138
    %v5332 = vunpack.c.h.b16 %v5138
    %v5333 = vunpack.c.l.b16 %v5139
    %v5334 = vunpack.c.h.b16 %v5139
    %v5335 = vunpack.c.l.b16 %v5140
    %v5336 = vunpack.c.h.b16 %v5140
    %v5337 = vunpack.c.l.b16 %v5141
    %v5338 = vunpack.c.h.b16 %v5141
    %v5339 = vunpack.c.l.b16 %v5142
    %v5340 = vunpack.c.h.b16 %v5142
    %v5341 = vunpack.c.l.b16 %v5143
    %v5342 = vunpack.c.h.b16 %v5143
    %v5343 = vunpack.c.l.b16 %v5144
    %v5344 = vunpack.c.h.b16 %v5144
    %v5345 = vunpack.c.l.b16 %v5145
    %v5346 = vunpack.c.h.b16 %v5145
    %v5347 = vunpack.c.l.b16 %v5146
    %v5348 = vunpack.c.h.b16 %v5146
    %v5349 = vunpack.c.l.b16 %v5147
    %v5350 = vunpack.c.h.b16 %v5147
    %v5351 = vunpack.c.l.b16 %v5148
    %v5352 = vunpack.c.h.b16 %v5148
    %v5353 = vunpack.c.l.b16 %v5149
    %v5354 = vunpack.c.h.b16 %v5149
    %v5355 = vunpack.c.l.b16 %v5150
    %v5356 = vunpack.c.h.b16 %v5150
    %v5357 = vunpack.c.l.b16 %v5151
    %v5358 = vunpack.c.h.b16 %v5151
    %v5359 = vunpack.c.l.b16 %v5152
    %v5360 = vunpack.c.h.b16 %v5152
    %v5361 = vunpack.c.l.b16 %v5153
    %v5362 = vunpack.c.h.b16 %v5153
    %v5363 = vunpack.c.l.b16 %v5154
    %v5364 = vunpack.c.h.b16 %v5154
    %v5365 = vunpack.c.l.b16 %v5155
    %v5366 = vunpack.c.h.b16 %v5155
    %v5367 = vunpack.c.l.b16 %v5156
    %v5368 = vunpack.c.h.b16 %v5156
    %v5369 = vunpack.c.l.b16 %v5157
    %v5370 = vunpack.c.h.b16 %v5157
    %v5371 = vunpack.c.l.b16 %v5158
    %v5372 = vunpack.c.h.b16 %v5158
    %v5373 = vunpack.c.l.b16 %v5159
    %v5374 = vunpack.c.h.b16 %v5159
    %v5375 = vunpack.c.l.b16 %v5160
    %v5376 = vunpack.c.h.b16 %v5160
    %v5377 = vunpack.c.l.b16 %v5161
    %v5378 = vunpack.c.h.b16 %v5161
    %v5379 = vunpack.c.l.b16 %v5162
    %v5380 = vunpack.c.h.b16 %v5162
    %v5381 = vunpack.c.l.b16 %v5163
    %v5382 = vunpack.c.h.b16 %v5163
    %v5383 = vunpack.c.l.b16 %v5164
    %v5384 = vunpack.c.h.b16 %v5164
    %v5385 = vunpack.c.l.b16 %v5165
    %v5386 = vunpack.c.h.b16 %v5165
    %v5387 = vunpack.c.l.b16 %v5166
    %v5388 = vunpack.c.h.b16 %v5166
    %v5389 = vunpack.c.l.b16 %v5167
    %v5390 = vunpack.c.h.b16 %v5167
    %v5391 = vunpack.c.l.b16 %v5168
    %v5392 = vunpack.c.h.b16 %v5168
    %v5393 = vunpack.c.l.b16 %v5169
    %v5394 = vunpack.c.h.b16 %v5169
    %v5395 = vunpack.c.l.b16 %v5170
    %v5396 = vunpack.c.h.b16 %v5170
    %v5397 = vunpack.c.l.b16 %v5171
    %v5398 = vunpack.c.h.b16 %v5171
    %v5399 = vunpack.c.l.b16 %v5172
    %v5400 = vunpack.c.h.b16 %v5172
    %v5401 = vunpack.c.l.b16 %v5173
    %v5402 = vunpack.c.h.b16 %v5173
    %v5403 = vunpack.c.l.b16 %v5174
    %v5404 = vunpack.c.h.b16 %v5174
    %v5405 = vunpack.c.l.b16 %v5175
    %v5406 = vunpack.c.h.b16 %v5175
    %v5407 = vunpack.c.l.b16 %v5176
    %v5408 = vunpack.c.h.b16 %v5176
    %v5409 = vunpack.c.l.b16 %v5177
    %v5410 = vunpack.c.h.b16 %v5177
    %v5411 = vunpack.c.l.b16 %v5178
    %v5412 = vunpack.c.h.b16 %v5178
    %v5413 = vunpack.c.l.b16 %v5179
    %v5414 = vunpack.c.h.b16 %v5179
    %v5415 = vunpack.c.l.b16 %v5180
    %v5416 = vunpack.c.h.b16 %v5180
    %v5417 = vunpack.c.l.b16 %v5181
    %v5418 = vunpack.c.h.b16 %v5181
    %v5419 = vunpack.c.l.b16 %v5182
    %v5420 = vunpack.c.h.b16 %v5182
    %v5421 = vunpack.c.l.b16 %v5183
    %v5422 = vunpack.c.h.b16 %v5183
    %v5423 = vunpack.c.l.b16 %v5184
    %v5424 = vunpack.c.h.b16 %v5184
    %v5425 = vunpack.c.l.b16 %v5185
    %v5426 = vunpack.c.h.b16 %v5185
    %v5427 = vunpack.c.l.b16 %v5186
    %v5428 = vunpack.c.h.b16 %v5186
    %v5429 = vunpack.c.l.b16 %v5187
    %v5430 = vunpack.c.h.b16 %v5187
    %v5431 = vunpack.c.l.b16 %v5188
    %v5432 = vunpack.c.h.b16 %v5188
    %v5433 = vunpack.c.l.b16 %v5189
    %v5434 = vunpack.c.h.b16 %v5189
    %v5435 = vunpack.c.l.b16 %v5190
    %v5436 = vunpack.c.h.b16 %v5190
    %v5437 = vunpack.c.l.b16 %v5191
    %v5438 = vunpack.c.h.b16 %v5191
    %v5439 = vunpack.c.l.b16 %v5192
    %v5440 = vunpack.c.h.b16 %v5192
    %v5441 = vunpack.c.l.b16 %v5193
    %v5442 = vunpack.c.h.b16 %v5193
    %v5443 = vunpack.c.l.b16 %v5194
    %v5444 = vunpack.c.h.b16 %v5194
    %v5445 = vunpack.c.l.b16 %v5195
    %v5446 = vunpack.c.h.b16 %v5195
    %v5447 = vunpack.c.l.b16 %v5196
    %v5448 = vunpack.c.h.b16 %v5196
    %v5449 = vunpack.c.l.b16 %v5197
    %v5450 = vunpack.c.h.b16 %v5197
    %v5451 = vunpack.c.l.b16 %v5198
    %v5452 = vunpack.c.h.b16 %v5198
    %v5453 = vunpack.c.l.b16 %v5199
    %v5454 = vunpack.c.h.b16 %v5199
    %v5455 = vunpack.c.l.b16 %v5200
    %v5456 = vunpack.c.h.b16 %v5200
    %v5457 = vunpack.c.l.b16 %v5201
    %v5458 = vunpack.c.h.b16 %v5201
    %v5459 = vunpack.c.l.b16 %v5202
    %v5460 = vunpack.c.h.b16 %v5202
    %v5461 = vunpack.c.l.b16 %v5203
    %v5462 = vunpack.c.h.b16 %v5203
    %v5463 = vunpack.c.l.b16 %v5204
    %v5464 = vunpack.c.h.b16 %v5204
    %v5465 = vunpack.c.l.b16 %v5205
    %v5466 = vunpack.c.h.b16 %v5205
    %v5467 = vunpack.c.l.b16 %v5206
    %v5468 = vunpack.c.h.b16 %v5206
    %v5469 = vunpack.c.l.b16 %v5207
    %v5470 = vunpack.c.h.b16 %v5207
    %v5471 = vunpack.c.l.b16 %v5208
    %v5472 = vunpack.c.h.b16 %v5208
    %v5473 = vunpack.c.l.b16 %v5209
    %v5474 = vunpack.c.h.b16 %v5209
    %v5475 = vunpack.c.l.b16 %v5210
    %v5476 = vunpack.c.h.b16 %v5210
    %v5477 = vunpack.c.l.b16 %v5211
    %v5478 = vunpack.c.h.b16 %v5211
    %v5479 = vunpack.c.l.b16 %v5212
    %v5480 = vunpack.c.h.b16 %v5212
    %v5481 = vunpack.c.l.b16 %v5213
    %v5482 = vunpack.c.h.b16 %v5213
    %v5483 = vunpack.c.l.b16 %v5214
    %v5484 = vunpack.c.h.b16 %v5214
    %v5485 = vunpack.c.l.b16 %v5215
    %v5486 = vunpack.c.h.b16 %v5215
    %v5487 = vunpack.c.l.b16 %v5216
    %v5488 = vunpack.c.h.b16 %v5216
    %v5489 = vunpack.c.l.b16 %v5217
    %v5490 = vunpack.c.h.b16 %v5217
    %v5491 = vunpack.c.l.b16 %v5218
    %v5492 = vunpack.c.h.b16 %v5218
    %v5493 = vunpack.c.l.b16 %v5219
    %v5494 = vunpack.c.h.b16 %v5219
    %v5495 = vunpack.c.l.b16 %v5220
    %v5496 = vunpack.c.h.b16 %v5220
    %v5497 = vunpack.c.l.b16 %v5221
    %v5498 = vunpack.c.h.b16 %v5221
    %v5499 = vunpack.c.l.b16 %v5222
    %v5500 = vunpack.c.h.b16 %v5222
    %v5501 = vunpack.c.l.b16 %v5223
    %v5502 = vunpack.c.h.b16 %v5223
    %v5503 = vunpack.c.l.b16 %v5224
    %v5504 = vunpack.c.h.b16 %v5224
    %v5505 = vunpack.c.l.b16 %v5225
    %v5506 = vunpack.c.h.b16 %v5225
    %v5507 = vunpack.c.l.b16 %v5226
    %v5508 = vunpack.c.h.b16 %v5226
    %v5509 = vunpack.c.l.b16 %v5227
    %v5510 = vunpack.c.h.b16 %v5227
    %v5511 = vunpack.c.l.b16 %v5228
    %v5512 = vunpack.c.h.b16 %v5228
    %v5513 = vunpack.c.l.b16 %v5229
    %v5514 = vunpack.c.h.b16 %v5229
    %v5515 = vunpack.c.l.b16 %v5230
    %v5516 = vunpack.c.h.b16 %v5230
    %v5517 = vunpack.c.l.b16 %v5231
    %v5518 = vunpack.c.h.b16 %v5231
    %v5519 = vunpack.c.l.b16 %v5232
    %v5520 = vunpack.c.h.b16 %v5232
    %v5521 = vpack.c.b16 %v5331, %v5329
    %v5522 = vpack.c.b16 %v5332, %v5330
    %v5523 = vpack.c.b16 %v5335, %v5333
    %v5524 = vpack.c.b16 %v5336, %v5334
    %v5525 = vpack.c.b16 %v5339, %v5337
    %v5526 = vpack.c.b16 %v5340, %v5338
    %v5527 = vpack.c.b16 %v5343, %v5341
    %v5528 = vpack.c.b16 %v5344, %v5342
    %v5529 = vpack.c.b16 %v5347, %v5345
    %v5530 = vpack.c.b16 %v5348, %v5346
    %v5531 = vpack.c.b16 %v5351, %v5349
    %v5532 = vpack.c.b16 %v5352, %v5350
    %v5533 = vpack.c.b16 %v5355, %v5353
    %v5534 = vpack.c.b16 %v5356, %v5354
    %v5535 = vpack.c.b16 %v5359, %v5357
    %v5536 = vpack.c.b16 %v5360, %v5358
    %v5537 = vpack.c.b16 %v5363, %v5361
    %v5538 = vpack.c.b16 %v5364, %v5362
    %v5539 = vpack.c.b16 %v5367, %v5365
    %v5540 = vpack.c.b16 %v5368, %v5366
    %v5541 = vpack.c.b16 %v5371, %v5369
    %v5542 = vpack.c.b16 %v5372, %v5370
    %v5543 = vpack.c.b16 %v5375, %v5373
    %v5544 = vpack.c.b16 %v5376, %v5374
    %v5545 = vpack.c.b16 %v5379, %v5377
    %v5546 = vpack.c.b16 %v5380, %v5378
    %v5547 = vpack.c.b16 %v5383, %v5381
    %v5548 = vpack.c.b16 %v5384, %v5382
    %v5549 = vpack.c.b16 %v5387, %v5385
    %v5550 = vpack.c.b16 %v5388, %v5386
    %v5551 = vpack.c.b16 %v5391, %v5389
    %v5552 = vpack.c.b16 %v5392, %v5390
    %v5553 = vpack.c.b16 %v5395, %v5393
    %v5554 = vpack.c.b16 %v5396, %v5394
    %v5555 = vpack.c.b16 %v5399, %v5397
    %v5556 = vpack.c.b16 %v5400, %v5398
    %v5557 = vpack.c.b16 %v5403, %v5401
    %v5558 = vpack.c.b16 %v5404, %v5402
    %v5559 = vpack.c.b16 %v5407, %v5405
    %v5560 = vpack.c.b16 %v5408, %v5406
    %v5561 = vpack.c.b16 %v5411, %v5409
    %v5562 = vpack.c.b16 %v5412, %v5410
    %v5563 = vpack.c.b16 %v5415, %v5413
    %v5564 = vpack.c.b16 %v5416, %v5414
    %v5565 = vpack.c.b16 %v5419, %v5417
    %v5566 = vpack.c.b16 %v5420, %v5418
    %v5567 = vpack.c.b16 %v5423, %v5421
    %v5568 = vpack.c.b16 %v5424, %v5422
    %v5569 = vpack.c.b16 %v5427, %v5425
    %v5570 = vpack.c.b16 %v5428, %v5426
    %v5571 = vpack.c.b16 %v5431, %v5429
    %v5572 = vpack.c.b16 %v5432, %v5430
    %v5573 = vpack.c.b16 %v5435, %v5433
    %v5574 = vpack.c.b16 %v5436, %v5434
    %v5575 = vpack.c.b16 %v5439, %v5437
    %v5576 = vpack.c.b16 %v5440, %v5438
    %v5577 = vpack.c.b16 %v5443, %v5441
    %v5578 = vpack.c.b16 %v5444, %v5442
    %v5579 = vpack.c.b16 %v5447, %v5445
    %v5580 = vpack.c.b16 %v5448, %v5446
    %v5581 = vpack.c.b16 %v5451, %v5449
    %v5582 = vpack.c.b16 %v5452, %v5450
    %v5583 = vpack.c.b16 %v5455, %v5453
    %v5584 = vpack.c.b16 %v5456, %v5454
    %v5585 = vpack.c.b16 %v5459, %v5457
    %v5586 = vpack.c.b16 %v5460, %v5458
    %v5587 = vpack.c.b16 %v5463, %v5461
    %v5588 = vpack.c.b16 %v5464, %v5462
    %v5589 = vpack.c.b16 %v5467, %v5465
    %v5590 = vpack.c.b16 %v5468, %v5466
    %v5591 = vpack.c.b16 %v5471, %v5469
    %v5592 = vpack.c.b16 %v5472, %v5470
    %v5593 = vpack.c.b16 %v5475, %v5473
    %v5594 = vpack.c.b16 %v5476, %v5474
    %v5595 = vpack.c.b16 %v5479, %v5477
    %v5596 = vpack.c.b16 %v5480, %v5478
    %v5597 = vpack.c.b16 %v5483, %v5481
    %v5598 = vpack.c.b16 %v5484, %v5482
    %v5599 = vpack.c.b16 %v5487, %v5485
    %v5600 = vpack.c.b16 %v5488, %v5486
    %v5601 = vpack.c.b16 %v5491, %v5489
    %v5602 = vpack.c.b16 %v5492, %v5490
    %v5603 = vpack.c.b16 %v5495, %v5493
    %v5604 = vpack.c.b16 %v5496, %v5494
    %v5605 = vpack.c.b16 %v5499, %v5497
    %v5606 = vpack.c.b16 %v5500, %v5498
    %v5607 = vpack.c.b16 %v5503, %v5501
    %v5608 = vpack.c.b16 %v5504, %v5502
    %v5609 = vpack.c.b16 %v5507, %v5505
    %v5610 = vpack.c.b16 %v5508, %v5506
    %v5611 = vpack.c.b16 %v5511, %v5509
    %v5612 = vpack.c.b16 %v5512, %v5510
    %v5613 = vpack.c.b16 %v5515, %v5513
    %v5614 = vpack.c.b16 %v5516, %v5514
    %v5615 = vpack.c.b16 %v5519, %v5517
    %v5616 = vpack.c.b16 %v5520, %v5518
    %5713 = vmatpush.bf16.msra.mxu0 %v5535
    %5714 = vmatpush.bf16.msra.mxu0 %v5533
    %5715 = vmatpush.bf16.msra.mxu0 %v5531
    %5716 = vmatpush.bf16.msra.mxu0 %v5529
    %5717 = vmatpush.bf16.msra.mxu0 %v5527
    %5718 = vmatpush.bf16.msra.mxu0 %v5525
    %5719 = vmatpush.bf16.msra.mxu0 %v5523
    %5720 = vmatpush.bf16.msra.mxu0 %v5521
    %5721 = vmatmul.bf16.gmra.mxu0 %v5131
    %v5722 = vpop.f32.mrf.mxu0
    %v5723 = vadd.f32 0.0, %v5722
    %v5724 = vpop.f32.mrf.mxu0
    %v5725 = vadd.f32 0.0, %v5724
    %5726 = vdwg.mxu0
    %5727 = vmatpush.bf16.msra.mxu0 %v5551
    %5728 = vmatpush.bf16.msra.mxu0 %v5549
    %5729 = vmatpush.bf16.msra.mxu0 %v5547
    %5730 = vmatpush.bf16.msra.mxu0 %v5545
    %5731 = vmatpush.bf16.msra.mxu0 %v5543
    %5732 = vmatpush.bf16.msra.mxu0 %v5541
    %5733 = vmatpush.bf16.msra.mxu0 %v5539
    %5734 = vmatpush.bf16.msra.mxu0 %v5537
    %5735 = vmatmul.bf16.gmra.mxu0 %v5132
    %v5736 = vpop.f32.mrf.mxu0
    %v5737 = vadd.f32 %v5723, %v5736
    %v5738 = vpop.f32.mrf.mxu0
    %v5739 = vadd.f32 %v5725, %v5738
    %5740 = vdwg.mxu0
    %5741 = vmatpush.bf16.msra.mxu0 %v5567
    %5742 = vmatpush.bf16.msra.mxu0 %v5565
    %5743 = vmatpush.bf16.msra.mxu0 %v5563
    %5744 = vmatpush.bf16.msra.mxu0 %v5561
    %5745 = vmatpush.bf16.msra.mxu0 %v5559
    %5746 = vmatpush.bf16.msra.mxu0 %v5557
    %5747 = vmatpush.bf16.msra.mxu0 %v5555
    %5748 = vmatpush.bf16.msra.mxu0 %v5553
    %5749 = vmatmul.bf16.gmra.mxu0 %v5133
    %v5750 = vpop.f32.mrf.mxu0
    %v5751 = vadd.f32 %v5737, %v5750
    %v5752 = vpop.f32.mrf.mxu0
    %v5753 = vadd.f32 %v5739, %v5752
    %5754 = vdwg.mxu0
    %5755 = vmatpush.bf16.msra.mxu0 %v5583
    %5756 = vmatpush.bf16.msra.mxu0 %v5581
    %5757 = vmatpush.bf16.msra.mxu0 %v5579
    %5758 = vmatpush.bf16.msra.mxu0 %v5577
    %5759 = vmatpush.bf16.msra.mxu0 %v5575
    %5760 = vmatpush.bf16.msra.mxu0 %v5573
    %5761 = vmatpush.bf16.msra.mxu0 %v5571
    %5762 = vmatpush.bf16.msra.mxu0 %v5569
    %5763 = vmatmul.bf16.gmra.mxu0 %v5134
    %v5764 = vpop.f32.mrf.mxu0
    %v5765 = vadd.f32 %v5751, %v5764
    %v5766 = vpop.f32.mrf.mxu0
    %v5767 = vadd.f32 %v5753, %v5766
    %5768 = vdwg.mxu0
    %5769 = vmatpush.bf16.msra.mxu0 %v5599
    %5770 = vmatpush.bf16.msra.mxu0 %v5597
    %5771 = vmatpush.bf16.msra.mxu0 %v5595
    %5772 = vmatpush.bf16.msra.mxu0 %v5593
    %5773 = vmatpush.bf16.msra.mxu0 %v5591
    %5774 = vmatpush.bf16.msra.mxu0 %v5589
    %5775 = vmatpush.bf16.msra.mxu0 %v5587
    %5776 = vmatpush.bf16.msra.mxu0 %v5585
    %5777 = vmatmul.bf16.gmra.mxu0 %v5135
    %v5778 = vpop.f32.mrf.mxu0
    %v5779 = vadd.f32 %v5765, %v5778
    %v5780 = vpop.f32.mrf.mxu0
    %v5781 = vadd.f32 %v5767, %v5780
    %5782 = vdwg.mxu0
    %5783 = vmatpush.bf16.msra.mxu0 %v5615
    %5784 = vmatpush.bf16.msra.mxu0 %v5613
    %5785 = vmatpush.bf16.msra.mxu0 %v5611
    %5786 = vmatpush.bf16.msra.mxu0 %v5609
    %5787 = vmatpush.bf16.msra.mxu0 %v5607
    %5788 = vmatpush.bf16.msra.mxu0 %v5605
    %5789 = vmatpush.bf16.msra.mxu0 %v5603
    %5790 = vmatpush.bf16.msra.mxu0 %v5601
    %5791 = vmatmul.bf16.gmra.mxu0 %v5136
    %v5792 = vpop.f32.mrf.mxu0
    %v5793 = vadd.f32 %v5779, %v5792
    %v5794 = vpop.f32.mrf.mxu0
    %v5795 = vadd.f32 %v5781, %v5794
    %5796 = vdwg.mxu0
    %5797 = vmatpush.bf16.msra.mxu0 %v5536
    %5798 = vmatpush.bf16.msra.mxu0 %v5534
    %5799 = vmatpush.bf16.msra.mxu0 %v5532
    %5800 = vmatpush.bf16.msra.mxu0 %v5530
    %5801 = vmatpush.bf16.msra.mxu0 %v5528
    %5802 = vmatpush.bf16.msra.mxu0 %v5526
    %5803 = vmatpush.bf16.msra.mxu0 %v5524
    %5804 = vmatpush.bf16.msra.mxu0 %v5522
    %5805 = vmatmul.bf16.gmra.mxu0 %v5131
    %v5806 = vpop.f32.mrf.mxu0
    %v5807 = vadd.f32 0.0, %v5806
    %v5808 = vpop.f32.mrf.mxu0
    %v5809 = vadd.f32 0.0, %v5808
    %5810 = vdwg.mxu0
    %5811 = vmatpush.bf16.msra.mxu0 %v5552
    %5812 = vmatpush.bf16.msra.mxu0 %v5550
    %5813 = vmatpush.bf16.msra.mxu0 %v5548
    %5814 = vmatpush.bf16.msra.mxu0 %v5546
    %5815 = vmatpush.bf16.msra.mxu0 %v5544
    %5816 = vmatpush.bf16.msra.mxu0 %v5542
    %5817 = vmatpush.bf16.msra.mxu0 %v5540
    %5818 = vmatpush.bf16.msra.mxu0 %v5538
    %5819 = vmatmul.bf16.gmra.mxu0 %v5132
    %v5820 = vpop.f32.mrf.mxu0
    %v5821 = vadd.f32 %v5807, %v5820
    %v5822 = vpop.f32.mrf.mxu0
    %v5823 = vadd.f32 %v5809, %v5822
    %5824 = vdwg.mxu0
    %5825 = vmatpush.bf16.msra.mxu0 %v5568
    %5826 = vmatpush.bf16.msra.mxu0 %v5566
    %5827 = vmatpush.bf16.msra.mxu0 %v5564
    %5828 = vmatpush.bf16.msra.mxu0 %v5562
    %5829 = vmatpush.bf16.msra.mxu0 %v5560
    %5830 = vmatpush.bf16.msra.mxu0 %v5558
    %5831 = vmatpush.bf16.msra.mxu0 %v5556
    %5832 = vmatpush.bf16.msra.mxu0 %v5554
    %5833 = vmatmul.bf16.gmra.mxu0 %v5133
    %v5834 = vpop.f32.mrf.mxu0
    %v5835 = vadd.f32 %v5821, %v5834
    %v5836 = vpop.f32.mrf.mxu0
    %v5837 = vadd.f32 %v5823, %v5836
    %5838 = vdwg.mxu0
    %5839 = vmatpush.bf16.msra.mxu0 %v5584
    %5840 = vmatpush.bf16.msra.mxu0 %v5582
    %5841 = vmatpush.bf16.msra.mxu0 %v5580
    %5842 = vmatpush.bf16.msra.mxu0 %v5578
    %5843 = vmatpush.bf16.msra.mxu0 %v5576
    %5844 = vmatpush.bf16.msra.mxu0 %v5574
    %5845 = vmatpush.bf16.msra.mxu0 %v5572
    %5846 = vmatpush.bf16.msra.mxu0 %v5570
    %5847 = vmatmul.bf16.gmra.mxu0 %v5134
    %v5848 = vpop.f32.mrf.mxu0
    %v5849 = vadd.f32 %v5835, %v5848
    %v5850 = vpop.f32.mrf.mxu0
    %v5851 = vadd.f32 %v5837, %v5850
    %5852 = vdwg.mxu0
    %5853 = vmatpush.bf16.msra.mxu0 %v5600
    %5854 = vmatpush.bf16.msra.mxu0 %v5598
    %5855 = vmatpush.bf16.msra.mxu0 %v5596
    %5856 = vmatpush.bf16.msra.mxu0 %v5594
    %5857 = vmatpush.bf16.msra.mxu0 %v5592
    %5858 = vmatpush.bf16.msra.mxu0 %v5590
    %5859 = vmatpush.bf16.msra.mxu0 %v5588
    %5860 = vmatpush.bf16.msra.mxu0 %v5586
    %5861 = vmatmul.bf16.gmra.mxu0 %v5135
    %v5862 = vpop.f32.mrf.mxu0
    %v5863 = vadd.f32 %v5849, %v5862
    %v5864 = vpop.f32.mrf.mxu0
    %v5865 = vadd.f32 %v5851, %v5864
    %5866 = vdwg.mxu0
    %5867 = vmatpush.bf16.msra.mxu0 %v5616
    %5868 = vmatpush.bf16.msra.mxu0 %v5614
    %5869 = vmatpush.bf16.msra.mxu0 %v5612
    %5870 = vmatpush.bf16.msra.mxu0 %v5610
    %5871 = vmatpush.bf16.msra.mxu0 %v5608
    %5872 = vmatpush.bf16.msra.mxu0 %v5606
    %5873 = vmatpush.bf16.msra.mxu0 %v5604
    %5874 = vmatpush.bf16.msra.mxu0 %v5602
    %5875 = vmatmul.bf16.gmra.mxu0 %v5136
    %v5876 = vpop.f32.mrf.mxu0
    %v5877 = vadd.f32 %v5863, %v5876
    %v5878 = vpop.f32.mrf.mxu0
    %v5879 = vadd.f32 %v5865, %v5878
    %5880 = vdwg.mxu0
    %v5881 = vld [vmem:[%s51] sm:$0x3]
    %v5882 = vld [vmem:[%s29] sm:$0xf]
    %v5883 = vld [vmem:[%s29 + $0x4] sm:$0xf]
    %v5884 = vld [vmem:[%s29 + $0x8] sm:$0xf]
    %v5885 = vld [vmem:[%s29 + $0xc] sm:$0xf]
    %v5886 = vpack.c.bf16 %v5877, %v5793
    %v5887 = vpack.c.bf16 %v5879, %v5795
    %v5888 = vld [vmem:[%s25] sm:$0xff]
    %v5889 = vld [vmem:[%s25 + $0x8] sm:$0xff]
    %v5890 = vld [vmem:[%s21] sm:$0xff]
    %v5891 = vld [vmem:[%s21 + $0x8] sm:$0xff]
    %5892 = vrot.lane.b32.xlu0 %v5793, 11
    %v5893 = vpop.permute.xlu0 %5892
    %5894 = vrot.lane.b32.xlu0 %v5795, 11
    %v5895 = vpop.permute.xlu0 %5894
    %5896 = vrot.lane.b32.xlu0 %v5877, 11
    %v5897 = vpop.permute.xlu0 %5896
    %5898 = vrot.lane.b32.xlu0 %v5879, 11
    %v5899 = vpop.permute.xlu0 %5898
    %vm5900 = vcmp.lt.s32.totalorder %v166, 11
    %v5901 = vsel %vm5900, %v5893, %v5897
    %v5902 = vsel %vm5900, %v5895, %v5899
    %v5903 = vsel %vm5900, %v5897, %v5893
    %v5904 = vsel %vm5900, %v5899, %v5895
    %v5905 = vpack.c.bf16 %v5901, %v5903
    %v5906 = vpack.c.bf16 %v5902, %v5904
    %5907 = vst [vmem:[#allocation2] sm:$0xff] %v5905
    %5908 = vst [vmem:[#allocation2 + $0x18] sm:$0xff] %v5906
    %5909 = vrot.lane.b32.xlu0 %v5793, 10
    %v5910 = vpop.permute.xlu0 %5909
    %5911 = vrot.lane.b32.xlu0 %v5795, 10
    %v5912 = vpop.permute.xlu0 %5911
    %5913 = vrot.lane.b32.xlu0 %v5877, 10
    %v5914 = vpop.permute.xlu0 %5913
    %5915 = vrot.lane.b32.xlu0 %v5879, 10
    %v5916 = vpop.permute.xlu0 %5915
    %vm5917 = vcmp.lt.s32.totalorder %v166, 10
    %v5918 = vsel %vm5917, %v5910, %v5914
    %v5919 = vsel %vm5917, %v5912, %v5916
    %v5920 = vsel %vm5917, %v5914, %v5910
    %v5921 = vsel %vm5917, %v5916, %v5912
    %v5922 = vpack.c.bf16 %v5918, %v5920
    %v5923 = vpack.c.bf16 %v5919, %v5921
    %5924 = vst [vmem:[#allocation2 + $0x30] sm:$0xff] %v5922
    %5925 = vst [vmem:[#allocation2 + $0x48] sm:$0xff] %v5923
    %5926 = vrot.lane.b32.xlu0 %v5793, 9
    %v5927 = vpop.permute.xlu0 %5926
    %5928 = vrot.lane.b32.xlu0 %v5795, 9
    %v5929 = vpop.permute.xlu0 %5928
    %5930 = vrot.lane.b32.xlu0 %v5877, 9
    %v5931 = vpop.permute.xlu0 %5930
    %5932 = vrot.lane.b32.xlu0 %v5879, 9
    %v5933 = vpop.permute.xlu0 %5932
    %vm5934 = vcmp.lt.s32.totalorder %v166, 9
    %v5935 = vsel %vm5934, %v5927, %v5931
    %v5936 = vsel %vm5934, %v5929, %v5933
    %v5937 = vsel %vm5934, %v5931, %v5927
    %v5938 = vsel %vm5934, %v5933, %v5929
    %v5939 = vpack.c.bf16 %v5935, %v5937
    %v5940 = vpack.c.bf16 %v5936, %v5938
    %5941 = vst [vmem:[#allocation2 + $0x60] sm:$0xff] %v5939
    %5942 = vst [vmem:[#allocation2 + $0x78] sm:$0xff] %v5940
    %5943 = vrot.lane.b32.xlu0 %v5793, 1
    %v5944 = vpop.permute.xlu0 %5943
    %5945 = vrot.lane.b32.xlu0 %v5795, 1
    %v5946 = vpop.permute.xlu0 %5945
    %5947 = vrot.lane.b32.xlu0 %v5877, 1
    %v5948 = vpop.permute.xlu0 %5947
    %5949 = vrot.lane.b32.xlu0 %v5879, 1
    %v5950 = vpop.permute.xlu0 %5949
    %v5951 = vsel %vm314, %v5944, %v5948
    %v5952 = vsel %vm314, %v5946, %v5950
    %v5953 = vsel %vm314, %v5948, %v5944
    %v5954 = vsel %vm314, %v5950, %v5946
    %v5955 = vpack.c.bf16 %v5951, %v5953
    %v5956 = vpack.c.bf16 %v5952, %v5954
    %5957 = vst [vmem:[#allocation2 + $0x90] sm:$0xff] %v5955
    %5958 = vst [vmem:[#allocation2 + $0xa8] sm:$0xff] %v5956
    %5959 = vst [vmem:[#allocation2 + $0xc0] sm:$0xff] %v5886
    %5960 = vst [vmem:[#allocation2 + $0xd8] sm:$0xff] %v5887
    %5961 = vrot.lane.b32.xlu0 %v5793, 127
    %v5962 = vpop.permute.xlu0 %5961
    %5963 = vrot.lane.b32.xlu0 %v5795, 127
    %v5964 = vpop.permute.xlu0 %5963
    %5965 = vrot.lane.b32.xlu0 %v5877, 127
    %v5966 = vpop.permute.xlu0 %5965
    %5967 = vrot.lane.b32.xlu0 %v5879, 127
    %v5968 = vpop.permute.xlu0 %5967
    %v5969 = vsel %vm375, %v5962, %v5966
    %v5970 = vsel %vm375, %v5964, %v5968
    %v5971 = vsel %vm375, %v5966, %v5962
    %v5972 = vsel %vm375, %v5968, %v5964
    %v5973 = vpack.c.bf16 %v5971, %v5969
    %v5974 = vpack.c.bf16 %v5972, %v5970
    %5975 = vst [vmem:[#allocation2 + $0xf0] sm:$0xff] %v5973
    %5976 = vst [vmem:[#allocation2 + $0x108] sm:$0xff] %v5974
    %5977 = vrot.lane.b32.xlu0 %v5793, 119
    %v5978 = vpop.permute.xlu0 %5977
    %5979 = vrot.lane.b32.xlu0 %v5795, 119
    %v5980 = vpop.permute.xlu0 %5979
    %5981 = vrot.lane.b32.xlu0 %v5877, 119
    %v5982 = vpop.permute.xlu0 %5981
    %5983 = vrot.lane.b32.xlu0 %v5879, 119
    %v5984 = vpop.permute.xlu0 %5983
    %vm5985 = vcmp.lt.s32.totalorder %v166, 119
    %v5986 = vsel %vm5985, %v5978, %v5982
    %v5987 = vsel %vm5985, %v5980, %v5984
    %v5988 = vsel %vm5985, %v5982, %v5978
    %v5989 = vsel %vm5985, %v5984, %v5980
    %v5990 = vpack.c.bf16 %v5988, %v5986
    %v5991 = vpack.c.bf16 %v5989, %v5987
    %5992 = vst [vmem:[#allocation2 + $0x120] sm:$0xff] %v5990
    %5993 = vst [vmem:[#allocation2 + $0x138] sm:$0xff] %v5991
    %5994 = vrot.lane.b32.xlu0 %v5793, 118
    %v5995 = vpop.permute.xlu0 %5994
    %5996 = vrot.lane.b32.xlu0 %v5795, 118
    %v5997 = vpop.permute.xlu0 %5996
    %5998 = vrot.lane.b32.xlu0 %v5877, 118
    %v5999 = vpop.permute.xlu0 %5998
    %6000 = vrot.lane.b32.xlu0 %v5879, 118
    %v6001 = vpop.permute.xlu0 %6000
    %vm6002 = vcmp.lt.s32.totalorder %v166, 118
    %v6003 = vsel %vm6002, %v5995, %v5999
    %v6004 = vsel %vm6002, %v5997, %v6001
    %v6005 = vsel %vm6002, %v5999, %v5995
    %v6006 = vsel %vm6002, %v6001, %v5997
    %v6007 = vpack.c.bf16 %v6005, %v6003
    %v6008 = vpack.c.bf16 %v6006, %v6004
    %6009 = vst [vmem:[#allocation2 + $0x150] sm:$0xff] %v6007
    %6010 = vst [vmem:[#allocation2 + $0x168] sm:$0xff] %v6008
    %6011 = vrot.lane.b32.xlu0 %v5793, 117
    %v6012 = vpop.permute.xlu0 %6011
    %6013 = vrot.lane.b32.xlu0 %v5795, 117
    %v6014 = vpop.permute.xlu0 %6013
    %6015 = vrot.lane.b32.xlu0 %v5877, 117
    %v6016 = vpop.permute.xlu0 %6015
    %6017 = vrot.lane.b32.xlu0 %v5879, 117
    %v6018 = vpop.permute.xlu0 %6017
    %vm6019 = vcmp.lt.s32.totalorder %v166, 117
    %v6020 = vsel %vm6019, %v6012, %v6016
    %v6021 = vsel %vm6019, %v6014, %v6018
    %v6022 = vsel %vm6019, %v6016, %v6012
    %v6023 = vsel %vm6019, %v6018, %v6014
    %v6024 = vpack.c.bf16 %v6022, %v6020
    %v6025 = vpack.c.bf16 %v6023, %v6021
    %6026 = vst [vmem:[#allocation2 + $0x180] sm:$0xff] %v6024
    %6027 = vst [vmem:[#allocation2 + $0x198] sm:$0xff] %v6025
    %v6028 = vld [vmem:[#allocation2] sm:$0xff]
    %v6029 = vld [vmem:[#allocation2 + $0x18] sm:$0xff]
    %v6030 = vld [vmem:[#allocation2 + $0x30] sm:$0xff]
    %v6031 = vld [vmem:[#allocation2 + $0x48] sm:$0xff]
    %v6032 = vld [vmem:[#allocation2 + $0x60] sm:$0xff]
    %v6033 = vld [vmem:[#allocation2 + $0x78] sm:$0xff]
    %v6034 = vld [vmem:[#allocation2 + $0x90] sm:$0xff]
    %v6035 = vld [vmem:[#allocation2 + $0xa8] sm:$0xff]
    %v6036 = vld [vmem:[#allocation2 + $0xc0] sm:$0xff]
    %v6037 = vld [vmem:[#allocation2 + $0xd8] sm:$0xff]
    %v6038 = vld [vmem:[#allocation2 + $0xf0] sm:$0xff]
    %v6039 = vld [vmem:[#allocation2 + $0x108] sm:$0xff]
    %v6040 = vld [vmem:[#allocation2 + $0x120] sm:$0xff]
    %v6041 = vld [vmem:[#allocation2 + $0x138] sm:$0xff]
    %v6042 = vld [vmem:[#allocation2 + $0x150] sm:$0xff]
    %v6043 = vld [vmem:[#allocation2 + $0x168] sm:$0xff]
    %v6044 = vld [vmem:[#allocation2 + $0x180] sm:$0xff]
    %v6045 = vld [vmem:[#allocation2 + $0x198] sm:$0xff]
    %6047 = vset.pattern.permute.xlu0 0
    %6048 = vperm.xlu0 %6047, %v5890
    %v6049 = vpop.permute.xlu0 %6048
    %6052 = vset.pattern.permute.xlu0 0
    %6053 = vperm.xlu0 %6052, %v5891
    %v6054 = vpop.permute.xlu0 %6053
    %v6058 = vunpack.c.l.b16 %v5888
    %v6059 = vunpack.c.h.b16 %v5888
    %v6060 = vunpack.c.l.b16 %v5889
    %v6061 = vunpack.c.h.b16 %v5889
    %v6062 = vpack.c.b16 %v6060, %v6058
    %v6063 = vpack.c.b16 %v6061, %v6059
    %v6083 = vunpack.c.l.b16 %v6028
    %v6084 = vunpack.c.h.b16 %v6028
    %v6085 = vunpack.c.l.b16 %v6029
    %v6086 = vunpack.c.h.b16 %v6029
    %v6087 = vunpack.c.l.b16 %v6030
    %v6088 = vunpack.c.h.b16 %v6030
    %v6089 = vunpack.c.l.b16 %v6031
    %v6090 = vunpack.c.h.b16 %v6031
    %v6091 = vunpack.c.l.b16 %v6032
    %v6092 = vunpack.c.h.b16 %v6032
    %v6093 = vunpack.c.l.b16 %v6033
    %v6094 = vunpack.c.h.b16 %v6033
    %v6095 = vunpack.c.l.b16 %v6034
    %v6096 = vunpack.c.h.b16 %v6034
    %v6097 = vunpack.c.l.b16 %v6035
    %v6098 = vunpack.c.h.b16 %v6035
    %v6099 = vunpack.c.l.b16 %v6036
    %v6100 = vunpack.c.h.b16 %v6036
    %v6101 = vunpack.c.l.b16 %v6037
    %v6102 = vunpack.c.h.b16 %v6037
    %v6103 = vunpack.c.l.b16 %v6038
    %v6104 = vunpack.c.h.b16 %v6038
    %v6105 = vunpack.c.l.b16 %v6039
    %v6106 = vunpack.c.h.b16 %v6039
    %v6107 = vunpack.c.l.b16 %v6040
    %v6108 = vunpack.c.h.b16 %v6040
    %v6109 = vunpack.c.l.b16 %v6041
    %v6110 = vunpack.c.h.b16 %v6041
    %v6111 = vunpack.c.l.b16 %v6042
    %v6112 = vunpack.c.h.b16 %v6042
    %v6113 = vunpack.c.l.b16 %v6043
    %v6114 = vunpack.c.h.b16 %v6043
    %v6115 = vunpack.c.l.b16 %v6044
    %v6116 = vunpack.c.h.b16 %v6044
    %v6117 = vunpack.c.l.b16 %v6045
    %v6118 = vunpack.c.h.b16 %v6045
    %v6119 = vpack.c.b16 %v6085, %v6083
    %v6120 = vpack.c.b16 %v6086, %v6084
    %v6121 = vpack.c.b16 %v6089, %v6087
    %v6122 = vpack.c.b16 %v6090, %v6088
    %v6123 = vpack.c.b16 %v6093, %v6091
    %v6124 = vpack.c.b16 %v6094, %v6092
    %v6125 = vpack.c.b16 %v6097, %v6095
    %v6126 = vpack.c.b16 %v6098, %v6096
    %v6127 = vpack.c.b16 %v6101, %v6099
    %v6128 = vpack.c.b16 %v6102, %v6100
    %v6129 = vpack.c.b16 %v6105, %v6103
    %v6130 = vpack.c.b16 %v6106, %v6104
    %v6131 = vpack.c.b16 %v6109, %v6107
    %v6132 = vpack.c.b16 %v6110, %v6108
    %v6133 = vpack.c.b16 %v6113, %v6111
    %v6134 = vpack.c.b16 %v6114, %v6112
    %v6135 = vpack.c.b16 %v6117, %v6115
    %v6136 = vpack.c.b16 %v6118, %v6116
    %v6156 = vsel %vm890, %v6063, 0
    %6158 = vmatpush.bf16.msra.mxu0 %v6133
    %6159 = vmatpush.bf16.msra.mxu0 %v6131
    %6160 = vmatpush.bf16.msra.mxu0 %v6129
    %6161 = vmatpush.bf16.msra.mxu0 %v6127
    %6162 = vmatpush.bf16.msra.mxu0 %v6125
    %6163 = vmatpush.bf16.msra.mxu0 %v6123
    %6164 = vmatpush.bf16.msra.mxu0 %v6121
    %6165 = vmatpush.bf16.msra.mxu0 %v6119
    %6166 = vmatmul.bf16.gmra.mxu0 %v6062
    %v6167 = vpop.f32.mrf.mxu0
    %v6168 = vadd.f32 %v6049, %v6167
    %v6169 = vpop.f32.mrf.mxu0
    %v6170 = vadd.f32 %v6054, %v6169
    %6171 = vdwg.mxu0
    %6172 = vmatpush.bf16.msra.mxu0 0
    %6173 = vmatpush.bf16.msra.mxu0 0
    %6174 = vmatpush.bf16.msra.mxu0 0
    %6175 = vmatpush.bf16.msra.mxu0 0
    %6176 = vmatpush.bf16.msra.mxu0 0
    %6177 = vmatpush.bf16.msra.mxu0 0
    %6178 = vmatpush.bf16.msra.mxu0 0
    %6179 = vmatpush.bf16.msra.mxu0 %v6135
    %6180 = vmatmul.bf16.gmra.mxu0 %v6156
    %v6181 = vpop.f32.mrf.mxu0
    %v6182 = vadd.f32 %v6168, %v6181
    %v6183 = vpop.f32.mrf.mxu0
    %v6184 = vadd.f32 %v6170, %v6183
    %6185 = vdwg.mxu0
    %6186 = vmatpush.bf16.msra.mxu0 %v6134
    %6187 = vmatpush.bf16.msra.mxu0 %v6132
    %6188 = vmatpush.bf16.msra.mxu0 %v6130
    %6189 = vmatpush.bf16.msra.mxu0 %v6128
    %6190 = vmatpush.bf16.msra.mxu0 %v6126
    %6191 = vmatpush.bf16.msra.mxu0 %v6124
    %6192 = vmatpush.bf16.msra.mxu0 %v6122
    %6193 = vmatpush.bf16.msra.mxu0 %v6120
    %6194 = vmatmul.bf16.gmra.mxu0 %v6062
    %v6195 = vpop.f32.mrf.mxu0
    %v6196 = vadd.f32 %v6049, %v6195
    %v6197 = vpop.f32.mrf.mxu0
    %v6198 = vadd.f32 %v6054, %v6197
    %6199 = vdwg.mxu0
    %6200 = vmatpush.bf16.msra.mxu0 0
    %6201 = vmatpush.bf16.msra.mxu0 0
    %6202 = vmatpush.bf16.msra.mxu0 0
    %6203 = vmatpush.bf16.msra.mxu0 0
    %6204 = vmatpush.bf16.msra.mxu0 0
    %6205 = vmatpush.bf16.msra.mxu0 0
    %6206 = vmatpush.bf16.msra.mxu0 0
    %6207 = vmatpush.bf16.msra.mxu0 %v6136
    %6208 = vmatmul.bf16.gmra.mxu0 %v6156
    %v6209 = vpop.f32.mrf.mxu0
    %v6210 = vadd.f32 %v6196, %v6209
    %v6211 = vpop.f32.mrf.mxu0
    %v6212 = vadd.f32 %v6198, %v6211
    %6213 = vdwg.mxu0
    %vm6214 = vcmp.ge.f32.partialorder %v6182, 0.0
    %vm6215 = vcmp.ge.f32.partialorder %v6210, 0.0
    %vm6216 = vcmp.ge.f32.partialorder %v6184, 0.0
    %vm6217 = vcmp.ge.f32.partialorder %v6212, 0.0
    %v6218 = vmul.f32 %v6182, 0.2
    %v6219 = vmul.f32 %v6210, 0.2
    %v6220 = vmul.f32 %v6184, 0.2
    %v6221 = vmul.f32 %v6212, 0.2
    %v6222 = vsel %vm6214, %v6182, %v6218
    %v6223 = vsel %vm6215, %v6210, %v6219
    %v6224 = vsel %vm6216, %v6184, %v6220
    %v6225 = vsel %vm6217, %v6212, %v6221
    %v6227 = vperm.slane %v5881, 0
    %v6228 = vperm.slane %v5881, 1
    %v6231 = vmul.f32 %v6222, %v6227
    %v6232 = vmul.f32 %v6223, %v6228
    %v6233 = vmul.f32 %v6224, %v6227
    %v6234 = vmul.f32 %v6225, %v6228
    %v6235 = vld [vmem:[%s27] sm:$0xff]
    %v6236 = vld [vmem:[%s27 + $0x8] sm:$0xff]
    %v6237 = vld [vmem:[%s27 + $0x10] sm:$0xff]
    %v6238 = vld [vmem:[%s27 + $0x18] sm:$0xff]
    %v6239 = vld [vmem:[%s23] sm:$0xff]
    %v6240 = vld [vmem:[%s23 + $0x8] sm:$0xff]
    %v6241 = vld [vmem:[%s23 + $0x10] sm:$0xff]
    %v6242 = vld [vmem:[%s23 + $0x18] sm:$0xff]
    %6243 = vrot.lane.b32.xlu0 %v6231, 11
    %v6244 = vpop.permute.xlu0 %6243
    %6245 = vrot.lane.b32.xlu0 %v6233, 11
    %v6246 = vpop.permute.xlu0 %6245
    %6247 = vrot.lane.b32.xlu0 %v6232, 11
    %v6248 = vpop.permute.xlu0 %6247
    %6249 = vrot.lane.b32.xlu0 %v6234, 11
    %v6250 = vpop.permute.xlu0 %6249
    %v6251 = vsel %vm5900, %v6244, %v6248
    %v6252 = vsel %vm5900, %v6246, %v6250
    %v6253 = vsel %vm5900, %v6248, %v6244
    %v6254 = vsel %vm5900, %v6250, %v6246
    %v6255 = vpack.c.bf16 %v6251, %v6253
    %v6256 = vpack.c.bf16 %v6252, %v6254
    %6257 = vst [vmem:[#allocation2] sm:$0xff] %v6255
    %6258 = vst [vmem:[#allocation2 + $0x18] sm:$0xff] %v6256
    %6259 = vrot.lane.b32.xlu0 %v6231, 10
    %v6260 = vpop.permute.xlu0 %6259
    %6261 = vrot.lane.b32.xlu0 %v6233, 10
    %v6262 = vpop.permute.xlu0 %6261
    %6263 = vrot.lane.b32.xlu0 %v6232, 10
    %v6264 = vpop.permute.xlu0 %6263
    %6265 = vrot.lane.b32.xlu0 %v6234, 10
    %v6266 = vpop.permute.xlu0 %6265
    %v6267 = vsel %vm5917, %v6260, %v6264
    %v6268 = vsel %vm5917, %v6262, %v6266
    %v6269 = vsel %vm5917, %v6264, %v6260
    %v6270 = vsel %vm5917, %v6266, %v6262
    %v6271 = vpack.c.bf16 %v6267, %v6269
    %v6272 = vpack.c.bf16 %v6268, %v6270
    %6273 = vst [vmem:[#allocation2 + $0x30] sm:$0xff] %v6271
    %6274 = vst [vmem:[#allocation2 + $0x48] sm:$0xff] %v6272
    %6275 = vrot.lane.b32.xlu0 %v6231, 9
    %v6276 = vpop.permute.xlu0 %6275
    %6277 = vrot.lane.b32.xlu0 %v6233, 9
    %v6278 = vpop.permute.xlu0 %6277
    %6279 = vrot.lane.b32.xlu0 %v6232, 9
    %v6280 = vpop.permute.xlu0 %6279
    %6281 = vrot.lane.b32.xlu0 %v6234, 9
    %v6282 = vpop.permute.xlu0 %6281
    %v6283 = vsel %vm5934, %v6276, %v6280
    %v6284 = vsel %vm5934, %v6278, %v6282
    %v6285 = vsel %vm5934, %v6280, %v6276
    %v6286 = vsel %vm5934, %v6282, %v6278
    %v6287 = vpack.c.bf16 %v6283, %v6285
    %v6288 = vpack.c.bf16 %v6284, %v6286
    %6289 = vst [vmem:[#allocation2 + $0x60] sm:$0xff] %v6287
    %6290 = vst [vmem:[#allocation2 + $0x78] sm:$0xff] %v6288
    %6291 = vrot.lane.b32.xlu0 %v6231, 1
    %v6292 = vpop.permute.xlu0 %6291
    %6293 = vrot.lane.b32.xlu0 %v6233, 1
    %v6294 = vpop.permute.xlu0 %6293
    %6295 = vrot.lane.b32.xlu0 %v6232, 1
    %v6296 = vpop.permute.xlu0 %6295
    %6297 = vrot.lane.b32.xlu0 %v6234, 1
    %v6298 = vpop.permute.xlu0 %6297
    %v6299 = vsel %vm314, %v6292, %v6296
    %v6300 = vsel %vm314, %v6294, %v6298
    %v6301 = vsel %vm314, %v6296, %v6292
    %v6302 = vsel %vm314, %v6298, %v6294
    %v6303 = vpack.c.bf16 %v6299, %v6301
    %v6304 = vpack.c.bf16 %v6300, %v6302
    %6305 = vst [vmem:[#allocation2 + $0x90] sm:$0xff] %v6303
    %6306 = vst [vmem:[#allocation2 + $0xa8] sm:$0xff] %v6304
    %v6307 = vpack.c.bf16 %v6232, %v6231
    %v6308 = vpack.c.bf16 %v6234, %v6233
    %6309 = vst [vmem:[#allocation2 + $0xc0] sm:$0xff] %v6307
    %6310 = vst [vmem:[#allocation2 + $0xd8] sm:$0xff] %v6308
    %6311 = vrot.lane.b32.xlu0 %v6231, 127
    %v6312 = vpop.permute.xlu0 %6311
    %6313 = vrot.lane.b32.xlu0 %v6233, 127
    %v6314 = vpop.permute.xlu0 %6313
    %6315 = vrot.lane.b32.xlu0 %v6232, 127
    %v6316 = vpop.permute.xlu0 %6315
    %6317 = vrot.lane.b32.xlu0 %v6234, 127
    %v6318 = vpop.permute.xlu0 %6317
    %v6319 = vsel %vm375, %v6312, %v6316
    %v6320 = vsel %vm375, %v6314, %v6318
    %v6321 = vsel %vm375, %v6316, %v6312
    %v6322 = vsel %vm375, %v6318, %v6314
    %v6323 = vpack.c.bf16 %v6321, %v6319
    %v6324 = vpack.c.bf16 %v6322, %v6320
    %6325 = vst [vmem:[#allocation2 + $0xf0] sm:$0xff] %v6323
    %6326 = vst [vmem:[#allocation2 + $0x108] sm:$0xff] %v6324
    %6327 = vrot.lane.b32.xlu0 %v6231, 119
    %v6328 = vpop.permute.xlu0 %6327
    %6329 = vrot.lane.b32.xlu0 %v6233, 119
    %v6330 = vpop.permute.xlu0 %6329
    %6331 = vrot.lane.b32.xlu0 %v6232, 119
    %v6332 = vpop.permute.xlu0 %6331
    %6333 = vrot.lane.b32.xlu0 %v6234, 119
    %v6334 = vpop.permute.xlu0 %6333
    %v6335 = vsel %vm5985, %v6328, %v6332
    %v6336 = vsel %vm5985, %v6330, %v6334
    %v6337 = vsel %vm5985, %v6332, %v6328
    %v6338 = vsel %vm5985, %v6334, %v6330
    %v6339 = vpack.c.bf16 %v6337, %v6335
    %v6340 = vpack.c.bf16 %v6338, %v6336
    %6341 = vst [vmem:[#allocation2 + $0x120] sm:$0xff] %v6339
    %6342 = vst [vmem:[#allocation2 + $0x138] sm:$0xff] %v6340
    %6343 = vrot.lane.b32.xlu0 %v6231, 118
    %v6344 = vpop.permute.xlu0 %6343
    %6345 = vrot.lane.b32.xlu0 %v6233, 118
    %v6346 = vpop.permute.xlu0 %6345
    %6347 = vrot.lane.b32.xlu0 %v6232, 118
    %v6348 = vpop.permute.xlu0 %6347
    %6349 = vrot.lane.b32.xlu0 %v6234, 118
    %v6350 = vpop.permute.xlu0 %6349
    %v6351 = vsel %vm6002, %v6344, %v6348
    %v6352 = vsel %vm6002, %v6346, %v6350
    %v6353 = vsel %vm6002, %v6348, %v6344
    %v6354 = vsel %vm6002, %v6350, %v6346
    %v6355 = vpack.c.bf16 %v6353, %v6351
    %v6356 = vpack.c.bf16 %v6354, %v6352
    %6357 = vst [vmem:[#allocation2 + $0x150] sm:$0xff] %v6355
    %6358 = vst [vmem:[#allocation2 + $0x168] sm:$0xff] %v6356
    %6359 = vrot.lane.b32.xlu0 %v6231, 117
    %v6360 = vpop.permute.xlu0 %6359
    %6361 = vrot.lane.b32.xlu0 %v6233, 117
    %v6362 = vpop.permute.xlu0 %6361
    %6363 = vrot.lane.b32.xlu0 %v6232, 117
    %v6364 = vpop.permute.xlu0 %6363
    %6365 = vrot.lane.b32.xlu0 %v6234, 117
    %v6366 = vpop.permute.xlu0 %6365
    %v6367 = vsel %vm6019, %v6360, %v6364
    %v6368 = vsel %vm6019, %v6362, %v6366
    %v6369 = vsel %vm6019, %v6364, %v6360
    %v6370 = vsel %vm6019, %v6366, %v6362
    %v6371 = vpack.c.bf16 %v6369, %v6367
    %v6372 = vpack.c.bf16 %v6370, %v6368
    %6373 = vst [vmem:[#allocation2 + $0x180] sm:$0xff] %v6371
    %6374 = vst [vmem:[#allocation2 + $0x198] sm:$0xff] %v6372
    %v6375 = vld [vmem:[#allocation2] sm:$0xff]
    %v6376 = vld [vmem:[#allocation2 + $0x18] sm:$0xff]
    %v6377 = vld [vmem:[#allocation2 + $0x30] sm:$0xff]
    %v6378 = vld [vmem:[#allocation2 + $0x48] sm:$0xff]
    %v6379 = vld [vmem:[#allocation2 + $0x60] sm:$0xff]
    %v6380 = vld [vmem:[#allocation2 + $0x78] sm:$0xff]
    %v6381 = vld [vmem:[#allocation2 + $0x90] sm:$0xff]
    %v6382 = vld [vmem:[#allocation2 + $0xa8] sm:$0xff]
    %v6383 = vld [vmem:[#allocation2 + $0xc0] sm:$0xff]
    %v6384 = vld [vmem:[#allocation2 + $0xd8] sm:$0xff]
    %v6385 = vld [vmem:[#allocation2 + $0xf0] sm:$0xff]
    %v6386 = vld [vmem:[#allocation2 + $0x108] sm:$0xff]
    %v6387 = vld [vmem:[#allocation2 + $0x120] sm:$0xff]
    %v6388 = vld [vmem:[#allocation2 + $0x138] sm:$0xff]
    %v6389 = vld [vmem:[#allocation2 + $0x150] sm:$0xff]
    %v6390 = vld [vmem:[#allocation2 + $0x168] sm:$0xff]
    %v6391 = vld [vmem:[#allocation2 + $0x180] sm:$0xff]
    %v6392 = vld [vmem:[#allocation2 + $0x198] sm:$0xff]
    %6394 = vset.pattern.permute.xlu0 0
    %6395 = vperm.xlu0 %6394, %v6239
    %v6396 = vpop.permute.xlu0 %6395
    %6399 = vset.pattern.permute.xlu0 0
    %6400 = vperm.xlu0 %6399, %v6240
    %v6401 = vpop.permute.xlu0 %6400
    %6404 = vset.pattern.permute.xlu0 0
    %6405 = vperm.xlu0 %6404, %v6241
    %v6406 = vpop.permute.xlu0 %6405
    %6409 = vset.pattern.permute.xlu0 0
    %6410 = vperm.xlu0 %6409, %v6242
    %v6411 = vpop.permute.xlu0 %6410
    %v6417 = vunpack.c.l.b16 %v6235
    %v6418 = vunpack.c.h.b16 %v6235
    %v6419 = vunpack.c.l.b16 %v6236
    %v6420 = vunpack.c.h.b16 %v6236
    %v6421 = vunpack.c.l.b16 %v6237
    %v6422 = vunpack.c.h.b16 %v6237
    %v6423 = vunpack.c.l.b16 %v6238
    %v6424 = vunpack.c.h.b16 %v6238
    %v6425 = vpack.c.b16 %v6419, %v6417
    %v6426 = vpack.c.b16 %v6420, %v6418
    %v6427 = vpack.c.b16 %v6423, %v6421
    %v6428 = vpack.c.b16 %v6424, %v6422
    %v6449 = vunpack.c.l.b16 %v6375
    %v6450 = vunpack.c.h.b16 %v6375
    %v6451 = vunpack.c.l.b16 %v6376
    %v6452 = vunpack.c.h.b16 %v6376
    %v6453 = vunpack.c.l.b16 %v6377
    %v6454 = vunpack.c.h.b16 %v6377
    %v6455 = vunpack.c.l.b16 %v6378
    %v6456 = vunpack.c.h.b16 %v6378
    %v6457 = vunpack.c.l.b16 %v6379
    %v6458 = vunpack.c.h.b16 %v6379
    %v6459 = vunpack.c.l.b16 %v6380
    %v6460 = vunpack.c.h.b16 %v6380
    %v6461 = vunpack.c.l.b16 %v6381
    %v6462 = vunpack.c.h.b16 %v6381
    %v6463 = vunpack.c.l.b16 %v6382
    %v6464 = vunpack.c.h.b16 %v6382
    %v6465 = vunpack.c.l.b16 %v6383
    %v6466 = vunpack.c.h.b16 %v6383
    %v6467 = vunpack.c.l.b16 %v6384
    %v6468 = vunpack.c.h.b16 %v6384
    %v6469 = vunpack.c.l.b16 %v6385
    %v6470 = vunpack.c.h.b16 %v6385
    %v6471 = vunpack.c.l.b16 %v6386
    %v6472 = vunpack.c.h.b16 %v6386
    %v6473 = vunpack.c.l.b16 %v6387
    %v6474 = vunpack.c.h.b16 %v6387
    %v6475 = vunpack.c.l.b16 %v6388
    %v6476 = vunpack.c.h.b16 %v6388
    %v6477 = vunpack.c.l.b16 %v6389
    %v6478 = vunpack.c.h.b16 %v6389
    %v6479 = vunpack.c.l.b16 %v6390
    %v6480 = vunpack.c.h.b16 %v6390
    %v6481 = vunpack.c.l.b16 %v6391
    %v6482 = vunpack.c.h.b16 %v6391
    %v6483 = vunpack.c.l.b16 %v6392
    %v6484 = vunpack.c.h.b16 %v6392
    %v6485 = vpack.c.b16 %v6451, %v6449
    %v6486 = vpack.c.b16 %v6452, %v6450
    %v6487 = vpack.c.b16 %v6455, %v6453
    %v6488 = vpack.c.b16 %v6456, %v6454
    %v6489 = vpack.c.b16 %v6459, %v6457
    %v6490 = vpack.c.b16 %v6460, %v6458
    %v6491 = vpack.c.b16 %v6463, %v6461
    %v6492 = vpack.c.b16 %v6464, %v6462
    %v6493 = vpack.c.b16 %v6467, %v6465
    %v6494 = vpack.c.b16 %v6468, %v6466
    %v6495 = vpack.c.b16 %v6471, %v6469
    %v6496 = vpack.c.b16 %v6472, %v6470
    %v6497 = vpack.c.b16 %v6475, %v6473
    %v6498 = vpack.c.b16 %v6476, %v6474
    %v6499 = vpack.c.b16 %v6479, %v6477
    %v6500 = vpack.c.b16 %v6480, %v6478
    %v6501 = vpack.c.b16 %v6483, %v6481
    %v6502 = vpack.c.b16 %v6484, %v6482
    %v6522 = vsel %vm890, %v6426, 0
    %v6525 = vsel %vm890, %v6428, 0
    %6527 = vmatpush.bf16.msra.mxu0 %v6499
    %6528 = vmatpush.bf16.msra.mxu0 %v6497
    %6529 = vmatpush.bf16.msra.mxu0 %v6495
    %6530 = vmatpush.bf16.msra.mxu0 %v6493
    %6531 = vmatpush.bf16.msra.mxu0 %v6491
    %6532 = vmatpush.bf16.msra.mxu0 %v6489
    %6533 = vmatpush.bf16.msra.mxu0 %v6487
    %6534 = vmatpush.bf16.msra.mxu0 %v6485
    %6535 = vmatmul.bf16.gmra.mxu0 %v6425
    %v6536 = vpop.f32.mrf.mxu0
    %v6537 = vadd.f32 %v6396, %v6536
    %v6538 = vpop.f32.mrf.mxu0
    %v6539 = vadd.f32 %v6401, %v6538
    %6540 = vmatmul.bf16.gmra.mxu0 %v6427
    %v6541 = vpop.f32.mrf.mxu0
    %v6542 = vadd.f32 %v6406, %v6541
    %v6543 = vpop.f32.mrf.mxu0
    %v6544 = vadd.f32 %v6411, %v6543
    %6545 = vdwg.mxu0
    %6546 = vmatpush.bf16.msra.mxu0 0
    %6547 = vmatpush.bf16.msra.mxu0 0
    %6548 = vmatpush.bf16.msra.mxu0 0
    %6549 = vmatpush.bf16.msra.mxu0 0
    %6550 = vmatpush.bf16.msra.mxu0 0
    %6551 = vmatpush.bf16.msra.mxu0 0
    %6552 = vmatpush.bf16.msra.mxu0 0
    %6553 = vmatpush.bf16.msra.mxu0 %v6501
    %6554 = vmatmul.bf16.gmra.mxu0 %v6522
    %v6555 = vpop.f32.mrf.mxu0
    %v6556 = vadd.f32 %v6537, %v6555
    %v6557 = vpop.f32.mrf.mxu0
    %v6558 = vadd.f32 %v6539, %v6557
    %6559 = vmatmul.bf16.gmra.mxu0 %v6525
    %v6560 = vpop.f32.mrf.mxu0
    %v6561 = vadd.f32 %v6542, %v6560
    %v6562 = vpop.f32.mrf.mxu0
    %v6563 = vadd.f32 %v6544, %v6562
    %6564 = vdwg.mxu0
    %6565 = vmatpush.bf16.msra.mxu0 %v6500
    %6566 = vmatpush.bf16.msra.mxu0 %v6498
    %6567 = vmatpush.bf16.msra.mxu0 %v6496
    %6568 = vmatpush.bf16.msra.mxu0 %v6494
    %6569 = vmatpush.bf16.msra.mxu0 %v6492
    %6570 = vmatpush.bf16.msra.mxu0 %v6490
    %6571 = vmatpush.bf16.msra.mxu0 %v6488
    %6572 = vmatpush.bf16.msra.mxu0 %v6486
    %6573 = vmatmul.bf16.gmra.mxu0 %v6425
    %v6574 = vpop.f32.mrf.mxu0
    %v6575 = vadd.f32 %v6396, %v6574
    %v6576 = vpop.f32.mrf.mxu0
    %v6577 = vadd.f32 %v6401, %v6576
    %6578 = vmatmul.bf16.gmra.mxu0 %v6427
    %v6579 = vpop.f32.mrf.mxu0
    %v6580 = vadd.f32 %v6406, %v6579
    %v6581 = vpop.f32.mrf.mxu0
    %v6582 = vadd.f32 %v6411, %v6581
    %6583 = vdwg.mxu0
    %6584 = vmatpush.bf16.msra.mxu0 0
    %6585 = vmatpush.bf16.msra.mxu0 0
    %6586 = vmatpush.bf16.msra.mxu0 0
    %6587 = vmatpush.bf16.msra.mxu0 0
    %6588 = vmatpush.bf16.msra.mxu0 0
    %6589 = vmatpush.bf16.msra.mxu0 0
    %6590 = vmatpush.bf16.msra.mxu0 0
    %6591 = vmatpush.bf16.msra.mxu0 %v6502
    %6592 = vmatmul.bf16.gmra.mxu0 %v6522
    %v6593 = vpop.f32.mrf.mxu0
    %v6594 = vadd.f32 %v6575, %v6593
    %v6595 = vpop.f32.mrf.mxu0
    %v6596 = vadd.f32 %v6577, %v6595
    %6597 = vmatmul.bf16.gmra.mxu0 %v6525
    %v6598 = vpop.f32.mrf.mxu0
    %v6599 = vadd.f32 %v6580, %v6598
    %v6600 = vpop.f32.mrf.mxu0
    %v6601 = vadd.f32 %v6582, %v6600
    %6602 = vdwg.mxu0
    %v6603 = vmul.f32 %v6556, 0.1
    %v6604 = vmul.f32 %v6594, 0.1
    %v6605 = vmul.f32 %v6558, 0.1
    %v6606 = vmul.f32 %v6596, 0.1
    %v6607 = vmul.f32 %v6561, 0.1
    %v6608 = vmul.f32 %v6599, 0.1
    %v6609 = vmul.f32 %v6563, 0.1
    %v6610 = vmul.f32 %v6601, 0.1
    %v6615 = vunpack.c.l.b16 %v5882
    %v6616 = vunpack.c.l.b16 %v5883
    %v6617 = vunpack.c.l.b16 %v5884
    %v6618 = vunpack.c.l.b16 %v5885
    %v6619 = vpack.c.b16 %v6616, %v6615
    %v6620 = vpack.c.b16 %v6618, %v6617
    %v6623 = vunpack.c.l.b16 %v5886
    %v6624 = vunpack.c.h.b16 %v5886
    %v6625 = vunpack.c.l.b16 %v5887
    %v6626 = vunpack.c.h.b16 %v5887
    %v6627 = vpack.c.b16 %v6625, %v6623
    %v6628 = vpack.c.b16 %v6626, %v6624
    %v6632 = vsel %vm890, %v6619, 0
    %v6635 = vsel %vm890, %v6620, 0
    %6637 = vmatpush.bf16.msra.mxu0 0
    %6638 = vmatpush.bf16.msra.mxu0 0
    %6639 = vmatpush.bf16.msra.mxu0 0
    %6640 = vmatpush.bf16.msra.mxu0 0
    %6641 = vmatpush.bf16.msra.mxu0 0
    %6642 = vmatpush.bf16.msra.mxu0 0
    %6643 = vmatpush.bf16.msra.mxu0 0
    %6644 = vmatpush.bf16.msra.mxu0 %v6627
    %6645 = vmatmul.bf16.gmra.mxu0 %v6632
    %v6646 = vpop.f32.mrf.mxu0
    %v6647 = vadd.f32 %v6603, %v6646
    %v6648 = vpop.f32.mrf.mxu0
    %v6649 = vadd.f32 %v6605, %v6648
    %6650 = vmatmul.bf16.gmra.mxu0 %v6635
    %v6651 = vpop.f32.mrf.mxu0
    %v6652 = vadd.f32 %v6607, %v6651
    %v6653 = vpop.f32.mrf.mxu0
    %v6654 = vadd.f32 %v6609, %v6653
    %6655 = vdwg.mxu0
    %6656 = vmatpush.bf16.msra.mxu0 0
    %6657 = vmatpush.bf16.msra.mxu0 0
    %6658 = vmatpush.bf16.msra.mxu0 0
    %6659 = vmatpush.bf16.msra.mxu0 0
    %6660 = vmatpush.bf16.msra.mxu0 0
    %6661 = vmatpush.bf16.msra.mxu0 0
    %6662 = vmatpush.bf16.msra.mxu0 0
    %6663 = vmatpush.bf16.msra.mxu0 %v6628
    %6664 = vmatmul.bf16.gmra.mxu0 %v6632
    %v6665 = vpop.f32.mrf.mxu0
    %v6666 = vadd.f32 %v6604, %v6665
    %v6667 = vpop.f32.mrf.mxu0
    %v6668 = vadd.f32 %v6606, %v6667
    %6669 = vmatmul.bf16.gmra.mxu0 %v6635
    %v6670 = vpop.f32.mrf.mxu0
    %v6671 = vadd.f32 %v6608, %v6670
    %v6672 = vpop.f32.mrf.mxu0
    %v6673 = vadd.f32 %v6610, %v6672
    %6674 = vdwg.mxu0
    %vm6675 = vcmp.ge.f32.partialorder %v6647, 0.0
    %vm6676 = vcmp.ge.f32.partialorder %v6666, 0.0
    %vm6677 = vcmp.ge.f32.partialorder %v6649, 0.0
    %vm6678 = vcmp.ge.f32.partialorder %v6668, 0.0
    %vm6679 = vcmp.ge.f32.partialorder %v6652, 0.0
    %vm6680 = vcmp.ge.f32.partialorder %v6671, 0.0
    %vm6681 = vcmp.ge.f32.partialorder %v6654, 0.0
    %vm6682 = vcmp.ge.f32.partialorder %v6673, 0.0
    %v6683 = vmul.f32 %v6647, 0.2
    %v6684 = vmul.f32 %v6666, 0.2
    %v6685 = vmul.f32 %v6649, 0.2
    %v6686 = vmul.f32 %v6668, 0.2
    %v6687 = vmul.f32 %v6652, 0.2
    %v6688 = vmul.f32 %v6671, 0.2
    %v6689 = vmul.f32 %v6654, 0.2
    %v6690 = vmul.f32 %v6673, 0.2
    %v6691 = vsel %vm6675, %v6647, %v6683
    %v6692 = vsel %vm6676, %v6666, %v6684
    %v6693 = vsel %vm6677, %v6649, %v6685
    %v6694 = vsel %vm6678, %v6668, %v6686
    %v6695 = vsel %vm6679, %v6652, %v6687
    %v6696 = vsel %vm6680, %v6671, %v6688
    %v6697 = vsel %vm6681, %v6654, %v6689
    %v6698 = vsel %vm6682, %v6673, %v6690
    %v6699 = vmul.f32 %v6691, %v6227
    %v6700 = vmul.f32 %v6692, %v6228
    %v6701 = vmul.f32 %v6693, %v6227
    %v6702 = vmul.f32 %v6694, %v6228
    %v6703 = vmul.f32 %v6695, %v6227
    %v6704 = vmul.f32 %v6696, %v6228
    %v6705 = vmul.f32 %v6697, %v6227
    %v6706 = vmul.f32 %v6698, %v6228
    %v6707 = vpack.c.bf16 %v6701, %v6699
    %v6708 = vpack.c.bf16 %v6702, %v6700
    %v6709 = vpack.c.bf16 %v6705, %v6703
    %v6710 = vpack.c.bf16 %v6706, %v6704
    %v6711 = vld [vmem:[%s57] sm:$0xf]
    %v6712 = vld [vmem:[%s57 + $0x4] sm:$0xf]
    %v6713 = vld [vmem:[%s57 + $0x8] sm:$0xf]
    %v6714 = vld [vmem:[%s57 + $0xc] sm:$0xf]
    %v6715 = vld [vmem:[%s57 + $0x10] sm:$0xf]
    %v6716 = vld [vmem:[%s57 + $0x14] sm:$0xf]
    %v6717 = vld [vmem:[%s57 + $0x18] sm:$0xf]
    %v6718 = vld [vmem:[%s57 + $0x1c] sm:$0xf]
    %v6719 = vld [vmem:[%s57 + $0x20] sm:$0xf]
    %v6720 = vld [vmem:[%s57 + $0x24] sm:$0xf]
    %v6721 = vld [vmem:[%s57 + $0x28] sm:$0xf]
    %v6722 = vld [vmem:[%s57 + $0x2c] sm:$0xf]
    %v6723 = vld [vmem:[%s57 + $0x30] sm:$0xf]
    %v6724 = vld [vmem:[%s57 + $0x34] sm:$0xf]
    %v6725 = vld [vmem:[%s57 + $0x38] sm:$0xf]
    %v6726 = vld [vmem:[%s57 + $0x3c] sm:$0xf]
    %v6727 = vld [vmem:[%s57 + $0x40] sm:$0xf]
    %v6728 = vld [vmem:[%s57 + $0x44] sm:$0xf]
    %v6729 = vld [vmem:[%s57 + $0x48] sm:$0xf]
    %v6730 = vld [vmem:[%s57 + $0x4c] sm:$0xf]
    %v6731 = vld [vmem:[%s57 + $0x50] sm:$0xf]
    %v6732 = vld [vmem:[%s57 + $0x54] sm:$0xf]
    %v6733 = vld [vmem:[%s57 + $0x58] sm:$0xf]
    %v6734 = vld [vmem:[%s57 + $0x5c] sm:$0xf]
    %v6735 = vld [vmem:[%s57 + $0x60] sm:$0xf]
    %v6736 = vld [vmem:[%s57 + $0x64] sm:$0xf]
    %v6737 = vld [vmem:[%s57 + $0x68] sm:$0xf]
    %v6738 = vld [vmem:[%s57 + $0x6c] sm:$0xf]
    %v6739 = vld [vmem:[%s57 + $0x70] sm:$0xf]
    %v6740 = vld [vmem:[%s57 + $0x74] sm:$0xf]
    %v6741 = vld [vmem:[%s57 + $0x78] sm:$0xf]
    %v6742 = vld [vmem:[%s57 + $0x7c] sm:$0xf]
    %v6775 = vunpack.c.l.b16 %v6711
    %v6776 = vunpack.c.l.b16 %v6712
    %v6777 = vunpack.c.l.b16 %v6713
    %v6778 = vunpack.c.l.b16 %v6714
    %v6779 = vunpack.c.l.b16 %v6715
    %v6780 = vunpack.c.l.b16 %v6716
    %v6781 = vunpack.c.l.b16 %v6717
    %v6782 = vunpack.c.l.b16 %v6718
    %v6783 = vunpack.c.l.b16 %v6719
    %v6784 = vunpack.c.l.b16 %v6720
    %v6785 = vunpack.c.l.b16 %v6721
    %v6786 = vunpack.c.l.b16 %v6722
    %v6787 = vunpack.c.l.b16 %v6723
    %v6788 = vunpack.c.l.b16 %v6724
    %v6789 = vunpack.c.l.b16 %v6725
    %v6790 = vunpack.c.l.b16 %v6726
    %v6791 = vunpack.c.l.b16 %v6727
    %v6792 = vunpack.c.l.b16 %v6728
    %v6793 = vunpack.c.l.b16 %v6729
    %v6794 = vunpack.c.l.b16 %v6730
    %v6795 = vunpack.c.l.b16 %v6731
    %v6796 = vunpack.c.l.b16 %v6732
    %v6797 = vunpack.c.l.b16 %v6733
    %v6798 = vunpack.c.l.b16 %v6734
    %v6799 = vunpack.c.l.b16 %v6735
    %v6800 = vunpack.c.l.b16 %v6736
    %v6801 = vunpack.c.l.b16 %v6737
    %v6802 = vunpack.c.l.b16 %v6738
    %v6803 = vunpack.c.l.b16 %v6739
    %v6804 = vunpack.c.l.b16 %v6740
    %v6805 = vunpack.c.l.b16 %v6741
    %v6806 = vunpack.c.l.b16 %v6742
    %v6807 = vpack.c.b16 %v6776, %v6775
    %v6808 = vpack.c.b16 %v6778, %v6777
    %v6809 = vpack.c.b16 %v6780, %v6779
    %v6810 = vpack.c.b16 %v6782, %v6781
    %v6811 = vpack.c.b16 %v6784, %v6783
    %v6812 = vpack.c.b16 %v6786, %v6785
    %v6813 = vpack.c.b16 %v6788, %v6787
    %v6814 = vpack.c.b16 %v6790, %v6789
    %v6815 = vpack.c.b16 %v6792, %v6791
    %v6816 = vpack.c.b16 %v6794, %v6793
    %v6817 = vpack.c.b16 %v6796, %v6795
    %v6818 = vpack.c.b16 %v6798, %v6797
    %v6819 = vpack.c.b16 %v6800, %v6799
    %v6820 = vpack.c.b16 %v6802, %v6801
    %v6821 = vpack.c.b16 %v6804, %v6803
    %v6822 = vpack.c.b16 %v6806, %v6805
    %6839 = vmatpush.bf16.msra.mxu0 %v6814
    %6840 = vmatpush.bf16.msra.mxu0 %v6813
    %6841 = vmatpush.bf16.msra.mxu0 %v6812
    %6842 = vmatpush.bf16.msra.mxu0 %v6811
    %6843 = vmatpush.bf16.msra.mxu0 %v6810
    %6844 = vmatpush.bf16.msra.mxu0 %v6809
    %6845 = vmatpush.bf16.msra.mxu0 %v6808
    %6846 = vmatpush.bf16.msra.mxu0 %v6807
    %6847 = vmatmul.bf16.gmra.mxu0 %v6707
    %v6848 = vpop.f32.mrf.mxu0
    %v6849 = vadd.f32 0.0, %v6848
    %v6850 = vpop.f32.mrf.mxu0
    %v6851 = vadd.f32 0.0, %v6850
    %6852 = vmatmul.bf16.gmra.mxu0 %v6709
    %v6853 = vpop.f32.mrf.mxu0
    %v6854 = vadd.f32 0.0, %v6853
    %v6855 = vpop.f32.mrf.mxu0
    %v6856 = vadd.f32 0.0, %v6855
    %6857 = vdwg.mxu0
    %6858 = vmatpush.bf16.msra.mxu0 %v6822
    %6859 = vmatpush.bf16.msra.mxu0 %v6821
    %6860 = vmatpush.bf16.msra.mxu0 %v6820
    %6861 = vmatpush.bf16.msra.mxu0 %v6819
    %6862 = vmatpush.bf16.msra.mxu0 %v6818
    %6863 = vmatpush.bf16.msra.mxu0 %v6817
    %6864 = vmatpush.bf16.msra.mxu0 %v6816
    %6865 = vmatpush.bf16.msra.mxu0 %v6815
    %6866 = vmatmul.bf16.gmra.mxu0 %v6708
    %v6867 = vpop.f32.mrf.mxu0
    %v6868 = vadd.f32 %v6849, %v6867
    %v6869 = vpop.f32.mrf.mxu0
    %v6870 = vadd.f32 %v6851, %v6869
    %6871 = vmatmul.bf16.gmra.mxu0 %v6710
    %v6872 = vpop.f32.mrf.mxu0
    %v6873 = vadd.f32 %v6854, %v6872
    %v6874 = vpop.f32.mrf.mxu0
    %v6875 = vadd.f32 %v6856, %v6874
    %6876 = vdwg.mxu0
    %v6877 = vld [vmem:[%s53] sm:$0x1]
    %v6878 = vld [vmem:[%s35] sm:$0xff]
    %v6879 = vld [vmem:[%s35 + $0x8] sm:$0xf]
    %v6880 = vld [vmem:[%s35 + $0xc] sm:$0xff]
    %v6881 = vld [vmem:[%s35 + $0x14] sm:$0xf]
    %v6882 = vld [vmem:[%s35 + $0x18] sm:$0xff]
    %v6883 = vld [vmem:[%s35 + $0x20] sm:$0xf]
    %v6884 = vld [vmem:[%s35 + $0x24] sm:$0xff]
    %v6885 = vld [vmem:[%s35 + $0x2c] sm:$0xf]
    %v6886 = vld [vmem:[%s31] sm:$0xff]
    %v6887 = vld [vmem:[%s31 + $0x8] sm:$0xff]
    %v6888 = vld [vmem:[%s31 + $0x10] sm:$0xff]
    %v6889 = vld [vmem:[%s31 + $0x18] sm:$0xff]
    %6890 = vrot.lane.b32.xlu0 %v6868, 7
    %v6891 = vpop.permute.xlu0 %6890
    %6892 = vrot.lane.b32.xlu0 %v6870, 7
    %v6893 = vpop.permute.xlu0 %6892
    %6894 = vrot.lane.b32.xlu0 %v6873, 7
    %v6895 = vpop.permute.xlu0 %6894
    %6896 = vrot.lane.b32.xlu0 %v6875, 7
    %v6897 = vpop.permute.xlu0 %6896
    %v6898 = vpack.c.bf16 %v6891, %v6891
    %v6899 = vpack.c.bf16 %v6893, %v6893
    %v6900 = vpack.c.bf16 %v6895, %v6895
    %v6901 = vpack.c.bf16 %v6897, %v6897
    %6902 = vst [vmem:[#allocation2] sm:$0xf] %v6898
    %6903 = vst [vmem:[#allocation2 + $0x18] sm:$0xf] %v6899
    %6904 = vst [vmem:[#allocation2 + $0x30] sm:$0xf] %v6900
    %6905 = vst [vmem:[#allocation2 + $0x48] sm:$0xf] %v6901
    %6906 = vrot.lane.b32.xlu0 %v6868, 6
    %v6907 = vpop.permute.xlu0 %6906
    %6908 = vrot.lane.b32.xlu0 %v6870, 6
    %v6909 = vpop.permute.xlu0 %6908
    %6910 = vrot.lane.b32.xlu0 %v6873, 6
    %v6911 = vpop.permute.xlu0 %6910
    %6912 = vrot.lane.b32.xlu0 %v6875, 6
    %v6913 = vpop.permute.xlu0 %6912
    %v6914 = vpack.c.bf16 %v6907, %v6907
    %v6915 = vpack.c.bf16 %v6909, %v6909
    %v6916 = vpack.c.bf16 %v6911, %v6911
    %v6917 = vpack.c.bf16 %v6913, %v6913
    %6918 = vst [vmem:[#allocation2 + $0x60] sm:$0xf] %v6914
    %6919 = vst [vmem:[#allocation2 + $0x78] sm:$0xf] %v6915
    %6920 = vst [vmem:[#allocation2 + $0x90] sm:$0xf] %v6916
    %6921 = vst [vmem:[#allocation2 + $0xa8] sm:$0xf] %v6917
    %6922 = vrot.lane.b32.xlu0 %v6868, 5
    %v6923 = vpop.permute.xlu0 %6922
    %6924 = vrot.lane.b32.xlu0 %v6870, 5
    %v6925 = vpop.permute.xlu0 %6924
    %6926 = vrot.lane.b32.xlu0 %v6873, 5
    %v6927 = vpop.permute.xlu0 %6926
    %6928 = vrot.lane.b32.xlu0 %v6875, 5
    %v6929 = vpop.permute.xlu0 %6928
    %v6930 = vpack.c.bf16 %v6923, %v6923
    %v6931 = vpack.c.bf16 %v6925, %v6925
    %v6932 = vpack.c.bf16 %v6927, %v6927
    %v6933 = vpack.c.bf16 %v6929, %v6929
    %6934 = vst [vmem:[#allocation2 + $0xc0] sm:$0xf] %v6930
    %6935 = vst [vmem:[#allocation2 + $0xd8] sm:$0xf] %v6931
    %6936 = vst [vmem:[#allocation2 + $0xf0] sm:$0xf] %v6932
    %6937 = vst [vmem:[#allocation2 + $0x108] sm:$0xf] %v6933
    %6938 = vrot.lane.b32.xlu0 %v6868, 1
    %v6939 = vpop.permute.xlu0 %6938
    %6940 = vrot.lane.b32.xlu0 %v6870, 1
    %v6941 = vpop.permute.xlu0 %6940
    %6942 = vrot.lane.b32.xlu0 %v6873, 1
    %v6943 = vpop.permute.xlu0 %6942
    %6944 = vrot.lane.b32.xlu0 %v6875, 1
    %v6945 = vpop.permute.xlu0 %6944
    %v6946 = vpack.c.bf16 %v6939, %v6939
    %v6947 = vpack.c.bf16 %v6941, %v6941
    %v6948 = vpack.c.bf16 %v6943, %v6943
    %v6949 = vpack.c.bf16 %v6945, %v6945
    %6950 = vst [vmem:[#allocation2 + $0x120] sm:$0xf] %v6946
    %6951 = vst [vmem:[#allocation2 + $0x138] sm:$0xf] %v6947
    %6952 = vst [vmem:[#allocation2 + $0x150] sm:$0xf] %v6948
    %6953 = vst [vmem:[#allocation2 + $0x168] sm:$0xf] %v6949
    %v6954 = vpack.c.bf16 %v6868, %v6868
    %v6955 = vpack.c.bf16 %v6870, %v6870
    %v6956 = vpack.c.bf16 %v6873, %v6873
    %v6957 = vpack.c.bf16 %v6875, %v6875
    %6958 = vst [vmem:[#allocation2 + $0x180] sm:$0xf] %v6954
    %6959 = vst [vmem:[#allocation2 + $0x198] sm:$0xf] %v6955
    %6960 = vst [vmem:[#allocation2 + $0x1b0] sm:$0xf] %v6956
    %6961 = vst [vmem:[#allocation2 + $0x1c8] sm:$0xf] %v6957
    %6962 = vrot.lane.b32.xlu0 %v6868, 127
    %v6963 = vpop.permute.xlu0 %6962
    %6964 = vrot.lane.b32.xlu0 %v6870, 127
    %v6965 = vpop.permute.xlu0 %6964
    %6966 = vrot.lane.b32.xlu0 %v6873, 127
    %v6967 = vpop.permute.xlu0 %6966
    %6968 = vrot.lane.b32.xlu0 %v6875, 127
    %v6969 = vpop.permute.xlu0 %6968
    %v6970 = vpack.c.bf16 %v6963, %v6963
    %v6971 = vpack.c.bf16 %v6965, %v6965
    %v6972 = vpack.c.bf16 %v6967, %v6967
    %v6973 = vpack.c.bf16 %v6969, %v6969
    %6974 = vst [vmem:[#allocation2 + $0x1e0] sm:$0xf] %v6970
    %6975 = vst [vmem:[#allocation2 + $0x1f8] sm:$0xf] %v6971
    %6976 = vst [vmem:[#allocation2 + $0x210] sm:$0xf] %v6972
    %6977 = vst [vmem:[#allocation2 + $0x228] sm:$0xf] %v6973
    %6978 = vrot.lane.b32.xlu0 %v6868, 123
    %v6979 = vpop.permute.xlu0 %6978
    %6980 = vrot.lane.b32.xlu0 %v6870, 123
    %v6981 = vpop.permute.xlu0 %6980
    %6982 = vrot.lane.b32.xlu0 %v6873, 123
    %v6983 = vpop.permute.xlu0 %6982
    %6984 = vrot.lane.b32.xlu0 %v6875, 123
    %v6985 = vpop.permute.xlu0 %6984
    %v6986 = vpack.c.bf16 %v6979, %v6979
    %v6987 = vpack.c.bf16 %v6981, %v6981
    %v6988 = vpack.c.bf16 %v6983, %v6983
    %v6989 = vpack.c.bf16 %v6985, %v6985
    %6990 = vst [vmem:[#allocation2 + $0x240] sm:$0xf] %v6986
    %6991 = vst [vmem:[#allocation2 + $0x258] sm:$0xf] %v6987
    %6992 = vst [vmem:[#allocation2 + $0x270] sm:$0xf] %v6988
    %6993 = vst [vmem:[#allocation2 + $0x288] sm:$0xf] %v6989
    %6994 = vrot.lane.b32.xlu0 %v6868, 122
    %v6995 = vpop.permute.xlu0 %6994
    %6996 = vrot.lane.b32.xlu0 %v6870, 122
    %v6997 = vpop.permute.xlu0 %6996
    %6998 = vrot.lane.b32.xlu0 %v6873, 122
    %v6999 = vpop.permute.xlu0 %6998
    %7000 = vrot.lane.b32.xlu0 %v6875, 122
    %v7001 = vpop.permute.xlu0 %7000
    %v7002 = vpack.c.bf16 %v6995, %v6995
    %v7003 = vpack.c.bf16 %v6997, %v6997
    %v7004 = vpack.c.bf16 %v6999, %v6999
    %v7005 = vpack.c.bf16 %v7001, %v7001
    %7006 = vst [vmem:[#allocation2 + $0x2a0] sm:$0xf] %v7002
    %7007 = vst [vmem:[#allocation2 + $0x2b8] sm:$0xf] %v7003
    %7008 = vst [vmem:[#allocation2 + $0x2d0] sm:$0xf] %v7004
    %7009 = vst [vmem:[#allocation2 + $0x2e8] sm:$0xf] %v7005
    %7010 = vrot.lane.b32.xlu0 %v6868, 121
    %v7011 = vpop.permute.xlu0 %7010
    %7012 = vrot.lane.b32.xlu0 %v6870, 121
    %v7013 = vpop.permute.xlu0 %7012
    %7014 = vrot.lane.b32.xlu0 %v6873, 121
    %v7015 = vpop.permute.xlu0 %7014
    %7016 = vrot.lane.b32.xlu0 %v6875, 121
    %v7017 = vpop.permute.xlu0 %7016
    %v7018 = vpack.c.bf16 %v7011, %v7011
    %v7019 = vpack.c.bf16 %v7013, %v7013
    %v7020 = vpack.c.bf16 %v7015, %v7015
    %v7021 = vpack.c.bf16 %v7017, %v7017
    %7022 = vst [vmem:[#allocation2 + $0x300] sm:$0xf] %v7018
    %7023 = vst [vmem:[#allocation2 + $0x318] sm:$0xf] %v7019
    %7024 = vst [vmem:[#allocation2 + $0x330] sm:$0xf] %v7020
    %7025 = vst [vmem:[#allocation2 + $0x348] sm:$0xf] %v7021
    %v7026 = vld [vmem:[#allocation2] sm:$0xf]
    %v7027 = vld [vmem:[#allocation2 + $0x18] sm:$0xf]
    %v7028 = vld [vmem:[#allocation2 + $0x30] sm:$0xf]
    %v7029 = vld [vmem:[#allocation2 + $0x48] sm:$0xf]
    %v7030 = vld [vmem:[#allocation2 + $0x60] sm:$0xf]
    %v7031 = vld [vmem:[#allocation2 + $0x78] sm:$0xf]
    %v7032 = vld [vmem:[#allocation2 + $0x90] sm:$0xf]
    %v7033 = vld [vmem:[#allocation2 + $0xa8] sm:$0xf]
    %v7034 = vld [vmem:[#allocation2 + $0xc0] sm:$0xf]
    %v7035 = vld [vmem:[#allocation2 + $0xd8] sm:$0xf]
    %v7036 = vld [vmem:[#allocation2 + $0xf0] sm:$0xf]
    %v7037 = vld [vmem:[#allocation2 + $0x108] sm:$0xf]
    %v7038 = vld [vmem:[#allocation2 + $0x120] sm:$0xf]
    %v7039 = vld [vmem:[#allocation2 + $0x138] sm:$0xf]
    %v7040 = vld [vmem:[#allocation2 + $0x150] sm:$0xf]
    %v7041 = vld [vmem:[#allocation2 + $0x168] sm:$0xf]
    %v7042 = vld [vmem:[#allocation2 + $0x180] sm:$0xf]
    %v7043 = vld [vmem:[#allocation2 + $0x198] sm:$0xf]
    %v7044 = vld [vmem:[#allocation2 + $0x1b0] sm:$0xf]
    %v7045 = vld [vmem:[#allocation2 + $0x1c8] sm:$0xf]
    %v7046 = vld [vmem:[#allocation2 + $0x1e0] sm:$0xf]
    %v7047 = vld [vmem:[#allocation2 + $0x1f8] sm:$0xf]
    %v7048 = vld [vmem:[#allocation2 + $0x210] sm:$0xf]
    %v7049 = vld [vmem:[#allocation2 + $0x228] sm:$0xf]
    %v7050 = vld [vmem:[#allocation2 + $0x240] sm:$0xf]
    %v7051 = vld [vmem:[#allocation2 + $0x258] sm:$0xf]
    %v7052 = vld [vmem:[#allocation2 + $0x270] sm:$0xf]
    %v7053 = vld [vmem:[#allocation2 + $0x288] sm:$0xf]
    %v7054 = vld [vmem:[#allocation2 + $0x2a0] sm:$0xf]
    %v7055 = vld [vmem:[#allocation2 + $0x2b8] sm:$0xf]
    %v7056 = vld [vmem:[#allocation2 + $0x2d0] sm:$0xf]
    %v7057 = vld [vmem:[#allocation2 + $0x2e8] sm:$0xf]
    %v7058 = vld [vmem:[#allocation2 + $0x300] sm:$0xf]
    %v7059 = vld [vmem:[#allocation2 + $0x318] sm:$0xf]
    %v7060 = vld [vmem:[#allocation2 + $0x330] sm:$0xf]
    %v7061 = vld [vmem:[#allocation2 + $0x348] sm:$0xf]
    %7063 = vset.pattern.permute.xlu0 0
    %7064 = vperm.xlu0 %7063, %v6886
    %v7065 = vpop.permute.xlu0 %7064
    %7068 = vset.pattern.permute.xlu0 0
    %7069 = vperm.xlu0 %7068, %v6887
    %v7070 = vpop.permute.xlu0 %7069
    %7073 = vset.pattern.permute.xlu0 0
    %7074 = vperm.xlu0 %7073, %v6888
    %v7075 = vpop.permute.xlu0 %7074
    %7078 = vset.pattern.permute.xlu0 0
    %7079 = vperm.xlu0 %7078, %v6889
    %v7080 = vpop.permute.xlu0 %7079
    %v7090 = vunpack.c.l.b16 %v6878
    %v7091 = vunpack.c.h.b16 %v6878
    %v7092 = vunpack.c.l.b16 %v6879
    %v7093 = vunpack.c.l.b16 %v6880
    %v7094 = vunpack.c.h.b16 %v6880
    %v7095 = vunpack.c.l.b16 %v6881
    %v7096 = vunpack.c.l.b16 %v6882
    %v7097 = vunpack.c.h.b16 %v6882
    %v7098 = vunpack.c.l.b16 %v6883
    %v7099 = vunpack.c.l.b16 %v6884
    %v7100 = vunpack.c.h.b16 %v6884
    %v7101 = vunpack.c.l.b16 %v6885
    %v7102 = vpack.c.b16 %v7093, %v7090
    %v7103 = vpack.c.b16 %v7094, %v7091
    %v7104 = vpack.c.b16 %v7095, %v7092
    %v7105 = vpack.c.b16 %v7099, %v7096
    %v7106 = vpack.c.b16 %v7100, %v7097
    %v7107 = vpack.c.b16 %v7101, %v7098
    %v7148 = vunpack.c.l.b16 %v7026
    %v7149 = vunpack.c.l.b16 %v7027
    %v7150 = vunpack.c.l.b16 %v7028
    %v7151 = vunpack.c.l.b16 %v7029
    %v7152 = vunpack.c.l.b16 %v7030
    %v7153 = vunpack.c.l.b16 %v7031
    %v7154 = vunpack.c.l.b16 %v7032
    %v7155 = vunpack.c.l.b16 %v7033
    %v7156 = vunpack.c.l.b16 %v7034
    %v7157 = vunpack.c.l.b16 %v7035
    %v7158 = vunpack.c.l.b16 %v7036
    %v7159 = vunpack.c.l.b16 %v7037
    %v7160 = vunpack.c.l.b16 %v7038
    %v7161 = vunpack.c.l.b16 %v7039
    %v7162 = vunpack.c.l.b16 %v7040
    %v7163 = vunpack.c.l.b16 %v7041
    %v7164 = vunpack.c.l.b16 %v7042
    %v7165 = vunpack.c.l.b16 %v7043
    %v7166 = vunpack.c.l.b16 %v7044
    %v7167 = vunpack.c.l.b16 %v7045
    %v7168 = vunpack.c.l.b16 %v7046
    %v7169 = vunpack.c.l.b16 %v7047
    %v7170 = vunpack.c.l.b16 %v7048
    %v7171 = vunpack.c.l.b16 %v7049
    %v7172 = vunpack.c.l.b16 %v7050
    %v7173 = vunpack.c.l.b16 %v7051
    %v7174 = vunpack.c.l.b16 %v7052
    %v7175 = vunpack.c.l.b16 %v7053
    %v7176 = vunpack.c.l.b16 %v7054
    %v7177 = vunpack.c.l.b16 %v7055
    %v7178 = vunpack.c.l.b16 %v7056
    %v7179 = vunpack.c.l.b16 %v7057
    %v7180 = vunpack.c.l.b16 %v7058
    %v7181 = vunpack.c.l.b16 %v7059
    %v7182 = vunpack.c.l.b16 %v7060
    %v7183 = vunpack.c.l.b16 %v7061
    %v7184 = vpack.c.b16 %v7149, %v7148
    %v7185 = vpack.c.b16 %v7151, %v7150
    %v7186 = vpack.c.b16 %v7153, %v7152
    %v7187 = vpack.c.b16 %v7155, %v7154
    %v7188 = vpack.c.b16 %v7157, %v7156
    %v7189 = vpack.c.b16 %v7159, %v7158
    %v7190 = vpack.c.b16 %v7161, %v7160
    %v7191 = vpack.c.b16 %v7163, %v7162
    %v7192 = vpack.c.b16 %v7165, %v7164
    %v7193 = vpack.c.b16 %v7167, %v7166
    %v7194 = vpack.c.b16 %v7169, %v7168
    %v7195 = vpack.c.b16 %v7171, %v7170
    %v7196 = vpack.c.b16 %v7173, %v7172
    %v7197 = vpack.c.b16 %v7175, %v7174
    %v7198 = vpack.c.b16 %v7177, %v7176
    %v7199 = vpack.c.b16 %v7179, %v7178
    %v7200 = vpack.c.b16 %v7181, %v7180
    %v7201 = vpack.c.b16 %v7183, %v7182
    %vm7220 = vcmask 261120
    %v7222 = vsel %vm7220, %v7104, 0
    %v7225 = vsel %vm7220, %v7107, 0
    %7227 = vmatpush.bf16.msra.mxu0 %v7191
    %7228 = vmatpush.bf16.msra.mxu0 %v7190
    %7229 = vmatpush.bf16.msra.mxu0 %v7189
    %7230 = vmatpush.bf16.msra.mxu0 %v7188
    %7231 = vmatpush.bf16.msra.mxu0 %v7187
    %7232 = vmatpush.bf16.msra.mxu0 %v7186
    %7233 = vmatpush.bf16.msra.mxu0 %v7185
    %7234 = vmatpush.bf16.msra.mxu0 %v7184
    %7235 = vmatmul.bf16.gmra.mxu0 %v7102
    %v7236 = vpop.f32.mrf.mxu0
    %v7237 = vadd.f32 %v7065, %v7236
    %v7238 = vpop.f32.mrf.mxu0
    %v7239 = vadd.f32 %v7070, %v7238
    %7240 = vmatmul.bf16.gmra.mxu0 %v7105
    %v7241 = vpop.f32.mrf.mxu0
    %v7242 = vadd.f32 %v7075, %v7241
    %v7243 = vpop.f32.mrf.mxu0
    %v7244 = vadd.f32 %v7080, %v7243
    %7245 = vdwg.mxu0
    %7246 = vmatpush.bf16.msra.mxu0 %v7199
    %7247 = vmatpush.bf16.msra.mxu0 %v7198
    %7248 = vmatpush.bf16.msra.mxu0 %v7197
    %7249 = vmatpush.bf16.msra.mxu0 %v7196
    %7250 = vmatpush.bf16.msra.mxu0 %v7195
    %7251 = vmatpush.bf16.msra.mxu0 %v7194
    %7252 = vmatpush.bf16.msra.mxu0 %v7193
    %7253 = vmatpush.bf16.msra.mxu0 %v7192
    %7254 = vmatmul.bf16.gmra.mxu0 %v7103
    %v7255 = vpop.f32.mrf.mxu0
    %v7256 = vadd.f32 %v7237, %v7255
    %v7257 = vpop.f32.mrf.mxu0
    %v7258 = vadd.f32 %v7239, %v7257
    %7259 = vmatmul.bf16.gmra.mxu0 %v7106
    %v7260 = vpop.f32.mrf.mxu0
    %v7261 = vadd.f32 %v7242, %v7260
    %v7262 = vpop.f32.mrf.mxu0
    %v7263 = vadd.f32 %v7244, %v7262
    %7264 = vdwg.mxu0
    %7265 = vmatpush.bf16.msra.mxu0 0
    %7266 = vmatpush.bf16.msra.mxu0 0
    %7267 = vmatpush.bf16.msra.mxu0 0
    %7268 = vmatpush.bf16.msra.mxu0 0
    %7269 = vmatpush.bf16.msra.mxu0 0
    %7270 = vmatpush.bf16.msra.mxu0 0
    %7271 = vmatpush.bf16.msra.mxu0 %v7201
    %7272 = vmatpush.bf16.msra.mxu0 %v7200
    %7273 = vmatmul.bf16.gmra.mxu0 %v7222
    %v7274 = vpop.f32.mrf.mxu0
    %v7275 = vadd.f32 %v7256, %v7274
    %v7276 = vpop.f32.mrf.mxu0
    %v7277 = vadd.f32 %v7258, %v7276
    %7278 = vmatmul.bf16.gmra.mxu0 %v7225
    %v7279 = vpop.f32.mrf.mxu0
    %v7280 = vadd.f32 %v7261, %v7279
    %v7281 = vpop.f32.mrf.mxu0
    %v7282 = vadd.f32 %v7263, %v7281
    %7283 = vdwg.mxu0
    %vm7284 = vcmp.ge.f32.partialorder %v7275, 0.0
    %vm7285 = vcmp.ge.f32.partialorder %v7277, 0.0
    %vm7286 = vcmp.ge.f32.partialorder %v7280, 0.0
    %vm7287 = vcmp.ge.f32.partialorder %v7282, 0.0
    %v7288 = vmul.f32 %v7275, 0.2
    %v7289 = vmul.f32 %v7277, 0.2
    %v7290 = vmul.f32 %v7280, 0.2
    %v7291 = vmul.f32 %v7282, 0.2
    %v7292 = vsel %vm7284, %v7275, %v7288
    %v7293 = vsel %vm7285, %v7277, %v7289
    %v7294 = vsel %vm7286, %v7280, %v7290
    %v7295 = vsel %vm7287, %v7282, %v7291
    %v7297 = vperm.slane %v6877, 0
    %v7299 = vmul.f32 %v7292, %v7297
    %v7300 = vmul.f32 %v7293, %v7297
    %v7301 = vmul.f32 %v7294, %v7297
    %v7302 = vmul.f32 %v7295, %v7297
    %v7303 = vld [vmem:[%s37] sm:$0xff]
    %v7304 = vld [vmem:[%s37 + $0x8] sm:$0xf]
    %v7305 = vld [vmem:[%s37 + $0xc] sm:$0xff]
    %v7306 = vld [vmem:[%s37 + $0x14] sm:$0xf]
    %v7307 = vld [vmem:[%s37 + $0x18] sm:$0xff]
    %v7308 = vld [vmem:[%s37 + $0x20] sm:$0xf]
    %v7309 = vld [vmem:[%s37 + $0x24] sm:$0xff]
    %v7310 = vld [vmem:[%s37 + $0x2c] sm:$0xf]
    %v7311 = vld [vmem:[%s33] sm:$0xff]
    %v7312 = vld [vmem:[%s33 + $0x8] sm:$0xff]
    %v7313 = vld [vmem:[%s33 + $0x10] sm:$0xff]
    %v7314 = vld [vmem:[%s33 + $0x18] sm:$0xff]
    %7315 = vrot.lane.b32.xlu0 %v7299, 7
    %v7316 = vpop.permute.xlu0 %7315
    %7317 = vrot.lane.b32.xlu0 %v7300, 7
    %v7318 = vpop.permute.xlu0 %7317
    %7319 = vrot.lane.b32.xlu0 %v7301, 7
    %v7320 = vpop.permute.xlu0 %7319
    %7321 = vrot.lane.b32.xlu0 %v7302, 7
    %v7322 = vpop.permute.xlu0 %7321
    %v7323 = vpack.c.bf16 %v7316, %v7316
    %v7324 = vpack.c.bf16 %v7318, %v7318
    %v7325 = vpack.c.bf16 %v7320, %v7320
    %v7326 = vpack.c.bf16 %v7322, %v7322
    %7327 = vst [vmem:[#allocation2] sm:$0xf] %v7323
    %7328 = vst [vmem:[#allocation2 + $0x18] sm:$0xf] %v7324
    %7329 = vst [vmem:[#allocation2 + $0x30] sm:$0xf] %v7325
    %7330 = vst [vmem:[#allocation2 + $0x48] sm:$0xf] %v7326
    %7331 = vrot.lane.b32.xlu0 %v7299, 6
    %v7332 = vpop.permute.xlu0 %7331
    %7333 = vrot.lane.b32.xlu0 %v7300, 6
    %v7334 = vpop.permute.xlu0 %7333
    %7335 = vrot.lane.b32.xlu0 %v7301, 6
    %v7336 = vpop.permute.xlu0 %7335
    %7337 = vrot.lane.b32.xlu0 %v7302, 6
    %v7338 = vpop.permute.xlu0 %7337
    %v7339 = vpack.c.bf16 %v7332, %v7332
    %v7340 = vpack.c.bf16 %v7334, %v7334
    %v7341 = vpack.c.bf16 %v7336, %v7336
    %v7342 = vpack.c.bf16 %v7338, %v7338
    %7343 = vst [vmem:[#allocation2 + $0x60] sm:$0xf] %v7339
    %7344 = vst [vmem:[#allocation2 + $0x78] sm:$0xf] %v7340
    %7345 = vst [vmem:[#allocation2 + $0x90] sm:$0xf] %v7341
    %7346 = vst [vmem:[#allocation2 + $0xa8] sm:$0xf] %v7342
    %7347 = vrot.lane.b32.xlu0 %v7299, 5
    %v7348 = vpop.permute.xlu0 %7347
    %7349 = vrot.lane.b32.xlu0 %v7300, 5
    %v7350 = vpop.permute.xlu0 %7349
    %7351 = vrot.lane.b32.xlu0 %v7301, 5
    %v7352 = vpop.permute.xlu0 %7351
    %7353 = vrot.lane.b32.xlu0 %v7302, 5
    %v7354 = vpop.permute.xlu0 %7353
    %v7355 = vpack.c.bf16 %v7348, %v7348
    %v7356 = vpack.c.bf16 %v7350, %v7350
    %v7357 = vpack.c.bf16 %v7352, %v7352
    %v7358 = vpack.c.bf16 %v7354, %v7354
    %7359 = vst [vmem:[#allocation2 + $0xc0] sm:$0xf] %v7355
    %7360 = vst [vmem:[#allocation2 + $0xd8] sm:$0xf] %v7356
    %7361 = vst [vmem:[#allocation2 + $0xf0] sm:$0xf] %v7357
    %7362 = vst [vmem:[#allocation2 + $0x108] sm:$0xf] %v7358
    %7363 = vrot.lane.b32.xlu0 %v7299, 1
    %v7364 = vpop.permute.xlu0 %7363
    %7365 = vrot.lane.b32.xlu0 %v7300, 1
    %v7366 = vpop.permute.xlu0 %7365
    %7367 = vrot.lane.b32.xlu0 %v7301, 1
    %v7368 = vpop.permute.xlu0 %7367
    %7369 = vrot.lane.b32.xlu0 %v7302, 1
    %v7370 = vpop.permute.xlu0 %7369
    %v7371 = vpack.c.bf16 %v7364, %v7364
    %v7372 = vpack.c.bf16 %v7366, %v7366
    %v7373 = vpack.c.bf16 %v7368, %v7368
    %v7374 = vpack.c.bf16 %v7370, %v7370
    %7375 = vst [vmem:[#allocation2 + $0x120] sm:$0xf] %v7371
    %7376 = vst [vmem:[#allocation2 + $0x138] sm:$0xf] %v7372
    %7377 = vst [vmem:[#allocation2 + $0x150] sm:$0xf] %v7373
    %7378 = vst [vmem:[#allocation2 + $0x168] sm:$0xf] %v7374
    %v7379 = vpack.c.bf16 %v7299, %v7299
    %v7380 = vpack.c.bf16 %v7300, %v7300
    %v7381 = vpack.c.bf16 %v7301, %v7301
    %v7382 = vpack.c.bf16 %v7302, %v7302
    %7383 = vst [vmem:[#allocation2 + $0x180] sm:$0xf] %v7379
    %7384 = vst [vmem:[#allocation2 + $0x198] sm:$0xf] %v7380
    %7385 = vst [vmem:[#allocation2 + $0x1b0] sm:$0xf] %v7381
    %7386 = vst [vmem:[#allocation2 + $0x1c8] sm:$0xf] %v7382
    %7387 = vrot.lane.b32.xlu0 %v7299, 127
    %v7388 = vpop.permute.xlu0 %7387
    %7389 = vrot.lane.b32.xlu0 %v7300, 127
    %v7390 = vpop.permute.xlu0 %7389
    %7391 = vrot.lane.b32.xlu0 %v7301, 127
    %v7392 = vpop.permute.xlu0 %7391
    %7393 = vrot.lane.b32.xlu0 %v7302, 127
    %v7394 = vpop.permute.xlu0 %7393
    %v7395 = vpack.c.bf16 %v7388, %v7388
    %v7396 = vpack.c.bf16 %v7390, %v7390
    %v7397 = vpack.c.bf16 %v7392, %v7392
    %v7398 = vpack.c.bf16 %v7394, %v7394
    %7399 = vst [vmem:[#allocation2 + $0x1e0] sm:$0xf] %v7395
    %7400 = vst [vmem:[#allocation2 + $0x1f8] sm:$0xf] %v7396
    %7401 = vst [vmem:[#allocation2 + $0x210] sm:$0xf] %v7397
    %7402 = vst [vmem:[#allocation2 + $0x228] sm:$0xf] %v7398
    %7403 = vrot.lane.b32.xlu0 %v7299, 123
    %v7404 = vpop.permute.xlu0 %7403
    %7405 = vrot.lane.b32.xlu0 %v7300, 123
    %v7406 = vpop.permute.xlu0 %7405
    %7407 = vrot.lane.b32.xlu0 %v7301, 123
    %v7408 = vpop.permute.xlu0 %7407
    %7409 = vrot.lane.b32.xlu0 %v7302, 123
    %v7410 = vpop.permute.xlu0 %7409
    %v7411 = vpack.c.bf16 %v7404, %v7404
    %v7412 = vpack.c.bf16 %v7406, %v7406
    %v7413 = vpack.c.bf16 %v7408, %v7408
    %v7414 = vpack.c.bf16 %v7410, %v7410
    %7415 = vst [vmem:[#allocation2 + $0x240] sm:$0xf] %v7411
    %7416 = vst [vmem:[#allocation2 + $0x258] sm:$0xf] %v7412
    %7417 = vst [vmem:[#allocation2 + $0x270] sm:$0xf] %v7413
    %7418 = vst [vmem:[#allocation2 + $0x288] sm:$0xf] %v7414
    %7419 = vrot.lane.b32.xlu0 %v7299, 122
    %v7420 = vpop.permute.xlu0 %7419
    %7421 = vrot.lane.b32.xlu0 %v7300, 122
    %v7422 = vpop.permute.xlu0 %7421
    %7423 = vrot.lane.b32.xlu0 %v7301, 122
    %v7424 = vpop.permute.xlu0 %7423
    %7425 = vrot.lane.b32.xlu0 %v7302, 122
    %v7426 = vpop.permute.xlu0 %7425
    %v7427 = vpack.c.bf16 %v7420, %v7420
    %v7428 = vpack.c.bf16 %v7422, %v7422
    %v7429 = vpack.c.bf16 %v7424, %v7424
    %v7430 = vpack.c.bf16 %v7426, %v7426
    %7431 = vst [vmem:[#allocation2 + $0x2a0] sm:$0xf] %v7427
    %7432 = vst [vmem:[#allocation2 + $0x2b8] sm:$0xf] %v7428
    %7433 = vst [vmem:[#allocation2 + $0x2d0] sm:$0xf] %v7429
    %7434 = vst [vmem:[#allocation2 + $0x2e8] sm:$0xf] %v7430
    %7435 = vrot.lane.b32.xlu0 %v7299, 121
    %v7436 = vpop.permute.xlu0 %7435
    %7437 = vrot.lane.b32.xlu0 %v7300, 121
    %v7438 = vpop.permute.xlu0 %7437
    %7439 = vrot.lane.b32.xlu0 %v7301, 121
    %v7440 = vpop.permute.xlu0 %7439
    %7441 = vrot.lane.b32.xlu0 %v7302, 121
    %v7442 = vpop.permute.xlu0 %7441
    %v7443 = vpack.c.bf16 %v7436, %v7436
    %v7444 = vpack.c.bf16 %v7438, %v7438
    %v7445 = vpack.c.bf16 %v7440, %v7440
    %v7446 = vpack.c.bf16 %v7442, %v7442
    %7447 = vst [vmem:[#allocation2 + $0x300] sm:$0xf] %v7443
    %7448 = vst [vmem:[#allocation2 + $0x318] sm:$0xf] %v7444
    %7449 = vst [vmem:[#allocation2 + $0x330] sm:$0xf] %v7445
    %7450 = vst [vmem:[#allocation2 + $0x348] sm:$0xf] %v7446
    %v7451 = vld [vmem:[#allocation2] sm:$0xf]
    %v7452 = vld [vmem:[#allocation2 + $0x18] sm:$0xf]
    %v7453 = vld [vmem:[#allocation2 + $0x30] sm:$0xf]
    %v7454 = vld [vmem:[#allocation2 + $0x48] sm:$0xf]
    %v7455 = vld [vmem:[#allocation2 + $0x60] sm:$0xf]
    %v7456 = vld [vmem:[#allocation2 + $0x78] sm:$0xf]
    %v7457 = vld [vmem:[#allocation2 + $0x90] sm:$0xf]
    %v7458 = vld [vmem:[#allocation2 + $0xa8] sm:$0xf]
    %v7459 = vld [vmem:[#allocation2 + $0xc0] sm:$0xf]
    %v7460 = vld [vmem:[#allocation2 + $0xd8] sm:$0xf]
    %v7461 = vld [vmem:[#allocation2 + $0xf0] sm:$0xf]
    %v7462 = vld [vmem:[#allocation2 + $0x108] sm:$0xf]
    %v7463 = vld [vmem:[#allocation2 + $0x120] sm:$0xf]
    %v7464 = vld [vmem:[#allocation2 + $0x138] sm:$0xf]
    %v7465 = vld [vmem:[#allocation2 + $0x150] sm:$0xf]
    %v7466 = vld [vmem:[#allocation2 + $0x168] sm:$0xf]
    %v7467 = vld [vmem:[#allocation2 + $0x180] sm:$0xf]
    %v7468 = vld [vmem:[#allocation2 + $0x198] sm:$0xf]
    %v7469 = vld [vmem:[#allocation2 + $0x1b0] sm:$0xf]
    %v7470 = vld [vmem:[#allocation2 + $0x1c8] sm:$0xf]
    %v7471 = vld [vmem:[#allocation2 + $0x1e0] sm:$0xf]
    %v7472 = vld [vmem:[#allocation2 + $0x1f8] sm:$0xf]
    %v7473 = vld [vmem:[#allocation2 + $0x210] sm:$0xf]
    %v7474 = vld [vmem:[#allocation2 + $0x228] sm:$0xf]
    %v7475 = vld [vmem:[#allocation2 + $0x240] sm:$0xf]
    %v7476 = vld [vmem:[#allocation2 + $0x258] sm:$0xf]
    %v7477 = vld [vmem:[#allocation2 + $0x270] sm:$0xf]
    %v7478 = vld [vmem:[#allocation2 + $0x288] sm:$0xf]
    %v7479 = vld [vmem:[#allocation2 + $0x2a0] sm:$0xf]
    %v7480 = vld [vmem:[#allocation2 + $0x2b8] sm:$0xf]
    %v7481 = vld [vmem:[#allocation2 + $0x2d0] sm:$0xf]
    %v7482 = vld [vmem:[#allocation2 + $0x2e8] sm:$0xf]
    %v7483 = vld [vmem:[#allocation2 + $0x300] sm:$0xf]
    %v7484 = vld [vmem:[#allocation2 + $0x318] sm:$0xf]
    %v7485 = vld [vmem:[#allocation2 + $0x330] sm:$0xf]
    %v7486 = vld [vmem:[#allocation2 + $0x348] sm:$0xf]
    %7488 = vset.pattern.permute.xlu0 0
    %7489 = vperm.xlu0 %7488, %v7311
    %v7490 = vpop.permute.xlu0 %7489
    %7493 = vset.pattern.permute.xlu0 0
    %7494 = vperm.xlu0 %7493, %v7312
    %v7495 = vpop.permute.xlu0 %7494
    %7498 = vset.pattern.permute.xlu0 0
    %7499 = vperm.xlu0 %7498, %v7313
    %v7500 = vpop.permute.xlu0 %7499
    %7503 = vset.pattern.permute.xlu0 0
    %7504 = vperm.xlu0 %7503, %v7314
    %v7505 = vpop.permute.xlu0 %7504
    %v7515 = vunpack.c.l.b16 %v7303
    %v7516 = vunpack.c.h.b16 %v7303
    %v7517 = vunpack.c.l.b16 %v7304
    %v7518 = vunpack.c.l.b16 %v7305
    %v7519 = vunpack.c.h.b16 %v7305
    %v7520 = vunpack.c.l.b16 %v7306
    %v7521 = vunpack.c.l.b16 %v7307
    %v7522 = vunpack.c.h.b16 %v7307
    %v7523 = vunpack.c.l.b16 %v7308
    %v7524 = vunpack.c.l.b16 %v7309
    %v7525 = vunpack.c.h.b16 %v7309
    %v7526 = vunpack.c.l.b16 %v7310
    %v7527 = vpack.c.b16 %v7518, %v7515
    %v7528 = vpack.c.b16 %v7519, %v7516
    %v7529 = vpack.c.b16 %v7520, %v7517
    %v7530 = vpack.c.b16 %v7524, %v7521
    %v7531 = vpack.c.b16 %v7525, %v7522
    %v7532 = vpack.c.b16 %v7526, %v7523
    %v7573 = vunpack.c.l.b16 %v7451
    %v7574 = vunpack.c.l.b16 %v7452
    %v7575 = vunpack.c.l.b16 %v7453
    %v7576 = vunpack.c.l.b16 %v7454
    %v7577 = vunpack.c.l.b16 %v7455
    %v7578 = vunpack.c.l.b16 %v7456
    %v7579 = vunpack.c.l.b16 %v7457
    %v7580 = vunpack.c.l.b16 %v7458
    %v7581 = vunpack.c.l.b16 %v7459
    %v7582 = vunpack.c.l.b16 %v7460
    %v7583 = vunpack.c.l.b16 %v7461
    %v7584 = vunpack.c.l.b16 %v7462
    %v7585 = vunpack.c.l.b16 %v7463
    %v7586 = vunpack.c.l.b16 %v7464
    %v7587 = vunpack.c.l.b16 %v7465
    %v7588 = vunpack.c.l.b16 %v7466
    %v7589 = vunpack.c.l.b16 %v7467
    %v7590 = vunpack.c.l.b16 %v7468
    %v7591 = vunpack.c.l.b16 %v7469
    %v7592 = vunpack.c.l.b16 %v7470
    %v7593 = vunpack.c.l.b16 %v7471
    %v7594 = vunpack.c.l.b16 %v7472
    %v7595 = vunpack.c.l.b16 %v7473
    %v7596 = vunpack.c.l.b16 %v7474
    %v7597 = vunpack.c.l.b16 %v7475
    %v7598 = vunpack.c.l.b16 %v7476
    %v7599 = vunpack.c.l.b16 %v7477
    %v7600 = vunpack.c.l.b16 %v7478
    %v7601 = vunpack.c.l.b16 %v7479
    %v7602 = vunpack.c.l.b16 %v7480
    %v7603 = vunpack.c.l.b16 %v7481
    %v7604 = vunpack.c.l.b16 %v7482
    %v7605 = vunpack.c.l.b16 %v7483
    %v7606 = vunpack.c.l.b16 %v7484
    %v7607 = vunpack.c.l.b16 %v7485
    %v7608 = vunpack.c.l.b16 %v7486
    %v7609 = vpack.c.b16 %v7574, %v7573
    %v7610 = vpack.c.b16 %v7576, %v7575
    %v7611 = vpack.c.b16 %v7578, %v7577
    %v7612 = vpack.c.b16 %v7580, %v7579
    %v7613 = vpack.c.b16 %v7582, %v7581
    %v7614 = vpack.c.b16 %v7584, %v7583
    %v7615 = vpack.c.b16 %v7586, %v7585
    %v7616 = vpack.c.b16 %v7588, %v7587
    %v7617 = vpack.c.b16 %v7590, %v7589
    %v7618 = vpack.c.b16 %v7592, %v7591
    %v7619 = vpack.c.b16 %v7594, %v7593
    %v7620 = vpack.c.b16 %v7596, %v7595
    %v7621 = vpack.c.b16 %v7598, %v7597
    %v7622 = vpack.c.b16 %v7600, %v7599
    %v7623 = vpack.c.b16 %v7602, %v7601
    %v7624 = vpack.c.b16 %v7604, %v7603
    %v7625 = vpack.c.b16 %v7606, %v7605
    %v7626 = vpack.c.b16 %v7608, %v7607
    %v7646 = vsel %vm7220, %v7529, 0
    %v7649 = vsel %vm7220, %v7532, 0
    %7651 = vmatpush.bf16.msra.mxu0 %v7616
    %7652 = vmatpush.bf16.msra.mxu0 %v7615
    %7653 = vmatpush.bf16.msra.mxu0 %v7614
    %7654 = vmatpush.bf16.msra.mxu0 %v7613
    %7655 = vmatpush.bf16.msra.mxu0 %v7612
    %7656 = vmatpush.bf16.msra.mxu0 %v7611
    %7657 = vmatpush.bf16.msra.mxu0 %v7610
    %7658 = vmatpush.bf16.msra.mxu0 %v7609
    %7659 = vmatmul.bf16.gmra.mxu0 %v7527
    %v7660 = vpop.f32.mrf.mxu0
    %v7661 = vadd.f32 %v7490, %v7660
    %v7662 = vpop.f32.mrf.mxu0
    %v7663 = vadd.f32 %v7495, %v7662
    %7664 = vmatmul.bf16.gmra.mxu0 %v7530
    %v7665 = vpop.f32.mrf.mxu0
    %v7666 = vadd.f32 %v7500, %v7665
    %v7667 = vpop.f32.mrf.mxu0
    %v7668 = vadd.f32 %v7505, %v7667
    %7669 = vdwg.mxu0
    %7670 = vmatpush.bf16.msra.mxu0 %v7624
    %7671 = vmatpush.bf16.msra.mxu0 %v7623
    %7672 = vmatpush.bf16.msra.mxu0 %v7622
    %7673 = vmatpush.bf16.msra.mxu0 %v7621
    %7674 = vmatpush.bf16.msra.mxu0 %v7620
    %7675 = vmatpush.bf16.msra.mxu0 %v7619
    %7676 = vmatpush.bf16.msra.mxu0 %v7618
    %7677 = vmatpush.bf16.msra.mxu0 %v7617
    %7678 = vmatmul.bf16.gmra.mxu0 %v7528
    %v7679 = vpop.f32.mrf.mxu0
    %v7680 = vadd.f32 %v7661, %v7679
    %v7681 = vpop.f32.mrf.mxu0
    %v7682 = vadd.f32 %v7663, %v7681
    %7683 = vmatmul.bf16.gmra.mxu0 %v7531
    %v7684 = vpop.f32.mrf.mxu0
    %v7685 = vadd.f32 %v7666, %v7684
    %v7686 = vpop.f32.mrf.mxu0
    %v7687 = vadd.f32 %v7668, %v7686
    %7688 = vdwg.mxu0
    %7689 = vmatpush.bf16.msra.mxu0 0
    %7690 = vmatpush.bf16.msra.mxu0 0
    %7691 = vmatpush.bf16.msra.mxu0 0
    %7692 = vmatpush.bf16.msra.mxu0 0
    %7693 = vmatpush.bf16.msra.mxu0 0
    %7694 = vmatpush.bf16.msra.mxu0 0
    %7695 = vmatpush.bf16.msra.mxu0 %v7626
    %7696 = vmatpush.bf16.msra.mxu0 %v7625
    %7697 = vmatmul.bf16.gmra.mxu0 %v7646
    %v7698 = vpop.f32.mrf.mxu0
    %v7699 = vadd.f32 %v7680, %v7698
    %v7700 = vpop.f32.mrf.mxu0
    %v7701 = vadd.f32 %v7682, %v7700
    %7702 = vmatmul.bf16.gmra.mxu0 %v7649
    %v7703 = vpop.f32.mrf.mxu0
    %v7704 = vadd.f32 %v7685, %v7703
    %v7705 = vpop.f32.mrf.mxu0
    %v7706 = vadd.f32 %v7687, %v7705
    %7707 = vdwg.mxu0
    %v7708 = vmul.f32 %v7699, 0.1
    %v7709 = vmul.f32 %v7701, 0.1
    %v7710 = vmul.f32 %v7704, 0.1
    %v7711 = vmul.f32 %v7706, 0.1
    %v7712 = vadd.f32 %v6868, %v7708
    %v7713 = vadd.f32 %v6870, %v7709
    %v7714 = vadd.f32 %v6873, %v7710
    %v7715 = vadd.f32 %v6875, %v7711
    %vm7716 = vcmp.ge.f32.partialorder %v7712, 0.0
    %vm7717 = vcmp.ge.f32.partialorder %v7713, 0.0
    %vm7718 = vcmp.ge.f32.partialorder %v7714, 0.0
    %vm7719 = vcmp.ge.f32.partialorder %v7715, 0.0
    %v7720 = vmul.f32 %v7712, 0.2
    %v7721 = vmul.f32 %v7713, 0.2
    %v7722 = vmul.f32 %v7714, 0.2
    %v7723 = vmul.f32 %v7715, 0.2
    %v7724 = vsel %vm7716, %v7712, %v7720
    %v7725 = vsel %vm7717, %v7713, %v7721
    %v7726 = vsel %vm7718, %v7714, %v7722
    %v7727 = vsel %vm7719, %v7715, %v7723
    %v7728 = vmul.f32 %v7724, %v7297
    %v7729 = vmul.f32 %v7725, %v7297
    %v7730 = vmul.f32 %v7726, %v7297
    %v7731 = vmul.f32 %v7727, %v7297
    %v7732 = vld [vmem:[%s47] sm:$0xff]
    %v7733 = vld [vmem:[%s47 + $0x8] sm:$0xff]
    %v7734 = vld [vmem:[%s47 + $0x10] sm:$0xff]
    %v7735 = vld [vmem:[%s47 + $0x18] sm:$0xff]
    %v7736 = vmul.f32 %v7728, %v7732
    %v7737 = vmul.f32 %v7729, %v7733
    %v7738 = vmul.f32 %v7730, %v7734
    %v7739 = vmul.f32 %v7731, %v7735
    %v7740 = vpack.c.bf16 %v7737, %v7736
    %v7741 = vpack.c.bf16 %v7739, %v7738
    %v7742 = vld [vmem:[%s45] sm:$0xf]
    %v7743 = vld [vmem:[%s45 + $0x4] sm:$0xf]
    %v7744 = vld [vmem:[%s45 + $0x8] sm:$0xf]
    %v7745 = vld [vmem:[%s45 + $0xc] sm:$0xf]
    %v7746 = vld [vmem:[%s45 + $0x10] sm:$0xf]
    %v7747 = vld [vmem:[%s45 + $0x14] sm:$0xf]
    %v7748 = vld [vmem:[%s45 + $0x18] sm:$0xf]
    %v7749 = vld [vmem:[%s45 + $0x1c] sm:$0xf]
    %v7750 = vld [vmem:[%s45 + $0x20] sm:$0xf]
    %v7751 = vld [vmem:[%s45 + $0x24] sm:$0xf]
    %v7752 = vld [vmem:[%s45 + $0x28] sm:$0xf]
    %v7753 = vld [vmem:[%s45 + $0x2c] sm:$0xf]
    %v7754 = vld [vmem:[%s45 + $0x30] sm:$0xf]
    %v7755 = vld [vmem:[%s45 + $0x34] sm:$0xf]
    %v7756 = vld [vmem:[%s45 + $0x38] sm:$0xf]
    %v7757 = vld [vmem:[%s45 + $0x3c] sm:$0xf]
    %v7774 = vunpack.c.l.b16 %v7742
    %v7775 = vunpack.c.l.b16 %v7743
    %v7776 = vunpack.c.l.b16 %v7744
    %v7777 = vunpack.c.l.b16 %v7745
    %v7778 = vunpack.c.l.b16 %v7746
    %v7779 = vunpack.c.l.b16 %v7747
    %v7780 = vunpack.c.l.b16 %v7748
    %v7781 = vunpack.c.l.b16 %v7749
    %v7782 = vunpack.c.l.b16 %v7750
    %v7783 = vunpack.c.l.b16 %v7751
    %v7784 = vunpack.c.l.b16 %v7752
    %v7785 = vunpack.c.l.b16 %v7753
    %v7786 = vunpack.c.l.b16 %v7754
    %v7787 = vunpack.c.l.b16 %v7755
    %v7788 = vunpack.c.l.b16 %v7756
    %v7789 = vunpack.c.l.b16 %v7757
    %v7790 = vpack.c.b16 %v7775, %v7774
    %v7791 = vpack.c.b16 %v7777, %v7776
    %v7792 = vpack.c.b16 %v7779, %v7778
    %v7793 = vpack.c.b16 %v7781, %v7780
    %v7794 = vpack.c.b16 %v7783, %v7782
    %v7795 = vpack.c.b16 %v7785, %v7784
    %v7796 = vpack.c.b16 %v7787, %v7786
    %v7797 = vpack.c.b16 %v7789, %v7788
    %7806 = vmatpush.bf16.msra.mxu0 %v7797
    %7807 = vmatpush.bf16.msra.mxu0 %v7796
    %7808 = vmatpush.bf16.msra.mxu0 %v7795
    %7809 = vmatpush.bf16.msra.mxu0 %v7794
    %7810 = vmatpush.bf16.msra.mxu0 %v7793
    %7811 = vmatpush.bf16.msra.mxu0 %v7792
    %7812 = vmatpush.bf16.msra.mxu0 %v7791
    %7813 = vmatpush.bf16.msra.mxu0 %v7790
    %7814 = vmatmul.bf16.gmra.mxu0 %v7740
    %v7815 = vpop.f32.mrf.mxu0
    %v7816 = vadd.f32 0.0, %v7815
    %v7817 = vpop.f32.mrf.mxu0
    %v7818 = vadd.f32 0.0, %v7817
    %7819 = vmatmul.bf16.gmra.mxu0 %v7741
    %v7820 = vpop.f32.mrf.mxu0
    %v7821 = vadd.f32 0.0, %v7820
    %v7822 = vpop.f32.mrf.mxu0
    %v7823 = vadd.f32 0.0, %v7822
    %7824 = vdwg.mxu0
    %vm7825 = vcmask 15360
    %v7826 = vsel %vm7825, %v7816, 0.0
    %v7827 = vsel %vm7825, %v7818, 0.0
    %v7828 = vadd.f32 %v7826, %v7827
    %v7829 = vsel %vm7825, %v7821, 0.0
    %v7830 = vadd.f32 %v7828, %v7829
    %v7831 = vsel %vm7825, %v7823, 0.0
    %v7832 = vadd.f32 %v7830, %v7831
    %v7833 = vrot.slane %v7832, 4
    %v7834 = vadd.f32 %v7832, %v7833
    %v7835 = vrot.slane %v7834, 2
    %v7836 = vadd.f32 %v7834, %v7835
    %v7837 = vrot.slane %v7836, 1
    %v7838 = vadd.f32 %v7836, %v7837
    %v7839 = vld [vmem:[%s43] sm:$0x1]
    %v7840 = vadd.f32 %v7838, %v7839
    %v7841 = vand.u32 2147483647, %v7840
    %v7842 = vsub.f32 0.0, %v7841
    %v7843 = vmul.f32 %v7842, 1.442695
    %v7844 = vpow.pop %v7843
    %vm7845 = vcmp.ge.f32.partialorder %v7840, 0.0
    %v7846 = vadd.f32 %v7844, 1.0
    %v7847 = vrcp.pop %v7846
    %v7848 = vmul.f32 %v7846, %v7847
    %v7849 = vsub.f32 1.0, %v7848
    %v7850 = vmul.f32 %v7847, %v7849
    %v7851 = vadd.f32 %v7847, %v7850
    %vm7852 = vweird.f32 %v7846
    %vm7853 = vweird.f32 %v7847
    %vm7854 = vmor %vm7852, %vm7853
    %v7855 = vsel %vm7854, %v7847, %v7851
    %v7856 = vand.u32 2147483647, %v7846
    %vm7857 = vcmp.eq.f32.partialorder %v7856, 8.507059e+37
    %v7858 = vand.u32 %v7846, 2147483648
    %v7859 = vor.u32 1.1754944e-38, %v7858
    %v7860 = vsel %vm7857, %v7859, %v7855
    %v7861 = vmul.f32 1.0, %v7860
    %v7862 = vmul.f32 %v7844, %v7860
    %v7863 = vsel %vm7845, %v7861, %v7862
    %vm7864 = vcmask 8192
    %7865 = vst.msk [vmem:[#allocation3] sm:$0x1] %vm7864, %v7863
    // Predicated region
    $region118: #{discriminator_forward.1} parent=1 // pred_check
      _
    $region119: #{discriminator_forward.1} parent=1 // pred_check_branch
      %7867 = sbr.rel (0) target = $region121
    $region120: #{discriminator_forward.1} parent=1 // pred_region
      %7869 = vsyncadd [#allocation4], 0
      %s7871 = sshll.u32 [#allocation3], 4
      %s7872 = int_to_ptr.vmem [resolvable:$true] %s7871
      %s7873 = sshll.u32 %s59, 4
      %s7874 = int_to_ptr.hbm [resolvable:$true] %s7873
      %7876 = dma.vmem_to_hbm [thread:$0]  %s7872, 16, %s7874, [#allocation4]
    $region121: #{discriminator_forward.1} parent=1 // pred_fallthru
      _
    // Predicated region
    $region122: #{discriminator_forward.1} parent=1 // pred_check
      _
    $region123: #{discriminator_forward.1} parent=1 // pred_check_branch
      %7878 = sbr.rel (0) target = $region125
    $region124: #{discriminator_forward.1} parent=1 // pred_region
      %7880 = dma.done [#allocation4], 16
    $region125: #{discriminator_forward.1} parent=1 // pred_fallthru
      _
    %7881 = vsyncpa [#allocation4], 1

</llo_original>
